<compile_context>
chip_gen: v7x
topology: tpu7x:2x2x1
jax: 0.10.0
libtpu: 0.0.40
codegen_flags: <defaults>
</compile_context>

<pallas_src>
import functools

import jax
import jax.numpy as jnp
from jax.experimental import pallas as pl
from jax.experimental.pallas import tpu as pltpu

_EPS = 1e-5
_WOFF = 8      # sublane-tile-aligned offset of the valid data inside the padded W axis
_WPAD = 16     # extra W columns in the padded scratch (8 left + 8 right)


def _conv3x3_bn(pad_ref, w_ref, gamma_ref, beta_ref, H, W):
    """3x3 conv (stride 1) + training-mode BatchNorm on a padded activation.

    pad_ref:   (N, H+2, W+_WPAD, C) zero-halo activation; valid data lives at
               [:, 1:H+1, _WOFF:_WOFF+W, :].
    w_ref:     (9*C, Cout) im2col weights, row index = (kh*3 + kw)*C + c.
    gamma_ref, beta_ref: (1, Cout).
    Returns    (N*H*W, Cout) float32.
    """
    N = pad_ref.shape[0]
    C = pad_ref.shape[-1]

    # im2col: gather the 9 taps once, then a single MXU matmul with K = 9*C.
    cols = []
    for kh in range(3):
        for kw in range(3):
            w0 = _WOFF - 1 + kw
            tap = pad_ref[:, kh:kh + H, w0:w0 + W, :]          # (N, H, W, C)
            cols.append(tap.reshape(N * H * W, C))
    patches = jnp.concatenate(cols, axis=-1)                   # (N*H*W, 9*C)
    acc = jnp.dot(patches, w_ref[...], preferred_element_type=jnp.float32)

    # BatchNorm2d training-mode forward: per-channel batch mean / biased var,
    # computed in one pass (sum and sum-of-squares).
    cnt = acc.shape[0]
    s = jnp.sum(acc, axis=0, keepdims=True)
    ss = jnp.sum(acc * acc, axis=0, keepdims=True)
    mean = s * (1.0 / cnt)
    var = ss * (1.0 / cnt) - mean * mean
    inv = jax.lax.rsqrt(var + _EPS)
    return (acc - mean) * inv * gamma_ref[...] + beta_ref[...]


def basic_block_kernel(x_ref, w1_ref, g1_ref, b1_ref, w2_ref, g2_ref, b2_ref,
                       o_ref, xpad_ref, ypad_ref):
    N, H, W, Cin = x_ref.shape
    planes = w1_ref.shape[-1]

    # ---- pad x into a VMEM scratch (zero halo); no wrapper-side jnp.pad -----
    xpad_ref[...] = jnp.zeros_like(xpad_ref)
    xpad_ref[:, 1:H + 1, _WOFF:_WOFF + W, :] = x_ref[...]

    # ---- conv1 (single im2col matmul) + bn1 + relu --------------------------
    y1 = _conv3x3_bn(xpad_ref, w1_ref, g1_ref, b1_ref, H, W)   # (N*H*W, planes)
    y1 = jnp.maximum(y1, 0.0)

    # intermediate stays in VMEM, re-padded for conv2 (never written to HBM)
    ypad_ref[...] = jnp.zeros_like(ypad_ref)
    ypad_ref[:, 1:H + 1, _WOFF:_WOFF + W, :] = y1.reshape(N, H, W, planes)

    # ---- conv2 + bn2 + residual add + relu ----------------------------------
    y2 = _conv3x3_bn(ypad_ref, w2_ref, g2_ref, b2_ref, H, W)   # (N*H*W, planes)
    y2 = y2 + x_ref[...].reshape(N * H * W, planes)
    y2 = jnp.maximum(y2, 0.0)
    o_ref[...] = y2.reshape(N, H, W, planes)


def _prep_weight(w_oihw):
    """(Cout, Cin, 3, 3) PyTorch layout -> (9*Cin, Cout) im2col layout."""
    cout, cin = w_oihw.shape[0], w_oihw.shape[1]
    return jnp.transpose(w_oihw, (2, 3, 1, 0)).reshape(9 * cin, cout).astype(jnp.float32)


def _vmem_specs(n):
    return [pl.BlockSpec(memory_space=pltpu.MemorySpace.VMEM) for _ in range(n)]


@functools.partial(jax.jit, static_argnames=())
def basic_block_forward(x_nchw, params):
    """BasicBlock forward. x_nchw: (N, C, H, W) float32 -> (N, C, H, W)."""
    x = jnp.transpose(x_nchw, (0, 2, 3, 1)).astype(jnp.float32)   # NHWC
    N, H, W, Cin = x.shape
    assert W % 8 == 0, "W must be a multiple of 8 (CIFAR spatial sizes are)"

    w1 = _prep_weight(params["w1"])
    w2 = _prep_weight(params["w2"])
    planes = w1.shape[-1]
    assert planes == Cin, "default BasicBlock path assumes inplanes == planes"
    g1 = params["g1"].reshape(1, planes).astype(jnp.float32)
    b1 = params["b1"].reshape(1, planes).astype(jnp.float32)
    g2 = params["g2"].reshape(1, planes).astype(jnp.float32)
    b2 = params["b2"].reshape(1, planes).astype(jnp.float32)

    out_nhwc = pl.pallas_call(
        basic_block_kernel,
        out_shape=jax.ShapeDtypeStruct((N, H, W, planes), jnp.float32),
        in_specs=_vmem_specs(7),
        out_specs=pl.BlockSpec(memory_space=pltpu.MemorySpace.VMEM),
        scratch_shapes=[
            pltpu.VMEM((N, H + 2, W + _WPAD, Cin), jnp.float32),    # padded x
            pltpu.VMEM((N, H + 2, W + _WPAD, planes), jnp.float32),  # padded y1
        ],
    )(x, w1, g1, b1, w2, g2, b2)

    return jnp.transpose(out_nhwc, (0, 3, 1, 2))                    # back to NCHW


# ---------------------------------------------------------------- reference --
def _ref_forward(x_nchw, params):
    def conv(x, w):
        return jax.lax.conv_general_dilated(
            x, w, window_strides=(1, 1), padding=((1, 1), (1, 1)),
            dimension_numbers=("NCHW", "OIHW", "NCHW"))

    def bn(x, gamma, beta):
        mean = jnp.mean(x, axis=(0, 2, 3), keepdims=True)
        var = jnp.mean((x - mean) ** 2, axis=(0, 2, 3), keepdims=True)
        return ((x - mean) * jax.lax.rsqrt(var + _EPS)
                * gamma.reshape(1, -1, 1, 1) + beta.reshape(1, -1, 1, 1))

    out = jnp.maximum(bn(conv(x_nchw, params["w1"]), params["g1"], params["b1"]), 0.0)
    out = bn(conv(out, params["w2"]), params["g2"], params["b2"])
    return jnp.maximum(out + x_nchw, 0.0)


# -------------------------------------------------------------------- main ---
if __name__ == "__main__":
    N, C, H, W = 2, 4, 16, 16            # inplanes = planes = 4, stride = 1
    planes = C

    key = jax.random.PRNGKey(0)
    kx, kw1, kw2, kg1, kb1, kg2, kb2 = jax.random.split(key, 7)

    x = jax.random.normal(kx, (N, C, H, W), dtype=jnp.float32)

    fan = C * 3 * 3
    params = {
        "w1": jax.random.normal(kw1, (planes, C, 3, 3), jnp.float32) * (2.0 / fan) ** 0.5,
        "w2": jax.random.normal(kw2, (planes, planes, 3, 3), jnp.float32) * (2.0 / fan) ** 0.5,
        "g1": 1.0 + 0.1 * jax.random.normal(kg1, (planes,), jnp.float32),
        "b1": 0.1 * jax.random.normal(kb1, (planes,), jnp.float32),
        "g2": 1.0 + 0.1 * jax.random.normal(kg2, (planes,), jnp.float32),
        "b2": 0.1 * jax.random.normal(kb2, (planes,), jnp.float32),
    }

    out = jax.block_until_ready(basic_block_forward(x, params))
    ref = jax.block_until_ready(_ref_forward(x, params))

    assert out.shape == (N, C, H, W), out.shape
    assert jnp.allclose(out, ref, rtol=2e-3, atol=2e-3), float(jnp.max(jnp.abs(out - ref)))
    print("KERNEL_OK")
</pallas_src>

<mosaic_0001>
module attributes {stable_mosaic.version = 11 : i64} {
  func.func @basic_block_kernel(%arg0: memref<2x16x16x4xf32, #tpu.memory_space<vmem>>, %arg1: memref<36x4xf32, #tpu.memory_space<vmem>>, %arg2: memref<1x4xf32, #tpu.memory_space<vmem>>, %arg3: memref<1x4xf32, #tpu.memory_space<vmem>>, %arg4: memref<36x4xf32, #tpu.memory_space<vmem>>, %arg5: memref<1x4xf32, #tpu.memory_space<vmem>>, %arg6: memref<1x4xf32, #tpu.memory_space<vmem>>, %arg7: memref<2x16x16x4xf32, #tpu.memory_space<vmem>>, %arg8: memref<2x18x32x4xf32, #tpu.memory_space<vmem>>, %arg9: memref<2x18x32x4xf32, #tpu.memory_space<vmem>>) attributes {dimension_semantics = [], scalar_prefetch = 0 : i64, scratch_operands = 2 : i64, tpu.core_type = #tpu.core_type<tc>} {
    %cst = arith.constant 0.000000e+00 : f32
    %0 = vector.broadcast %cst : f32 to vector<2x18x32x4xf32>
    %c0 = arith.constant 0 : index
    %c0_0 = arith.constant 0 : index
    %c0_1 = arith.constant 0 : index
    %c0_2 = arith.constant 0 : index
    %1 = vector.load %arg8[%c0, %c0_0, %c0_1, %c0_2] : memref<2x18x32x4xf32, #tpu.memory_space<vmem>>, vector<2x18x32x4xf32>
    tpu.vector_store %arg8[%c0, %c0_0, %c0_1, %c0_2], %0 {strides = array<i32>} : memref<2x18x32x4xf32, #tpu.memory_space<vmem>>, vector<2x18x32x4xf32>,
    %c0_3 = arith.constant 0 : index
    %c0_4 = arith.constant 0 : index
    %c0_5 = arith.constant 0 : index
    %c0_6 = arith.constant 0 : index
    %2 = vector.load %arg0[%c0_3, %c0_4, %c0_5, %c0_6] : memref<2x16x16x4xf32, #tpu.memory_space<vmem>>, vector<2x16x16x4xf32>
    %c0_7 = arith.constant 0 : index
    %c1 = arith.constant 1 : index
    %c8 = arith.constant 8 : index
    %c0_8 = arith.constant 0 : index
    %3 = vector.load %arg8[%c0_7, %c1, %c8, %c0_8] : memref<2x18x32x4xf32, #tpu.memory_space<vmem>>, vector<2x16x16x4xf32>
    tpu.vector_store %arg8[%c0_7, %c1, %c8, %c0_8], %2 {strides = array<i32>} : memref<2x18x32x4xf32, #tpu.memory_space<vmem>>, vector<2x16x16x4xf32>,
    %c0_9 = arith.constant 0 : index
    %c0_10 = arith.constant 0 : index
    %c7 = arith.constant 7 : index
    %c0_11 = arith.constant 0 : index
    %4 = vector.load %arg8[%c0_9, %c0_10, %c7, %c0_11] : memref<2x18x32x4xf32, #tpu.memory_space<vmem>>, vector<2x16x16x4xf32>
    %5 = vector.shape_cast %4 : vector<2x16x16x4xf32> to vector<512x4xf32>
    %c0_12 = arith.constant 0 : index
    %c0_13 = arith.constant 0 : index
    %c8_14 = arith.constant 8 : index
    %c0_15 = arith.constant 0 : index
    %6 = vector.load %arg8[%c0_12, %c0_13, %c8_14, %c0_15] : memref<2x18x32x4xf32, #tpu.memory_space<vmem>>, vector<2x16x16x4xf32>
    %7 = vector.shape_cast %6 : vector<2x16x16x4xf32> to vector<512x4xf32>
    %c0_16 = arith.constant 0 : index
    %c0_17 = arith.constant 0 : index
    %c9 = arith.constant 9 : index
    %c0_18 = arith.constant 0 : index
    %8 = vector.load %arg8[%c0_16, %c0_17, %c9, %c0_18] : memref<2x18x32x4xf32, #tpu.memory_space<vmem>>, vector<2x16x16x4xf32>
    %9 = vector.shape_cast %8 : vector<2x16x16x4xf32> to vector<512x4xf32>
    %c0_19 = arith.constant 0 : index
    %c1_20 = arith.constant 1 : index
    %c7_21 = arith.constant 7 : index
    %c0_22 = arith.constant 0 : index
    %10 = vector.load %arg8[%c0_19, %c1_20, %c7_21, %c0_22] : memref<2x18x32x4xf32, #tpu.memory_space<vmem>>, vector<2x16x16x4xf32>
    %11 = vector.shape_cast %10 : vector<2x16x16x4xf32> to vector<512x4xf32>
    %c0_23 = arith.constant 0 : index
    %c1_24 = arith.constant 1 : index
    %c8_25 = arith.constant 8 : index
    %c0_26 = arith.constant 0 : index
    %12 = vector.load %arg8[%c0_23, %c1_24, %c8_25, %c0_26] : memref<2x18x32x4xf32, #tpu.memory_space<vmem>>, vector<2x16x16x4xf32>
    %13 = vector.shape_cast %12 : vector<2x16x16x4xf32> to vector<512x4xf32>
    %c0_27 = arith.constant 0 : index
    %c1_28 = arith.constant 1 : index
    %c9_29 = arith.constant 9 : index
    %c0_30 = arith.constant 0 : index
    %14 = vector.load %arg8[%c0_27, %c1_28, %c9_29, %c0_30] : memref<2x18x32x4xf32, #tpu.memory_space<vmem>>, vector<2x16x16x4xf32>
    %15 = vector.shape_cast %14 : vector<2x16x16x4xf32> to vector<512x4xf32>
    %c0_31 = arith.constant 0 : index
    %c2 = arith.constant 2 : index
    %c7_32 = arith.constant 7 : index
    %c0_33 = arith.constant 0 : index
    %16 = vector.load %arg8[%c0_31, %c2, %c7_32, %c0_33] : memref<2x18x32x4xf32, #tpu.memory_space<vmem>>, vector<2x16x16x4xf32>
    %17 = vector.shape_cast %16 : vector<2x16x16x4xf32> to vector<512x4xf32>
    %c0_34 = arith.constant 0 : index
    %c2_35 = arith.constant 2 : index
    %c8_36 = arith.constant 8 : index
    %c0_37 = arith.constant 0 : index
    %18 = vector.load %arg8[%c0_34, %c2_35, %c8_36, %c0_37] : memref<2x18x32x4xf32, #tpu.memory_space<vmem>>, vector<2x16x16x4xf32>
    %19 = vector.shape_cast %18 : vector<2x16x16x4xf32> to vector<512x4xf32>
    %c0_38 = arith.constant 0 : index
    %c2_39 = arith.constant 2 : index
    %c9_40 = arith.constant 9 : index
    %c0_41 = arith.constant 0 : index
    %20 = vector.load %arg8[%c0_38, %c2_39, %c9_40, %c0_41] : memref<2x18x32x4xf32, #tpu.memory_space<vmem>>, vector<2x16x16x4xf32>
    %21 = vector.shape_cast %20 : vector<2x16x16x4xf32> to vector<512x4xf32>
    %22 = tpu.concatenate %5, %7, %9, %11, %13, %15, %17, %19, %21 in 1 : vector<512x4xf32>, vector<512x4xf32>, vector<512x4xf32>, vector<512x4xf32>, vector<512x4xf32>, vector<512x4xf32>, vector<512x4xf32>, vector<512x4xf32>, vector<512x4xf32> -> vector<512x36xf32>
    %c0_42 = arith.constant 0 : index
    %c0_43 = arith.constant 0 : index
    %23 = vector.load %arg1[%c0_42, %c0_43] : memref<36x4xf32, #tpu.memory_space<vmem>>, vector<36x4xf32>
    %cst_44 = arith.constant dense<0.000000e+00> : vector<512x4xf32>
    %24 = tpu.matmul %22, %23, %cst_44 {dimension_numbers = #tpu.dot_dimension_numbers<[1], [0], [0], [1], [0, 0, 1, 1], [], []>} : vector<512x36xf32>, vector<36x4xf32>, vector<512x4xf32> -> vector<512x4xf32>
    %cst_45 = arith.constant dense<0.000000e+00> : vector<4xf32>
    %25 = vector.multi_reduction <add>, %24, %cst_45 [0] : vector<512x4xf32> to vector<4xf32>
    %26 = vector.shape_cast %25 : vector<4xf32> to vector<1x4xf32>
    %27 = arith.mulf %24, %24 : vector<512x4xf32>
    %cst_46 = arith.constant dense<0.000000e+00> : vector<4xf32>
    %28 = vector.multi_reduction <add>, %27, %cst_46 [0] : vector<512x4xf32> to vector<4xf32>
    %29 = vector.shape_cast %28 : vector<4xf32> to vector<1x4xf32>
    %cst_47 = arith.constant 0.001953125 : f32
    %30 = vector.broadcast %cst_47 : f32 to vector<1x4xf32>
    %31 = arith.mulf %26, %30 : vector<1x4xf32>
    %cst_48 = arith.constant 0.001953125 : f32
    %32 = vector.broadcast %cst_48 : f32 to vector<1x4xf32>
    %33 = arith.mulf %29, %32 : vector<1x4xf32>
    %34 = arith.mulf %31, %31 : vector<1x4xf32>
    %35 = arith.subf %33, %34 : vector<1x4xf32>
    %cst_49 = arith.constant 9.99999974E-6 : f32
    %36 = vector.broadcast %cst_49 : f32 to vector<1x4xf32>
    %37 = arith.addf %35, %36 : vector<1x4xf32>
    %38 = math.rsqrt %37 : vector<1x4xf32>
    %39 = vector.broadcast %31 : vector<1x4xf32> to vector<512x4xf32>
    %40 = arith.subf %24, %39 : vector<512x4xf32>
    %41 = vector.broadcast %38 : vector<1x4xf32> to vector<512x4xf32>
    %42 = arith.mulf %40, %41 : vector<512x4xf32>
    %c0_50 = arith.constant 0 : index
    %c0_51 = arith.constant 0 : index
    %43 = vector.load %arg2[%c0_50, %c0_51] : memref<1x4xf32, #tpu.memory_space<vmem>>, vector<1x4xf32>
    %44 = vector.broadcast %43 : vector<1x4xf32> to vector<512x4xf32>
    %45 = arith.mulf %42, %44 : vector<512x4xf32>
    %c0_52 = arith.constant 0 : index
    %c0_53 = arith.constant 0 : index
    %46 = vector.load %arg3[%c0_52, %c0_53] : memref<1x4xf32, #tpu.memory_space<vmem>>, vector<1x4xf32>
    %47 = vector.broadcast %46 : vector<1x4xf32> to vector<512x4xf32>
    %48 = arith.addf %45, %47 : vector<512x4xf32>
    %cst_54 = arith.constant 0.000000e+00 : f32
    %49 = vector.broadcast %cst_54 : f32 to vector<512x4xf32>
    %50 = arith.maximumf %48, %49 : vector<512x4xf32>
    %cst_55 = arith.constant 0.000000e+00 : f32
    %51 = vector.broadcast %cst_55 : f32 to vector<2x18x32x4xf32>
    %c0_56 = arith.constant 0 : index
    %c0_57 = arith.constant 0 : index
    %c0_58 = arith.constant 0 : index
    %c0_59 = arith.constant 0 : index
    %52 = vector.load %arg9[%c0_56, %c0_57, %c0_58, %c0_59] : memref<2x18x32x4xf32, #tpu.memory_space<vmem>>, vector<2x18x32x4xf32>
    tpu.vector_store %arg9[%c0_56, %c0_57, %c0_58, %c0_59], %51 {strides = array<i32>} : memref<2x18x32x4xf32, #tpu.memory_space<vmem>>, vector<2x18x32x4xf32>,
    %53 = vector.shape_cast %50 : vector<512x4xf32> to vector<2x16x16x4xf32>
    %c0_60 = arith.constant 0 : index
    %c1_61 = arith.constant 1 : index
    %c8_62 = arith.constant 8 : index
    %c0_63 = arith.constant 0 : index
    %54 = vector.load %arg9[%c0_60, %c1_61, %c8_62, %c0_63] : memref<2x18x32x4xf32, #tpu.memory_space<vmem>>, vector<2x16x16x4xf32>
    tpu.vector_store %arg9[%c0_60, %c1_61, %c8_62, %c0_63], %53 {strides = array<i32>} : memref<2x18x32x4xf32, #tpu.memory_space<vmem>>, vector<2x16x16x4xf32>,
    %c0_64 = arith.constant 0 : index
    %c0_65 = arith.constant 0 : index
    %c7_66 = arith.constant 7 : index
    %c0_67 = arith.constant 0 : index
    %55 = vector.load %arg9[%c0_64, %c0_65, %c7_66, %c0_67] : memref<2x18x32x4xf32, #tpu.memory_space<vmem>>, vector<2x16x16x4xf32>
    %56 = vector.shape_cast %55 : vector<2x16x16x4xf32> to vector<512x4xf32>
    %c0_68 = arith.constant 0 : index
    %c0_69 = arith.constant 0 : index
    %c8_70 = arith.constant 8 : index
    %c0_71 = arith.constant 0 : index
    %57 = vector.load %arg9[%c0_68, %c0_69, %c8_70, %c0_71] : memref<2x18x32x4xf32, #tpu.memory_space<vmem>>, vector<2x16x16x4xf32>
    %58 = vector.shape_cast %57 : vector<2x16x16x4xf32> to vector<512x4xf32>
    %c0_72 = arith.constant 0 : index
    %c0_73 = arith.constant 0 : index
    %c9_74 = arith.constant 9 : index
    %c0_75 = arith.constant 0 : index
    %59 = vector.load %arg9[%c0_72, %c0_73, %c9_74, %c0_75] : memref<2x18x32x4xf32, #tpu.memory_space<vmem>>, vector<2x16x16x4xf32>
    %60 = vector.shape_cast %59 : vector<2x16x16x4xf32> to vector<512x4xf32>
    %c0_76 = arith.constant 0 : index
    %c1_77 = arith.constant 1 : index
    %c7_78 = arith.constant 7 : index
    %c0_79 = arith.constant 0 : index
    %61 = vector.load %arg9[%c0_76, %c1_77, %c7_78, %c0_79] : memref<2x18x32x4xf32, #tpu.memory_space<vmem>>, vector<2x16x16x4xf32>
    %62 = vector.shape_cast %61 : vector<2x16x16x4xf32> to vector<512x4xf32>
    %c0_80 = arith.constant 0 : index
    %c1_81 = arith.constant 1 : index
    %c8_82 = arith.constant 8 : index
    %c0_83 = arith.constant 0 : index
    %63 = vector.load %arg9[%c0_80, %c1_81, %c8_82, %c0_83] : memref<2x18x32x4xf32, #tpu.memory_space<vmem>>, vector<2x16x16x4xf32>
    %64 = vector.shape_cast %63 : vector<2x16x16x4xf32> to vector<512x4xf32>
    %c0_84 = arith.constant 0 : index
    %c1_85 = arith.constant 1 : index
    %c9_86 = arith.constant 9 : index
    %c0_87 = arith.constant 0 : index
    %65 = vector.load %arg9[%c0_84, %c1_85, %c9_86, %c0_87] : memref<2x18x32x4xf32, #tpu.memory_space<vmem>>, vector<2x16x16x4xf32>
    %66 = vector.shape_cast %65 : vector<2x16x16x4xf32> to vector<512x4xf32>
    %c0_88 = arith.constant 0 : index
    %c2_89 = arith.constant 2 : index
    %c7_90 = arith.constant 7 : index
    %c0_91 = arith.constant 0 : index
    %67 = vector.load %arg9[%c0_88, %c2_89, %c7_90, %c0_91] : memref<2x18x32x4xf32, #tpu.memory_space<vmem>>, vector<2x16x16x4xf32>
    %68 = vector.shape_cast %67 : vector<2x16x16x4xf32> to vector<512x4xf32>
    %c0_92 = arith.constant 0 : index
    %c2_93 = arith.constant 2 : index
    %c8_94 = arith.constant 8 : index
    %c0_95 = arith.constant 0 : index
    %69 = vector.load %arg9[%c0_92, %c2_93, %c8_94, %c0_95] : memref<2x18x32x4xf32, #tpu.memory_space<vmem>>, vector<2x16x16x4xf32>
    %70 = vector.shape_cast %69 : vector<2x16x16x4xf32> to vector<512x4xf32>
    %c0_96 = arith.constant 0 : index
    %c2_97 = arith.constant 2 : index
    %c9_98 = arith.constant 9 : index
    %c0_99 = arith.constant 0 : index
    %71 = vector.load %arg9[%c0_96, %c2_97, %c9_98, %c0_99] : memref<2x18x32x4xf32, #tpu.memory_space<vmem>>, vector<2x16x16x4xf32>
    %72 = vector.shape_cast %71 : vector<2x16x16x4xf32> to vector<512x4xf32>
    %73 = tpu.concatenate %56, %58, %60, %62, %64, %66, %68, %70, %72 in 1 : vector<512x4xf32>, vector<512x4xf32>, vector<512x4xf32>, vector<512x4xf32>, vector<512x4xf32>, vector<512x4xf32>, vector<512x4xf32>, vector<512x4xf32>, vector<512x4xf32> -> vector<512x36xf32>
    %c0_100 = arith.constant 0 : index
    %c0_101 = arith.constant 0 : index
    %74 = vector.load %arg4[%c0_100, %c0_101] : memref<36x4xf32, #tpu.memory_space<vmem>>, vector<36x4xf32>
    %cst_102 = arith.constant dense<0.000000e+00> : vector<512x4xf32>
    %75 = tpu.matmul %73, %74, %cst_102 {dimension_numbers = #tpu.dot_dimension_numbers<[1], [0], [0], [1], [0, 0, 1, 1], [], []>} : vector<512x36xf32>, vector<36x4xf32>, vector<512x4xf32> -> vector<512x4xf32>
    %cst_103 = arith.constant dense<0.000000e+00> : vector<4xf32>
    %76 = vector.multi_reduction <add>, %75, %cst_103 [0] : vector<512x4xf32> to vector<4xf32>
    %77 = vector.shape_cast %76 : vector<4xf32> to vector<1x4xf32>
    %78 = arith.mulf %75, %75 : vector<512x4xf32>
    %cst_104 = arith.constant dense<0.000000e+00> : vector<4xf32>
    %79 = vector.multi_reduction <add>, %78, %cst_104 [0] : vector<512x4xf32> to vector<4xf32>
    %80 = vector.shape_cast %79 : vector<4xf32> to vector<1x4xf32>
    %cst_105 = arith.constant 0.001953125 : f32
    %81 = vector.broadcast %cst_105 : f32 to vector<1x4xf32>
    %82 = arith.mulf %77, %81 : vector<1x4xf32>
    %cst_106 = arith.constant 0.001953125 : f32
    %83 = vector.broadcast %cst_106 : f32 to vector<1x4xf32>
    %84 = arith.mulf %80, %83 : vector<1x4xf32>
    %85 = arith.mulf %82, %82 : vector<1x4xf32>
    %86 = arith.subf %84, %85 : vector<1x4xf32>
    %cst_107 = arith.constant 9.99999974E-6 : f32
    %87 = vector.broadcast %cst_107 : f32 to vector<1x4xf32>
    %88 = arith.addf %86, %87 : vector<1x4xf32>
    %89 = math.rsqrt %88 : vector<1x4xf32>
    %90 = vector.broadcast %82 : vector<1x4xf32> to vector<512x4xf32>
    %91 = arith.subf %75, %90 : vector<512x4xf32>
    %92 = vector.broadcast %89 : vector<1x4xf32> to vector<512x4xf32>
    %93 = arith.mulf %91, %92 : vector<512x4xf32>
    %c0_108 = arith.constant 0 : index
    %c0_109 = arith.constant 0 : index
    %94 = vector.load %arg5[%c0_108, %c0_109] : memref<1x4xf32, #tpu.memory_space<vmem>>, vector<1x4xf32>
    %95 = vector.broadcast %94 : vector<1x4xf32> to vector<512x4xf32>
    %96 = arith.mulf %93, %95 : vector<512x4xf32>
    %c0_110 = arith.constant 0 : index
    %c0_111 = arith.constant 0 : index
    %97 = vector.load %arg6[%c0_110, %c0_111] : memref<1x4xf32, #tpu.memory_space<vmem>>, vector<1x4xf32>
    %98 = vector.broadcast %97 : vector<1x4xf32> to vector<512x4xf32>
    %99 = arith.addf %96, %98 : vector<512x4xf32>
    %c0_112 = arith.constant 0 : index
    %c0_113 = arith.constant 0 : index
    %c0_114 = arith.constant 0 : index
    %c0_115 = arith.constant 0 : index
    %100 = vector.load %arg0[%c0_112, %c0_113, %c0_114, %c0_115] : memref<2x16x16x4xf32, #tpu.memory_space<vmem>>, vector<2x16x16x4xf32>
    %101 = vector.shape_cast %100 : vector<2x16x16x4xf32> to vector<512x4xf32>
    %102 = arith.addf %99, %101 : vector<512x4xf32>
    %cst_116 = arith.constant 0.000000e+00 : f32
    %103 = vector.broadcast %cst_116 : f32 to vector<512x4xf32>
    %104 = arith.maximumf %102, %103 : vector<512x4xf32>
    %105 = vector.shape_cast %104 : vector<512x4xf32> to vector<2x16x16x4xf32>
    %c0_117 = arith.constant 0 : index
    %c0_118 = arith.constant 0 : index
    %c0_119 = arith.constant 0 : index
    %c0_120 = arith.constant 0 : index
    %106 = vector.load %arg7[%c0_117, %c0_118, %c0_119, %c0_120] : memref<2x16x16x4xf32, #tpu.memory_space<vmem>>, vector<2x16x16x4xf32>
    tpu.vector_store %arg7[%c0_117, %c0_118, %c0_119, %c0_120], %105 {strides = array<i32>} : memref<2x16x16x4xf32, #tpu.memory_space<vmem>>, vector<2x16x16x4xf32>,
    return
  }
}

</mosaic_0001>

<llo_original>
// kernel: basic_block_forward.1
$region0: #{basic_block_forward.1}
  #allocation0 [shape = 'u32[]', space=smem, size = 0x4, offset = 0x4, fixed_abs, tag = 'smem constant byte address 0x4 - core index']
  #allocation1 [shape = 'u32[144,128]{1,0:T(1,128)}', space=vmem, size = 0x12000, scoped, tag = 'internal scratch']
  #allocation2 [shape = 'f32[2,18,32,4]{3,2,1,0:T(8,128)}', space=vmem, size = 0x90000, scoped, tag = 'scratch operand']
  #allocation3 [shape = 'f32[2,18,32,4]{3,2,1,0:T(8,128)}', space=vmem, size = 0x90000, scoped, tag = 'scratch operand']
  %s0 = inlined_call_operand.vmem [shape: f32[2,16,16,4], index: 0, kind: input, shape index: {}]
  %s1 = inlined_call_operand.vmem [shape: f32[36,4], index: 1, kind: input, shape index: {}]
  %s2 = inlined_call_operand.vmem [shape: f32[1,4], index: 2, kind: input, shape index: {}]
  %s3 = inlined_call_operand.vmem [shape: f32[1,4], index: 3, kind: input, shape index: {}]
  %s4 = inlined_call_operand.vmem [shape: f32[36,4], index: 4, kind: input, shape index: {}]
  %s5 = inlined_call_operand.vmem [shape: f32[1,4], index: 5, kind: input, shape index: {}]
  %s6 = inlined_call_operand.vmem [shape: f32[1,4], index: 6, kind: input, shape index: {}]
  %s7 = inlined_call_operand.vmem [shape: f32[2,16,16,4], index: 7, kind: output, shape index: {}]
  %s8 = sld [smem:[#allocation0]]
  $region38: #{basic_block_forward.1} parent=0
    _
  %s10 = ssub.s32 1, %s8
  %s11 = scalar_select 0, %s10, %s8
  // Predicated region
  $region2: #{basic_block_forward.1} parent=0 // pred_check
    _
  $region3: #{basic_block_forward.1} parent=0 // pred_check_branch
    %13 = sbr.rel (0) target = $region5
  $region4: #{basic_block_forward.1} parent=0 // pred_region
    _
  $region5: #{basic_block_forward.1} parent=0 // pred_fallthru
    _
  // Predicated region
  $region6: #{basic_block_forward.1} parent=0 // pred_check
    _
  $region7: #{basic_block_forward.1} parent=0 // pred_check_branch
    %15 = sbr.rel (0) target = $region9
  $region8: #{basic_block_forward.1} parent=0 // pred_region
    _
  $region9: #{basic_block_forward.1} parent=0 // pred_fallthru
    _
  // Predicated region
  $region10: #{basic_block_forward.1} parent=0 // pred_check
    _
  $region11: #{basic_block_forward.1} parent=0 // pred_check_branch
    %17 = sbr.rel (0) target = $region13
  $region12: #{basic_block_forward.1} parent=0 // pred_region
    _
  $region13: #{basic_block_forward.1} parent=0 // pred_fallthru
    _
  // Predicated region
  $region14: #{basic_block_forward.1} parent=0 // pred_check
    _
  $region15: #{basic_block_forward.1} parent=0 // pred_check_branch
    %19 = sbr.rel (0) target = $region17
  $region16: #{basic_block_forward.1} parent=0 // pred_region
    _
  $region17: #{basic_block_forward.1} parent=0 // pred_fallthru
    _
  // Predicated region
  $region18: #{basic_block_forward.1} parent=0 // pred_check
    _
  $region19: #{basic_block_forward.1} parent=0 // pred_check_branch
    %21 = sbr.rel (0) target = $region21
  $region20: #{basic_block_forward.1} parent=0 // pred_region
    _
  $region21: #{basic_block_forward.1} parent=0 // pred_fallthru
    _
  // Predicated region
  $region22: #{basic_block_forward.1} parent=0 // pred_check
    _
  $region23: #{basic_block_forward.1} parent=0 // pred_check_branch
    %23 = sbr.rel (0) target = $region25
  $region24: #{basic_block_forward.1} parent=0 // pred_region
    _
  $region25: #{basic_block_forward.1} parent=0 // pred_fallthru
    _
  // Predicated region
  $region26: #{basic_block_forward.1} parent=0 // pred_check
    _
  $region27: #{basic_block_forward.1} parent=0 // pred_check_branch
    %25 = sbr.rel (0) target = $region29
  $region28: #{basic_block_forward.1} parent=0 // pred_region
    _
  $region29: #{basic_block_forward.1} parent=0 // pred_fallthru
    _
  %vm26 = vcmask 31744
  %27 = vst.msk [vmem:[#allocation2] sm:$0xff] %vm26, 0.0
  %28 = vst.msk [vmem:[#allocation2 + $0x8] sm:$0xff] %vm26, 0.0
  %29 = vst.msk [vmem:[#allocation2 + $0x10] sm:$0xff] %vm26, 0.0
  %30 = vst.msk [vmem:[#allocation2 + $0x18] sm:$0xff] %vm26, 0.0
  %31 = vst.msk [vmem:[#allocation2 + $0x20] sm:$0xff] %vm26, 0.0
  %32 = vst.msk [vmem:[#allocation2 + $0x28] sm:$0xff] %vm26, 0.0
  %33 = vst.msk [vmem:[#allocation2 + $0x30] sm:$0xff] %vm26, 0.0
  %34 = vst.msk [vmem:[#allocation2 + $0x38] sm:$0xff] %vm26, 0.0
  %35 = vst.msk [vmem:[#allocation2 + $0x40] sm:$0xff] %vm26, 0.0
  %36 = vst.msk [vmem:[#allocation2 + $0x48] sm:$0xff] %vm26, 0.0
  %37 = vst.msk [vmem:[#allocation2 + $0x50] sm:$0xff] %vm26, 0.0
  %38 = vst.msk [vmem:[#allocation2 + $0x58] sm:$0xff] %vm26, 0.0
  %39 = vst.msk [vmem:[#allocation2 + $0x60] sm:$0xff] %vm26, 0.0
  %40 = vst.msk [vmem:[#allocation2 + $0x68] sm:$0xff] %vm26, 0.0
  %41 = vst.msk [vmem:[#allocation2 + $0x70] sm:$0xff] %vm26, 0.0
  %42 = vst.msk [vmem:[#allocation2 + $0x78] sm:$0xff] %vm26, 0.0
  %43 = vst.msk [vmem:[#allocation2 + $0x80] sm:$0xff] %vm26, 0.0
  %44 = vst.msk [vmem:[#allocation2 + $0x88] sm:$0xff] %vm26, 0.0
  %45 = vst.msk [vmem:[#allocation2 + $0x90] sm:$0xff] %vm26, 0.0
  %46 = vst.msk [vmem:[#allocation2 + $0x98] sm:$0xff] %vm26, 0.0
  %47 = vst.msk [vmem:[#allocation2 + $0xa0] sm:$0xff] %vm26, 0.0
  %48 = vst.msk [vmem:[#allocation2 + $0xa8] sm:$0xff] %vm26, 0.0
  %49 = vst.msk [vmem:[#allocation2 + $0xb0] sm:$0xff] %vm26, 0.0
  %50 = vst.msk [vmem:[#allocation2 + $0xb8] sm:$0xff] %vm26, 0.0
  %51 = vst.msk [vmem:[#allocation2 + $0xc0] sm:$0xff] %vm26, 0.0
  %52 = vst.msk [vmem:[#allocation2 + $0xc8] sm:$0xff] %vm26, 0.0
  %53 = vst.msk [vmem:[#allocation2 + $0xd0] sm:$0xff] %vm26, 0.0
  %54 = vst.msk [vmem:[#allocation2 + $0xd8] sm:$0xff] %vm26, 0.0
  %55 = vst.msk [vmem:[#allocation2 + $0xe0] sm:$0xff] %vm26, 0.0
  %56 = vst.msk [vmem:[#allocation2 + $0xe8] sm:$0xff] %vm26, 0.0
  %57 = vst.msk [vmem:[#allocation2 + $0xf0] sm:$0xff] %vm26, 0.0
  %58 = vst.msk [vmem:[#allocation2 + $0xf8] sm:$0xff] %vm26, 0.0
  %59 = vst.msk [vmem:[#allocation2 + $0x100] sm:$0xff] %vm26, 0.0
  %60 = vst.msk [vmem:[#allocation2 + $0x108] sm:$0xff] %vm26, 0.0
  %61 = vst.msk [vmem:[#allocation2 + $0x110] sm:$0xff] %vm26, 0.0
  %62 = vst.msk [vmem:[#allocation2 + $0x118] sm:$0xff] %vm26, 0.0
  %63 = vst.msk [vmem:[#allocation2 + $0x120] sm:$0xff] %vm26, 0.0
  %64 = vst.msk [vmem:[#allocation2 + $0x128] sm:$0xff] %vm26, 0.0
  %65 = vst.msk [vmem:[#allocation2 + $0x130] sm:$0xff] %vm26, 0.0
  %66 = vst.msk [vmem:[#allocation2 + $0x138] sm:$0xff] %vm26, 0.0
  %67 = vst.msk [vmem:[#allocation2 + $0x140] sm:$0xff] %vm26, 0.0
  %68 = vst.msk [vmem:[#allocation2 + $0x148] sm:$0xff] %vm26, 0.0
  %69 = vst.msk [vmem:[#allocation2 + $0x150] sm:$0xff] %vm26, 0.0
  %70 = vst.msk [vmem:[#allocation2 + $0x158] sm:$0xff] %vm26, 0.0
  %71 = vst.msk [vmem:[#allocation2 + $0x160] sm:$0xff] %vm26, 0.0
  %72 = vst.msk [vmem:[#allocation2 + $0x168] sm:$0xff] %vm26, 0.0
  %73 = vst.msk [vmem:[#allocation2 + $0x170] sm:$0xff] %vm26, 0.0
  %74 = vst.msk [vmem:[#allocation2 + $0x178] sm:$0xff] %vm26, 0.0
  %75 = vst.msk [vmem:[#allocation2 + $0x180] sm:$0xff] %vm26, 0.0
  %76 = vst.msk [vmem:[#allocation2 + $0x188] sm:$0xff] %vm26, 0.0
  %77 = vst.msk [vmem:[#allocation2 + $0x190] sm:$0xff] %vm26, 0.0
  %78 = vst.msk [vmem:[#allocation2 + $0x198] sm:$0xff] %vm26, 0.0
  %79 = vst.msk [vmem:[#allocation2 + $0x1a0] sm:$0xff] %vm26, 0.0
  %80 = vst.msk [vmem:[#allocation2 + $0x1a8] sm:$0xff] %vm26, 0.0
  %81 = vst.msk [vmem:[#allocation2 + $0x1b0] sm:$0xff] %vm26, 0.0
  %82 = vst.msk [vmem:[#allocation2 + $0x1b8] sm:$0xff] %vm26, 0.0
  %83 = vst.msk [vmem:[#allocation2 + $0x1c0] sm:$0xff] %vm26, 0.0
  %84 = vst.msk [vmem:[#allocation2 + $0x1c8] sm:$0xff] %vm26, 0.0
  %85 = vst.msk [vmem:[#allocation2 + $0x1d0] sm:$0xff] %vm26, 0.0
  %86 = vst.msk [vmem:[#allocation2 + $0x1d8] sm:$0xff] %vm26, 0.0
  %87 = vst.msk [vmem:[#allocation2 + $0x1e0] sm:$0xff] %vm26, 0.0
  %88 = vst.msk [vmem:[#allocation2 + $0x1e8] sm:$0xff] %vm26, 0.0
  %89 = vst.msk [vmem:[#allocation2 + $0x1f0] sm:$0xff] %vm26, 0.0
  %90 = vst.msk [vmem:[#allocation2 + $0x1f8] sm:$0xff] %vm26, 0.0
  %91 = vst.msk [vmem:[#allocation2 + $0x200] sm:$0xff] %vm26, 0.0
  %92 = vst.msk [vmem:[#allocation2 + $0x208] sm:$0xff] %vm26, 0.0
  %93 = vst.msk [vmem:[#allocation2 + $0x210] sm:$0xff] %vm26, 0.0
  %94 = vst.msk [vmem:[#allocation2 + $0x218] sm:$0xff] %vm26, 0.0
  %95 = vst.msk [vmem:[#allocation2 + $0x220] sm:$0xff] %vm26, 0.0
  %96 = vst.msk [vmem:[#allocation2 + $0x228] sm:$0xff] %vm26, 0.0
  %97 = vst.msk [vmem:[#allocation2 + $0x230] sm:$0xff] %vm26, 0.0
  %98 = vst.msk [vmem:[#allocation2 + $0x238] sm:$0xff] %vm26, 0.0
  %99 = vst.msk [vmem:[#allocation2 + $0x240] sm:$0xff] %vm26, 0.0
  %100 = vst.msk [vmem:[#allocation2 + $0x248] sm:$0xff] %vm26, 0.0
  %101 = vst.msk [vmem:[#allocation2 + $0x250] sm:$0xff] %vm26, 0.0
  %102 = vst.msk [vmem:[#allocation2 + $0x258] sm:$0xff] %vm26, 0.0
  %103 = vst.msk [vmem:[#allocation2 + $0x260] sm:$0xff] %vm26, 0.0
  %104 = vst.msk [vmem:[#allocation2 + $0x268] sm:$0xff] %vm26, 0.0
  %105 = vst.msk [vmem:[#allocation2 + $0x270] sm:$0xff] %vm26, 0.0
  %106 = vst.msk [vmem:[#allocation2 + $0x278] sm:$0xff] %vm26, 0.0
  %107 = vst.msk [vmem:[#allocation2 + $0x280] sm:$0xff] %vm26, 0.0
  %108 = vst.msk [vmem:[#allocation2 + $0x288] sm:$0xff] %vm26, 0.0
  %109 = vst.msk [vmem:[#allocation2 + $0x290] sm:$0xff] %vm26, 0.0
  %110 = vst.msk [vmem:[#allocation2 + $0x298] sm:$0xff] %vm26, 0.0
  %111 = vst.msk [vmem:[#allocation2 + $0x2a0] sm:$0xff] %vm26, 0.0
  %112 = vst.msk [vmem:[#allocation2 + $0x2a8] sm:$0xff] %vm26, 0.0
  %113 = vst.msk [vmem:[#allocation2 + $0x2b0] sm:$0xff] %vm26, 0.0
  %114 = vst.msk [vmem:[#allocation2 + $0x2b8] sm:$0xff] %vm26, 0.0
  %115 = vst.msk [vmem:[#allocation2 + $0x2c0] sm:$0xff] %vm26, 0.0
  %116 = vst.msk [vmem:[#allocation2 + $0x2c8] sm:$0xff] %vm26, 0.0
  %117 = vst.msk [vmem:[#allocation2 + $0x2d0] sm:$0xff] %vm26, 0.0
  %118 = vst.msk [vmem:[#allocation2 + $0x2d8] sm:$0xff] %vm26, 0.0
  %119 = vst.msk [vmem:[#allocation2 + $0x2e0] sm:$0xff] %vm26, 0.0
  %120 = vst.msk [vmem:[#allocation2 + $0x2e8] sm:$0xff] %vm26, 0.0
  %121 = vst.msk [vmem:[#allocation2 + $0x2f0] sm:$0xff] %vm26, 0.0
  %122 = vst.msk [vmem:[#allocation2 + $0x2f8] sm:$0xff] %vm26, 0.0
  %123 = vst.msk [vmem:[#allocation2 + $0x300] sm:$0xff] %vm26, 0.0
  %124 = vst.msk [vmem:[#allocation2 + $0x308] sm:$0xff] %vm26, 0.0
  %125 = vst.msk [vmem:[#allocation2 + $0x310] sm:$0xff] %vm26, 0.0
  %126 = vst.msk [vmem:[#allocation2 + $0x318] sm:$0xff] %vm26, 0.0
  %127 = vst.msk [vmem:[#allocation2 + $0x320] sm:$0xff] %vm26, 0.0
  %128 = vst.msk [vmem:[#allocation2 + $0x328] sm:$0xff] %vm26, 0.0
  %129 = vst.msk [vmem:[#allocation2 + $0x330] sm:$0xff] %vm26, 0.0
  %130 = vst.msk [vmem:[#allocation2 + $0x338] sm:$0xff] %vm26, 0.0
  %131 = vst.msk [vmem:[#allocation2 + $0x340] sm:$0xff] %vm26, 0.0
  %132 = vst.msk [vmem:[#allocation2 + $0x348] sm:$0xff] %vm26, 0.0
  %133 = vst.msk [vmem:[#allocation2 + $0x350] sm:$0xff] %vm26, 0.0
  %134 = vst.msk [vmem:[#allocation2 + $0x358] sm:$0xff] %vm26, 0.0
  %135 = vst.msk [vmem:[#allocation2 + $0x360] sm:$0xff] %vm26, 0.0
  %136 = vst.msk [vmem:[#allocation2 + $0x368] sm:$0xff] %vm26, 0.0
  %137 = vst.msk [vmem:[#allocation2 + $0x370] sm:$0xff] %vm26, 0.0
  %138 = vst.msk [vmem:[#allocation2 + $0x378] sm:$0xff] %vm26, 0.0
  %139 = vst.msk [vmem:[#allocation2 + $0x380] sm:$0xff] %vm26, 0.0
  %140 = vst.msk [vmem:[#allocation2 + $0x388] sm:$0xff] %vm26, 0.0
  %141 = vst.msk [vmem:[#allocation2 + $0x390] sm:$0xff] %vm26, 0.0
  %142 = vst.msk [vmem:[#allocation2 + $0x398] sm:$0xff] %vm26, 0.0
  %143 = vst.msk [vmem:[#allocation2 + $0x3a0] sm:$0xff] %vm26, 0.0
  %144 = vst.msk [vmem:[#allocation2 + $0x3a8] sm:$0xff] %vm26, 0.0
  %145 = vst.msk [vmem:[#allocation2 + $0x3b0] sm:$0xff] %vm26, 0.0
  %146 = vst.msk [vmem:[#allocation2 + $0x3b8] sm:$0xff] %vm26, 0.0
  %147 = vst.msk [vmem:[#allocation2 + $0x3c0] sm:$0xff] %vm26, 0.0
  %148 = vst.msk [vmem:[#allocation2 + $0x3c8] sm:$0xff] %vm26, 0.0
  %149 = vst.msk [vmem:[#allocation2 + $0x3d0] sm:$0xff] %vm26, 0.0
  %150 = vst.msk [vmem:[#allocation2 + $0x3d8] sm:$0xff] %vm26, 0.0
  %151 = vst.msk [vmem:[#allocation2 + $0x3e0] sm:$0xff] %vm26, 0.0
  %152 = vst.msk [vmem:[#allocation2 + $0x3e8] sm:$0xff] %vm26, 0.0
  %153 = vst.msk [vmem:[#allocation2 + $0x3f0] sm:$0xff] %vm26, 0.0
  %154 = vst.msk [vmem:[#allocation2 + $0x3f8] sm:$0xff] %vm26, 0.0
  %155 = vst.msk [vmem:[#allocation2 + $0x400] sm:$0xff] %vm26, 0.0
  %156 = vst.msk [vmem:[#allocation2 + $0x408] sm:$0xff] %vm26, 0.0
  %157 = vst.msk [vmem:[#allocation2 + $0x410] sm:$0xff] %vm26, 0.0
  %158 = vst.msk [vmem:[#allocation2 + $0x418] sm:$0xff] %vm26, 0.0
  %159 = vst.msk [vmem:[#allocation2 + $0x420] sm:$0xff] %vm26, 0.0
  %160 = vst.msk [vmem:[#allocation2 + $0x428] sm:$0xff] %vm26, 0.0
  %161 = vst.msk [vmem:[#allocation2 + $0x430] sm:$0xff] %vm26, 0.0
  %162 = vst.msk [vmem:[#allocation2 + $0x438] sm:$0xff] %vm26, 0.0
  %163 = vst.msk [vmem:[#allocation2 + $0x440] sm:$0xff] %vm26, 0.0
  %164 = vst.msk [vmem:[#allocation2 + $0x448] sm:$0xff] %vm26, 0.0
  %165 = vst.msk [vmem:[#allocation2 + $0x450] sm:$0xff] %vm26, 0.0
  %166 = vst.msk [vmem:[#allocation2 + $0x458] sm:$0xff] %vm26, 0.0
  %167 = vst.msk [vmem:[#allocation2 + $0x460] sm:$0xff] %vm26, 0.0
  %168 = vst.msk [vmem:[#allocation2 + $0x468] sm:$0xff] %vm26, 0.0
  %169 = vst.msk [vmem:[#allocation2 + $0x470] sm:$0xff] %vm26, 0.0
  %170 = vst.msk [vmem:[#allocation2 + $0x478] sm:$0xff] %vm26, 0.0
  %v171 = vld [vmem:[%s0] sm:$0xff]
  %v172 = vld [vmem:[%s0 + $0x8] sm:$0xff]
  %v173 = vld [vmem:[%s0 + $0x10] sm:$0xff]
  %v174 = vld [vmem:[%s0 + $0x18] sm:$0xff]
  %v175 = vld [vmem:[%s0 + $0x20] sm:$0xff]
  %v176 = vld [vmem:[%s0 + $0x28] sm:$0xff]
  %v177 = vld [vmem:[%s0 + $0x30] sm:$0xff]
  %v178 = vld [vmem:[%s0 + $0x38] sm:$0xff]
  %v179 = vld [vmem:[%s0 + $0x40] sm:$0xff]
  %v180 = vld [vmem:[%s0 + $0x48] sm:$0xff]
  %v181 = vld [vmem:[%s0 + $0x50] sm:$0xff]
  %v182 = vld [vmem:[%s0 + $0x58] sm:$0xff]
  %v183 = vld [vmem:[%s0 + $0x60] sm:$0xff]
  %v184 = vld [vmem:[%s0 + $0x68] sm:$0xff]
  %v185 = vld [vmem:[%s0 + $0x70] sm:$0xff]
  %v186 = vld [vmem:[%s0 + $0x78] sm:$0xff]
  %v187 = vld [vmem:[%s0 + $0x80] sm:$0xff]
  %v188 = vld [vmem:[%s0 + $0x88] sm:$0xff]
  %v189 = vld [vmem:[%s0 + $0x90] sm:$0xff]
  %v190 = vld [vmem:[%s0 + $0x98] sm:$0xff]
  %v191 = vld [vmem:[%s0 + $0xa0] sm:$0xff]
  %v192 = vld [vmem:[%s0 + $0xa8] sm:$0xff]
  %v193 = vld [vmem:[%s0 + $0xb0] sm:$0xff]
  %v194 = vld [vmem:[%s0 + $0xb8] sm:$0xff]
  %v195 = vld [vmem:[%s0 + $0xc0] sm:$0xff]
  %v196 = vld [vmem:[%s0 + $0xc8] sm:$0xff]
  %v197 = vld [vmem:[%s0 + $0xd0] sm:$0xff]
  %v198 = vld [vmem:[%s0 + $0xd8] sm:$0xff]
  %v199 = vld [vmem:[%s0 + $0xe0] sm:$0xff]
  %v200 = vld [vmem:[%s0 + $0xe8] sm:$0xff]
  %v201 = vld [vmem:[%s0 + $0xf0] sm:$0xff]
  %v202 = vld [vmem:[%s0 + $0xf8] sm:$0xff]
  %v203 = vld [vmem:[%s0 + $0x100] sm:$0xff]
  %v204 = vld [vmem:[%s0 + $0x108] sm:$0xff]
  %v205 = vld [vmem:[%s0 + $0x110] sm:$0xff]
  %v206 = vld [vmem:[%s0 + $0x118] sm:$0xff]
  %v207 = vld [vmem:[%s0 + $0x120] sm:$0xff]
  %v208 = vld [vmem:[%s0 + $0x128] sm:$0xff]
  %v209 = vld [vmem:[%s0 + $0x130] sm:$0xff]
  %v210 = vld [vmem:[%s0 + $0x138] sm:$0xff]
  %v211 = vld [vmem:[%s0 + $0x140] sm:$0xff]
  %v212 = vld [vmem:[%s0 + $0x148] sm:$0xff]
  %v213 = vld [vmem:[%s0 + $0x150] sm:$0xff]
  %v214 = vld [vmem:[%s0 + $0x158] sm:$0xff]
  %v215 = vld [vmem:[%s0 + $0x160] sm:$0xff]
  %v216 = vld [vmem:[%s0 + $0x168] sm:$0xff]
  %v217 = vld [vmem:[%s0 + $0x170] sm:$0xff]
  %v218 = vld [vmem:[%s0 + $0x178] sm:$0xff]
  %v219 = vld [vmem:[%s0 + $0x180] sm:$0xff]
  %v220 = vld [vmem:[%s0 + $0x188] sm:$0xff]
  %v221 = vld [vmem:[%s0 + $0x190] sm:$0xff]
  %v222 = vld [vmem:[%s0 + $0x198] sm:$0xff]
  %v223 = vld [vmem:[%s0 + $0x1a0] sm:$0xff]
  %v224 = vld [vmem:[%s0 + $0x1a8] sm:$0xff]
  %v225 = vld [vmem:[%s0 + $0x1b0] sm:$0xff]
  %v226 = vld [vmem:[%s0 + $0x1b8] sm:$0xff]
  %v227 = vld [vmem:[%s0 + $0x1c0] sm:$0xff]
  %v228 = vld [vmem:[%s0 + $0x1c8] sm:$0xff]
  %v229 = vld [vmem:[%s0 + $0x1d0] sm:$0xff]
  %v230 = vld [vmem:[%s0 + $0x1d8] sm:$0xff]
  %v231 = vld [vmem:[%s0 + $0x1e0] sm:$0xff]
  %v232 = vld [vmem:[%s0 + $0x1e8] sm:$0xff]
  %v233 = vld [vmem:[%s0 + $0x1f0] sm:$0xff]
  %v234 = vld [vmem:[%s0 + $0x1f8] sm:$0xff]
  %s235 = scalar_lea.vmem [#allocation2], 32
  %236 = vst.msk [vmem:[%s235 + $0x8] sm:$0xff] %vm26, %v171
  %237 = vst.msk [vmem:[%s235 + $0x10] sm:$0xff] %vm26, %v172
  %238 = vst.msk [vmem:[%s235 + $0x28] sm:$0xff] %vm26, %v173
  %239 = vst.msk [vmem:[%s235 + $0x30] sm:$0xff] %vm26, %v174
  %240 = vst.msk [vmem:[%s235 + $0x48] sm:$0xff] %vm26, %v175
  %241 = vst.msk [vmem:[%s235 + $0x50] sm:$0xff] %vm26, %v176
  %242 = vst.msk [vmem:[%s235 + $0x68] sm:$0xff] %vm26, %v177
  %243 = vst.msk [vmem:[%s235 + $0x70] sm:$0xff] %vm26, %v178
  %244 = vst.msk [vmem:[%s235 + $0x88] sm:$0xff] %vm26, %v179
  %245 = vst.msk [vmem:[%s235 + $0x90] sm:$0xff] %vm26, %v180
  %246 = vst.msk [vmem:[%s235 + $0xa8] sm:$0xff] %vm26, %v181
  %247 = vst.msk [vmem:[%s235 + $0xb0] sm:$0xff] %vm26, %v182
  %248 = vst.msk [vmem:[%s235 + $0xc8] sm:$0xff] %vm26, %v183
  %249 = vst.msk [vmem:[%s235 + $0xd0] sm:$0xff] %vm26, %v184
  %250 = vst.msk [vmem:[%s235 + $0xe8] sm:$0xff] %vm26, %v185
  %251 = vst.msk [vmem:[%s235 + $0xf0] sm:$0xff] %vm26, %v186
  %252 = vst.msk [vmem:[%s235 + $0x108] sm:$0xff] %vm26, %v187
  %253 = vst.msk [vmem:[%s235 + $0x110] sm:$0xff] %vm26, %v188
  %254 = vst.msk [vmem:[%s235 + $0x128] sm:$0xff] %vm26, %v189
  %255 = vst.msk [vmem:[%s235 + $0x130] sm:$0xff] %vm26, %v190
  %256 = vst.msk [vmem:[%s235 + $0x148] sm:$0xff] %vm26, %v191
  %257 = vst.msk [vmem:[%s235 + $0x150] sm:$0xff] %vm26, %v192
  %258 = vst.msk [vmem:[%s235 + $0x168] sm:$0xff] %vm26, %v193
  %259 = vst.msk [vmem:[%s235 + $0x170] sm:$0xff] %vm26, %v194
  %260 = vst.msk [vmem:[%s235 + $0x188] sm:$0xff] %vm26, %v195
  %261 = vst.msk [vmem:[%s235 + $0x190] sm:$0xff] %vm26, %v196
  %262 = vst.msk [vmem:[%s235 + $0x1a8] sm:$0xff] %vm26, %v197
  %263 = vst.msk [vmem:[%s235 + $0x1b0] sm:$0xff] %vm26, %v198
  %264 = vst.msk [vmem:[%s235 + $0x1c8] sm:$0xff] %vm26, %v199
  %265 = vst.msk [vmem:[%s235 + $0x1d0] sm:$0xff] %vm26, %v200
  %266 = vst.msk [vmem:[%s235 + $0x1e8] sm:$0xff] %vm26, %v201
  %267 = vst.msk [vmem:[%s235 + $0x1f0] sm:$0xff] %vm26, %v202
  %268 = vst.msk [vmem:[%s235 + $0x248] sm:$0xff] %vm26, %v203
  %269 = vst.msk [vmem:[%s235 + $0x250] sm:$0xff] %vm26, %v204
  %270 = vst.msk [vmem:[%s235 + $0x268] sm:$0xff] %vm26, %v205
  %271 = vst.msk [vmem:[%s235 + $0x270] sm:$0xff] %vm26, %v206
  %272 = vst.msk [vmem:[%s235 + $0x288] sm:$0xff] %vm26, %v207
  %273 = vst.msk [vmem:[%s235 + $0x290] sm:$0xff] %vm26, %v208
  %274 = vst.msk [vmem:[%s235 + $0x2a8] sm:$0xff] %vm26, %v209
  %275 = vst.msk [vmem:[%s235 + $0x2b0] sm:$0xff] %vm26, %v210
  %276 = vst.msk [vmem:[%s235 + $0x2c8] sm:$0xff] %vm26, %v211
  %277 = vst.msk [vmem:[%s235 + $0x2d0] sm:$0xff] %vm26, %v212
  %278 = vst.msk [vmem:[%s235 + $0x2e8] sm:$0xff] %vm26, %v213
  %279 = vst.msk [vmem:[%s235 + $0x2f0] sm:$0xff] %vm26, %v214
  %280 = vst.msk [vmem:[%s235 + $0x308] sm:$0xff] %vm26, %v215
  %281 = vst.msk [vmem:[%s235 + $0x310] sm:$0xff] %vm26, %v216
  %282 = vst.msk [vmem:[%s235 + $0x328] sm:$0xff] %vm26, %v217
  %283 = vst.msk [vmem:[%s235 + $0x330] sm:$0xff] %vm26, %v218
  %284 = vst.msk [vmem:[%s235 + $0x348] sm:$0xff] %vm26, %v219
  %285 = vst.msk [vmem:[%s235 + $0x350] sm:$0xff] %vm26, %v220
  %286 = vst.msk [vmem:[%s235 + $0x368] sm:$0xff] %vm26, %v221
  %287 = vst.msk [vmem:[%s235 + $0x370] sm:$0xff] %vm26, %v222
  %288 = vst.msk [vmem:[%s235 + $0x388] sm:$0xff] %vm26, %v223
  %289 = vst.msk [vmem:[%s235 + $0x390] sm:$0xff] %vm26, %v224
  %290 = vst.msk [vmem:[%s235 + $0x3a8] sm:$0xff] %vm26, %v225
  %291 = vst.msk [vmem:[%s235 + $0x3b0] sm:$0xff] %vm26, %v226
  %292 = vst.msk [vmem:[%s235 + $0x3c8] sm:$0xff] %vm26, %v227
  %293 = vst.msk [vmem:[%s235 + $0x3d0] sm:$0xff] %vm26, %v228
  %294 = vst.msk [vmem:[%s235 + $0x3e8] sm:$0xff] %vm26, %v229
  %295 = vst.msk [vmem:[%s235 + $0x3f0] sm:$0xff] %vm26, %v230
  %296 = vst.msk [vmem:[%s235 + $0x408] sm:$0xff] %vm26, %v231
  %297 = vst.msk [vmem:[%s235 + $0x410] sm:$0xff] %vm26, %v232
  %298 = vst.msk [vmem:[%s235 + $0x428] sm:$0xff] %vm26, %v233
  %299 = vst.msk [vmem:[%s235 + $0x430] sm:$0xff] %vm26, %v234
  %v300 = vld [vmem:[#allocation2 + $0x7] sm:$0xff]
  %v301 = vld [vmem:[#allocation2 + $0xf] sm:$0xff]
  %v302 = vld [vmem:[#allocation2 + $0x27] sm:$0xff]
  %v303 = vld [vmem:[#allocation2 + $0x2f] sm:$0xff]
  %v304 = vld [vmem:[#allocation2 + $0x47] sm:$0xff]
  %v305 = vld [vmem:[#allocation2 + $0x4f] sm:$0xff]
  %v306 = vld [vmem:[#allocation2 + $0x67] sm:$0xff]
  %v307 = vld [vmem:[#allocation2 + $0x6f] sm:$0xff]
  %v308 = vld [vmem:[#allocation2 + $0x87] sm:$0xff]
  %v309 = vld [vmem:[#allocation2 + $0x8f] sm:$0xff]
  %v310 = vld [vmem:[#allocation2 + $0xa7] sm:$0xff]
  %v311 = vld [vmem:[#allocation2 + $0xaf] sm:$0xff]
  %v312 = vld [vmem:[#allocation2 + $0xc7] sm:$0xff]
  %v313 = vld [vmem:[#allocation2 + $0xcf] sm:$0xff]
  %v314 = vld [vmem:[#allocation2 + $0xe7] sm:$0xff]
  %v315 = vld [vmem:[#allocation2 + $0xef] sm:$0xff]
  %v316 = vld [vmem:[#allocation2 + $0x107] sm:$0xff]
  %v317 = vld [vmem:[#allocation2 + $0x10f] sm:$0xff]
  %v318 = vld [vmem:[#allocation2 + $0x127] sm:$0xff]
  %v319 = vld [vmem:[#allocation2 + $0x12f] sm:$0xff]
  %v320 = vld [vmem:[#allocation2 + $0x147] sm:$0xff]
  %v321 = vld [vmem:[#allocation2 + $0x14f] sm:$0xff]
  %v322 = vld [vmem:[#allocation2 + $0x167] sm:$0xff]
  %v323 = vld [vmem:[#allocation2 + $0x16f] sm:$0xff]
  %v324 = vld [vmem:[#allocation2 + $0x187] sm:$0xff]
  %v325 = vld [vmem:[#allocation2 + $0x18f] sm:$0xff]
  %v326 = vld [vmem:[#allocation2 + $0x1a7] sm:$0xff]
  %v327 = vld [vmem:[#allocation2 + $0x1af] sm:$0xff]
  %v328 = vld [vmem:[#allocation2 + $0x1c7] sm:$0xff]
  %v329 = vld [vmem:[#allocation2 + $0x1cf] sm:$0xff]
  %v330 = vld [vmem:[#allocation2 + $0x1e7] sm:$0xff]
  %v331 = vld [vmem:[#allocation2 + $0x1ef] sm:$0xff]
  %v332 = vld [vmem:[#allocation2 + $0x247] sm:$0xff]
  %v333 = vld [vmem:[#allocation2 + $0x24f] sm:$0xff]
  %v334 = vld [vmem:[#allocation2 + $0x267] sm:$0xff]
  %v335 = vld [vmem:[#allocation2 + $0x26f] sm:$0xff]
  %v336 = vld [vmem:[#allocation2 + $0x287] sm:$0xff]
  %v337 = vld [vmem:[#allocation2 + $0x28f] sm:$0xff]
  %v338 = vld [vmem:[#allocation2 + $0x2a7] sm:$0xff]
  %v339 = vld [vmem:[#allocation2 + $0x2af] sm:$0xff]
  %v340 = vld [vmem:[#allocation2 + $0x2c7] sm:$0xff]
  %v341 = vld [vmem:[#allocation2 + $0x2cf] sm:$0xff]
  %v342 = vld [vmem:[#allocation2 + $0x2e7] sm:$0xff]
  %v343 = vld [vmem:[#allocation2 + $0x2ef] sm:$0xff]
  %v344 = vld [vmem:[#allocation2 + $0x307] sm:$0xff]
  %v345 = vld [vmem:[#allocation2 + $0x30f] sm:$0xff]
  %v346 = vld [vmem:[#allocation2 + $0x327] sm:$0xff]
  %v347 = vld [vmem:[#allocation2 + $0x32f] sm:$0xff]
  %v348 = vld [vmem:[#allocation2 + $0x347] sm:$0xff]
  %v349 = vld [vmem:[#allocation2 + $0x34f] sm:$0xff]
  %v350 = vld [vmem:[#allocation2 + $0x367] sm:$0xff]
  %v351 = vld [vmem:[#allocation2 + $0x36f] sm:$0xff]
  %v352 = vld [vmem:[#allocation2 + $0x387] sm:$0xff]
  %v353 = vld [vmem:[#allocation2 + $0x38f] sm:$0xff]
  %v354 = vld [vmem:[#allocation2 + $0x3a7] sm:$0xff]
  %v355 = vld [vmem:[#allocation2 + $0x3af] sm:$0xff]
  %v356 = vld [vmem:[#allocation2 + $0x3c7] sm:$0xff]
  %v357 = vld [vmem:[#allocation2 + $0x3cf] sm:$0xff]
  %v358 = vld [vmem:[#allocation2 + $0x3e7] sm:$0xff]
  %v359 = vld [vmem:[#allocation2 + $0x3ef] sm:$0xff]
  %v360 = vld [vmem:[#allocation2 + $0x407] sm:$0xff]
  %v361 = vld [vmem:[#allocation2 + $0x40f] sm:$0xff]
  %v362 = vld [vmem:[#allocation2 + $0x427] sm:$0xff]
  %v363 = vld [vmem:[#allocation2 + $0x42f] sm:$0xff]
  %v364 = vld [vmem:[#allocation2 + $0x8] sm:$0xff]
  %v365 = vld [vmem:[#allocation2 + $0x10] sm:$0xff]
  %v366 = vld [vmem:[#allocation2 + $0x28] sm:$0xff]
  %v367 = vld [vmem:[#allocation2 + $0x30] sm:$0xff]
  %v368 = vld [vmem:[#allocation2 + $0x48] sm:$0xff]
  %v369 = vld [vmem:[#allocation2 + $0x50] sm:$0xff]
  %v370 = vld [vmem:[#allocation2 + $0x68] sm:$0xff]
  %v371 = vld [vmem:[#allocation2 + $0x70] sm:$0xff]
  %v372 = vld [vmem:[#allocation2 + $0x88] sm:$0xff]
  %v373 = vld [vmem:[#allocation2 + $0x90] sm:$0xff]
  %v374 = vld [vmem:[#allocation2 + $0xa8] sm:$0xff]
  %v375 = vld [vmem:[#allocation2 + $0xb0] sm:$0xff]
  %v376 = vld [vmem:[#allocation2 + $0xc8] sm:$0xff]
  %v377 = vld [vmem:[#allocation2 + $0xd0] sm:$0xff]
  %v378 = vld [vmem:[#allocation2 + $0xe8] sm:$0xff]
  %v379 = vld [vmem:[#allocation2 + $0xf0] sm:$0xff]
  %v380 = vld [vmem:[#allocation2 + $0x108] sm:$0xff]
  %v381 = vld [vmem:[#allocation2 + $0x110] sm:$0xff]
  %v382 = vld [vmem:[#allocation2 + $0x128] sm:$0xff]
  %v383 = vld [vmem:[#allocation2 + $0x130] sm:$0xff]
  %v384 = vld [vmem:[#allocation2 + $0x148] sm:$0xff]
  %v385 = vld [vmem:[#allocation2 + $0x150] sm:$0xff]
  %v386 = vld [vmem:[#allocation2 + $0x168] sm:$0xff]
  %v387 = vld [vmem:[#allocation2 + $0x170] sm:$0xff]
  %v388 = vld [vmem:[#allocation2 + $0x188] sm:$0xff]
  %v389 = vld [vmem:[#allocation2 + $0x190] sm:$0xff]
  %v390 = vld [vmem:[#allocation2 + $0x1a8] sm:$0xff]
  %v391 = vld [vmem:[#allocation2 + $0x1b0] sm:$0xff]
  %v392 = vld [vmem:[#allocation2 + $0x1c8] sm:$0xff]
  %v393 = vld [vmem:[#allocation2 + $0x1d0] sm:$0xff]
  %v394 = vld [vmem:[#allocation2 + $0x1e8] sm:$0xff]
  %v395 = vld [vmem:[#allocation2 + $0x1f0] sm:$0xff]
  %v396 = vld [vmem:[#allocation2 + $0x248] sm:$0xff]
  %v397 = vld [vmem:[#allocation2 + $0x250] sm:$0xff]
  %v398 = vld [vmem:[#allocation2 + $0x268] sm:$0xff]
  %v399 = vld [vmem:[#allocation2 + $0x270] sm:$0xff]
  %v400 = vld [vmem:[#allocation2 + $0x288] sm:$0xff]
  %v401 = vld [vmem:[#allocation2 + $0x290] sm:$0xff]
  %v402 = vld [vmem:[#allocation2 + $0x2a8] sm:$0xff]
  %v403 = vld [vmem:[#allocation2 + $0x2b0] sm:$0xff]
  %v404 = vld [vmem:[#allocation2 + $0x2c8] sm:$0xff]
  %v405 = vld [vmem:[#allocation2 + $0x2d0] sm:$0xff]
  %v406 = vld [vmem:[#allocation2 + $0x2e8] sm:$0xff]
  %v407 = vld [vmem:[#allocation2 + $0x2f0] sm:$0xff]
  %v408 = vld [vmem:[#allocation2 + $0x308] sm:$0xff]
  %v409 = vld [vmem:[#allocation2 + $0x310] sm:$0xff]
  %v410 = vld [vmem:[#allocation2 + $0x328] sm:$0xff]
  %v411 = vld [vmem:[#allocation2 + $0x330] sm:$0xff]
  %v412 = vld [vmem:[#allocation2 + $0x348] sm:$0xff]
  %v413 = vld [vmem:[#allocation2 + $0x350] sm:$0xff]
  %v414 = vld [vmem:[#allocation2 + $0x368] sm:$0xff]
  %v415 = vld [vmem:[#allocation2 + $0x370] sm:$0xff]
  %v416 = vld [vmem:[#allocation2 + $0x388] sm:$0xff]
  %v417 = vld [vmem:[#allocation2 + $0x390] sm:$0xff]
  %v418 = vld [vmem:[#allocation2 + $0x3a8] sm:$0xff]
  %v419 = vld [vmem:[#allocation2 + $0x3b0] sm:$0xff]
  %v420 = vld [vmem:[#allocation2 + $0x3c8] sm:$0xff]
  %v421 = vld [vmem:[#allocation2 + $0x3d0] sm:$0xff]
  %v422 = vld [vmem:[#allocation2 + $0x3e8] sm:$0xff]
  %v423 = vld [vmem:[#allocation2 + $0x3f0] sm:$0xff]
  %v424 = vld [vmem:[#allocation2 + $0x408] sm:$0xff]
  %v425 = vld [vmem:[#allocation2 + $0x410] sm:$0xff]
  %v426 = vld [vmem:[#allocation2 + $0x428] sm:$0xff]
  %v427 = vld [vmem:[#allocation2 + $0x430] sm:$0xff]
  %v428 = vld [vmem:[#allocation2 + $0x9] sm:$0xff]
  %v429 = vld [vmem:[#allocation2 + $0x11] sm:$0xff]
  %v430 = vld [vmem:[#allocation2 + $0x29] sm:$0xff]
  %v431 = vld [vmem:[#allocation2 + $0x31] sm:$0xff]
  %v432 = vld [vmem:[#allocation2 + $0x49] sm:$0xff]
  %v433 = vld [vmem:[#allocation2 + $0x51] sm:$0xff]
  %v434 = vld [vmem:[#allocation2 + $0x69] sm:$0xff]
  %v435 = vld [vmem:[#allocation2 + $0x71] sm:$0xff]
  %v436 = vld [vmem:[#allocation2 + $0x89] sm:$0xff]
  %v437 = vld [vmem:[#allocation2 + $0x91] sm:$0xff]
  %v438 = vld [vmem:[#allocation2 + $0xa9] sm:$0xff]
  %v439 = vld [vmem:[#allocation2 + $0xb1] sm:$0xff]
  %v440 = vld [vmem:[#allocation2 + $0xc9] sm:$0xff]
  %v441 = vld [vmem:[#allocation2 + $0xd1] sm:$0xff]
  %v442 = vld [vmem:[#allocation2 + $0xe9] sm:$0xff]
  %v443 = vld [vmem:[#allocation2 + $0xf1] sm:$0xff]
  %v444 = vld [vmem:[#allocation2 + $0x109] sm:$0xff]
  %v445 = vld [vmem:[#allocation2 + $0x111] sm:$0xff]
  %v446 = vld [vmem:[#allocation2 + $0x129] sm:$0xff]
  %v447 = vld [vmem:[#allocation2 + $0x131] sm:$0xff]
  %v448 = vld [vmem:[#allocation2 + $0x149] sm:$0xff]
  %v449 = vld [vmem:[#allocation2 + $0x151] sm:$0xff]
  %v450 = vld [vmem:[#allocation2 + $0x169] sm:$0xff]
  %v451 = vld [vmem:[#allocation2 + $0x171] sm:$0xff]
  %v452 = vld [vmem:[#allocation2 + $0x189] sm:$0xff]
  %v453 = vld [vmem:[#allocation2 + $0x191] sm:$0xff]
  %v454 = vld [vmem:[#allocation2 + $0x1a9] sm:$0xff]
  %v455 = vld [vmem:[#allocation2 + $0x1b1] sm:$0xff]
  %v456 = vld [vmem:[#allocation2 + $0x1c9] sm:$0xff]
  %v457 = vld [vmem:[#allocation2 + $0x1d1] sm:$0xff]
  %v458 = vld [vmem:[#allocation2 + $0x1e9] sm:$0xff]
  %v459 = vld [vmem:[#allocation2 + $0x1f1] sm:$0xff]
  %v460 = vld [vmem:[#allocation2 + $0x249] sm:$0xff]
  %v461 = vld [vmem:[#allocation2 + $0x251] sm:$0xff]
  %v462 = vld [vmem:[#allocation2 + $0x269] sm:$0xff]
  %v463 = vld [vmem:[#allocation2 + $0x271] sm:$0xff]
  %v464 = vld [vmem:[#allocation2 + $0x289] sm:$0xff]
  %v465 = vld [vmem:[#allocation2 + $0x291] sm:$0xff]
  %v466 = vld [vmem:[#allocation2 + $0x2a9] sm:$0xff]
  %v467 = vld [vmem:[#allocation2 + $0x2b1] sm:$0xff]
  %v468 = vld [vmem:[#allocation2 + $0x2c9] sm:$0xff]
  %v469 = vld [vmem:[#allocation2 + $0x2d1] sm:$0xff]
  %v470 = vld [vmem:[#allocation2 + $0x2e9] sm:$0xff]
  %v471 = vld [vmem:[#allocation2 + $0x2f1] sm:$0xff]
  %v472 = vld [vmem:[#allocation2 + $0x309] sm:$0xff]
  %v473 = vld [vmem:[#allocation2 + $0x311] sm:$0xff]
  %v474 = vld [vmem:[#allocation2 + $0x329] sm:$0xff]
  %v475 = vld [vmem:[#allocation2 + $0x331] sm:$0xff]
  %v476 = vld [vmem:[#allocation2 + $0x349] sm:$0xff]
  %v477 = vld [vmem:[#allocation2 + $0x351] sm:$0xff]
  %v478 = vld [vmem:[#allocation2 + $0x369] sm:$0xff]
  %v479 = vld [vmem:[#allocation2 + $0x371] sm:$0xff]
  %v480 = vld [vmem:[#allocation2 + $0x389] sm:$0xff]
  %v481 = vld [vmem:[#allocation2 + $0x391] sm:$0xff]
  %v482 = vld [vmem:[#allocation2 + $0x3a9] sm:$0xff]
  %v483 = vld [vmem:[#allocation2 + $0x3b1] sm:$0xff]
  %v484 = vld [vmem:[#allocation2 + $0x3c9] sm:$0xff]
  %v485 = vld [vmem:[#allocation2 + $0x3d1] sm:$0xff]
  %v486 = vld [vmem:[#allocation2 + $0x3e9] sm:$0xff]
  %v487 = vld [vmem:[#allocation2 + $0x3f1] sm:$0xff]
  %v488 = vld [vmem:[#allocation2 + $0x409] sm:$0xff]
  %v489 = vld [vmem:[#allocation2 + $0x411] sm:$0xff]
  %v490 = vld [vmem:[#allocation2 + $0x429] sm:$0xff]
  %v491 = vld [vmem:[#allocation2 + $0x431] sm:$0xff]
  %v492 = vld [vmem:[%s235 + $0x7] sm:$0xff]
  %v493 = vld [vmem:[%s235 + $0xf] sm:$0xff]
  %v494 = vld [vmem:[%s235 + $0x27] sm:$0xff]
  %v495 = vld [vmem:[%s235 + $0x2f] sm:$0xff]
  %v496 = vld [vmem:[%s235 + $0x47] sm:$0xff]
  %v497 = vld [vmem:[%s235 + $0x4f] sm:$0xff]
  %v498 = vld [vmem:[%s235 + $0x67] sm:$0xff]
  %v499 = vld [vmem:[%s235 + $0x6f] sm:$0xff]
  %v500 = vld [vmem:[%s235 + $0x87] sm:$0xff]
  %v501 = vld [vmem:[%s235 + $0x8f] sm:$0xff]
  %v502 = vld [vmem:[%s235 + $0xa7] sm:$0xff]
  %v503 = vld [vmem:[%s235 + $0xaf] sm:$0xff]
  %v504 = vld [vmem:[%s235 + $0xc7] sm:$0xff]
  %v505 = vld [vmem:[%s235 + $0xcf] sm:$0xff]
  %v506 = vld [vmem:[%s235 + $0xe7] sm:$0xff]
  %v507 = vld [vmem:[%s235 + $0xef] sm:$0xff]
  %v508 = vld [vmem:[%s235 + $0x107] sm:$0xff]
  %v509 = vld [vmem:[%s235 + $0x10f] sm:$0xff]
  %v510 = vld [vmem:[%s235 + $0x127] sm:$0xff]
  %v511 = vld [vmem:[%s235 + $0x12f] sm:$0xff]
  %v512 = vld [vmem:[%s235 + $0x147] sm:$0xff]
  %v513 = vld [vmem:[%s235 + $0x14f] sm:$0xff]
  %v514 = vld [vmem:[%s235 + $0x167] sm:$0xff]
  %v515 = vld [vmem:[%s235 + $0x16f] sm:$0xff]
  %v516 = vld [vmem:[%s235 + $0x187] sm:$0xff]
  %v517 = vld [vmem:[%s235 + $0x18f] sm:$0xff]
  %v518 = vld [vmem:[%s235 + $0x1a7] sm:$0xff]
  %v519 = vld [vmem:[%s235 + $0x1af] sm:$0xff]
  %v520 = vld [vmem:[%s235 + $0x1c7] sm:$0xff]
  %v521 = vld [vmem:[%s235 + $0x1cf] sm:$0xff]
  %v522 = vld [vmem:[%s235 + $0x1e7] sm:$0xff]
  %v523 = vld [vmem:[%s235 + $0x1ef] sm:$0xff]
  %v524 = vld [vmem:[%s235 + $0x247] sm:$0xff]
  %v525 = vld [vmem:[%s235 + $0x24f] sm:$0xff]
  %v526 = vld [vmem:[%s235 + $0x267] sm:$0xff]
  %v527 = vld [vmem:[%s235 + $0x26f] sm:$0xff]
  %v528 = vld [vmem:[%s235 + $0x287] sm:$0xff]
  %v529 = vld [vmem:[%s235 + $0x28f] sm:$0xff]
  %v530 = vld [vmem:[%s235 + $0x2a7] sm:$0xff]
  %v531 = vld [vmem:[%s235 + $0x2af] sm:$0xff]
  %v532 = vld [vmem:[%s235 + $0x2c7] sm:$0xff]
  %v533 = vld [vmem:[%s235 + $0x2cf] sm:$0xff]
  %v534 = vld [vmem:[%s235 + $0x2e7] sm:$0xff]
  %v535 = vld [vmem:[%s235 + $0x2ef] sm:$0xff]
  %v536 = vld [vmem:[%s235 + $0x307] sm:$0xff]
  %v537 = vld [vmem:[%s235 + $0x30f] sm:$0xff]
  %v538 = vld [vmem:[%s235 + $0x327] sm:$0xff]
  %v539 = vld [vmem:[%s235 + $0x32f] sm:$0xff]
  %v540 = vld [vmem:[%s235 + $0x347] sm:$0xff]
  %v541 = vld [vmem:[%s235 + $0x34f] sm:$0xff]
  %v542 = vld [vmem:[%s235 + $0x367] sm:$0xff]
  %v543 = vld [vmem:[%s235 + $0x36f] sm:$0xff]
  %v544 = vld [vmem:[%s235 + $0x387] sm:$0xff]
  %v545 = vld [vmem:[%s235 + $0x38f] sm:$0xff]
  %v546 = vld [vmem:[%s235 + $0x3a7] sm:$0xff]
  %v547 = vld [vmem:[%s235 + $0x3af] sm:$0xff]
  %v548 = vld [vmem:[%s235 + $0x3c7] sm:$0xff]
  %v549 = vld [vmem:[%s235 + $0x3cf] sm:$0xff]
  %v550 = vld [vmem:[%s235 + $0x3e7] sm:$0xff]
  %v551 = vld [vmem:[%s235 + $0x3ef] sm:$0xff]
  %v552 = vld [vmem:[%s235 + $0x407] sm:$0xff]
  %v553 = vld [vmem:[%s235 + $0x40f] sm:$0xff]
  %v554 = vld [vmem:[%s235 + $0x427] sm:$0xff]
  %v555 = vld [vmem:[%s235 + $0x42f] sm:$0xff]
  %v556 = vld [vmem:[%s235 + $0x8] sm:$0xff]
  %v557 = vld [vmem:[%s235 + $0x10] sm:$0xff]
  %v558 = vld [vmem:[%s235 + $0x28] sm:$0xff]
  %v559 = vld [vmem:[%s235 + $0x30] sm:$0xff]
  %v560 = vld [vmem:[%s235 + $0x48] sm:$0xff]
  %v561 = vld [vmem:[%s235 + $0x50] sm:$0xff]
  %v562 = vld [vmem:[%s235 + $0x68] sm:$0xff]
  %v563 = vld [vmem:[%s235 + $0x70] sm:$0xff]
  %v564 = vld [vmem:[%s235 + $0x88] sm:$0xff]
  %v565 = vld [vmem:[%s235 + $0x90] sm:$0xff]
  %v566 = vld [vmem:[%s235 + $0xa8] sm:$0xff]
  %v567 = vld [vmem:[%s235 + $0xb0] sm:$0xff]
  %v568 = vld [vmem:[%s235 + $0xc8] sm:$0xff]
  %v569 = vld [vmem:[%s235 + $0xd0] sm:$0xff]
  %v570 = vld [vmem:[%s235 + $0xe8] sm:$0xff]
  %v571 = vld [vmem:[%s235 + $0xf0] sm:$0xff]
  %v572 = vld [vmem:[%s235 + $0x108] sm:$0xff]
  %v573 = vld [vmem:[%s235 + $0x110] sm:$0xff]
  %v574 = vld [vmem:[%s235 + $0x128] sm:$0xff]
  %v575 = vld [vmem:[%s235 + $0x130] sm:$0xff]
  %v576 = vld [vmem:[%s235 + $0x148] sm:$0xff]
  %v577 = vld [vmem:[%s235 + $0x150] sm:$0xff]
  %v578 = vld [vmem:[%s235 + $0x168] sm:$0xff]
  %v579 = vld [vmem:[%s235 + $0x170] sm:$0xff]
  %v580 = vld [vmem:[%s235 + $0x188] sm:$0xff]
  %v581 = vld [vmem:[%s235 + $0x190] sm:$0xff]
  %v582 = vld [vmem:[%s235 + $0x1a8] sm:$0xff]
  %v583 = vld [vmem:[%s235 + $0x1b0] sm:$0xff]
  %v584 = vld [vmem:[%s235 + $0x1c8] sm:$0xff]
  %v585 = vld [vmem:[%s235 + $0x1d0] sm:$0xff]
  %v586 = vld [vmem:[%s235 + $0x1e8] sm:$0xff]
  %v587 = vld [vmem:[%s235 + $0x1f0] sm:$0xff]
  %v588 = vld [vmem:[%s235 + $0x248] sm:$0xff]
  %v589 = vld [vmem:[%s235 + $0x250] sm:$0xff]
  %v590 = vld [vmem:[%s235 + $0x268] sm:$0xff]
  %v591 = vld [vmem:[%s235 + $0x270] sm:$0xff]
  %v592 = vld [vmem:[%s235 + $0x288] sm:$0xff]
  %v593 = vld [vmem:[%s235 + $0x290] sm:$0xff]
  %v594 = vld [vmem:[%s235 + $0x2a8] sm:$0xff]
  %v595 = vld [vmem:[%s235 + $0x2b0] sm:$0xff]
  %v596 = vld [vmem:[%s235 + $0x2c8] sm:$0xff]
  %v597 = vld [vmem:[%s235 + $0x2d0] sm:$0xff]
  %v598 = vld [vmem:[%s235 + $0x2e8] sm:$0xff]
  %v599 = vld [vmem:[%s235 + $0x2f0] sm:$0xff]
  %v600 = vld [vmem:[%s235 + $0x308] sm:$0xff]
  %v601 = vld [vmem:[%s235 + $0x310] sm:$0xff]
  %v602 = vld [vmem:[%s235 + $0x328] sm:$0xff]
  %v603 = vld [vmem:[%s235 + $0x330] sm:$0xff]
  %v604 = vld [vmem:[%s235 + $0x348] sm:$0xff]
  %v605 = vld [vmem:[%s235 + $0x350] sm:$0xff]
  %v606 = vld [vmem:[%s235 + $0x368] sm:$0xff]
  %v607 = vld [vmem:[%s235 + $0x370] sm:$0xff]
  %v608 = vld [vmem:[%s235 + $0x388] sm:$0xff]
  %v609 = vld [vmem:[%s235 + $0x390] sm:$0xff]
  %v610 = vld [vmem:[%s235 + $0x3a8] sm:$0xff]
  %v611 = vld [vmem:[%s235 + $0x3b0] sm:$0xff]
  %v612 = vld [vmem:[%s235 + $0x3c8] sm:$0xff]
  %v613 = vld [vmem:[%s235 + $0x3d0] sm:$0xff]
  %v614 = vld [vmem:[%s235 + $0x3e8] sm:$0xff]
  %v615 = vld [vmem:[%s235 + $0x3f0] sm:$0xff]
  %v616 = vld [vmem:[%s235 + $0x408] sm:$0xff]
  %v617 = vld [vmem:[%s235 + $0x410] sm:$0xff]
  %v618 = vld [vmem:[%s235 + $0x428] sm:$0xff]
  %v619 = vld [vmem:[%s235 + $0x430] sm:$0xff]
  %v620 = vld [vmem:[%s235 + $0x9] sm:$0xff]
  %v621 = vld [vmem:[%s235 + $0x11] sm:$0xff]
  %v622 = vld [vmem:[%s235 + $0x29] sm:$0xff]
  %v623 = vld [vmem:[%s235 + $0x31] sm:$0xff]
  %v624 = vld [vmem:[%s235 + $0x49] sm:$0xff]
  %v625 = vld [vmem:[%s235 + $0x51] sm:$0xff]
  %v626 = vld [vmem:[%s235 + $0x69] sm:$0xff]
  %v627 = vld [vmem:[%s235 + $0x71] sm:$0xff]
  %v628 = vld [vmem:[%s235 + $0x89] sm:$0xff]
  %v629 = vld [vmem:[%s235 + $0x91] sm:$0xff]
  %v630 = vld [vmem:[%s235 + $0xa9] sm:$0xff]
  %v631 = vld [vmem:[%s235 + $0xb1] sm:$0xff]
  %v632 = vld [vmem:[%s235 + $0xc9] sm:$0xff]
  %v633 = vld [vmem:[%s235 + $0xd1] sm:$0xff]
  %v634 = vld [vmem:[%s235 + $0xe9] sm:$0xff]
  %v635 = vld [vmem:[%s235 + $0xf1] sm:$0xff]
  %v636 = vld [vmem:[%s235 + $0x109] sm:$0xff]
  %v637 = vld [vmem:[%s235 + $0x111] sm:$0xff]
  %v638 = vld [vmem:[%s235 + $0x129] sm:$0xff]
  %v639 = vld [vmem:[%s235 + $0x131] sm:$0xff]
  %v640 = vld [vmem:[%s235 + $0x149] sm:$0xff]
  %v641 = vld [vmem:[%s235 + $0x151] sm:$0xff]
  %v642 = vld [vmem:[%s235 + $0x169] sm:$0xff]
  %v643 = vld [vmem:[%s235 + $0x171] sm:$0xff]
  %v644 = vld [vmem:[%s235 + $0x189] sm:$0xff]
  %v645 = vld [vmem:[%s235 + $0x191] sm:$0xff]
  %v646 = vld [vmem:[%s235 + $0x1a9] sm:$0xff]
  %v647 = vld [vmem:[%s235 + $0x1b1] sm:$0xff]
  %v648 = vld [vmem:[%s235 + $0x1c9] sm:$0xff]
  %v649 = vld [vmem:[%s235 + $0x1d1] sm:$0xff]
  %v650 = vld [vmem:[%s235 + $0x1e9] sm:$0xff]
  %v651 = vld [vmem:[%s235 + $0x1f1] sm:$0xff]
  %v652 = vld [vmem:[%s235 + $0x249] sm:$0xff]
  %v653 = vld [vmem:[%s235 + $0x251] sm:$0xff]
  %v654 = vld [vmem:[%s235 + $0x269] sm:$0xff]
  %v655 = vld [vmem:[%s235 + $0x271] sm:$0xff]
  %v656 = vld [vmem:[%s235 + $0x289] sm:$0xff]
  %v657 = vld [vmem:[%s235 + $0x291] sm:$0xff]
  %v658 = vld [vmem:[%s235 + $0x2a9] sm:$0xff]
  %v659 = vld [vmem:[%s235 + $0x2b1] sm:$0xff]
  %v660 = vld [vmem:[%s235 + $0x2c9] sm:$0xff]
  %v661 = vld [vmem:[%s235 + $0x2d1] sm:$0xff]
  %v662 = vld [vmem:[%s235 + $0x2e9] sm:$0xff]
  %v663 = vld [vmem:[%s235 + $0x2f1] sm:$0xff]
  %v664 = vld [vmem:[%s235 + $0x309] sm:$0xff]
  %v665 = vld [vmem:[%s235 + $0x311] sm:$0xff]
  %v666 = vld [vmem:[%s235 + $0x329] sm:$0xff]
  %v667 = vld [vmem:[%s235 + $0x331] sm:$0xff]
  %v668 = vld [vmem:[%s235 + $0x349] sm:$0xff]
  %v669 = vld [vmem:[%s235 + $0x351] sm:$0xff]
  %v670 = vld [vmem:[%s235 + $0x369] sm:$0xff]
  %v671 = vld [vmem:[%s235 + $0x371] sm:$0xff]
  %v672 = vld [vmem:[%s235 + $0x389] sm:$0xff]
  %v673 = vld [vmem:[%s235 + $0x391] sm:$0xff]
  %v674 = vld [vmem:[%s235 + $0x3a9] sm:$0xff]
  %v675 = vld [vmem:[%s235 + $0x3b1] sm:$0xff]
  %v676 = vld [vmem:[%s235 + $0x3c9] sm:$0xff]
  %v677 = vld [vmem:[%s235 + $0x3d1] sm:$0xff]
  %v678 = vld [vmem:[%s235 + $0x3e9] sm:$0xff]
  %v679 = vld [vmem:[%s235 + $0x3f1] sm:$0xff]
  %v680 = vld [vmem:[%s235 + $0x409] sm:$0xff]
  %v681 = vld [vmem:[%s235 + $0x411] sm:$0xff]
  %v682 = vld [vmem:[%s235 + $0x429] sm:$0xff]
  %v683 = vld [vmem:[%s235 + $0x431] sm:$0xff]
  %s684 = scalar_lea.vmem [#allocation2], 64
  %v685 = vld [vmem:[%s684 + $0x7] sm:$0xff]
  %v686 = vld [vmem:[%s684 + $0xf] sm:$0xff]
  %v687 = vld [vmem:[%s684 + $0x27] sm:$0xff]
  %v688 = vld [vmem:[%s684 + $0x2f] sm:$0xff]
  %v689 = vld [vmem:[%s684 + $0x47] sm:$0xff]
  %v690 = vld [vmem:[%s684 + $0x4f] sm:$0xff]
  %v691 = vld [vmem:[%s684 + $0x67] sm:$0xff]
  %v692 = vld [vmem:[%s684 + $0x6f] sm:$0xff]
  %v693 = vld [vmem:[%s684 + $0x87] sm:$0xff]
  %v694 = vld [vmem:[%s684 + $0x8f] sm:$0xff]
  %v695 = vld [vmem:[%s684 + $0xa7] sm:$0xff]
  %v696 = vld [vmem:[%s684 + $0xaf] sm:$0xff]
  %v697 = vld [vmem:[%s684 + $0xc7] sm:$0xff]
  %v698 = vld [vmem:[%s684 + $0xcf] sm:$0xff]
  %v699 = vld [vmem:[%s684 + $0xe7] sm:$0xff]
  %v700 = vld [vmem:[%s684 + $0xef] sm:$0xff]
  %v701 = vld [vmem:[%s684 + $0x107] sm:$0xff]
  %v702 = vld [vmem:[%s684 + $0x10f] sm:$0xff]
  %v703 = vld [vmem:[%s684 + $0x127] sm:$0xff]
  %v704 = vld [vmem:[%s684 + $0x12f] sm:$0xff]
  %v705 = vld [vmem:[%s684 + $0x147] sm:$0xff]
  %v706 = vld [vmem:[%s684 + $0x14f] sm:$0xff]
  %v707 = vld [vmem:[%s684 + $0x167] sm:$0xff]
  %v708 = vld [vmem:[%s684 + $0x16f] sm:$0xff]
  %v709 = vld [vmem:[%s684 + $0x187] sm:$0xff]
  %v710 = vld [vmem:[%s684 + $0x18f] sm:$0xff]
  %v711 = vld [vmem:[%s684 + $0x1a7] sm:$0xff]
  %v712 = vld [vmem:[%s684 + $0x1af] sm:$0xff]
  %v713 = vld [vmem:[%s684 + $0x1c7] sm:$0xff]
  %v714 = vld [vmem:[%s684 + $0x1cf] sm:$0xff]
  %v715 = vld [vmem:[%s684 + $0x1e7] sm:$0xff]
  %v716 = vld [vmem:[%s684 + $0x1ef] sm:$0xff]
  %v717 = vld [vmem:[%s684 + $0x247] sm:$0xff]
  %v718 = vld [vmem:[%s684 + $0x24f] sm:$0xff]
  %v719 = vld [vmem:[%s684 + $0x267] sm:$0xff]
  %v720 = vld [vmem:[%s684 + $0x26f] sm:$0xff]
  %v721 = vld [vmem:[%s684 + $0x287] sm:$0xff]
  %v722 = vld [vmem:[%s684 + $0x28f] sm:$0xff]
  %v723 = vld [vmem:[%s684 + $0x2a7] sm:$0xff]
  %v724 = vld [vmem:[%s684 + $0x2af] sm:$0xff]
  %v725 = vld [vmem:[%s684 + $0x2c7] sm:$0xff]
  %v726 = vld [vmem:[%s684 + $0x2cf] sm:$0xff]
  %v727 = vld [vmem:[%s684 + $0x2e7] sm:$0xff]
  %v728 = vld [vmem:[%s684 + $0x2ef] sm:$0xff]
  %v729 = vld [vmem:[%s684 + $0x307] sm:$0xff]
  %v730 = vld [vmem:[%s684 + $0x30f] sm:$0xff]
  %v731 = vld [vmem:[%s684 + $0x327] sm:$0xff]
  %v732 = vld [vmem:[%s684 + $0x32f] sm:$0xff]
  %v733 = vld [vmem:[%s684 + $0x347] sm:$0xff]
  %v734 = vld [vmem:[%s684 + $0x34f] sm:$0xff]
  %v735 = vld [vmem:[%s684 + $0x367] sm:$0xff]
  %v736 = vld [vmem:[%s684 + $0x36f] sm:$0xff]
  %v737 = vld [vmem:[%s684 + $0x387] sm:$0xff]
  %v738 = vld [vmem:[%s684 + $0x38f] sm:$0xff]
  %v739 = vld [vmem:[%s684 + $0x3a7] sm:$0xff]
  %v740 = vld [vmem:[%s684 + $0x3af] sm:$0xff]
  %v741 = vld [vmem:[%s684 + $0x3c7] sm:$0xff]
  %v742 = vld [vmem:[%s684 + $0x3cf] sm:$0xff]
  %v743 = vld [vmem:[%s684 + $0x3e7] sm:$0xff]
  %v744 = vld [vmem:[%s684 + $0x3ef] sm:$0xff]
  %v745 = vld [vmem:[%s684 + $0x407] sm:$0xff]
  %v746 = vld [vmem:[%s684 + $0x40f] sm:$0xff]
  %v747 = vld [vmem:[%s684 + $0x427] sm:$0xff]
  %v748 = vld [vmem:[%s684 + $0x42f] sm:$0xff]
  %v749 = vld [vmem:[%s684 + $0x8] sm:$0xff]
  %v750 = vld [vmem:[%s684 + $0x10] sm:$0xff]
  %v751 = vld [vmem:[%s684 + $0x28] sm:$0xff]
  %v752 = vld [vmem:[%s684 + $0x30] sm:$0xff]
  %v753 = vld [vmem:[%s684 + $0x48] sm:$0xff]
  %v754 = vld [vmem:[%s684 + $0x50] sm:$0xff]
  %v755 = vld [vmem:[%s684 + $0x68] sm:$0xff]
  %v756 = vld [vmem:[%s684 + $0x70] sm:$0xff]
  %v757 = vld [vmem:[%s684 + $0x88] sm:$0xff]
  %v758 = vld [vmem:[%s684 + $0x90] sm:$0xff]
  %v759 = vld [vmem:[%s684 + $0xa8] sm:$0xff]
  %v760 = vld [vmem:[%s684 + $0xb0] sm:$0xff]
  %v761 = vld [vmem:[%s684 + $0xc8] sm:$0xff]
  %v762 = vld [vmem:[%s684 + $0xd0] sm:$0xff]
  %v763 = vld [vmem:[%s684 + $0xe8] sm:$0xff]
  %v764 = vld [vmem:[%s684 + $0xf0] sm:$0xff]
  %v765 = vld [vmem:[%s684 + $0x108] sm:$0xff]
  %v766 = vld [vmem:[%s684 + $0x110] sm:$0xff]
  %v767 = vld [vmem:[%s684 + $0x128] sm:$0xff]
  %v768 = vld [vmem:[%s684 + $0x130] sm:$0xff]
  %v769 = vld [vmem:[%s684 + $0x148] sm:$0xff]
  %v770 = vld [vmem:[%s684 + $0x150] sm:$0xff]
  %v771 = vld [vmem:[%s684 + $0x168] sm:$0xff]
  %v772 = vld [vmem:[%s684 + $0x170] sm:$0xff]
  %v773 = vld [vmem:[%s684 + $0x188] sm:$0xff]
  %v774 = vld [vmem:[%s684 + $0x190] sm:$0xff]
  %v775 = vld [vmem:[%s684 + $0x1a8] sm:$0xff]
  %v776 = vld [vmem:[%s684 + $0x1b0] sm:$0xff]
  %v777 = vld [vmem:[%s684 + $0x1c8] sm:$0xff]
  %v778 = vld [vmem:[%s684 + $0x1d0] sm:$0xff]
  %v779 = vld [vmem:[%s684 + $0x1e8] sm:$0xff]
  %v780 = vld [vmem:[%s684 + $0x1f0] sm:$0xff]
  %v781 = vld [vmem:[%s684 + $0x248] sm:$0xff]
  %v782 = vld [vmem:[%s684 + $0x250] sm:$0xff]
  %v783 = vld [vmem:[%s684 + $0x268] sm:$0xff]
  %v784 = vld [vmem:[%s684 + $0x270] sm:$0xff]
  %v785 = vld [vmem:[%s684 + $0x288] sm:$0xff]
  %v786 = vld [vmem:[%s684 + $0x290] sm:$0xff]
  %v787 = vld [vmem:[%s684 + $0x2a8] sm:$0xff]
  %v788 = vld [vmem:[%s684 + $0x2b0] sm:$0xff]
  %v789 = vld [vmem:[%s684 + $0x2c8] sm:$0xff]
  %v790 = vld [vmem:[%s684 + $0x2d0] sm:$0xff]
  %v791 = vld [vmem:[%s684 + $0x2e8] sm:$0xff]
  %v792 = vld [vmem:[%s684 + $0x2f0] sm:$0xff]
  %v793 = vld [vmem:[%s684 + $0x308] sm:$0xff]
  %v794 = vld [vmem:[%s684 + $0x310] sm:$0xff]
  %v795 = vld [vmem:[%s684 + $0x328] sm:$0xff]
  %v796 = vld [vmem:[%s684 + $0x330] sm:$0xff]
  %v797 = vld [vmem:[%s684 + $0x348] sm:$0xff]
  %v798 = vld [vmem:[%s684 + $0x350] sm:$0xff]
  %v799 = vld [vmem:[%s684 + $0x368] sm:$0xff]
  %v800 = vld [vmem:[%s684 + $0x370] sm:$0xff]
  %v801 = vld [vmem:[%s684 + $0x388] sm:$0xff]
  %v802 = vld [vmem:[%s684 + $0x390] sm:$0xff]
  %v803 = vld [vmem:[%s684 + $0x3a8] sm:$0xff]
  %v804 = vld [vmem:[%s684 + $0x3b0] sm:$0xff]
  %v805 = vld [vmem:[%s684 + $0x3c8] sm:$0xff]
  %v806 = vld [vmem:[%s684 + $0x3d0] sm:$0xff]
  %v807 = vld [vmem:[%s684 + $0x3e8] sm:$0xff]
  %v808 = vld [vmem:[%s684 + $0x3f0] sm:$0xff]
  %v809 = vld [vmem:[%s684 + $0x408] sm:$0xff]
  %v810 = vld [vmem:[%s684 + $0x410] sm:$0xff]
  %v811 = vld [vmem:[%s684 + $0x428] sm:$0xff]
  %v812 = vld [vmem:[%s684 + $0x430] sm:$0xff]
  %v813 = vld [vmem:[%s684 + $0x9] sm:$0xff]
  %v814 = vld [vmem:[%s684 + $0x11] sm:$0xff]
  %v815 = vld [vmem:[%s684 + $0x29] sm:$0xff]
  %v816 = vld [vmem:[%s684 + $0x31] sm:$0xff]
  %v817 = vld [vmem:[%s684 + $0x49] sm:$0xff]
  %v818 = vld [vmem:[%s684 + $0x51] sm:$0xff]
  %v819 = vld [vmem:[%s684 + $0x69] sm:$0xff]
  %v820 = vld [vmem:[%s684 + $0x71] sm:$0xff]
  %v821 = vld [vmem:[%s684 + $0x89] sm:$0xff]
  %v822 = vld [vmem:[%s684 + $0x91] sm:$0xff]
  %v823 = vld [vmem:[%s684 + $0xa9] sm:$0xff]
  %v824 = vld [vmem:[%s684 + $0xb1] sm:$0xff]
  %v825 = vld [vmem:[%s684 + $0xc9] sm:$0xff]
  %v826 = vld [vmem:[%s684 + $0xd1] sm:$0xff]
  %v827 = vld [vmem:[%s684 + $0xe9] sm:$0xff]
  %v828 = vld [vmem:[%s684 + $0xf1] sm:$0xff]
  %v829 = vld [vmem:[%s684 + $0x109] sm:$0xff]
  %v830 = vld [vmem:[%s684 + $0x111] sm:$0xff]
  %v831 = vld [vmem:[%s684 + $0x129] sm:$0xff]
  %v832 = vld [vmem:[%s684 + $0x131] sm:$0xff]
  %v833 = vld [vmem:[%s684 + $0x149] sm:$0xff]
  %v834 = vld [vmem:[%s684 + $0x151] sm:$0xff]
  %v835 = vld [vmem:[%s684 + $0x169] sm:$0xff]
  %v836 = vld [vmem:[%s684 + $0x171] sm:$0xff]
  %v837 = vld [vmem:[%s684 + $0x189] sm:$0xff]
  %v838 = vld [vmem:[%s684 + $0x191] sm:$0xff]
  %v839 = vld [vmem:[%s684 + $0x1a9] sm:$0xff]
  %v840 = vld [vmem:[%s684 + $0x1b1] sm:$0xff]
  %v841 = vld [vmem:[%s684 + $0x1c9] sm:$0xff]
  %v842 = vld [vmem:[%s684 + $0x1d1] sm:$0xff]
  %v843 = vld [vmem:[%s684 + $0x1e9] sm:$0xff]
  %v844 = vld [vmem:[%s684 + $0x1f1] sm:$0xff]
  %v845 = vld [vmem:[%s684 + $0x249] sm:$0xff]
  %v846 = vld [vmem:[%s684 + $0x251] sm:$0xff]
  %v847 = vld [vmem:[%s684 + $0x269] sm:$0xff]
  %v848 = vld [vmem:[%s684 + $0x271] sm:$0xff]
  %v849 = vld [vmem:[%s684 + $0x289] sm:$0xff]
  %v850 = vld [vmem:[%s684 + $0x291] sm:$0xff]
  %v851 = vld [vmem:[%s684 + $0x2a9] sm:$0xff]
  %v852 = vld [vmem:[%s684 + $0x2b1] sm:$0xff]
  %v853 = vld [vmem:[%s684 + $0x2c9] sm:$0xff]
  %v854 = vld [vmem:[%s684 + $0x2d1] sm:$0xff]
  %v855 = vld [vmem:[%s684 + $0x2e9] sm:$0xff]
  %v856 = vld [vmem:[%s684 + $0x2f1] sm:$0xff]
  %v857 = vld [vmem:[%s684 + $0x309] sm:$0xff]
  %v858 = vld [vmem:[%s684 + $0x311] sm:$0xff]
  %v859 = vld [vmem:[%s684 + $0x329] sm:$0xff]
  %v860 = vld [vmem:[%s684 + $0x331] sm:$0xff]
  %v861 = vld [vmem:[%s684 + $0x349] sm:$0xff]
  %v862 = vld [vmem:[%s684 + $0x351] sm:$0xff]
  %v863 = vld [vmem:[%s684 + $0x369] sm:$0xff]
  %v864 = vld [vmem:[%s684 + $0x371] sm:$0xff]
  %v865 = vld [vmem:[%s684 + $0x389] sm:$0xff]
  %v866 = vld [vmem:[%s684 + $0x391] sm:$0xff]
  %v867 = vld [vmem:[%s684 + $0x3a9] sm:$0xff]
  %v868 = vld [vmem:[%s684 + $0x3b1] sm:$0xff]
  %v869 = vld [vmem:[%s684 + $0x3c9] sm:$0xff]
  %v870 = vld [vmem:[%s684 + $0x3d1] sm:$0xff]
  %v871 = vld [vmem:[%s684 + $0x3e9] sm:$0xff]
  %v872 = vld [vmem:[%s684 + $0x3f1] sm:$0xff]
  %v873 = vld [vmem:[%s684 + $0x409] sm:$0xff]
  %v874 = vld [vmem:[%s684 + $0x411] sm:$0xff]
  %v875 = vld [vmem:[%s684 + $0x429] sm:$0xff]
  %v876 = vld [vmem:[%s684 + $0x431] sm:$0xff]
  %941 = vrot.lane.b32.xlu0 %v364, 4
  %v942 = vpop.permute.xlu0 %941
  %943 = vrot.lane.b32.xlu0 %v365, 4
  %v944 = vpop.permute.xlu0 %943
  %945 = vrot.lane.b32.xlu0 %v366, 4
  %v946 = vpop.permute.xlu0 %945
  %947 = vrot.lane.b32.xlu0 %v367, 4
  %v948 = vpop.permute.xlu0 %947
  %949 = vrot.lane.b32.xlu0 %v368, 4
  %v950 = vpop.permute.xlu0 %949
  %951 = vrot.lane.b32.xlu0 %v369, 4
  %v952 = vpop.permute.xlu0 %951
  %953 = vrot.lane.b32.xlu0 %v370, 4
  %v954 = vpop.permute.xlu0 %953
  %955 = vrot.lane.b32.xlu0 %v371, 4
  %v956 = vpop.permute.xlu0 %955
  %957 = vrot.lane.b32.xlu0 %v372, 4
  %v958 = vpop.permute.xlu0 %957
  %959 = vrot.lane.b32.xlu0 %v373, 4
  %v960 = vpop.permute.xlu0 %959
  %961 = vrot.lane.b32.xlu0 %v374, 4
  %v962 = vpop.permute.xlu0 %961
  %963 = vrot.lane.b32.xlu0 %v375, 4
  %v964 = vpop.permute.xlu0 %963
  %965 = vrot.lane.b32.xlu0 %v376, 4
  %v966 = vpop.permute.xlu0 %965
  %967 = vrot.lane.b32.xlu0 %v377, 4
  %v968 = vpop.permute.xlu0 %967
  %969 = vrot.lane.b32.xlu0 %v378, 4
  %v970 = vpop.permute.xlu0 %969
  %971 = vrot.lane.b32.xlu0 %v379, 4
  %v972 = vpop.permute.xlu0 %971
  %973 = vrot.lane.b32.xlu0 %v380, 4
  %v974 = vpop.permute.xlu0 %973
  %975 = vrot.lane.b32.xlu0 %v381, 4
  %v976 = vpop.permute.xlu0 %975
  %977 = vrot.lane.b32.xlu0 %v382, 4
  %v978 = vpop.permute.xlu0 %977
  %979 = vrot.lane.b32.xlu0 %v383, 4
  %v980 = vpop.permute.xlu0 %979
  %981 = vrot.lane.b32.xlu0 %v384, 4
  %v982 = vpop.permute.xlu0 %981
  %983 = vrot.lane.b32.xlu0 %v385, 4
  %v984 = vpop.permute.xlu0 %983
  %985 = vrot.lane.b32.xlu0 %v386, 4
  %v986 = vpop.permute.xlu0 %985
  %987 = vrot.lane.b32.xlu0 %v387, 4
  %v988 = vpop.permute.xlu0 %987
  %989 = vrot.lane.b32.xlu0 %v388, 4
  %v990 = vpop.permute.xlu0 %989
  %991 = vrot.lane.b32.xlu0 %v389, 4
  %v992 = vpop.permute.xlu0 %991
  %993 = vrot.lane.b32.xlu0 %v390, 4
  %v994 = vpop.permute.xlu0 %993
  %995 = vrot.lane.b32.xlu0 %v391, 4
  %v996 = vpop.permute.xlu0 %995
  %997 = vrot.lane.b32.xlu0 %v392, 4
  %v998 = vpop.permute.xlu0 %997
  %999 = vrot.lane.b32.xlu0 %v393, 4
  %v1000 = vpop.permute.xlu0 %999
  %1001 = vrot.lane.b32.xlu0 %v394, 4
  %v1002 = vpop.permute.xlu0 %1001
  %1003 = vrot.lane.b32.xlu0 %v395, 4
  %v1004 = vpop.permute.xlu0 %1003
  %1005 = vrot.lane.b32.xlu0 %v396, 4
  %v1006 = vpop.permute.xlu0 %1005
  %1007 = vrot.lane.b32.xlu0 %v397, 4
  %v1008 = vpop.permute.xlu0 %1007
  %1009 = vrot.lane.b32.xlu0 %v398, 4
  %v1010 = vpop.permute.xlu0 %1009
  %1011 = vrot.lane.b32.xlu0 %v399, 4
  %v1012 = vpop.permute.xlu0 %1011
  %1013 = vrot.lane.b32.xlu0 %v400, 4
  %v1014 = vpop.permute.xlu0 %1013
  %1015 = vrot.lane.b32.xlu0 %v401, 4
  %v1016 = vpop.permute.xlu0 %1015
  %1017 = vrot.lane.b32.xlu0 %v402, 4
  %v1018 = vpop.permute.xlu0 %1017
  %1019 = vrot.lane.b32.xlu0 %v403, 4
  %v1020 = vpop.permute.xlu0 %1019
  %1021 = vrot.lane.b32.xlu0 %v404, 4
  %v1022 = vpop.permute.xlu0 %1021
  %1023 = vrot.lane.b32.xlu0 %v405, 4
  %v1024 = vpop.permute.xlu0 %1023
  %1025 = vrot.lane.b32.xlu0 %v406, 4
  %v1026 = vpop.permute.xlu0 %1025
  %1027 = vrot.lane.b32.xlu0 %v407, 4
  %v1028 = vpop.permute.xlu0 %1027
  %1029 = vrot.lane.b32.xlu0 %v408, 4
  %v1030 = vpop.permute.xlu0 %1029
  %1031 = vrot.lane.b32.xlu0 %v409, 4
  %v1032 = vpop.permute.xlu0 %1031
  %1033 = vrot.lane.b32.xlu0 %v410, 4
  %v1034 = vpop.permute.xlu0 %1033
  %1035 = vrot.lane.b32.xlu0 %v411, 4
  %v1036 = vpop.permute.xlu0 %1035
  %1037 = vrot.lane.b32.xlu0 %v412, 4
  %v1038 = vpop.permute.xlu0 %1037
  %1039 = vrot.lane.b32.xlu0 %v413, 4
  %v1040 = vpop.permute.xlu0 %1039
  %1041 = vrot.lane.b32.xlu0 %v414, 4
  %v1042 = vpop.permute.xlu0 %1041
  %1043 = vrot.lane.b32.xlu0 %v415, 4
  %v1044 = vpop.permute.xlu0 %1043
  %1045 = vrot.lane.b32.xlu0 %v416, 4
  %v1046 = vpop.permute.xlu0 %1045
  %1047 = vrot.lane.b32.xlu0 %v417, 4
  %v1048 = vpop.permute.xlu0 %1047
  %1049 = vrot.lane.b32.xlu0 %v418, 4
  %v1050 = vpop.permute.xlu0 %1049
  %1051 = vrot.lane.b32.xlu0 %v419, 4
  %v1052 = vpop.permute.xlu0 %1051
  %1053 = vrot.lane.b32.xlu0 %v420, 4
  %v1054 = vpop.permute.xlu0 %1053
  %1055 = vrot.lane.b32.xlu0 %v421, 4
  %v1056 = vpop.permute.xlu0 %1055
  %1057 = vrot.lane.b32.xlu0 %v422, 4
  %v1058 = vpop.permute.xlu0 %1057
  %1059 = vrot.lane.b32.xlu0 %v423, 4
  %v1060 = vpop.permute.xlu0 %1059
  %1061 = vrot.lane.b32.xlu0 %v424, 4
  %v1062 = vpop.permute.xlu0 %1061
  %1063 = vrot.lane.b32.xlu0 %v425, 4
  %v1064 = vpop.permute.xlu0 %1063
  %1065 = vrot.lane.b32.xlu0 %v426, 4
  %v1066 = vpop.permute.xlu0 %1065
  %1067 = vrot.lane.b32.xlu0 %v427, 4
  %v1068 = vpop.permute.xlu0 %1067
  %1197 = vrot.lane.b32.xlu0 %v428, 8
  %v1198 = vpop.permute.xlu0 %1197
  %1199 = vrot.lane.b32.xlu0 %v429, 8
  %v1200 = vpop.permute.xlu0 %1199
  %1201 = vrot.lane.b32.xlu0 %v430, 8
  %v1202 = vpop.permute.xlu0 %1201
  %1203 = vrot.lane.b32.xlu0 %v431, 8
  %v1204 = vpop.permute.xlu0 %1203
  %1205 = vrot.lane.b32.xlu0 %v432, 8
  %v1206 = vpop.permute.xlu0 %1205
  %1207 = vrot.lane.b32.xlu0 %v433, 8
  %v1208 = vpop.permute.xlu0 %1207
  %1209 = vrot.lane.b32.xlu0 %v434, 8
  %v1210 = vpop.permute.xlu0 %1209
  %1211 = vrot.lane.b32.xlu0 %v435, 8
  %v1212 = vpop.permute.xlu0 %1211
  %1213 = vrot.lane.b32.xlu0 %v436, 8
  %v1214 = vpop.permute.xlu0 %1213
  %1215 = vrot.lane.b32.xlu0 %v437, 8
  %v1216 = vpop.permute.xlu0 %1215
  %1217 = vrot.lane.b32.xlu0 %v438, 8
  %v1218 = vpop.permute.xlu0 %1217
  %1219 = vrot.lane.b32.xlu0 %v439, 8
  %v1220 = vpop.permute.xlu0 %1219
  %1221 = vrot.lane.b32.xlu0 %v440, 8
  %v1222 = vpop.permute.xlu0 %1221
  %1223 = vrot.lane.b32.xlu0 %v441, 8
  %v1224 = vpop.permute.xlu0 %1223
  %1225 = vrot.lane.b32.xlu0 %v442, 8
  %v1226 = vpop.permute.xlu0 %1225
  %1227 = vrot.lane.b32.xlu0 %v443, 8
  %v1228 = vpop.permute.xlu0 %1227
  %1229 = vrot.lane.b32.xlu0 %v444, 8
  %v1230 = vpop.permute.xlu0 %1229
  %1231 = vrot.lane.b32.xlu0 %v445, 8
  %v1232 = vpop.permute.xlu0 %1231
  %1233 = vrot.lane.b32.xlu0 %v446, 8
  %v1234 = vpop.permute.xlu0 %1233
  %1235 = vrot.lane.b32.xlu0 %v447, 8
  %v1236 = vpop.permute.xlu0 %1235
  %1237 = vrot.lane.b32.xlu0 %v448, 8
  %v1238 = vpop.permute.xlu0 %1237
  %1239 = vrot.lane.b32.xlu0 %v449, 8
  %v1240 = vpop.permute.xlu0 %1239
  %1241 = vrot.lane.b32.xlu0 %v450, 8
  %v1242 = vpop.permute.xlu0 %1241
  %1243 = vrot.lane.b32.xlu0 %v451, 8
  %v1244 = vpop.permute.xlu0 %1243
  %1245 = vrot.lane.b32.xlu0 %v452, 8
  %v1246 = vpop.permute.xlu0 %1245
  %1247 = vrot.lane.b32.xlu0 %v453, 8
  %v1248 = vpop.permute.xlu0 %1247
  %1249 = vrot.lane.b32.xlu0 %v454, 8
  %v1250 = vpop.permute.xlu0 %1249
  %1251 = vrot.lane.b32.xlu0 %v455, 8
  %v1252 = vpop.permute.xlu0 %1251
  %1253 = vrot.lane.b32.xlu0 %v456, 8
  %v1254 = vpop.permute.xlu0 %1253
  %1255 = vrot.lane.b32.xlu0 %v457, 8
  %v1256 = vpop.permute.xlu0 %1255
  %1257 = vrot.lane.b32.xlu0 %v458, 8
  %v1258 = vpop.permute.xlu0 %1257
  %1259 = vrot.lane.b32.xlu0 %v459, 8
  %v1260 = vpop.permute.xlu0 %1259
  %1261 = vrot.lane.b32.xlu0 %v460, 8
  %v1262 = vpop.permute.xlu0 %1261
  %1263 = vrot.lane.b32.xlu0 %v461, 8
  %v1264 = vpop.permute.xlu0 %1263
  %1265 = vrot.lane.b32.xlu0 %v462, 8
  %v1266 = vpop.permute.xlu0 %1265
  %1267 = vrot.lane.b32.xlu0 %v463, 8
  %v1268 = vpop.permute.xlu0 %1267
  %1269 = vrot.lane.b32.xlu0 %v464, 8
  %v1270 = vpop.permute.xlu0 %1269
  %1271 = vrot.lane.b32.xlu0 %v465, 8
  %v1272 = vpop.permute.xlu0 %1271
  %1273 = vrot.lane.b32.xlu0 %v466, 8
  %v1274 = vpop.permute.xlu0 %1273
  %1275 = vrot.lane.b32.xlu0 %v467, 8
  %v1276 = vpop.permute.xlu0 %1275
  %1277 = vrot.lane.b32.xlu0 %v468, 8
  %v1278 = vpop.permute.xlu0 %1277
  %1279 = vrot.lane.b32.xlu0 %v469, 8
  %v1280 = vpop.permute.xlu0 %1279
  %1281 = vrot.lane.b32.xlu0 %v470, 8
  %v1282 = vpop.permute.xlu0 %1281
  %1283 = vrot.lane.b32.xlu0 %v471, 8
  %v1284 = vpop.permute.xlu0 %1283
  %1285 = vrot.lane.b32.xlu0 %v472, 8
  %v1286 = vpop.permute.xlu0 %1285
  %1287 = vrot.lane.b32.xlu0 %v473, 8
  %v1288 = vpop.permute.xlu0 %1287
  %1289 = vrot.lane.b32.xlu0 %v474, 8
  %v1290 = vpop.permute.xlu0 %1289
  %1291 = vrot.lane.b32.xlu0 %v475, 8
  %v1292 = vpop.permute.xlu0 %1291
  %1293 = vrot.lane.b32.xlu0 %v476, 8
  %v1294 = vpop.permute.xlu0 %1293
  %1295 = vrot.lane.b32.xlu0 %v477, 8
  %v1296 = vpop.permute.xlu0 %1295
  %1297 = vrot.lane.b32.xlu0 %v478, 8
  %v1298 = vpop.permute.xlu0 %1297
  %1299 = vrot.lane.b32.xlu0 %v479, 8
  %v1300 = vpop.permute.xlu0 %1299
  %1301 = vrot.lane.b32.xlu0 %v480, 8
  %v1302 = vpop.permute.xlu0 %1301
  %1303 = vrot.lane.b32.xlu0 %v481, 8
  %v1304 = vpop.permute.xlu0 %1303
  %1305 = vrot.lane.b32.xlu0 %v482, 8
  %v1306 = vpop.permute.xlu0 %1305
  %1307 = vrot.lane.b32.xlu0 %v483, 8
  %v1308 = vpop.permute.xlu0 %1307
  %1309 = vrot.lane.b32.xlu0 %v484, 8
  %v1310 = vpop.permute.xlu0 %1309
  %1311 = vrot.lane.b32.xlu0 %v485, 8
  %v1312 = vpop.permute.xlu0 %1311
  %1313 = vrot.lane.b32.xlu0 %v486, 8
  %v1314 = vpop.permute.xlu0 %1313
  %1315 = vrot.lane.b32.xlu0 %v487, 8
  %v1316 = vpop.permute.xlu0 %1315
  %1317 = vrot.lane.b32.xlu0 %v488, 8
  %v1318 = vpop.permute.xlu0 %1317
  %1319 = vrot.lane.b32.xlu0 %v489, 8
  %v1320 = vpop.permute.xlu0 %1319
  %1321 = vrot.lane.b32.xlu0 %v490, 8
  %v1322 = vpop.permute.xlu0 %1321
  %1323 = vrot.lane.b32.xlu0 %v491, 8
  %v1324 = vpop.permute.xlu0 %1323
  %1453 = vrot.lane.b32.xlu0 %v492, 12
  %v1454 = vpop.permute.xlu0 %1453
  %1455 = vrot.lane.b32.xlu0 %v493, 12
  %v1456 = vpop.permute.xlu0 %1455
  %1457 = vrot.lane.b32.xlu0 %v494, 12
  %v1458 = vpop.permute.xlu0 %1457
  %1459 = vrot.lane.b32.xlu0 %v495, 12
  %v1460 = vpop.permute.xlu0 %1459
  %1461 = vrot.lane.b32.xlu0 %v496, 12
  %v1462 = vpop.permute.xlu0 %1461
  %1463 = vrot.lane.b32.xlu0 %v497, 12
  %v1464 = vpop.permute.xlu0 %1463
  %1465 = vrot.lane.b32.xlu0 %v498, 12
  %v1466 = vpop.permute.xlu0 %1465
  %1467 = vrot.lane.b32.xlu0 %v499, 12
  %v1468 = vpop.permute.xlu0 %1467
  %1469 = vrot.lane.b32.xlu0 %v500, 12
  %v1470 = vpop.permute.xlu0 %1469
  %1471 = vrot.lane.b32.xlu0 %v501, 12
  %v1472 = vpop.permute.xlu0 %1471
  %1473 = vrot.lane.b32.xlu0 %v502, 12
  %v1474 = vpop.permute.xlu0 %1473
  %1475 = vrot.lane.b32.xlu0 %v503, 12
  %v1476 = vpop.permute.xlu0 %1475
  %1477 = vrot.lane.b32.xlu0 %v504, 12
  %v1478 = vpop.permute.xlu0 %1477
  %1479 = vrot.lane.b32.xlu0 %v505, 12
  %v1480 = vpop.permute.xlu0 %1479
  %1481 = vrot.lane.b32.xlu0 %v506, 12
  %v1482 = vpop.permute.xlu0 %1481
  %1483 = vrot.lane.b32.xlu0 %v507, 12
  %v1484 = vpop.permute.xlu0 %1483
  %1485 = vrot.lane.b32.xlu0 %v508, 12
  %v1486 = vpop.permute.xlu0 %1485
  %1487 = vrot.lane.b32.xlu0 %v509, 12
  %v1488 = vpop.permute.xlu0 %1487
  %1489 = vrot.lane.b32.xlu0 %v510, 12
  %v1490 = vpop.permute.xlu0 %1489
  %1491 = vrot.lane.b32.xlu0 %v511, 12
  %v1492 = vpop.permute.xlu0 %1491
  %1493 = vrot.lane.b32.xlu0 %v512, 12
  %v1494 = vpop.permute.xlu0 %1493
  %1495 = vrot.lane.b32.xlu0 %v513, 12
  %v1496 = vpop.permute.xlu0 %1495
  %1497 = vrot.lane.b32.xlu0 %v514, 12
  %v1498 = vpop.permute.xlu0 %1497
  %1499 = vrot.lane.b32.xlu0 %v515, 12
  %v1500 = vpop.permute.xlu0 %1499
  %1501 = vrot.lane.b32.xlu0 %v516, 12
  %v1502 = vpop.permute.xlu0 %1501
  %1503 = vrot.lane.b32.xlu0 %v517, 12
  %v1504 = vpop.permute.xlu0 %1503
  %1505 = vrot.lane.b32.xlu0 %v518, 12
  %v1506 = vpop.permute.xlu0 %1505
  %1507 = vrot.lane.b32.xlu0 %v519, 12
  %v1508 = vpop.permute.xlu0 %1507
  %1509 = vrot.lane.b32.xlu0 %v520, 12
  %v1510 = vpop.permute.xlu0 %1509
  %1511 = vrot.lane.b32.xlu0 %v521, 12
  %v1512 = vpop.permute.xlu0 %1511
  %1513 = vrot.lane.b32.xlu0 %v522, 12
  %v1514 = vpop.permute.xlu0 %1513
  %1515 = vrot.lane.b32.xlu0 %v523, 12
  %v1516 = vpop.permute.xlu0 %1515
  %1517 = vrot.lane.b32.xlu0 %v524, 12
  %v1518 = vpop.permute.xlu0 %1517
  %1519 = vrot.lane.b32.xlu0 %v525, 12
  %v1520 = vpop.permute.xlu0 %1519
  %1521 = vrot.lane.b32.xlu0 %v526, 12
  %v1522 = vpop.permute.xlu0 %1521
  %1523 = vrot.lane.b32.xlu0 %v527, 12
  %v1524 = vpop.permute.xlu0 %1523
  %1525 = vrot.lane.b32.xlu0 %v528, 12
  %v1526 = vpop.permute.xlu0 %1525
  %1527 = vrot.lane.b32.xlu0 %v529, 12
  %v1528 = vpop.permute.xlu0 %1527
  %1529 = vrot.lane.b32.xlu0 %v530, 12
  %v1530 = vpop.permute.xlu0 %1529
  %1531 = vrot.lane.b32.xlu0 %v531, 12
  %v1532 = vpop.permute.xlu0 %1531
  %1533 = vrot.lane.b32.xlu0 %v532, 12
  %v1534 = vpop.permute.xlu0 %1533
  %1535 = vrot.lane.b32.xlu0 %v533, 12
  %v1536 = vpop.permute.xlu0 %1535
  %1537 = vrot.lane.b32.xlu0 %v534, 12
  %v1538 = vpop.permute.xlu0 %1537
  %1539 = vrot.lane.b32.xlu0 %v535, 12
  %v1540 = vpop.permute.xlu0 %1539
  %1541 = vrot.lane.b32.xlu0 %v536, 12
  %v1542 = vpop.permute.xlu0 %1541
  %1543 = vrot.lane.b32.xlu0 %v537, 12
  %v1544 = vpop.permute.xlu0 %1543
  %1545 = vrot.lane.b32.xlu0 %v538, 12
  %v1546 = vpop.permute.xlu0 %1545
  %1547 = vrot.lane.b32.xlu0 %v539, 12
  %v1548 = vpop.permute.xlu0 %1547
  %1549 = vrot.lane.b32.xlu0 %v540, 12
  %v1550 = vpop.permute.xlu0 %1549
  %1551 = vrot.lane.b32.xlu0 %v541, 12
  %v1552 = vpop.permute.xlu0 %1551
  %1553 = vrot.lane.b32.xlu0 %v542, 12
  %v1554 = vpop.permute.xlu0 %1553
  %1555 = vrot.lane.b32.xlu0 %v543, 12
  %v1556 = vpop.permute.xlu0 %1555
  %1557 = vrot.lane.b32.xlu0 %v544, 12
  %v1558 = vpop.permute.xlu0 %1557
  %1559 = vrot.lane.b32.xlu0 %v545, 12
  %v1560 = vpop.permute.xlu0 %1559
  %1561 = vrot.lane.b32.xlu0 %v546, 12
  %v1562 = vpop.permute.xlu0 %1561
  %1563 = vrot.lane.b32.xlu0 %v547, 12
  %v1564 = vpop.permute.xlu0 %1563
  %1565 = vrot.lane.b32.xlu0 %v548, 12
  %v1566 = vpop.permute.xlu0 %1565
  %1567 = vrot.lane.b32.xlu0 %v549, 12
  %v1568 = vpop.permute.xlu0 %1567
  %1569 = vrot.lane.b32.xlu0 %v550, 12
  %v1570 = vpop.permute.xlu0 %1569
  %1571 = vrot.lane.b32.xlu0 %v551, 12
  %v1572 = vpop.permute.xlu0 %1571
  %1573 = vrot.lane.b32.xlu0 %v552, 12
  %v1574 = vpop.permute.xlu0 %1573
  %1575 = vrot.lane.b32.xlu0 %v553, 12
  %v1576 = vpop.permute.xlu0 %1575
  %1577 = vrot.lane.b32.xlu0 %v554, 12
  %v1578 = vpop.permute.xlu0 %1577
  %1579 = vrot.lane.b32.xlu0 %v555, 12
  %v1580 = vpop.permute.xlu0 %1579
  %1709 = vrot.lane.b32.xlu0 %v556, 16
  %v1710 = vpop.permute.xlu0 %1709
  %1711 = vrot.lane.b32.xlu0 %v557, 16
  %v1712 = vpop.permute.xlu0 %1711
  %1713 = vrot.lane.b32.xlu0 %v558, 16
  %v1714 = vpop.permute.xlu0 %1713
  %1715 = vrot.lane.b32.xlu0 %v559, 16
  %v1716 = vpop.permute.xlu0 %1715
  %1717 = vrot.lane.b32.xlu0 %v560, 16
  %v1718 = vpop.permute.xlu0 %1717
  %1719 = vrot.lane.b32.xlu0 %v561, 16
  %v1720 = vpop.permute.xlu0 %1719
  %1721 = vrot.lane.b32.xlu0 %v562, 16
  %v1722 = vpop.permute.xlu0 %1721
  %1723 = vrot.lane.b32.xlu0 %v563, 16
  %v1724 = vpop.permute.xlu0 %1723
  %1725 = vrot.lane.b32.xlu0 %v564, 16
  %v1726 = vpop.permute.xlu0 %1725
  %1727 = vrot.lane.b32.xlu0 %v565, 16
  %v1728 = vpop.permute.xlu0 %1727
  %1729 = vrot.lane.b32.xlu0 %v566, 16
  %v1730 = vpop.permute.xlu0 %1729
  %1731 = vrot.lane.b32.xlu0 %v567, 16
  %v1732 = vpop.permute.xlu0 %1731
  %1733 = vrot.lane.b32.xlu0 %v568, 16
  %v1734 = vpop.permute.xlu0 %1733
  %1735 = vrot.lane.b32.xlu0 %v569, 16
  %v1736 = vpop.permute.xlu0 %1735
  %1737 = vrot.lane.b32.xlu0 %v570, 16
  %v1738 = vpop.permute.xlu0 %1737
  %1739 = vrot.lane.b32.xlu0 %v571, 16
  %v1740 = vpop.permute.xlu0 %1739
  %1741 = vrot.lane.b32.xlu0 %v572, 16
  %v1742 = vpop.permute.xlu0 %1741
  %1743 = vrot.lane.b32.xlu0 %v573, 16
  %v1744 = vpop.permute.xlu0 %1743
  %1745 = vrot.lane.b32.xlu0 %v574, 16
  %v1746 = vpop.permute.xlu0 %1745
  %1747 = vrot.lane.b32.xlu0 %v575, 16
  %v1748 = vpop.permute.xlu0 %1747
  %1749 = vrot.lane.b32.xlu0 %v576, 16
  %v1750 = vpop.permute.xlu0 %1749
  %1751 = vrot.lane.b32.xlu0 %v577, 16
  %v1752 = vpop.permute.xlu0 %1751
  %1753 = vrot.lane.b32.xlu0 %v578, 16
  %v1754 = vpop.permute.xlu0 %1753
  %1755 = vrot.lane.b32.xlu0 %v579, 16
  %v1756 = vpop.permute.xlu0 %1755
  %1757 = vrot.lane.b32.xlu0 %v580, 16
  %v1758 = vpop.permute.xlu0 %1757
  %1759 = vrot.lane.b32.xlu0 %v581, 16
  %v1760 = vpop.permute.xlu0 %1759
  %1761 = vrot.lane.b32.xlu0 %v582, 16
  %v1762 = vpop.permute.xlu0 %1761
  %1763 = vrot.lane.b32.xlu0 %v583, 16
  %v1764 = vpop.permute.xlu0 %1763
  %1765 = vrot.lane.b32.xlu0 %v584, 16
  %v1766 = vpop.permute.xlu0 %1765
  %1767 = vrot.lane.b32.xlu0 %v585, 16
  %v1768 = vpop.permute.xlu0 %1767
  %1769 = vrot.lane.b32.xlu0 %v586, 16
  %v1770 = vpop.permute.xlu0 %1769
  %1771 = vrot.lane.b32.xlu0 %v587, 16
  %v1772 = vpop.permute.xlu0 %1771
  %1773 = vrot.lane.b32.xlu0 %v588, 16
  %v1774 = vpop.permute.xlu0 %1773
  %1775 = vrot.lane.b32.xlu0 %v589, 16
  %v1776 = vpop.permute.xlu0 %1775
  %1777 = vrot.lane.b32.xlu0 %v590, 16
  %v1778 = vpop.permute.xlu0 %1777
  %1779 = vrot.lane.b32.xlu0 %v591, 16
  %v1780 = vpop.permute.xlu0 %1779
  %1781 = vrot.lane.b32.xlu0 %v592, 16
  %v1782 = vpop.permute.xlu0 %1781
  %1783 = vrot.lane.b32.xlu0 %v593, 16
  %v1784 = vpop.permute.xlu0 %1783
  %1785 = vrot.lane.b32.xlu0 %v594, 16
  %v1786 = vpop.permute.xlu0 %1785
  %1787 = vrot.lane.b32.xlu0 %v595, 16
  %v1788 = vpop.permute.xlu0 %1787
  %1789 = vrot.lane.b32.xlu0 %v596, 16
  %v1790 = vpop.permute.xlu0 %1789
  %1791 = vrot.lane.b32.xlu0 %v597, 16
  %v1792 = vpop.permute.xlu0 %1791
  %1793 = vrot.lane.b32.xlu0 %v598, 16
  %v1794 = vpop.permute.xlu0 %1793
  %1795 = vrot.lane.b32.xlu0 %v599, 16
  %v1796 = vpop.permute.xlu0 %1795
  %1797 = vrot.lane.b32.xlu0 %v600, 16
  %v1798 = vpop.permute.xlu0 %1797
  %1799 = vrot.lane.b32.xlu0 %v601, 16
  %v1800 = vpop.permute.xlu0 %1799
  %1801 = vrot.lane.b32.xlu0 %v602, 16
  %v1802 = vpop.permute.xlu0 %1801
  %1803 = vrot.lane.b32.xlu0 %v603, 16
  %v1804 = vpop.permute.xlu0 %1803
  %1805 = vrot.lane.b32.xlu0 %v604, 16
  %v1806 = vpop.permute.xlu0 %1805
  %1807 = vrot.lane.b32.xlu0 %v605, 16
  %v1808 = vpop.permute.xlu0 %1807
  %1809 = vrot.lane.b32.xlu0 %v606, 16
  %v1810 = vpop.permute.xlu0 %1809
  %1811 = vrot.lane.b32.xlu0 %v607, 16
  %v1812 = vpop.permute.xlu0 %1811
  %1813 = vrot.lane.b32.xlu0 %v608, 16
  %v1814 = vpop.permute.xlu0 %1813
  %1815 = vrot.lane.b32.xlu0 %v609, 16
  %v1816 = vpop.permute.xlu0 %1815
  %1817 = vrot.lane.b32.xlu0 %v610, 16
  %v1818 = vpop.permute.xlu0 %1817
  %1819 = vrot.lane.b32.xlu0 %v611, 16
  %v1820 = vpop.permute.xlu0 %1819
  %1821 = vrot.lane.b32.xlu0 %v612, 16
  %v1822 = vpop.permute.xlu0 %1821
  %1823 = vrot.lane.b32.xlu0 %v613, 16
  %v1824 = vpop.permute.xlu0 %1823
  %1825 = vrot.lane.b32.xlu0 %v614, 16
  %v1826 = vpop.permute.xlu0 %1825
  %1827 = vrot.lane.b32.xlu0 %v615, 16
  %v1828 = vpop.permute.xlu0 %1827
  %1829 = vrot.lane.b32.xlu0 %v616, 16
  %v1830 = vpop.permute.xlu0 %1829
  %1831 = vrot.lane.b32.xlu0 %v617, 16
  %v1832 = vpop.permute.xlu0 %1831
  %1833 = vrot.lane.b32.xlu0 %v618, 16
  %v1834 = vpop.permute.xlu0 %1833
  %1835 = vrot.lane.b32.xlu0 %v619, 16
  %v1836 = vpop.permute.xlu0 %1835
  %1965 = vrot.lane.b32.xlu0 %v620, 20
  %v1966 = vpop.permute.xlu0 %1965
  %1967 = vrot.lane.b32.xlu0 %v621, 20
  %v1968 = vpop.permute.xlu0 %1967
  %1969 = vrot.lane.b32.xlu0 %v622, 20
  %v1970 = vpop.permute.xlu0 %1969
  %1971 = vrot.lane.b32.xlu0 %v623, 20
  %v1972 = vpop.permute.xlu0 %1971
  %1973 = vrot.lane.b32.xlu0 %v624, 20
  %v1974 = vpop.permute.xlu0 %1973
  %1975 = vrot.lane.b32.xlu0 %v625, 20
  %v1976 = vpop.permute.xlu0 %1975
  %1977 = vrot.lane.b32.xlu0 %v626, 20
  %v1978 = vpop.permute.xlu0 %1977
  %1979 = vrot.lane.b32.xlu0 %v627, 20
  %v1980 = vpop.permute.xlu0 %1979
  %1981 = vrot.lane.b32.xlu0 %v628, 20
  %v1982 = vpop.permute.xlu0 %1981
  %1983 = vrot.lane.b32.xlu0 %v629, 20
  %v1984 = vpop.permute.xlu0 %1983
  %1985 = vrot.lane.b32.xlu0 %v630, 20
  %v1986 = vpop.permute.xlu0 %1985
  %1987 = vrot.lane.b32.xlu0 %v631, 20
  %v1988 = vpop.permute.xlu0 %1987
  %1989 = vrot.lane.b32.xlu0 %v632, 20
  %v1990 = vpop.permute.xlu0 %1989
  %1991 = vrot.lane.b32.xlu0 %v633, 20
  %v1992 = vpop.permute.xlu0 %1991
  %1993 = vrot.lane.b32.xlu0 %v634, 20
  %v1994 = vpop.permute.xlu0 %1993
  %1995 = vrot.lane.b32.xlu0 %v635, 20
  %v1996 = vpop.permute.xlu0 %1995
  %1997 = vrot.lane.b32.xlu0 %v636, 20
  %v1998 = vpop.permute.xlu0 %1997
  %1999 = vrot.lane.b32.xlu0 %v637, 20
  %v2000 = vpop.permute.xlu0 %1999
  %2001 = vrot.lane.b32.xlu0 %v638, 20
  %v2002 = vpop.permute.xlu0 %2001
  %2003 = vrot.lane.b32.xlu0 %v639, 20
  %v2004 = vpop.permute.xlu0 %2003
  %2005 = vrot.lane.b32.xlu0 %v640, 20
  %v2006 = vpop.permute.xlu0 %2005
  %2007 = vrot.lane.b32.xlu0 %v641, 20
  %v2008 = vpop.permute.xlu0 %2007
  %2009 = vrot.lane.b32.xlu0 %v642, 20
  %v2010 = vpop.permute.xlu0 %2009
  %2011 = vrot.lane.b32.xlu0 %v643, 20
  %v2012 = vpop.permute.xlu0 %2011
  %2013 = vrot.lane.b32.xlu0 %v644, 20
  %v2014 = vpop.permute.xlu0 %2013
  %2015 = vrot.lane.b32.xlu0 %v645, 20
  %v2016 = vpop.permute.xlu0 %2015
  %2017 = vrot.lane.b32.xlu0 %v646, 20
  %v2018 = vpop.permute.xlu0 %2017
  %2019 = vrot.lane.b32.xlu0 %v647, 20
  %v2020 = vpop.permute.xlu0 %2019
  %2021 = vrot.lane.b32.xlu0 %v648, 20
  %v2022 = vpop.permute.xlu0 %2021
  %2023 = vrot.lane.b32.xlu0 %v649, 20
  %v2024 = vpop.permute.xlu0 %2023
  %2025 = vrot.lane.b32.xlu0 %v650, 20
  %v2026 = vpop.permute.xlu0 %2025
  %2027 = vrot.lane.b32.xlu0 %v651, 20
  %v2028 = vpop.permute.xlu0 %2027
  %2029 = vrot.lane.b32.xlu0 %v652, 20
  %v2030 = vpop.permute.xlu0 %2029
  %2031 = vrot.lane.b32.xlu0 %v653, 20
  %v2032 = vpop.permute.xlu0 %2031
  %2033 = vrot.lane.b32.xlu0 %v654, 20
  %v2034 = vpop.permute.xlu0 %2033
  %2035 = vrot.lane.b32.xlu0 %v655, 20
  %v2036 = vpop.permute.xlu0 %2035
  %2037 = vrot.lane.b32.xlu0 %v656, 20
  %v2038 = vpop.permute.xlu0 %2037
  %2039 = vrot.lane.b32.xlu0 %v657, 20
  %v2040 = vpop.permute.xlu0 %2039
  %2041 = vrot.lane.b32.xlu0 %v658, 20
  %v2042 = vpop.permute.xlu0 %2041
  %2043 = vrot.lane.b32.xlu0 %v659, 20
  %v2044 = vpop.permute.xlu0 %2043
  %2045 = vrot.lane.b32.xlu0 %v660, 20
  %v2046 = vpop.permute.xlu0 %2045
  %2047 = vrot.lane.b32.xlu0 %v661, 20
  %v2048 = vpop.permute.xlu0 %2047
  %2049 = vrot.lane.b32.xlu0 %v662, 20
  %v2050 = vpop.permute.xlu0 %2049
  %2051 = vrot.lane.b32.xlu0 %v663, 20
  %v2052 = vpop.permute.xlu0 %2051
  %2053 = vrot.lane.b32.xlu0 %v664, 20
  %v2054 = vpop.permute.xlu0 %2053
  %2055 = vrot.lane.b32.xlu0 %v665, 20
  %v2056 = vpop.permute.xlu0 %2055
  %2057 = vrot.lane.b32.xlu0 %v666, 20
  %v2058 = vpop.permute.xlu0 %2057
  %2059 = vrot.lane.b32.xlu0 %v667, 20
  %v2060 = vpop.permute.xlu0 %2059
  %2061 = vrot.lane.b32.xlu0 %v668, 20
  %v2062 = vpop.permute.xlu0 %2061
  %2063 = vrot.lane.b32.xlu0 %v669, 20
  %v2064 = vpop.permute.xlu0 %2063
  %2065 = vrot.lane.b32.xlu0 %v670, 20
  %v2066 = vpop.permute.xlu0 %2065
  %2067 = vrot.lane.b32.xlu0 %v671, 20
  %v2068 = vpop.permute.xlu0 %2067
  %2069 = vrot.lane.b32.xlu0 %v672, 20
  %v2070 = vpop.permute.xlu0 %2069
  %2071 = vrot.lane.b32.xlu0 %v673, 20
  %v2072 = vpop.permute.xlu0 %2071
  %2073 = vrot.lane.b32.xlu0 %v674, 20
  %v2074 = vpop.permute.xlu0 %2073
  %2075 = vrot.lane.b32.xlu0 %v675, 20
  %v2076 = vpop.permute.xlu0 %2075
  %2077 = vrot.lane.b32.xlu0 %v676, 20
  %v2078 = vpop.permute.xlu0 %2077
  %2079 = vrot.lane.b32.xlu0 %v677, 20
  %v2080 = vpop.permute.xlu0 %2079
  %2081 = vrot.lane.b32.xlu0 %v678, 20
  %v2082 = vpop.permute.xlu0 %2081
  %2083 = vrot.lane.b32.xlu0 %v679, 20
  %v2084 = vpop.permute.xlu0 %2083
  %2085 = vrot.lane.b32.xlu0 %v680, 20
  %v2086 = vpop.permute.xlu0 %2085
  %2087 = vrot.lane.b32.xlu0 %v681, 20
  %v2088 = vpop.permute.xlu0 %2087
  %2089 = vrot.lane.b32.xlu0 %v682, 20
  %v2090 = vpop.permute.xlu0 %2089
  %2091 = vrot.lane.b32.xlu0 %v683, 20
  %v2092 = vpop.permute.xlu0 %2091
  %2221 = vrot.lane.b32.xlu0 %v685, 24
  %v2222 = vpop.permute.xlu0 %2221
  %2223 = vrot.lane.b32.xlu0 %v686, 24
  %v2224 = vpop.permute.xlu0 %2223
  %2225 = vrot.lane.b32.xlu0 %v687, 24
  %v2226 = vpop.permute.xlu0 %2225
  %2227 = vrot.lane.b32.xlu0 %v688, 24
  %v2228 = vpop.permute.xlu0 %2227
  %2229 = vrot.lane.b32.xlu0 %v689, 24
  %v2230 = vpop.permute.xlu0 %2229
  %2231 = vrot.lane.b32.xlu0 %v690, 24
  %v2232 = vpop.permute.xlu0 %2231
  %2233 = vrot.lane.b32.xlu0 %v691, 24
  %v2234 = vpop.permute.xlu0 %2233
  %2235 = vrot.lane.b32.xlu0 %v692, 24
  %v2236 = vpop.permute.xlu0 %2235
  %2237 = vrot.lane.b32.xlu0 %v693, 24
  %v2238 = vpop.permute.xlu0 %2237
  %2239 = vrot.lane.b32.xlu0 %v694, 24
  %v2240 = vpop.permute.xlu0 %2239
  %2241 = vrot.lane.b32.xlu0 %v695, 24
  %v2242 = vpop.permute.xlu0 %2241
  %2243 = vrot.lane.b32.xlu0 %v696, 24
  %v2244 = vpop.permute.xlu0 %2243
  %2245 = vrot.lane.b32.xlu0 %v697, 24
  %v2246 = vpop.permute.xlu0 %2245
  %2247 = vrot.lane.b32.xlu0 %v698, 24
  %v2248 = vpop.permute.xlu0 %2247
  %2249 = vrot.lane.b32.xlu0 %v699, 24
  %v2250 = vpop.permute.xlu0 %2249
  %2251 = vrot.lane.b32.xlu0 %v700, 24
  %v2252 = vpop.permute.xlu0 %2251
  %2253 = vrot.lane.b32.xlu0 %v701, 24
  %v2254 = vpop.permute.xlu0 %2253
  %2255 = vrot.lane.b32.xlu0 %v702, 24
  %v2256 = vpop.permute.xlu0 %2255
  %2257 = vrot.lane.b32.xlu0 %v703, 24
  %v2258 = vpop.permute.xlu0 %2257
  %2259 = vrot.lane.b32.xlu0 %v704, 24
  %v2260 = vpop.permute.xlu0 %2259
  %2261 = vrot.lane.b32.xlu0 %v705, 24
  %v2262 = vpop.permute.xlu0 %2261
  %2263 = vrot.lane.b32.xlu0 %v706, 24
  %v2264 = vpop.permute.xlu0 %2263
  %2265 = vrot.lane.b32.xlu0 %v707, 24
  %v2266 = vpop.permute.xlu0 %2265
  %2267 = vrot.lane.b32.xlu0 %v708, 24
  %v2268 = vpop.permute.xlu0 %2267
  %2269 = vrot.lane.b32.xlu0 %v709, 24
  %v2270 = vpop.permute.xlu0 %2269
  %2271 = vrot.lane.b32.xlu0 %v710, 24
  %v2272 = vpop.permute.xlu0 %2271
  %2273 = vrot.lane.b32.xlu0 %v711, 24
  %v2274 = vpop.permute.xlu0 %2273
  %2275 = vrot.lane.b32.xlu0 %v712, 24
  %v2276 = vpop.permute.xlu0 %2275
  %2277 = vrot.lane.b32.xlu0 %v713, 24
  %v2278 = vpop.permute.xlu0 %2277
  %2279 = vrot.lane.b32.xlu0 %v714, 24
  %v2280 = vpop.permute.xlu0 %2279
  %2281 = vrot.lane.b32.xlu0 %v715, 24
  %v2282 = vpop.permute.xlu0 %2281
  %2283 = vrot.lane.b32.xlu0 %v716, 24
  %v2284 = vpop.permute.xlu0 %2283
  %2285 = vrot.lane.b32.xlu0 %v717, 24
  %v2286 = vpop.permute.xlu0 %2285
  %2287 = vrot.lane.b32.xlu0 %v718, 24
  %v2288 = vpop.permute.xlu0 %2287
  %2289 = vrot.lane.b32.xlu0 %v719, 24
  %v2290 = vpop.permute.xlu0 %2289
  %2291 = vrot.lane.b32.xlu0 %v720, 24
  %v2292 = vpop.permute.xlu0 %2291
  %2293 = vrot.lane.b32.xlu0 %v721, 24
  %v2294 = vpop.permute.xlu0 %2293
  %2295 = vrot.lane.b32.xlu0 %v722, 24
  %v2296 = vpop.permute.xlu0 %2295
  %2297 = vrot.lane.b32.xlu0 %v723, 24
  %v2298 = vpop.permute.xlu0 %2297
  %2299 = vrot.lane.b32.xlu0 %v724, 24
  %v2300 = vpop.permute.xlu0 %2299
  %2301 = vrot.lane.b32.xlu0 %v725, 24
  %v2302 = vpop.permute.xlu0 %2301
  %2303 = vrot.lane.b32.xlu0 %v726, 24
  %v2304 = vpop.permute.xlu0 %2303
  %2305 = vrot.lane.b32.xlu0 %v727, 24
  %v2306 = vpop.permute.xlu0 %2305
  %2307 = vrot.lane.b32.xlu0 %v728, 24
  %v2308 = vpop.permute.xlu0 %2307
  %2309 = vrot.lane.b32.xlu0 %v729, 24
  %v2310 = vpop.permute.xlu0 %2309
  %2311 = vrot.lane.b32.xlu0 %v730, 24
  %v2312 = vpop.permute.xlu0 %2311
  %2313 = vrot.lane.b32.xlu0 %v731, 24
  %v2314 = vpop.permute.xlu0 %2313
  %2315 = vrot.lane.b32.xlu0 %v732, 24
  %v2316 = vpop.permute.xlu0 %2315
  %2317 = vrot.lane.b32.xlu0 %v733, 24
  %v2318 = vpop.permute.xlu0 %2317
  %2319 = vrot.lane.b32.xlu0 %v734, 24
  %v2320 = vpop.permute.xlu0 %2319
  %2321 = vrot.lane.b32.xlu0 %v735, 24
  %v2322 = vpop.permute.xlu0 %2321
  %2323 = vrot.lane.b32.xlu0 %v736, 24
  %v2324 = vpop.permute.xlu0 %2323
  %2325 = vrot.lane.b32.xlu0 %v737, 24
  %v2326 = vpop.permute.xlu0 %2325
  %2327 = vrot.lane.b32.xlu0 %v738, 24
  %v2328 = vpop.permute.xlu0 %2327
  %2329 = vrot.lane.b32.xlu0 %v739, 24
  %v2330 = vpop.permute.xlu0 %2329
  %2331 = vrot.lane.b32.xlu0 %v740, 24
  %v2332 = vpop.permute.xlu0 %2331
  %2333 = vrot.lane.b32.xlu0 %v741, 24
  %v2334 = vpop.permute.xlu0 %2333
  %2335 = vrot.lane.b32.xlu0 %v742, 24
  %v2336 = vpop.permute.xlu0 %2335
  %2337 = vrot.lane.b32.xlu0 %v743, 24
  %v2338 = vpop.permute.xlu0 %2337
  %2339 = vrot.lane.b32.xlu0 %v744, 24
  %v2340 = vpop.permute.xlu0 %2339
  %2341 = vrot.lane.b32.xlu0 %v745, 24
  %v2342 = vpop.permute.xlu0 %2341
  %2343 = vrot.lane.b32.xlu0 %v746, 24
  %v2344 = vpop.permute.xlu0 %2343
  %2345 = vrot.lane.b32.xlu0 %v747, 24
  %v2346 = vpop.permute.xlu0 %2345
  %2347 = vrot.lane.b32.xlu0 %v748, 24
  %v2348 = vpop.permute.xlu0 %2347
  %2477 = vrot.lane.b32.xlu0 %v749, 28
  %v2478 = vpop.permute.xlu0 %2477
  %2479 = vrot.lane.b32.xlu0 %v750, 28
  %v2480 = vpop.permute.xlu0 %2479
  %2481 = vrot.lane.b32.xlu0 %v751, 28
  %v2482 = vpop.permute.xlu0 %2481
  %2483 = vrot.lane.b32.xlu0 %v752, 28
  %v2484 = vpop.permute.xlu0 %2483
  %2485 = vrot.lane.b32.xlu0 %v753, 28
  %v2486 = vpop.permute.xlu0 %2485
  %2487 = vrot.lane.b32.xlu0 %v754, 28
  %v2488 = vpop.permute.xlu0 %2487
  %2489 = vrot.lane.b32.xlu0 %v755, 28
  %v2490 = vpop.permute.xlu0 %2489
  %2491 = vrot.lane.b32.xlu0 %v756, 28
  %v2492 = vpop.permute.xlu0 %2491
  %2493 = vrot.lane.b32.xlu0 %v757, 28
  %v2494 = vpop.permute.xlu0 %2493
  %2495 = vrot.lane.b32.xlu0 %v758, 28
  %v2496 = vpop.permute.xlu0 %2495
  %2497 = vrot.lane.b32.xlu0 %v759, 28
  %v2498 = vpop.permute.xlu0 %2497
  %2499 = vrot.lane.b32.xlu0 %v760, 28
  %v2500 = vpop.permute.xlu0 %2499
  %2501 = vrot.lane.b32.xlu0 %v761, 28
  %v2502 = vpop.permute.xlu0 %2501
  %2503 = vrot.lane.b32.xlu0 %v762, 28
  %v2504 = vpop.permute.xlu0 %2503
  %2505 = vrot.lane.b32.xlu0 %v763, 28
  %v2506 = vpop.permute.xlu0 %2505
  %2507 = vrot.lane.b32.xlu0 %v764, 28
  %v2508 = vpop.permute.xlu0 %2507
  %2509 = vrot.lane.b32.xlu0 %v765, 28
  %v2510 = vpop.permute.xlu0 %2509
  %2511 = vrot.lane.b32.xlu0 %v766, 28
  %v2512 = vpop.permute.xlu0 %2511
  %2513 = vrot.lane.b32.xlu0 %v767, 28
  %v2514 = vpop.permute.xlu0 %2513
  %2515 = vrot.lane.b32.xlu0 %v768, 28
  %v2516 = vpop.permute.xlu0 %2515
  %2517 = vrot.lane.b32.xlu0 %v769, 28
  %v2518 = vpop.permute.xlu0 %2517
  %2519 = vrot.lane.b32.xlu0 %v770, 28
  %v2520 = vpop.permute.xlu0 %2519
  %2521 = vrot.lane.b32.xlu0 %v771, 28
  %v2522 = vpop.permute.xlu0 %2521
  %2523 = vrot.lane.b32.xlu0 %v772, 28
  %v2524 = vpop.permute.xlu0 %2523
  %2525 = vrot.lane.b32.xlu0 %v773, 28
  %v2526 = vpop.permute.xlu0 %2525
  %2527 = vrot.lane.b32.xlu0 %v774, 28
  %v2528 = vpop.permute.xlu0 %2527
  %2529 = vrot.lane.b32.xlu0 %v775, 28
  %v2530 = vpop.permute.xlu0 %2529
  %2531 = vrot.lane.b32.xlu0 %v776, 28
  %v2532 = vpop.permute.xlu0 %2531
  %2533 = vrot.lane.b32.xlu0 %v777, 28
  %v2534 = vpop.permute.xlu0 %2533
  %2535 = vrot.lane.b32.xlu0 %v778, 28
  %v2536 = vpop.permute.xlu0 %2535
  %2537 = vrot.lane.b32.xlu0 %v779, 28
  %v2538 = vpop.permute.xlu0 %2537
  %2539 = vrot.lane.b32.xlu0 %v780, 28
  %v2540 = vpop.permute.xlu0 %2539
  %2541 = vrot.lane.b32.xlu0 %v781, 28
  %v2542 = vpop.permute.xlu0 %2541
  %2543 = vrot.lane.b32.xlu0 %v782, 28
  %v2544 = vpop.permute.xlu0 %2543
  %2545 = vrot.lane.b32.xlu0 %v783, 28
  %v2546 = vpop.permute.xlu0 %2545
  %2547 = vrot.lane.b32.xlu0 %v784, 28
  %v2548 = vpop.permute.xlu0 %2547
  %2549 = vrot.lane.b32.xlu0 %v785, 28
  %v2550 = vpop.permute.xlu0 %2549
  %2551 = vrot.lane.b32.xlu0 %v786, 28
  %v2552 = vpop.permute.xlu0 %2551
  %2553 = vrot.lane.b32.xlu0 %v787, 28
  %v2554 = vpop.permute.xlu0 %2553
  %2555 = vrot.lane.b32.xlu0 %v788, 28
  %v2556 = vpop.permute.xlu0 %2555
  %2557 = vrot.lane.b32.xlu0 %v789, 28
  %v2558 = vpop.permute.xlu0 %2557
  %2559 = vrot.lane.b32.xlu0 %v790, 28
  %v2560 = vpop.permute.xlu0 %2559
  %2561 = vrot.lane.b32.xlu0 %v791, 28
  %v2562 = vpop.permute.xlu0 %2561
  %2563 = vrot.lane.b32.xlu0 %v792, 28
  %v2564 = vpop.permute.xlu0 %2563
  %2565 = vrot.lane.b32.xlu0 %v793, 28
  %v2566 = vpop.permute.xlu0 %2565
  %2567 = vrot.lane.b32.xlu0 %v794, 28
  %v2568 = vpop.permute.xlu0 %2567
  %2569 = vrot.lane.b32.xlu0 %v795, 28
  %v2570 = vpop.permute.xlu0 %2569
  %2571 = vrot.lane.b32.xlu0 %v796, 28
  %v2572 = vpop.permute.xlu0 %2571
  %2573 = vrot.lane.b32.xlu0 %v797, 28
  %v2574 = vpop.permute.xlu0 %2573
  %2575 = vrot.lane.b32.xlu0 %v798, 28
  %v2576 = vpop.permute.xlu0 %2575
  %2577 = vrot.lane.b32.xlu0 %v799, 28
  %v2578 = vpop.permute.xlu0 %2577
  %2579 = vrot.lane.b32.xlu0 %v800, 28
  %v2580 = vpop.permute.xlu0 %2579
  %2581 = vrot.lane.b32.xlu0 %v801, 28
  %v2582 = vpop.permute.xlu0 %2581
  %2583 = vrot.lane.b32.xlu0 %v802, 28
  %v2584 = vpop.permute.xlu0 %2583
  %2585 = vrot.lane.b32.xlu0 %v803, 28
  %v2586 = vpop.permute.xlu0 %2585
  %2587 = vrot.lane.b32.xlu0 %v804, 28
  %v2588 = vpop.permute.xlu0 %2587
  %2589 = vrot.lane.b32.xlu0 %v805, 28
  %v2590 = vpop.permute.xlu0 %2589
  %2591 = vrot.lane.b32.xlu0 %v806, 28
  %v2592 = vpop.permute.xlu0 %2591
  %2593 = vrot.lane.b32.xlu0 %v807, 28
  %v2594 = vpop.permute.xlu0 %2593
  %2595 = vrot.lane.b32.xlu0 %v808, 28
  %v2596 = vpop.permute.xlu0 %2595
  %2597 = vrot.lane.b32.xlu0 %v809, 28
  %v2598 = vpop.permute.xlu0 %2597
  %2599 = vrot.lane.b32.xlu0 %v810, 28
  %v2600 = vpop.permute.xlu0 %2599
  %2601 = vrot.lane.b32.xlu0 %v811, 28
  %v2602 = vpop.permute.xlu0 %2601
  %2603 = vrot.lane.b32.xlu0 %v812, 28
  %v2604 = vpop.permute.xlu0 %2603
  %2733 = vrot.lane.b32.xlu0 %v813, 32
  %v2734 = vpop.permute.xlu0 %2733
  %2735 = vrot.lane.b32.xlu0 %v814, 32
  %v2736 = vpop.permute.xlu0 %2735
  %2737 = vrot.lane.b32.xlu0 %v815, 32
  %v2738 = vpop.permute.xlu0 %2737
  %2739 = vrot.lane.b32.xlu0 %v816, 32
  %v2740 = vpop.permute.xlu0 %2739
  %2741 = vrot.lane.b32.xlu0 %v817, 32
  %v2742 = vpop.permute.xlu0 %2741
  %2743 = vrot.lane.b32.xlu0 %v818, 32
  %v2744 = vpop.permute.xlu0 %2743
  %2745 = vrot.lane.b32.xlu0 %v819, 32
  %v2746 = vpop.permute.xlu0 %2745
  %2747 = vrot.lane.b32.xlu0 %v820, 32
  %v2748 = vpop.permute.xlu0 %2747
  %2749 = vrot.lane.b32.xlu0 %v821, 32
  %v2750 = vpop.permute.xlu0 %2749
  %2751 = vrot.lane.b32.xlu0 %v822, 32
  %v2752 = vpop.permute.xlu0 %2751
  %2753 = vrot.lane.b32.xlu0 %v823, 32
  %v2754 = vpop.permute.xlu0 %2753
  %2755 = vrot.lane.b32.xlu0 %v824, 32
  %v2756 = vpop.permute.xlu0 %2755
  %2757 = vrot.lane.b32.xlu0 %v825, 32
  %v2758 = vpop.permute.xlu0 %2757
  %2759 = vrot.lane.b32.xlu0 %v826, 32
  %v2760 = vpop.permute.xlu0 %2759
  %2761 = vrot.lane.b32.xlu0 %v827, 32
  %v2762 = vpop.permute.xlu0 %2761
  %2763 = vrot.lane.b32.xlu0 %v828, 32
  %v2764 = vpop.permute.xlu0 %2763
  %2765 = vrot.lane.b32.xlu0 %v829, 32
  %v2766 = vpop.permute.xlu0 %2765
  %2767 = vrot.lane.b32.xlu0 %v830, 32
  %v2768 = vpop.permute.xlu0 %2767
  %2769 = vrot.lane.b32.xlu0 %v831, 32
  %v2770 = vpop.permute.xlu0 %2769
  %2771 = vrot.lane.b32.xlu0 %v832, 32
  %v2772 = vpop.permute.xlu0 %2771
  %2773 = vrot.lane.b32.xlu0 %v833, 32
  %v2774 = vpop.permute.xlu0 %2773
  %2775 = vrot.lane.b32.xlu0 %v834, 32
  %v2776 = vpop.permute.xlu0 %2775
  %2777 = vrot.lane.b32.xlu0 %v835, 32
  %v2778 = vpop.permute.xlu0 %2777
  %2779 = vrot.lane.b32.xlu0 %v836, 32
  %v2780 = vpop.permute.xlu0 %2779
  %2781 = vrot.lane.b32.xlu0 %v837, 32
  %v2782 = vpop.permute.xlu0 %2781
  %2783 = vrot.lane.b32.xlu0 %v838, 32
  %v2784 = vpop.permute.xlu0 %2783
  %2785 = vrot.lane.b32.xlu0 %v839, 32
  %v2786 = vpop.permute.xlu0 %2785
  %2787 = vrot.lane.b32.xlu0 %v840, 32
  %v2788 = vpop.permute.xlu0 %2787
  %2789 = vrot.lane.b32.xlu0 %v841, 32
  %v2790 = vpop.permute.xlu0 %2789
  %2791 = vrot.lane.b32.xlu0 %v842, 32
  %v2792 = vpop.permute.xlu0 %2791
  %2793 = vrot.lane.b32.xlu0 %v843, 32
  %v2794 = vpop.permute.xlu0 %2793
  %2795 = vrot.lane.b32.xlu0 %v844, 32
  %v2796 = vpop.permute.xlu0 %2795
  %2797 = vrot.lane.b32.xlu0 %v845, 32
  %v2798 = vpop.permute.xlu0 %2797
  %2799 = vrot.lane.b32.xlu0 %v846, 32
  %v2800 = vpop.permute.xlu0 %2799
  %2801 = vrot.lane.b32.xlu0 %v847, 32
  %v2802 = vpop.permute.xlu0 %2801
  %2803 = vrot.lane.b32.xlu0 %v848, 32
  %v2804 = vpop.permute.xlu0 %2803
  %2805 = vrot.lane.b32.xlu0 %v849, 32
  %v2806 = vpop.permute.xlu0 %2805
  %2807 = vrot.lane.b32.xlu0 %v850, 32
  %v2808 = vpop.permute.xlu0 %2807
  %2809 = vrot.lane.b32.xlu0 %v851, 32
  %v2810 = vpop.permute.xlu0 %2809
  %2811 = vrot.lane.b32.xlu0 %v852, 32
  %v2812 = vpop.permute.xlu0 %2811
  %2813 = vrot.lane.b32.xlu0 %v853, 32
  %v2814 = vpop.permute.xlu0 %2813
  %2815 = vrot.lane.b32.xlu0 %v854, 32
  %v2816 = vpop.permute.xlu0 %2815
  %2817 = vrot.lane.b32.xlu0 %v855, 32
  %v2818 = vpop.permute.xlu0 %2817
  %2819 = vrot.lane.b32.xlu0 %v856, 32
  %v2820 = vpop.permute.xlu0 %2819
  %2821 = vrot.lane.b32.xlu0 %v857, 32
  %v2822 = vpop.permute.xlu0 %2821
  %2823 = vrot.lane.b32.xlu0 %v858, 32
  %v2824 = vpop.permute.xlu0 %2823
  %2825 = vrot.lane.b32.xlu0 %v859, 32
  %v2826 = vpop.permute.xlu0 %2825
  %2827 = vrot.lane.b32.xlu0 %v860, 32
  %v2828 = vpop.permute.xlu0 %2827
  %2829 = vrot.lane.b32.xlu0 %v861, 32
  %v2830 = vpop.permute.xlu0 %2829
  %2831 = vrot.lane.b32.xlu0 %v862, 32
  %v2832 = vpop.permute.xlu0 %2831
  %2833 = vrot.lane.b32.xlu0 %v863, 32
  %v2834 = vpop.permute.xlu0 %2833
  %2835 = vrot.lane.b32.xlu0 %v864, 32
  %v2836 = vpop.permute.xlu0 %2835
  %2837 = vrot.lane.b32.xlu0 %v865, 32
  %v2838 = vpop.permute.xlu0 %2837
  %2839 = vrot.lane.b32.xlu0 %v866, 32
  %v2840 = vpop.permute.xlu0 %2839
  %2841 = vrot.lane.b32.xlu0 %v867, 32
  %v2842 = vpop.permute.xlu0 %2841
  %2843 = vrot.lane.b32.xlu0 %v868, 32
  %v2844 = vpop.permute.xlu0 %2843
  %2845 = vrot.lane.b32.xlu0 %v869, 32
  %v2846 = vpop.permute.xlu0 %2845
  %2847 = vrot.lane.b32.xlu0 %v870, 32
  %v2848 = vpop.permute.xlu0 %2847
  %2849 = vrot.lane.b32.xlu0 %v871, 32
  %v2850 = vpop.permute.xlu0 %2849
  %2851 = vrot.lane.b32.xlu0 %v872, 32
  %v2852 = vpop.permute.xlu0 %2851
  %2853 = vrot.lane.b32.xlu0 %v873, 32
  %v2854 = vpop.permute.xlu0 %2853
  %2855 = vrot.lane.b32.xlu0 %v874, 32
  %v2856 = vpop.permute.xlu0 %2855
  %2857 = vrot.lane.b32.xlu0 %v875, 32
  %v2858 = vpop.permute.xlu0 %2857
  %2859 = vrot.lane.b32.xlu0 %v876, 32
  %v2860 = vpop.permute.xlu0 %2859
  %v2925 = vsel %vm26, %v300, %v942
  %v2926 = vsel %vm26, %v301, %v944
  %v2927 = vsel %vm26, %v302, %v946
  %v2928 = vsel %vm26, %v303, %v948
  %v2929 = vsel %vm26, %v304, %v950
  %v2930 = vsel %vm26, %v305, %v952
  %v2931 = vsel %vm26, %v306, %v954
  %v2932 = vsel %vm26, %v307, %v956
  %v2933 = vsel %vm26, %v308, %v958
  %v2934 = vsel %vm26, %v309, %v960
  %v2935 = vsel %vm26, %v310, %v962
  %v2936 = vsel %vm26, %v311, %v964
  %v2937 = vsel %vm26, %v312, %v966
  %v2938 = vsel %vm26, %v313, %v968
  %v2939 = vsel %vm26, %v314, %v970
  %v2940 = vsel %vm26, %v315, %v972
  %v2941 = vsel %vm26, %v316, %v974
  %v2942 = vsel %vm26, %v317, %v976
  %v2943 = vsel %vm26, %v318, %v978
  %v2944 = vsel %vm26, %v319, %v980
  %v2945 = vsel %vm26, %v320, %v982
  %v2946 = vsel %vm26, %v321, %v984
  %v2947 = vsel %vm26, %v322, %v986
  %v2948 = vsel %vm26, %v323, %v988
  %v2949 = vsel %vm26, %v324, %v990
  %v2950 = vsel %vm26, %v325, %v992
  %v2951 = vsel %vm26, %v326, %v994
  %v2952 = vsel %vm26, %v327, %v996
  %v2953 = vsel %vm26, %v328, %v998
  %v2954 = vsel %vm26, %v329, %v1000
  %v2955 = vsel %vm26, %v330, %v1002
  %v2956 = vsel %vm26, %v331, %v1004
  %v2957 = vsel %vm26, %v332, %v1006
  %v2958 = vsel %vm26, %v333, %v1008
  %v2959 = vsel %vm26, %v334, %v1010
  %v2960 = vsel %vm26, %v335, %v1012
  %v2961 = vsel %vm26, %v336, %v1014
  %v2962 = vsel %vm26, %v337, %v1016
  %v2963 = vsel %vm26, %v338, %v1018
  %v2964 = vsel %vm26, %v339, %v1020
  %v2965 = vsel %vm26, %v340, %v1022
  %v2966 = vsel %vm26, %v341, %v1024
  %v2967 = vsel %vm26, %v342, %v1026
  %v2968 = vsel %vm26, %v343, %v1028
  %v2969 = vsel %vm26, %v344, %v1030
  %v2970 = vsel %vm26, %v345, %v1032
  %v2971 = vsel %vm26, %v346, %v1034
  %v2972 = vsel %vm26, %v347, %v1036
  %v2973 = vsel %vm26, %v348, %v1038
  %v2974 = vsel %vm26, %v349, %v1040
  %v2975 = vsel %vm26, %v350, %v1042
  %v2976 = vsel %vm26, %v351, %v1044
  %v2977 = vsel %vm26, %v352, %v1046
  %v2978 = vsel %vm26, %v353, %v1048
  %v2979 = vsel %vm26, %v354, %v1050
  %v2980 = vsel %vm26, %v355, %v1052
  %v2981 = vsel %vm26, %v356, %v1054
  %v2982 = vsel %vm26, %v357, %v1056
  %v2983 = vsel %vm26, %v358, %v1058
  %v2984 = vsel %vm26, %v359, %v1060
  %v2985 = vsel %vm26, %v360, %v1062
  %v2986 = vsel %vm26, %v361, %v1064
  %v2987 = vsel %vm26, %v362, %v1066
  %v2988 = vsel %vm26, %v363, %v1068
  %vm2989 = vcmask 64512
  %v2990 = vsel %vm2989, %v2925, %v1198
  %v2991 = vsel %vm2989, %v2926, %v1200
  %v2992 = vsel %vm2989, %v2927, %v1202
  %v2993 = vsel %vm2989, %v2928, %v1204
  %v2994 = vsel %vm2989, %v2929, %v1206
  %v2995 = vsel %vm2989, %v2930, %v1208
  %v2996 = vsel %vm2989, %v2931, %v1210
  %v2997 = vsel %vm2989, %v2932, %v1212
  %v2998 = vsel %vm2989, %v2933, %v1214
  %v2999 = vsel %vm2989, %v2934, %v1216
  %v3000 = vsel %vm2989, %v2935, %v1218
  %v3001 = vsel %vm2989, %v2936, %v1220
  %v3002 = vsel %vm2989, %v2937, %v1222
  %v3003 = vsel %vm2989, %v2938, %v1224
  %v3004 = vsel %vm2989, %v2939, %v1226
  %v3005 = vsel %vm2989, %v2940, %v1228
  %v3006 = vsel %vm2989, %v2941, %v1230
  %v3007 = vsel %vm2989, %v2942, %v1232
  %v3008 = vsel %vm2989, %v2943, %v1234
  %v3009 = vsel %vm2989, %v2944, %v1236
  %v3010 = vsel %vm2989, %v2945, %v1238
  %v3011 = vsel %vm2989, %v2946, %v1240
  %v3012 = vsel %vm2989, %v2947, %v1242
  %v3013 = vsel %vm2989, %v2948, %v1244
  %v3014 = vsel %vm2989, %v2949, %v1246
  %v3015 = vsel %vm2989, %v2950, %v1248
  %v3016 = vsel %vm2989, %v2951, %v1250
  %v3017 = vsel %vm2989, %v2952, %v1252
  %v3018 = vsel %vm2989, %v2953, %v1254
  %v3019 = vsel %vm2989, %v2954, %v1256
  %v3020 = vsel %vm2989, %v2955, %v1258
  %v3021 = vsel %vm2989, %v2956, %v1260
  %v3022 = vsel %vm2989, %v2957, %v1262
  %v3023 = vsel %vm2989, %v2958, %v1264
  %v3024 = vsel %vm2989, %v2959, %v1266
  %v3025 = vsel %vm2989, %v2960, %v1268
  %v3026 = vsel %vm2989, %v2961, %v1270
  %v3027 = vsel %vm2989, %v2962, %v1272
  %v3028 = vsel %vm2989, %v2963, %v1274
  %v3029 = vsel %vm2989, %v2964, %v1276
  %v3030 = vsel %vm2989, %v2965, %v1278
  %v3031 = vsel %vm2989, %v2966, %v1280
  %v3032 = vsel %vm2989, %v2967, %v1282
  %v3033 = vsel %vm2989, %v2968, %v1284
  %v3034 = vsel %vm2989, %v2969, %v1286
  %v3035 = vsel %vm2989, %v2970, %v1288
  %v3036 = vsel %vm2989, %v2971, %v1290
  %v3037 = vsel %vm2989, %v2972, %v1292
  %v3038 = vsel %vm2989, %v2973, %v1294
  %v3039 = vsel %vm2989, %v2974, %v1296
  %v3040 = vsel %vm2989, %v2975, %v1298
  %v3041 = vsel %vm2989, %v2976, %v1300
  %v3042 = vsel %vm2989, %v2977, %v1302
  %v3043 = vsel %vm2989, %v2978, %v1304
  %v3044 = vsel %vm2989, %v2979, %v1306
  %v3045 = vsel %vm2989, %v2980, %v1308
  %v3046 = vsel %vm2989, %v2981, %v1310
  %v3047 = vsel %vm2989, %v2982, %v1312
  %v3048 = vsel %vm2989, %v2983, %v1314
  %v3049 = vsel %vm2989, %v2984, %v1316
  %v3050 = vsel %vm2989, %v2985, %v1318
  %v3051 = vsel %vm2989, %v2986, %v1320
  %v3052 = vsel %vm2989, %v2987, %v1322
  %v3053 = vsel %vm2989, %v2988, %v1324
  %vm3054 = vcmask 97280
  %v3055 = vsel %vm3054, %v2990, %v1454
  %v3056 = vsel %vm3054, %v2991, %v1456
  %v3057 = vsel %vm3054, %v2992, %v1458
  %v3058 = vsel %vm3054, %v2993, %v1460
  %v3059 = vsel %vm3054, %v2994, %v1462
  %v3060 = vsel %vm3054, %v2995, %v1464
  %v3061 = vsel %vm3054, %v2996, %v1466
  %v3062 = vsel %vm3054, %v2997, %v1468
  %v3063 = vsel %vm3054, %v2998, %v1470
  %v3064 = vsel %vm3054, %v2999, %v1472
  %v3065 = vsel %vm3054, %v3000, %v1474
  %v3066 = vsel %vm3054, %v3001, %v1476
  %v3067 = vsel %vm3054, %v3002, %v1478
  %v3068 = vsel %vm3054, %v3003, %v1480
  %v3069 = vsel %vm3054, %v3004, %v1482
  %v3070 = vsel %vm3054, %v3005, %v1484
  %v3071 = vsel %vm3054, %v3006, %v1486
  %v3072 = vsel %vm3054, %v3007, %v1488
  %v3073 = vsel %vm3054, %v3008, %v1490
  %v3074 = vsel %vm3054, %v3009, %v1492
  %v3075 = vsel %vm3054, %v3010, %v1494
  %v3076 = vsel %vm3054, %v3011, %v1496
  %v3077 = vsel %vm3054, %v3012, %v1498
  %v3078 = vsel %vm3054, %v3013, %v1500
  %v3079 = vsel %vm3054, %v3014, %v1502
  %v3080 = vsel %vm3054, %v3015, %v1504
  %v3081 = vsel %vm3054, %v3016, %v1506
  %v3082 = vsel %vm3054, %v3017, %v1508
  %v3083 = vsel %vm3054, %v3018, %v1510
  %v3084 = vsel %vm3054, %v3019, %v1512
  %v3085 = vsel %vm3054, %v3020, %v1514
  %v3086 = vsel %vm3054, %v3021, %v1516
  %v3087 = vsel %vm3054, %v3022, %v1518
  %v3088 = vsel %vm3054, %v3023, %v1520
  %v3089 = vsel %vm3054, %v3024, %v1522
  %v3090 = vsel %vm3054, %v3025, %v1524
  %v3091 = vsel %vm3054, %v3026, %v1526
  %v3092 = vsel %vm3054, %v3027, %v1528
  %v3093 = vsel %vm3054, %v3028, %v1530
  %v3094 = vsel %vm3054, %v3029, %v1532
  %v3095 = vsel %vm3054, %v3030, %v1534
  %v3096 = vsel %vm3054, %v3031, %v1536
  %v3097 = vsel %vm3054, %v3032, %v1538
  %v3098 = vsel %vm3054, %v3033, %v1540
  %v3099 = vsel %vm3054, %v3034, %v1542
  %v3100 = vsel %vm3054, %v3035, %v1544
  %v3101 = vsel %vm3054, %v3036, %v1546
  %v3102 = vsel %vm3054, %v3037, %v1548
  %v3103 = vsel %vm3054, %v3038, %v1550
  %v3104 = vsel %vm3054, %v3039, %v1552
  %v3105 = vsel %vm3054, %v3040, %v1554
  %v3106 = vsel %vm3054, %v3041, %v1556
  %v3107 = vsel %vm3054, %v3042, %v1558
  %v3108 = vsel %vm3054, %v3043, %v1560
  %v3109 = vsel %vm3054, %v3044, %v1562
  %v3110 = vsel %vm3054, %v3045, %v1564
  %v3111 = vsel %vm3054, %v3046, %v1566
  %v3112 = vsel %vm3054, %v3047, %v1568
  %v3113 = vsel %vm3054, %v3048, %v1570
  %v3114 = vsel %vm3054, %v3049, %v1572
  %v3115 = vsel %vm3054, %v3050, %v1574
  %v3116 = vsel %vm3054, %v3051, %v1576
  %v3117 = vsel %vm3054, %v3052, %v1578
  %v3118 = vsel %vm3054, %v3053, %v1580
  %vm3119 = vcmask 130048
  %v3120 = vsel %vm3119, %v3055, %v1710
  %v3121 = vsel %vm3119, %v3056, %v1712
  %v3122 = vsel %vm3119, %v3057, %v1714
  %v3123 = vsel %vm3119, %v3058, %v1716
  %v3124 = vsel %vm3119, %v3059, %v1718
  %v3125 = vsel %vm3119, %v3060, %v1720
  %v3126 = vsel %vm3119, %v3061, %v1722
  %v3127 = vsel %vm3119, %v3062, %v1724
  %v3128 = vsel %vm3119, %v3063, %v1726
  %v3129 = vsel %vm3119, %v3064, %v1728
  %v3130 = vsel %vm3119, %v3065, %v1730
  %v3131 = vsel %vm3119, %v3066, %v1732
  %v3132 = vsel %vm3119, %v3067, %v1734
  %v3133 = vsel %vm3119, %v3068, %v1736
  %v3134 = vsel %vm3119, %v3069, %v1738
  %v3135 = vsel %vm3119, %v3070, %v1740
  %v3136 = vsel %vm3119, %v3071, %v1742
  %v3137 = vsel %vm3119, %v3072, %v1744
  %v3138 = vsel %vm3119, %v3073, %v1746
  %v3139 = vsel %vm3119, %v3074, %v1748
  %v3140 = vsel %vm3119, %v3075, %v1750
  %v3141 = vsel %vm3119, %v3076, %v1752
  %v3142 = vsel %vm3119, %v3077, %v1754
  %v3143 = vsel %vm3119, %v3078, %v1756
  %v3144 = vsel %vm3119, %v3079, %v1758
  %v3145 = vsel %vm3119, %v3080, %v1760
  %v3146 = vsel %vm3119, %v3081, %v1762
  %v3147 = vsel %vm3119, %v3082, %v1764
  %v3148 = vsel %vm3119, %v3083, %v1766
  %v3149 = vsel %vm3119, %v3084, %v1768
  %v3150 = vsel %vm3119, %v3085, %v1770
  %v3151 = vsel %vm3119, %v3086, %v1772
  %v3152 = vsel %vm3119, %v3087, %v1774
  %v3153 = vsel %vm3119, %v3088, %v1776
  %v3154 = vsel %vm3119, %v3089, %v1778
  %v3155 = vsel %vm3119, %v3090, %v1780
  %v3156 = vsel %vm3119, %v3091, %v1782
  %v3157 = vsel %vm3119, %v3092, %v1784
  %v3158 = vsel %vm3119, %v3093, %v1786
  %v3159 = vsel %vm3119, %v3094, %v1788
  %v3160 = vsel %vm3119, %v3095, %v1790
  %v3161 = vsel %vm3119, %v3096, %v1792
  %v3162 = vsel %vm3119, %v3097, %v1794
  %v3163 = vsel %vm3119, %v3098, %v1796
  %v3164 = vsel %vm3119, %v3099, %v1798
  %v3165 = vsel %vm3119, %v3100, %v1800
  %v3166 = vsel %vm3119, %v3101, %v1802
  %v3167 = vsel %vm3119, %v3102, %v1804
  %v3168 = vsel %vm3119, %v3103, %v1806
  %v3169 = vsel %vm3119, %v3104, %v1808
  %v3170 = vsel %vm3119, %v3105, %v1810
  %v3171 = vsel %vm3119, %v3106, %v1812
  %v3172 = vsel %vm3119, %v3107, %v1814
  %v3173 = vsel %vm3119, %v3108, %v1816
  %v3174 = vsel %vm3119, %v3109, %v1818
  %v3175 = vsel %vm3119, %v3110, %v1820
  %v3176 = vsel %vm3119, %v3111, %v1822
  %v3177 = vsel %vm3119, %v3112, %v1824
  %v3178 = vsel %vm3119, %v3113, %v1826
  %v3179 = vsel %vm3119, %v3114, %v1828
  %v3180 = vsel %vm3119, %v3115, %v1830
  %v3181 = vsel %vm3119, %v3116, %v1832
  %v3182 = vsel %vm3119, %v3117, %v1834
  %v3183 = vsel %vm3119, %v3118, %v1836
  %vm3184 = vcmask 162816
  %v3185 = vsel %vm3184, %v3120, %v1966
  %v3186 = vsel %vm3184, %v3121, %v1968
  %v3187 = vsel %vm3184, %v3122, %v1970
  %v3188 = vsel %vm3184, %v3123, %v1972
  %v3189 = vsel %vm3184, %v3124, %v1974
  %v3190 = vsel %vm3184, %v3125, %v1976
  %v3191 = vsel %vm3184, %v3126, %v1978
  %v3192 = vsel %vm3184, %v3127, %v1980
  %v3193 = vsel %vm3184, %v3128, %v1982
  %v3194 = vsel %vm3184, %v3129, %v1984
  %v3195 = vsel %vm3184, %v3130, %v1986
  %v3196 = vsel %vm3184, %v3131, %v1988
  %v3197 = vsel %vm3184, %v3132, %v1990
  %v3198 = vsel %vm3184, %v3133, %v1992
  %v3199 = vsel %vm3184, %v3134, %v1994
  %v3200 = vsel %vm3184, %v3135, %v1996
  %v3201 = vsel %vm3184, %v3136, %v1998
  %v3202 = vsel %vm3184, %v3137, %v2000
  %v3203 = vsel %vm3184, %v3138, %v2002
  %v3204 = vsel %vm3184, %v3139, %v2004
  %v3205 = vsel %vm3184, %v3140, %v2006
  %v3206 = vsel %vm3184, %v3141, %v2008
  %v3207 = vsel %vm3184, %v3142, %v2010
  %v3208 = vsel %vm3184, %v3143, %v2012
  %v3209 = vsel %vm3184, %v3144, %v2014
  %v3210 = vsel %vm3184, %v3145, %v2016
  %v3211 = vsel %vm3184, %v3146, %v2018
  %v3212 = vsel %vm3184, %v3147, %v2020
  %v3213 = vsel %vm3184, %v3148, %v2022
  %v3214 = vsel %vm3184, %v3149, %v2024
  %v3215 = vsel %vm3184, %v3150, %v2026
  %v3216 = vsel %vm3184, %v3151, %v2028
  %v3217 = vsel %vm3184, %v3152, %v2030
  %v3218 = vsel %vm3184, %v3153, %v2032
  %v3219 = vsel %vm3184, %v3154, %v2034
  %v3220 = vsel %vm3184, %v3155, %v2036
  %v3221 = vsel %vm3184, %v3156, %v2038
  %v3222 = vsel %vm3184, %v3157, %v2040
  %v3223 = vsel %vm3184, %v3158, %v2042
  %v3224 = vsel %vm3184, %v3159, %v2044
  %v3225 = vsel %vm3184, %v3160, %v2046
  %v3226 = vsel %vm3184, %v3161, %v2048
  %v3227 = vsel %vm3184, %v3162, %v2050
  %v3228 = vsel %vm3184, %v3163, %v2052
  %v3229 = vsel %vm3184, %v3164, %v2054
  %v3230 = vsel %vm3184, %v3165, %v2056
  %v3231 = vsel %vm3184, %v3166, %v2058
  %v3232 = vsel %vm3184, %v3167, %v2060
  %v3233 = vsel %vm3184, %v3168, %v2062
  %v3234 = vsel %vm3184, %v3169, %v2064
  %v3235 = vsel %vm3184, %v3170, %v2066
  %v3236 = vsel %vm3184, %v3171, %v2068
  %v3237 = vsel %vm3184, %v3172, %v2070
  %v3238 = vsel %vm3184, %v3173, %v2072
  %v3239 = vsel %vm3184, %v3174, %v2074
  %v3240 = vsel %vm3184, %v3175, %v2076
  %v3241 = vsel %vm3184, %v3176, %v2078
  %v3242 = vsel %vm3184, %v3177, %v2080
  %v3243 = vsel %vm3184, %v3178, %v2082
  %v3244 = vsel %vm3184, %v3179, %v2084
  %v3245 = vsel %vm3184, %v3180, %v2086
  %v3246 = vsel %vm3184, %v3181, %v2088
  %v3247 = vsel %vm3184, %v3182, %v2090
  %v3248 = vsel %vm3184, %v3183, %v2092
  %vm3249 = vcmask 195584
  %v3250 = vsel %vm3249, %v3185, %v2222
  %v3251 = vsel %vm3249, %v3186, %v2224
  %v3252 = vsel %vm3249, %v3187, %v2226
  %v3253 = vsel %vm3249, %v3188, %v2228
  %v3254 = vsel %vm3249, %v3189, %v2230
  %v3255 = vsel %vm3249, %v3190, %v2232
  %v3256 = vsel %vm3249, %v3191, %v2234
  %v3257 = vsel %vm3249, %v3192, %v2236
  %v3258 = vsel %vm3249, %v3193, %v2238
  %v3259 = vsel %vm3249, %v3194, %v2240
  %v3260 = vsel %vm3249, %v3195, %v2242
  %v3261 = vsel %vm3249, %v3196, %v2244
  %v3262 = vsel %vm3249, %v3197, %v2246
  %v3263 = vsel %vm3249, %v3198, %v2248
  %v3264 = vsel %vm3249, %v3199, %v2250
  %v3265 = vsel %vm3249, %v3200, %v2252
  %v3266 = vsel %vm3249, %v3201, %v2254
  %v3267 = vsel %vm3249, %v3202, %v2256
  %v3268 = vsel %vm3249, %v3203, %v2258
  %v3269 = vsel %vm3249, %v3204, %v2260
  %v3270 = vsel %vm3249, %v3205, %v2262
  %v3271 = vsel %vm3249, %v3206, %v2264
  %v3272 = vsel %vm3249, %v3207, %v2266
  %v3273 = vsel %vm3249, %v3208, %v2268
  %v3274 = vsel %vm3249, %v3209, %v2270
  %v3275 = vsel %vm3249, %v3210, %v2272
  %v3276 = vsel %vm3249, %v3211, %v2274
  %v3277 = vsel %vm3249, %v3212, %v2276
  %v3278 = vsel %vm3249, %v3213, %v2278
  %v3279 = vsel %vm3249, %v3214, %v2280
  %v3280 = vsel %vm3249, %v3215, %v2282
  %v3281 = vsel %vm3249, %v3216, %v2284
  %v3282 = vsel %vm3249, %v3217, %v2286
  %v3283 = vsel %vm3249, %v3218, %v2288
  %v3284 = vsel %vm3249, %v3219, %v2290
  %v3285 = vsel %vm3249, %v3220, %v2292
  %v3286 = vsel %vm3249, %v3221, %v2294
  %v3287 = vsel %vm3249, %v3222, %v2296
  %v3288 = vsel %vm3249, %v3223, %v2298
  %v3289 = vsel %vm3249, %v3224, %v2300
  %v3290 = vsel %vm3249, %v3225, %v2302
  %v3291 = vsel %vm3249, %v3226, %v2304
  %v3292 = vsel %vm3249, %v3227, %v2306
  %v3293 = vsel %vm3249, %v3228, %v2308
  %v3294 = vsel %vm3249, %v3229, %v2310
  %v3295 = vsel %vm3249, %v3230, %v2312
  %v3296 = vsel %vm3249, %v3231, %v2314
  %v3297 = vsel %vm3249, %v3232, %v2316
  %v3298 = vsel %vm3249, %v3233, %v2318
  %v3299 = vsel %vm3249, %v3234, %v2320
  %v3300 = vsel %vm3249, %v3235, %v2322
  %v3301 = vsel %vm3249, %v3236, %v2324
  %v3302 = vsel %vm3249, %v3237, %v2326
  %v3303 = vsel %vm3249, %v3238, %v2328
  %v3304 = vsel %vm3249, %v3239, %v2330
  %v3305 = vsel %vm3249, %v3240, %v2332
  %v3306 = vsel %vm3249, %v3241, %v2334
  %v3307 = vsel %vm3249, %v3242, %v2336
  %v3308 = vsel %vm3249, %v3243, %v2338
  %v3309 = vsel %vm3249, %v3244, %v2340
  %v3310 = vsel %vm3249, %v3245, %v2342
  %v3311 = vsel %vm3249, %v3246, %v2344
  %v3312 = vsel %vm3249, %v3247, %v2346
  %v3313 = vsel %vm3249, %v3248, %v2348
  %vm3314 = vcmask 228352
  %v3315 = vsel %vm3314, %v3250, %v2478
  %v3316 = vsel %vm3314, %v3251, %v2480
  %v3317 = vsel %vm3314, %v3252, %v2482
  %v3318 = vsel %vm3314, %v3253, %v2484
  %v3319 = vsel %vm3314, %v3254, %v2486
  %v3320 = vsel %vm3314, %v3255, %v2488
  %v3321 = vsel %vm3314, %v3256, %v2490
  %v3322 = vsel %vm3314, %v3257, %v2492
  %v3323 = vsel %vm3314, %v3258, %v2494
  %v3324 = vsel %vm3314, %v3259, %v2496
  %v3325 = vsel %vm3314, %v3260, %v2498
  %v3326 = vsel %vm3314, %v3261, %v2500
  %v3327 = vsel %vm3314, %v3262, %v2502
  %v3328 = vsel %vm3314, %v3263, %v2504
  %v3329 = vsel %vm3314, %v3264, %v2506
  %v3330 = vsel %vm3314, %v3265, %v2508
  %v3331 = vsel %vm3314, %v3266, %v2510
  %v3332 = vsel %vm3314, %v3267, %v2512
  %v3333 = vsel %vm3314, %v3268, %v2514
  %v3334 = vsel %vm3314, %v3269, %v2516
  %v3335 = vsel %vm3314, %v3270, %v2518
  %v3336 = vsel %vm3314, %v3271, %v2520
  %v3337 = vsel %vm3314, %v3272, %v2522
  %v3338 = vsel %vm3314, %v3273, %v2524
  %v3339 = vsel %vm3314, %v3274, %v2526
  %v3340 = vsel %vm3314, %v3275, %v2528
  %v3341 = vsel %vm3314, %v3276, %v2530
  %v3342 = vsel %vm3314, %v3277, %v2532
  %v3343 = vsel %vm3314, %v3278, %v2534
  %v3344 = vsel %vm3314, %v3279, %v2536
  %v3345 = vsel %vm3314, %v3280, %v2538
  %v3346 = vsel %vm3314, %v3281, %v2540
  %v3347 = vsel %vm3314, %v3282, %v2542
  %v3348 = vsel %vm3314, %v3283, %v2544
  %v3349 = vsel %vm3314, %v3284, %v2546
  %v3350 = vsel %vm3314, %v3285, %v2548
  %v3351 = vsel %vm3314, %v3286, %v2550
  %v3352 = vsel %vm3314, %v3287, %v2552
  %v3353 = vsel %vm3314, %v3288, %v2554
  %v3354 = vsel %vm3314, %v3289, %v2556
  %v3355 = vsel %vm3314, %v3290, %v2558
  %v3356 = vsel %vm3314, %v3291, %v2560
  %v3357 = vsel %vm3314, %v3292, %v2562
  %v3358 = vsel %vm3314, %v3293, %v2564
  %v3359 = vsel %vm3314, %v3294, %v2566
  %v3360 = vsel %vm3314, %v3295, %v2568
  %v3361 = vsel %vm3314, %v3296, %v2570
  %v3362 = vsel %vm3314, %v3297, %v2572
  %v3363 = vsel %vm3314, %v3298, %v2574
  %v3364 = vsel %vm3314, %v3299, %v2576
  %v3365 = vsel %vm3314, %v3300, %v2578
  %v3366 = vsel %vm3314, %v3301, %v2580
  %v3367 = vsel %vm3314, %v3302, %v2582
  %v3368 = vsel %vm3314, %v3303, %v2584
  %v3369 = vsel %vm3314, %v3304, %v2586
  %v3370 = vsel %vm3314, %v3305, %v2588
  %v3371 = vsel %vm3314, %v3306, %v2590
  %v3372 = vsel %vm3314, %v3307, %v2592
  %v3373 = vsel %vm3314, %v3308, %v2594
  %v3374 = vsel %vm3314, %v3309, %v2596
  %v3375 = vsel %vm3314, %v3310, %v2598
  %v3376 = vsel %vm3314, %v3311, %v2600
  %v3377 = vsel %vm3314, %v3312, %v2602
  %v3378 = vsel %vm3314, %v3313, %v2604
  %vm3379 = vcmask 261120
  %v3380 = vsel %vm3379, %v3315, %v2734
  %v3381 = vsel %vm3379, %v3316, %v2736
  %v3382 = vsel %vm3379, %v3317, %v2738
  %v3383 = vsel %vm3379, %v3318, %v2740
  %v3384 = vsel %vm3379, %v3319, %v2742
  %v3385 = vsel %vm3379, %v3320, %v2744
  %v3386 = vsel %vm3379, %v3321, %v2746
  %v3387 = vsel %vm3379, %v3322, %v2748
  %v3388 = vsel %vm3379, %v3323, %v2750
  %v3389 = vsel %vm3379, %v3324, %v2752
  %v3390 = vsel %vm3379, %v3325, %v2754
  %v3391 = vsel %vm3379, %v3326, %v2756
  %v3392 = vsel %vm3379, %v3327, %v2758
  %v3393 = vsel %vm3379, %v3328, %v2760
  %v3394 = vsel %vm3379, %v3329, %v2762
  %v3395 = vsel %vm3379, %v3330, %v2764
  %v3396 = vsel %vm3379, %v3331, %v2766
  %v3397 = vsel %vm3379, %v3332, %v2768
  %v3398 = vsel %vm3379, %v3333, %v2770
  %v3399 = vsel %vm3379, %v3334, %v2772
  %v3400 = vsel %vm3379, %v3335, %v2774
  %v3401 = vsel %vm3379, %v3336, %v2776
  %v3402 = vsel %vm3379, %v3337, %v2778
  %v3403 = vsel %vm3379, %v3338, %v2780
  %v3404 = vsel %vm3379, %v3339, %v2782
  %v3405 = vsel %vm3379, %v3340, %v2784
  %v3406 = vsel %vm3379, %v3341, %v2786
  %v3407 = vsel %vm3379, %v3342, %v2788
  %v3408 = vsel %vm3379, %v3343, %v2790
  %v3409 = vsel %vm3379, %v3344, %v2792
  %v3410 = vsel %vm3379, %v3345, %v2794
  %v3411 = vsel %vm3379, %v3346, %v2796
  %v3412 = vsel %vm3379, %v3347, %v2798
  %v3413 = vsel %vm3379, %v3348, %v2800
  %v3414 = vsel %vm3379, %v3349, %v2802
  %v3415 = vsel %vm3379, %v3350, %v2804
  %v3416 = vsel %vm3379, %v3351, %v2806
  %v3417 = vsel %vm3379, %v3352, %v2808
  %v3418 = vsel %vm3379, %v3353, %v2810
  %v3419 = vsel %vm3379, %v3354, %v2812
  %v3420 = vsel %vm3379, %v3355, %v2814
  %v3421 = vsel %vm3379, %v3356, %v2816
  %v3422 = vsel %vm3379, %v3357, %v2818
  %v3423 = vsel %vm3379, %v3358, %v2820
  %v3424 = vsel %vm3379, %v3359, %v2822
  %v3425 = vsel %vm3379, %v3360, %v2824
  %v3426 = vsel %vm3379, %v3361, %v2826
  %v3427 = vsel %vm3379, %v3362, %v2828
  %v3428 = vsel %vm3379, %v3363, %v2830
  %v3429 = vsel %vm3379, %v3364, %v2832
  %v3430 = vsel %vm3379, %v3365, %v2834
  %v3431 = vsel %vm3379, %v3366, %v2836
  %v3432 = vsel %vm3379, %v3367, %v2838
  %v3433 = vsel %vm3379, %v3368, %v2840
  %v3434 = vsel %vm3379, %v3369, %v2842
  %v3435 = vsel %vm3379, %v3370, %v2844
  %v3436 = vsel %vm3379, %v3371, %v2846
  %v3437 = vsel %vm3379, %v3372, %v2848
  %v3438 = vsel %vm3379, %v3373, %v2850
  %v3439 = vsel %vm3379, %v3374, %v2852
  %v3440 = vsel %vm3379, %v3375, %v2854
  %v3441 = vsel %vm3379, %v3376, %v2856
  %v3442 = vsel %vm3379, %v3377, %v2858
  %v3443 = vsel %vm3379, %v3378, %v2860
  %v3444 = vld [vmem:[%s1] sm:$0xff]
  %v3445 = vld [vmem:[%s1 + $0x8] sm:$0xff]
  %v3446 = vld [vmem:[%s1 + $0x10] sm:$0xff]
  %v3447 = vld [vmem:[%s1 + $0x18] sm:$0xff]
  %v3448 = vld [vmem:[%s1 + $0x20] sm:$0xf]
  %vm3449 = vcmask 293888
  %v3451 = vsel %vm3449, %v3380, 0
  %v3454 = vsel %vm3449, %v3381, 0
  %v3457 = vsel %vm3449, %v3382, 0
  %v3460 = vsel %vm3449, %v3383, 0
  %v3463 = vsel %vm3449, %v3384, 0
  %v3466 = vsel %vm3449, %v3385, 0
  %v3469 = vsel %vm3449, %v3386, 0
  %v3472 = vsel %vm3449, %v3387, 0
  %v3475 = vsel %vm3449, %v3388, 0
  %v3478 = vsel %vm3449, %v3389, 0
  %v3481 = vsel %vm3449, %v3390, 0
  %v3484 = vsel %vm3449, %v3391, 0
  %v3487 = vsel %vm3449, %v3392, 0
  %v3490 = vsel %vm3449, %v3393, 0
  %v3493 = vsel %vm3449, %v3394, 0
  %v3496 = vsel %vm3449, %v3395, 0
  %v3499 = vsel %vm3449, %v3396, 0
  %v3502 = vsel %vm3449, %v3397, 0
  %v3505 = vsel %vm3449, %v3398, 0
  %v3508 = vsel %vm3449, %v3399, 0
  %v3511 = vsel %vm3449, %v3400, 0
  %v3514 = vsel %vm3449, %v3401, 0
  %v3517 = vsel %vm3449, %v3402, 0
  %v3520 = vsel %vm3449, %v3403, 0
  %v3523 = vsel %vm3449, %v3404, 0
  %v3526 = vsel %vm3449, %v3405, 0
  %v3529 = vsel %vm3449, %v3406, 0
  %v3532 = vsel %vm3449, %v3407, 0
  %v3535 = vsel %vm3449, %v3408, 0
  %v3538 = vsel %vm3449, %v3409, 0
  %v3541 = vsel %vm3449, %v3410, 0
  %v3544 = vsel %vm3449, %v3411, 0
  %v3547 = vsel %vm3449, %v3412, 0
  %v3550 = vsel %vm3449, %v3413, 0
  %v3553 = vsel %vm3449, %v3414, 0
  %v3556 = vsel %vm3449, %v3415, 0
  %v3559 = vsel %vm3449, %v3416, 0
  %v3562 = vsel %vm3449, %v3417, 0
  %v3565 = vsel %vm3449, %v3418, 0
  %v3568 = vsel %vm3449, %v3419, 0
  %v3571 = vsel %vm3449, %v3420, 0
  %v3574 = vsel %vm3449, %v3421, 0
  %v3577 = vsel %vm3449, %v3422, 0
  %v3580 = vsel %vm3449, %v3423, 0
  %v3583 = vsel %vm3449, %v3424, 0
  %v3586 = vsel %vm3449, %v3425, 0
  %v3589 = vsel %vm3449, %v3426, 0
  %v3592 = vsel %vm3449, %v3427, 0
  %v3595 = vsel %vm3449, %v3428, 0
  %v3598 = vsel %vm3449, %v3429, 0
  %v3601 = vsel %vm3449, %v3430, 0
  %v3604 = vsel %vm3449, %v3431, 0
  %v3607 = vsel %vm3449, %v3432, 0
  %v3610 = vsel %vm3449, %v3433, 0
  %v3613 = vsel %vm3449, %v3434, 0
  %v3616 = vsel %vm3449, %v3435, 0
  %v3619 = vsel %vm3449, %v3436, 0
  %v3622 = vsel %vm3449, %v3437, 0
  %v3625 = vsel %vm3449, %v3438, 0
  %v3628 = vsel %vm3449, %v3439, 0
  %v3631 = vsel %vm3449, %v3440, 0
  %v3634 = vsel %vm3449, %v3441, 0
  %v3637 = vsel %vm3449, %v3442, 0
  %v3640 = vsel %vm3449, %v3443, 0
  %vm3642 = vcmask 1043456
  %v3644 = vsel %vm3642, %v3448, 0
  %3646 = vmatprep.subr.mxu0 0.0
  %3647 = vmatpush1.msra.mxu0 %v3444
  %3648 = vmatprep.subr.mxu0 0.0
  %3649 = vmatpush1.msra.mxu0 %v3445
  %3650 = vmatprep.subr.mxu0 0.0
  %3651 = vmatpush1.msra.mxu0 %v3446
  %3652 = vmatprep.subr.mxu0 0.0
  %3653 = vmatpush1.msra.mxu0 %v3447
  %3654 = vmatprep.subr.mxu0 0.0
  %3655 = vmatpush1.msra.mxu0 %v3644
  %3656 = vmatprep.subr.mxu0 0.0
  %3657 = vmatpush1.msra.mxu0 0.0
  %3658 = vmatprep.subr.mxu0 0.0
  %3659 = vmatpush1.msra.mxu0 0.0
  %3660 = vmatprep.subr.mxu0 0.0
  %3661 = vmatpush1.msra.mxu0 0.0
  %3662 = vmatprep.subr.mxu0 0.0
  %3663 = vmatpush1.msra.mxu0 0.0
  %3664 = vmatprep.subr.mxu0 0.0
  %3665 = vmatpush1.msra.mxu0 0.0
  %3666 = vmatprep.subr.mxu0 0.0
  %3667 = vmatpush1.msra.mxu0 0.0
  %3668 = vmatprep.subr.mxu0 0.0
  %3669 = vmatpush1.msra.mxu0 0.0
  %3670 = vmatprep.subr.mxu0 0.0
  %3671 = vmatpush1.msra.mxu0 0.0
  %3672 = vmatprep.subr.mxu0 0.0
  %3673 = vmatpush1.msra.mxu0 0.0
  %3674 = vmatprep.subr.mxu0 0.0
  %3675 = vmatpush1.msra.mxu0 0.0
  %3676 = vmatprep.subr.mxu0 0.0
  %3677 = vmatpush1.msra.mxu0 0.0
  %3678 = vmatprep.subr.mxu0 0.0
  %3679 = vmatpush1.msra.mxu0 0.0
  %3680 = vmatprep.subr.mxu0 0.0
  %3681 = vmatpush1.msra.mxu0 0.0
  %3682 = vmatprep.subr.mxu0 0.0
  %3683 = vmatpush1.msra.mxu0 0.0
  %3684 = vmatprep.subr.mxu0 0.0
  %3685 = vmatpush1.msra.mxu0 0.0
  %3686 = vmatprep.subr.mxu0 0.0
  %3687 = vmatpush1.msra.mxu0 0.0
  %3688 = vmatprep.subr.mxu0 0.0
  %3689 = vmatpush1.msra.mxu0 0.0
  %3690 = vmatprep.subr.mxu0 0.0
  %3691 = vmatpush1.msra.mxu0 0.0
  %3692 = vmatprep.subr.mxu0 0.0
  %3693 = vmatpush1.msra.mxu0 0.0
  %3694 = vmatprep.subr.mxu0 0.0
  %3695 = vmatpush1.msra.mxu0 0.0
  %3696 = vmatprep.subr.mxu0 0.0
  %3697 = vmatpush1.msra.mxu0 0.0
  %3698 = vmatprep.subr.mxu0 0.0
  %3699 = vmatpush1.msra.mxu0 0.0
  %3700 = vmatprep.subr.mxu0 0.0
  %3701 = vmatpush1.msra.mxu0 0.0
  %3702 = vmatprep.subr.mxu0 0.0
  %3703 = vmatpush1.msra.mxu0 0.0
  %3704 = vmatprep.subr.mxu0 0.0
  %3705 = vmatpush1.msra.mxu0 0.0
  %3706 = vmatprep.subr.mxu0 0.0
  %3707 = vmatpush1.msra.mxu0 0.0
  %3708 = vmatprep.subr.mxu0 0.0
  %3709 = vmatpush1.msra.mxu0 0.0
  %3710 = vmatprep.mubr.f32.mxu0 0.0
  %3711 = vmatmul.mubr.f32.gmra.mrb[0].mxu0 %v3451
  %v3712 = vpop.f32.mrb[0].mxu0
  %v3713 = vadd.f32 0.0, %v3712
  %v3714 = vpop.f32.mrb[0].mxu0
  %3715 = vmatprep.mubr.f32.mxu0 0.0
  %3716 = vmatmul.mubr.f32.gmra.mrb[0].mxu0 %v3454
  %v3717 = vpop.f32.mrb[0].mxu0
  %v3718 = vadd.f32 0.0, %v3717
  %v3719 = vpop.f32.mrb[0].mxu0
  %3720 = vmatprep.mubr.f32.mxu0 0.0
  %3721 = vmatmul.mubr.f32.gmra.mrb[0].mxu0 %v3457
  %v3722 = vpop.f32.mrb[0].mxu0
  %v3723 = vadd.f32 0.0, %v3722
  %v3724 = vpop.f32.mrb[0].mxu0
  %3725 = vmatprep.mubr.f32.mxu0 0.0
  %3726 = vmatmul.mubr.f32.gmra.mrb[0].mxu0 %v3460
  %v3727 = vpop.f32.mrb[0].mxu0
  %v3728 = vadd.f32 0.0, %v3727
  %v3729 = vpop.f32.mrb[0].mxu0
  %3730 = vmatprep.mubr.f32.mxu0 0.0
  %3731 = vmatmul.mubr.f32.gmra.mrb[0].mxu0 %v3463
  %v3732 = vpop.f32.mrb[0].mxu0
  %v3733 = vadd.f32 0.0, %v3732
  %v3734 = vpop.f32.mrb[0].mxu0
  %3735 = vmatprep.mubr.f32.mxu0 0.0
  %3736 = vmatmul.mubr.f32.gmra.mrb[0].mxu0 %v3466
  %v3737 = vpop.f32.mrb[0].mxu0
  %v3738 = vadd.f32 0.0, %v3737
  %v3739 = vpop.f32.mrb[0].mxu0
  %3740 = vmatprep.mubr.f32.mxu0 0.0
  %3741 = vmatmul.mubr.f32.gmra.mrb[0].mxu0 %v3469
  %v3742 = vpop.f32.mrb[0].mxu0
  %v3743 = vadd.f32 0.0, %v3742
  %v3744 = vpop.f32.mrb[0].mxu0
  %3745 = vmatprep.mubr.f32.mxu0 0.0
  %3746 = vmatmul.mubr.f32.gmra.mrb[0].mxu0 %v3472
  %v3747 = vpop.f32.mrb[0].mxu0
  %v3748 = vadd.f32 0.0, %v3747
  %v3749 = vpop.f32.mrb[0].mxu0
  %3750 = vmatprep.mubr.f32.mxu0 0.0
  %3751 = vmatmul.mubr.f32.gmra.mrb[0].mxu0 %v3475
  %v3752 = vpop.f32.mrb[0].mxu0
  %v3753 = vadd.f32 0.0, %v3752
  %v3754 = vpop.f32.mrb[0].mxu0
  %3755 = vmatprep.mubr.f32.mxu0 0.0
  %3756 = vmatmul.mubr.f32.gmra.mrb[0].mxu0 %v3478
  %v3757 = vpop.f32.mrb[0].mxu0
  %v3758 = vadd.f32 0.0, %v3757
  %v3759 = vpop.f32.mrb[0].mxu0
  %3760 = vmatprep.mubr.f32.mxu0 0.0
  %3761 = vmatmul.mubr.f32.gmra.mrb[0].mxu0 %v3481
  %v3762 = vpop.f32.mrb[0].mxu0
  %v3763 = vadd.f32 0.0, %v3762
  %v3764 = vpop.f32.mrb[0].mxu0
  %3765 = vmatprep.mubr.f32.mxu0 0.0
  %3766 = vmatmul.mubr.f32.gmra.mrb[0].mxu0 %v3484
  %v3767 = vpop.f32.mrb[0].mxu0
  %v3768 = vadd.f32 0.0, %v3767
  %v3769 = vpop.f32.mrb[0].mxu0
  %3770 = vmatprep.mubr.f32.mxu0 0.0
  %3771 = vmatmul.mubr.f32.gmra.mrb[0].mxu0 %v3487
  %v3772 = vpop.f32.mrb[0].mxu0
  %v3773 = vadd.f32 0.0, %v3772
  %v3774 = vpop.f32.mrb[0].mxu0
  %3775 = vmatprep.mubr.f32.mxu0 0.0
  %3776 = vmatmul.mubr.f32.gmra.mrb[0].mxu0 %v3490
  %v3777 = vpop.f32.mrb[0].mxu0
  %v3778 = vadd.f32 0.0, %v3777
  %v3779 = vpop.f32.mrb[0].mxu0
  %3780 = vmatprep.mubr.f32.mxu0 0.0
  %3781 = vmatmul.mubr.f32.gmra.mrb[0].mxu0 %v3493
  %v3782 = vpop.f32.mrb[0].mxu0
  %v3783 = vadd.f32 0.0, %v3782
  %v3784 = vpop.f32.mrb[0].mxu0
  %3785 = vmatprep.mubr.f32.mxu0 0.0
  %3786 = vmatmul.mubr.f32.gmra.mrb[0].mxu0 %v3496
  %v3787 = vpop.f32.mrb[0].mxu0
  %v3788 = vadd.f32 0.0, %v3787
  %v3789 = vpop.f32.mrb[0].mxu0
  %3790 = vmatprep.mubr.f32.mxu0 0.0
  %3791 = vmatmul.mubr.f32.gmra.mrb[0].mxu0 %v3499
  %v3792 = vpop.f32.mrb[0].mxu0
  %v3793 = vadd.f32 0.0, %v3792
  %v3794 = vpop.f32.mrb[0].mxu0
  %3795 = vmatprep.mubr.f32.mxu0 0.0
  %3796 = vmatmul.mubr.f32.gmra.mrb[0].mxu0 %v3502
  %v3797 = vpop.f32.mrb[0].mxu0
  %v3798 = vadd.f32 0.0, %v3797
  %v3799 = vpop.f32.mrb[0].mxu0
  %3800 = vmatprep.mubr.f32.mxu0 0.0
  %3801 = vmatmul.mubr.f32.gmra.mrb[0].mxu0 %v3505
  %v3802 = vpop.f32.mrb[0].mxu0
  %v3803 = vadd.f32 0.0, %v3802
  %v3804 = vpop.f32.mrb[0].mxu0
  %3805 = vmatprep.mubr.f32.mxu0 0.0
  %3806 = vmatmul.mubr.f32.gmra.mrb[0].mxu0 %v3508
  %v3807 = vpop.f32.mrb[0].mxu0
  %v3808 = vadd.f32 0.0, %v3807
  %v3809 = vpop.f32.mrb[0].mxu0
  %3810 = vmatprep.mubr.f32.mxu0 0.0
  %3811 = vmatmul.mubr.f32.gmra.mrb[0].mxu0 %v3511
  %v3812 = vpop.f32.mrb[0].mxu0
  %v3813 = vadd.f32 0.0, %v3812
  %v3814 = vpop.f32.mrb[0].mxu0
  %3815 = vmatprep.mubr.f32.mxu0 0.0
  %3816 = vmatmul.mubr.f32.gmra.mrb[0].mxu0 %v3514
  %v3817 = vpop.f32.mrb[0].mxu0
  %v3818 = vadd.f32 0.0, %v3817
  %v3819 = vpop.f32.mrb[0].mxu0
  %3820 = vmatprep.mubr.f32.mxu0 0.0
  %3821 = vmatmul.mubr.f32.gmra.mrb[0].mxu0 %v3517
  %v3822 = vpop.f32.mrb[0].mxu0
  %v3823 = vadd.f32 0.0, %v3822
  %v3824 = vpop.f32.mrb[0].mxu0
  %3825 = vmatprep.mubr.f32.mxu0 0.0
  %3826 = vmatmul.mubr.f32.gmra.mrb[0].mxu0 %v3520
  %v3827 = vpop.f32.mrb[0].mxu0
  %v3828 = vadd.f32 0.0, %v3827
  %v3829 = vpop.f32.mrb[0].mxu0
  %3830 = vmatprep.mubr.f32.mxu0 0.0
  %3831 = vmatmul.mubr.f32.gmra.mrb[0].mxu0 %v3523
  %v3832 = vpop.f32.mrb[0].mxu0
  %v3833 = vadd.f32 0.0, %v3832
  %v3834 = vpop.f32.mrb[0].mxu0
  %3835 = vmatprep.mubr.f32.mxu0 0.0
  %3836 = vmatmul.mubr.f32.gmra.mrb[0].mxu0 %v3526
  %v3837 = vpop.f32.mrb[0].mxu0
  %v3838 = vadd.f32 0.0, %v3837
  %v3839 = vpop.f32.mrb[0].mxu0
  %3840 = vmatprep.mubr.f32.mxu0 0.0
  %3841 = vmatmul.mubr.f32.gmra.mrb[0].mxu0 %v3529
  %v3842 = vpop.f32.mrb[0].mxu0
  %v3843 = vadd.f32 0.0, %v3842
  %v3844 = vpop.f32.mrb[0].mxu0
  %3845 = vmatprep.mubr.f32.mxu0 0.0
  %3846 = vmatmul.mubr.f32.gmra.mrb[0].mxu0 %v3532
  %v3847 = vpop.f32.mrb[0].mxu0
  %v3848 = vadd.f32 0.0, %v3847
  %v3849 = vpop.f32.mrb[0].mxu0
  %3850 = vmatprep.mubr.f32.mxu0 0.0
  %3851 = vmatmul.mubr.f32.gmra.mrb[0].mxu0 %v3535
  %v3852 = vpop.f32.mrb[0].mxu0
  %v3853 = vadd.f32 0.0, %v3852
  %v3854 = vpop.f32.mrb[0].mxu0
  %3855 = vmatprep.mubr.f32.mxu0 0.0
  %3856 = vmatmul.mubr.f32.gmra.mrb[0].mxu0 %v3538
  %v3857 = vpop.f32.mrb[0].mxu0
  %v3858 = vadd.f32 0.0, %v3857
  %v3859 = vpop.f32.mrb[0].mxu0
  %3860 = vmatprep.mubr.f32.mxu0 0.0
  %3861 = vmatmul.mubr.f32.gmra.mrb[0].mxu0 %v3541
  %v3862 = vpop.f32.mrb[0].mxu0
  %v3863 = vadd.f32 0.0, %v3862
  %v3864 = vpop.f32.mrb[0].mxu0
  %3865 = vmatprep.mubr.f32.mxu0 0.0
  %3866 = vmatmul.mubr.f32.gmra.mrb[0].mxu0 %v3544
  %v3867 = vpop.f32.mrb[0].mxu0
  %v3868 = vadd.f32 0.0, %v3867
  %v3869 = vpop.f32.mrb[0].mxu0
  %3870 = vmatprep.mubr.f32.mxu0 0.0
  %3871 = vmatmul.mubr.f32.gmra.mrb[0].mxu0 %v3547
  %v3872 = vpop.f32.mrb[0].mxu0
  %v3873 = vadd.f32 0.0, %v3872
  %v3874 = vpop.f32.mrb[0].mxu0
  %3875 = vmatprep.mubr.f32.mxu0 0.0
  %3876 = vmatmul.mubr.f32.gmra.mrb[0].mxu0 %v3550
  %v3877 = vpop.f32.mrb[0].mxu0
  %v3878 = vadd.f32 0.0, %v3877
  %v3879 = vpop.f32.mrb[0].mxu0
  %3880 = vmatprep.mubr.f32.mxu0 0.0
  %3881 = vmatmul.mubr.f32.gmra.mrb[0].mxu0 %v3553
  %v3882 = vpop.f32.mrb[0].mxu0
  %v3883 = vadd.f32 0.0, %v3882
  %v3884 = vpop.f32.mrb[0].mxu0
  %3885 = vmatprep.mubr.f32.mxu0 0.0
  %3886 = vmatmul.mubr.f32.gmra.mrb[0].mxu0 %v3556
  %v3887 = vpop.f32.mrb[0].mxu0
  %v3888 = vadd.f32 0.0, %v3887
  %v3889 = vpop.f32.mrb[0].mxu0
  %3890 = vmatprep.mubr.f32.mxu0 0.0
  %3891 = vmatmul.mubr.f32.gmra.mrb[0].mxu0 %v3559
  %v3892 = vpop.f32.mrb[0].mxu0
  %v3893 = vadd.f32 0.0, %v3892
  %v3894 = vpop.f32.mrb[0].mxu0
  %3895 = vmatprep.mubr.f32.mxu0 0.0
  %3896 = vmatmul.mubr.f32.gmra.mrb[0].mxu0 %v3562
  %v3897 = vpop.f32.mrb[0].mxu0
  %v3898 = vadd.f32 0.0, %v3897
  %v3899 = vpop.f32.mrb[0].mxu0
  %3900 = vmatprep.mubr.f32.mxu0 0.0
  %3901 = vmatmul.mubr.f32.gmra.mrb[0].mxu0 %v3565
  %v3902 = vpop.f32.mrb[0].mxu0
  %v3903 = vadd.f32 0.0, %v3902
  %v3904 = vpop.f32.mrb[0].mxu0
  %3905 = vmatprep.mubr.f32.mxu0 0.0
  %3906 = vmatmul.mubr.f32.gmra.mrb[0].mxu0 %v3568
  %v3907 = vpop.f32.mrb[0].mxu0
  %v3908 = vadd.f32 0.0, %v3907
  %v3909 = vpop.f32.mrb[0].mxu0
  %3910 = vmatprep.mubr.f32.mxu0 0.0
  %3911 = vmatmul.mubr.f32.gmra.mrb[0].mxu0 %v3571
  %v3912 = vpop.f32.mrb[0].mxu0
  %v3913 = vadd.f32 0.0, %v3912
  %v3914 = vpop.f32.mrb[0].mxu0
  %3915 = vmatprep.mubr.f32.mxu0 0.0
  %3916 = vmatmul.mubr.f32.gmra.mrb[0].mxu0 %v3574
  %v3917 = vpop.f32.mrb[0].mxu0
  %v3918 = vadd.f32 0.0, %v3917
  %v3919 = vpop.f32.mrb[0].mxu0
  %3920 = vmatprep.mubr.f32.mxu0 0.0
  %3921 = vmatmul.mubr.f32.gmra.mrb[0].mxu0 %v3577
  %v3922 = vpop.f32.mrb[0].mxu0
  %v3923 = vadd.f32 0.0, %v3922
  %v3924 = vpop.f32.mrb[0].mxu0
  %3925 = vmatprep.mubr.f32.mxu0 0.0
  %3926 = vmatmul.mubr.f32.gmra.mrb[0].mxu0 %v3580
  %v3927 = vpop.f32.mrb[0].mxu0
  %v3928 = vadd.f32 0.0, %v3927
  %v3929 = vpop.f32.mrb[0].mxu0
  %3930 = vmatprep.mubr.f32.mxu0 0.0
  %3931 = vmatmul.mubr.f32.gmra.mrb[0].mxu0 %v3583
  %v3932 = vpop.f32.mrb[0].mxu0
  %v3933 = vadd.f32 0.0, %v3932
  %v3934 = vpop.f32.mrb[0].mxu0
  %3935 = vmatprep.mubr.f32.mxu0 0.0
  %3936 = vmatmul.mubr.f32.gmra.mrb[0].mxu0 %v3586
  %v3937 = vpop.f32.mrb[0].mxu0
  %v3938 = vadd.f32 0.0, %v3937
  %v3939 = vpop.f32.mrb[0].mxu0
  %3940 = vmatprep.mubr.f32.mxu0 0.0
  %3941 = vmatmul.mubr.f32.gmra.mrb[0].mxu0 %v3589
  %v3942 = vpop.f32.mrb[0].mxu0
  %v3943 = vadd.f32 0.0, %v3942
  %v3944 = vpop.f32.mrb[0].mxu0
  %3945 = vmatprep.mubr.f32.mxu0 0.0
  %3946 = vmatmul.mubr.f32.gmra.mrb[0].mxu0 %v3592
  %v3947 = vpop.f32.mrb[0].mxu0
  %v3948 = vadd.f32 0.0, %v3947
  %v3949 = vpop.f32.mrb[0].mxu0
  %3950 = vmatprep.mubr.f32.mxu0 0.0
  %3951 = vmatmul.mubr.f32.gmra.mrb[0].mxu0 %v3595
  %v3952 = vpop.f32.mrb[0].mxu0
  %v3953 = vadd.f32 0.0, %v3952
  %v3954 = vpop.f32.mrb[0].mxu0
  %3955 = vmatprep.mubr.f32.mxu0 0.0
  %3956 = vmatmul.mubr.f32.gmra.mrb[0].mxu0 %v3598
  %v3957 = vpop.f32.mrb[0].mxu0
  %v3958 = vadd.f32 0.0, %v3957
  %v3959 = vpop.f32.mrb[0].mxu0
  %3960 = vmatprep.mubr.f32.mxu0 0.0
  %3961 = vmatmul.mubr.f32.gmra.mrb[0].mxu0 %v3601
  %v3962 = vpop.f32.mrb[0].mxu0
  %v3963 = vadd.f32 0.0, %v3962
  %v3964 = vpop.f32.mrb[0].mxu0
  %3965 = vmatprep.mubr.f32.mxu0 0.0
  %3966 = vmatmul.mubr.f32.gmra.mrb[0].mxu0 %v3604
  %v3967 = vpop.f32.mrb[0].mxu0
  %v3968 = vadd.f32 0.0, %v3967
  %v3969 = vpop.f32.mrb[0].mxu0
  %3970 = vmatprep.mubr.f32.mxu0 0.0
  %3971 = vmatmul.mubr.f32.gmra.mrb[0].mxu0 %v3607
  %v3972 = vpop.f32.mrb[0].mxu0
  %v3973 = vadd.f32 0.0, %v3972
  %v3974 = vpop.f32.mrb[0].mxu0
  %3975 = vmatprep.mubr.f32.mxu0 0.0
  %3976 = vmatmul.mubr.f32.gmra.mrb[0].mxu0 %v3610
  %v3977 = vpop.f32.mrb[0].mxu0
  %v3978 = vadd.f32 0.0, %v3977
  %v3979 = vpop.f32.mrb[0].mxu0
  %3980 = vmatprep.mubr.f32.mxu0 0.0
  %3981 = vmatmul.mubr.f32.gmra.mrb[0].mxu0 %v3613
  %v3982 = vpop.f32.mrb[0].mxu0
  %v3983 = vadd.f32 0.0, %v3982
  %v3984 = vpop.f32.mrb[0].mxu0
  %3985 = vmatprep.mubr.f32.mxu0 0.0
  %3986 = vmatmul.mubr.f32.gmra.mrb[0].mxu0 %v3616
  %v3987 = vpop.f32.mrb[0].mxu0
  %v3988 = vadd.f32 0.0, %v3987
  %v3989 = vpop.f32.mrb[0].mxu0
  %3990 = vmatprep.mubr.f32.mxu0 0.0
  %3991 = vmatmul.mubr.f32.gmra.mrb[0].mxu0 %v3619
  %v3992 = vpop.f32.mrb[0].mxu0
  %v3993 = vadd.f32 0.0, %v3992
  %v3994 = vpop.f32.mrb[0].mxu0
  %3995 = vmatprep.mubr.f32.mxu0 0.0
  %3996 = vmatmul.mubr.f32.gmra.mrb[0].mxu0 %v3622
  %v3997 = vpop.f32.mrb[0].mxu0
  %v3998 = vadd.f32 0.0, %v3997
  %v3999 = vpop.f32.mrb[0].mxu0
  %4000 = vmatprep.mubr.f32.mxu0 0.0
  %4001 = vmatmul.mubr.f32.gmra.mrb[0].mxu0 %v3625
  %v4002 = vpop.f32.mrb[0].mxu0
  %v4003 = vadd.f32 0.0, %v4002
  %v4004 = vpop.f32.mrb[0].mxu0
  %4005 = vmatprep.mubr.f32.mxu0 0.0
  %4006 = vmatmul.mubr.f32.gmra.mrb[0].mxu0 %v3628
  %v4007 = vpop.f32.mrb[0].mxu0
  %v4008 = vadd.f32 0.0, %v4007
  %v4009 = vpop.f32.mrb[0].mxu0
  %4010 = vmatprep.mubr.f32.mxu0 0.0
  %4011 = vmatmul.mubr.f32.gmra.mrb[0].mxu0 %v3631
  %v4012 = vpop.f32.mrb[0].mxu0
  %v4013 = vadd.f32 0.0, %v4012
  %v4014 = vpop.f32.mrb[0].mxu0
  %4015 = vmatprep.mubr.f32.mxu0 0.0
  %4016 = vmatmul.mubr.f32.gmra.mrb[0].mxu0 %v3634
  %v4017 = vpop.f32.mrb[0].mxu0
  %v4018 = vadd.f32 0.0, %v4017
  %v4019 = vpop.f32.mrb[0].mxu0
  %4020 = vmatprep.mubr.f32.mxu0 0.0
  %4021 = vmatmul.mubr.f32.gmra.mrb[0].mxu0 %v3637
  %v4022 = vpop.f32.mrb[0].mxu0
  %v4023 = vadd.f32 0.0, %v4022
  %v4024 = vpop.f32.mrb[0].mxu0
  %4025 = vmatprep.mubr.f32.mxu0 0.0
  %4026 = vmatmul.mubr.f32.gmra.mrb[0].mxu0 %v3640
  %v4027 = vpop.f32.mrb[0].mxu0
  %v4028 = vadd.f32 0.0, %v4027
  %v4029 = vpop.f32.mrb[0].mxu0
  %4030 = vdwg.mxu0
  %v4031 = vsel %vm26, %v3713, 0.0
  %v4032 = vsel %vm26, %v3718, 0.0
  %v4033 = vadd.f32 %v4031, %v4032
  %v4034 = vsel %vm26, %v3723, 0.0
  %v4035 = vadd.f32 %v4033, %v4034
  %v4036 = vsel %vm26, %v3728, 0.0
  %v4037 = vadd.f32 %v4035, %v4036
  %v4038 = vsel %vm26, %v3733, 0.0
  %v4039 = vadd.f32 %v4037, %v4038
  %v4040 = vsel %vm26, %v3738, 0.0
  %v4041 = vadd.f32 %v4039, %v4040
  %v4042 = vsel %vm26, %v3743, 0.0
  %v4043 = vadd.f32 %v4041, %v4042
  %v4044 = vsel %vm26, %v3748, 0.0
  %v4045 = vadd.f32 %v4043, %v4044
  %v4046 = vsel %vm26, %v3753, 0.0
  %v4047 = vadd.f32 %v4045, %v4046
  %v4048 = vsel %vm26, %v3758, 0.0
  %v4049 = vadd.f32 %v4047, %v4048
  %v4050 = vsel %vm26, %v3763, 0.0
  %v4051 = vadd.f32 %v4049, %v4050
  %v4052 = vsel %vm26, %v3768, 0.0
  %v4053 = vadd.f32 %v4051, %v4052
  %v4054 = vsel %vm26, %v3773, 0.0
  %v4055 = vadd.f32 %v4053, %v4054
  %v4056 = vsel %vm26, %v3778, 0.0
  %v4057 = vadd.f32 %v4055, %v4056
  %v4058 = vsel %vm26, %v3783, 0.0
  %v4059 = vadd.f32 %v4057, %v4058
  %v4060 = vsel %vm26, %v3788, 0.0
  %v4061 = vadd.f32 %v4059, %v4060
  %v4062 = vsel %vm26, %v3793, 0.0
  %v4063 = vadd.f32 %v4061, %v4062
  %v4064 = vsel %vm26, %v3798, 0.0
  %v4065 = vadd.f32 %v4063, %v4064
  %v4066 = vsel %vm26, %v3803, 0.0
  %v4067 = vadd.f32 %v4065, %v4066
  %v4068 = vsel %vm26, %v3808, 0.0
  %v4069 = vadd.f32 %v4067, %v4068
  %v4070 = vsel %vm26, %v3813, 0.0
  %v4071 = vadd.f32 %v4069, %v4070
  %v4072 = vsel %vm26, %v3818, 0.0
  %v4073 = vadd.f32 %v4071, %v4072
  %v4074 = vsel %vm26, %v3823, 0.0
  %v4075 = vadd.f32 %v4073, %v4074
  %v4076 = vsel %vm26, %v3828, 0.0
  %v4077 = vadd.f32 %v4075, %v4076
  %v4078 = vsel %vm26, %v3833, 0.0
  %v4079 = vadd.f32 %v4077, %v4078
  %v4080 = vsel %vm26, %v3838, 0.0
  %v4081 = vadd.f32 %v4079, %v4080
  %v4082 = vsel %vm26, %v3843, 0.0
  %v4083 = vadd.f32 %v4081, %v4082
  %v4084 = vsel %vm26, %v3848, 0.0
  %v4085 = vadd.f32 %v4083, %v4084
  %v4086 = vsel %vm26, %v3853, 0.0
  %v4087 = vadd.f32 %v4085, %v4086
  %v4088 = vsel %vm26, %v3858, 0.0
  %v4089 = vadd.f32 %v4087, %v4088
  %v4090 = vsel %vm26, %v3863, 0.0
  %v4091 = vadd.f32 %v4089, %v4090
  %v4092 = vsel %vm26, %v3868, 0.0
  %v4093 = vadd.f32 %v4091, %v4092
  %v4094 = vsel %vm26, %v3873, 0.0
  %v4095 = vadd.f32 %v4093, %v4094
  %v4096 = vsel %vm26, %v3878, 0.0
  %v4097 = vadd.f32 %v4095, %v4096
  %v4098 = vsel %vm26, %v3883, 0.0
  %v4099 = vadd.f32 %v4097, %v4098
  %v4100 = vsel %vm26, %v3888, 0.0
  %v4101 = vadd.f32 %v4099, %v4100
  %v4102 = vsel %vm26, %v3893, 0.0
  %v4103 = vadd.f32 %v4101, %v4102
  %v4104 = vsel %vm26, %v3898, 0.0
  %v4105 = vadd.f32 %v4103, %v4104
  %v4106 = vsel %vm26, %v3903, 0.0
  %v4107 = vadd.f32 %v4105, %v4106
  %v4108 = vsel %vm26, %v3908, 0.0
  %v4109 = vadd.f32 %v4107, %v4108
  %v4110 = vsel %vm26, %v3913, 0.0
  %v4111 = vadd.f32 %v4109, %v4110
  %v4112 = vsel %vm26, %v3918, 0.0
  %v4113 = vadd.f32 %v4111, %v4112
  %v4114 = vsel %vm26, %v3923, 0.0
  %v4115 = vadd.f32 %v4113, %v4114
  %v4116 = vsel %vm26, %v3928, 0.0
  %v4117 = vadd.f32 %v4115, %v4116
  %v4118 = vsel %vm26, %v3933, 0.0
  %v4119 = vadd.f32 %v4117, %v4118
  %v4120 = vsel %vm26, %v3938, 0.0
  %v4121 = vadd.f32 %v4119, %v4120
  %v4122 = vsel %vm26, %v3943, 0.0
  %v4123 = vadd.f32 %v4121, %v4122
  %v4124 = vsel %vm26, %v3948, 0.0
  %v4125 = vadd.f32 %v4123, %v4124
  %v4126 = vsel %vm26, %v3953, 0.0
  %v4127 = vadd.f32 %v4125, %v4126
  %v4128 = vsel %vm26, %v3958, 0.0
  %v4129 = vadd.f32 %v4127, %v4128
  %v4130 = vsel %vm26, %v3963, 0.0
  %v4131 = vadd.f32 %v4129, %v4130
  %v4132 = vsel %vm26, %v3968, 0.0
  %v4133 = vadd.f32 %v4131, %v4132
  %v4134 = vsel %vm26, %v3973, 0.0
  %v4135 = vadd.f32 %v4133, %v4134
  %v4136 = vsel %vm26, %v3978, 0.0
  %v4137 = vadd.f32 %v4135, %v4136
  %v4138 = vsel %vm26, %v3983, 0.0
  %v4139 = vadd.f32 %v4137, %v4138
  %v4140 = vsel %vm26, %v3988, 0.0
  %v4141 = vadd.f32 %v4139, %v4140
  %v4142 = vsel %vm26, %v3993, 0.0
  %v4143 = vadd.f32 %v4141, %v4142
  %v4144 = vsel %vm26, %v3998, 0.0
  %v4145 = vadd.f32 %v4143, %v4144
  %v4146 = vsel %vm26, %v4003, 0.0
  %v4147 = vadd.f32 %v4145, %v4146
  %v4148 = vsel %vm26, %v4008, 0.0
  %v4149 = vadd.f32 %v4147, %v4148
  %v4150 = vsel %vm26, %v4013, 0.0
  %v4151 = vadd.f32 %v4149, %v4150
  %v4152 = vsel %vm26, %v4018, 0.0
  %v4153 = vadd.f32 %v4151, %v4152
  %v4154 = vsel %vm26, %v4023, 0.0
  %v4155 = vadd.f32 %v4153, %v4154
  %v4156 = vsel %vm26, %v4028, 0.0
  %v4157 = vadd.f32 %v4155, %v4156
  %v4158 = vrot.slane %v4157, 4
  %v4159 = vadd.f32 %v4157, %v4158
  %v4160 = vrot.slane %v4159, 2
  %v4161 = vadd.f32 %v4159, %v4160
  %v4162 = vrot.slane %v4161, 1
  %v4163 = vadd.f32 %v4161, %v4162
  %v4164 = vmul.f32 %v3713, %v3713
  %v4165 = vmul.f32 %v3718, %v3718
  %v4166 = vmul.f32 %v3723, %v3723
  %v4167 = vmul.f32 %v3728, %v3728
  %v4168 = vmul.f32 %v3733, %v3733
  %v4169 = vmul.f32 %v3738, %v3738
  %v4170 = vmul.f32 %v3743, %v3743
  %v4171 = vmul.f32 %v3748, %v3748
  %v4172 = vmul.f32 %v3753, %v3753
  %v4173 = vmul.f32 %v3758, %v3758
  %v4174 = vmul.f32 %v3763, %v3763
  %v4175 = vmul.f32 %v3768, %v3768
  %v4176 = vmul.f32 %v3773, %v3773
  %v4177 = vmul.f32 %v3778, %v3778
  %v4178 = vmul.f32 %v3783, %v3783
  %v4179 = vmul.f32 %v3788, %v3788
  %v4180 = vmul.f32 %v3793, %v3793
  %v4181 = vmul.f32 %v3798, %v3798
  %v4182 = vmul.f32 %v3803, %v3803
  %v4183 = vmul.f32 %v3808, %v3808
  %v4184 = vmul.f32 %v3813, %v3813
  %v4185 = vmul.f32 %v3818, %v3818
  %v4186 = vmul.f32 %v3823, %v3823
  %v4187 = vmul.f32 %v3828, %v3828
  %v4188 = vmul.f32 %v3833, %v3833
  %v4189 = vmul.f32 %v3838, %v3838
  %v4190 = vmul.f32 %v3843, %v3843
  %v4191 = vmul.f32 %v3848, %v3848
  %v4192 = vmul.f32 %v3853, %v3853
  %v4193 = vmul.f32 %v3858, %v3858
  %v4194 = vmul.f32 %v3863, %v3863
  %v4195 = vmul.f32 %v3868, %v3868
  %v4196 = vmul.f32 %v3873, %v3873
  %v4197 = vmul.f32 %v3878, %v3878
  %v4198 = vmul.f32 %v3883, %v3883
  %v4199 = vmul.f32 %v3888, %v3888
  %v4200 = vmul.f32 %v3893, %v3893
  %v4201 = vmul.f32 %v3898, %v3898
  %v4202 = vmul.f32 %v3903, %v3903
  %v4203 = vmul.f32 %v3908, %v3908
  %v4204 = vmul.f32 %v3913, %v3913
  %v4205 = vmul.f32 %v3918, %v3918
  %v4206 = vmul.f32 %v3923, %v3923
  %v4207 = vmul.f32 %v3928, %v3928
  %v4208 = vmul.f32 %v3933, %v3933
  %v4209 = vmul.f32 %v3938, %v3938
  %v4210 = vmul.f32 %v3943, %v3943
  %v4211 = vmul.f32 %v3948, %v3948
  %v4212 = vmul.f32 %v3953, %v3953
  %v4213 = vmul.f32 %v3958, %v3958
  %v4214 = vmul.f32 %v3963, %v3963
  %v4215 = vmul.f32 %v3968, %v3968
  %v4216 = vmul.f32 %v3973, %v3973
  %v4217 = vmul.f32 %v3978, %v3978
  %v4218 = vmul.f32 %v3983, %v3983
  %v4219 = vmul.f32 %v3988, %v3988
  %v4220 = vmul.f32 %v3993, %v3993
  %v4221 = vmul.f32 %v3998, %v3998
  %v4222 = vmul.f32 %v4003, %v4003
  %v4223 = vmul.f32 %v4008, %v4008
  %v4224 = vmul.f32 %v4013, %v4013
  %v4225 = vmul.f32 %v4018, %v4018
  %v4226 = vmul.f32 %v4023, %v4023
  %v4227 = vmul.f32 %v4028, %v4028
  %v4228 = vsel %vm26, %v4164, 0.0
  %v4229 = vsel %vm26, %v4165, 0.0
  %v4230 = vadd.f32 %v4228, %v4229
  %v4231 = vsel %vm26, %v4166, 0.0
  %v4232 = vadd.f32 %v4230, %v4231
  %v4233 = vsel %vm26, %v4167, 0.0
  %v4234 = vadd.f32 %v4232, %v4233
  %v4235 = vsel %vm26, %v4168, 0.0
  %v4236 = vadd.f32 %v4234, %v4235
  %v4237 = vsel %vm26, %v4169, 0.0
  %v4238 = vadd.f32 %v4236, %v4237
  %v4239 = vsel %vm26, %v4170, 0.0
  %v4240 = vadd.f32 %v4238, %v4239
  %v4241 = vsel %vm26, %v4171, 0.0
  %v4242 = vadd.f32 %v4240, %v4241
  %v4243 = vsel %vm26, %v4172, 0.0
  %v4244 = vadd.f32 %v4242, %v4243
  %v4245 = vsel %vm26, %v4173, 0.0
  %v4246 = vadd.f32 %v4244, %v4245
  %v4247 = vsel %vm26, %v4174, 0.0
  %v4248 = vadd.f32 %v4246, %v4247
  %v4249 = vsel %vm26, %v4175, 0.0
  %v4250 = vadd.f32 %v4248, %v4249
  %v4251 = vsel %vm26, %v4176, 0.0
  %v4252 = vadd.f32 %v4250, %v4251
  %v4253 = vsel %vm26, %v4177, 0.0
  %v4254 = vadd.f32 %v4252, %v4253
  %v4255 = vsel %vm26, %v4178, 0.0
  %v4256 = vadd.f32 %v4254, %v4255
  %v4257 = vsel %vm26, %v4179, 0.0
  %v4258 = vadd.f32 %v4256, %v4257
  %v4259 = vsel %vm26, %v4180, 0.0
  %v4260 = vadd.f32 %v4258, %v4259
  %v4261 = vsel %vm26, %v4181, 0.0
  %v4262 = vadd.f32 %v4260, %v4261
  %v4263 = vsel %vm26, %v4182, 0.0
  %v4264 = vadd.f32 %v4262, %v4263
  %v4265 = vsel %vm26, %v4183, 0.0
  %v4266 = vadd.f32 %v4264, %v4265
  %v4267 = vsel %vm26, %v4184, 0.0
  %v4268 = vadd.f32 %v4266, %v4267
  %v4269 = vsel %vm26, %v4185, 0.0
  %v4270 = vadd.f32 %v4268, %v4269
  %v4271 = vsel %vm26, %v4186, 0.0
  %v4272 = vadd.f32 %v4270, %v4271
  %v4273 = vsel %vm26, %v4187, 0.0
  %v4274 = vadd.f32 %v4272, %v4273
  %v4275 = vsel %vm26, %v4188, 0.0
  %v4276 = vadd.f32 %v4274, %v4275
  %v4277 = vsel %vm26, %v4189, 0.0
  %v4278 = vadd.f32 %v4276, %v4277
  %v4279 = vsel %vm26, %v4190, 0.0
  %v4280 = vadd.f32 %v4278, %v4279
  %v4281 = vsel %vm26, %v4191, 0.0
  %v4282 = vadd.f32 %v4280, %v4281
  %v4283 = vsel %vm26, %v4192, 0.0
  %v4284 = vadd.f32 %v4282, %v4283
  %v4285 = vsel %vm26, %v4193, 0.0
  %v4286 = vadd.f32 %v4284, %v4285
  %v4287 = vsel %vm26, %v4194, 0.0
  %v4288 = vadd.f32 %v4286, %v4287
  %v4289 = vsel %vm26, %v4195, 0.0
  %v4290 = vadd.f32 %v4288, %v4289
  %v4291 = vsel %vm26, %v4196, 0.0
  %v4292 = vadd.f32 %v4290, %v4291
  %v4293 = vsel %vm26, %v4197, 0.0
  %v4294 = vadd.f32 %v4292, %v4293
  %v4295 = vsel %vm26, %v4198, 0.0
  %v4296 = vadd.f32 %v4294, %v4295
  %v4297 = vsel %vm26, %v4199, 0.0
  %v4298 = vadd.f32 %v4296, %v4297
  %v4299 = vsel %vm26, %v4200, 0.0
  %v4300 = vadd.f32 %v4298, %v4299
  %v4301 = vsel %vm26, %v4201, 0.0
  %v4302 = vadd.f32 %v4300, %v4301
  %v4303 = vsel %vm26, %v4202, 0.0
  %v4304 = vadd.f32 %v4302, %v4303
  %v4305 = vsel %vm26, %v4203, 0.0
  %v4306 = vadd.f32 %v4304, %v4305
  %v4307 = vsel %vm26, %v4204, 0.0
  %v4308 = vadd.f32 %v4306, %v4307
  %v4309 = vsel %vm26, %v4205, 0.0
  %v4310 = vadd.f32 %v4308, %v4309
  %v4311 = vsel %vm26, %v4206, 0.0
  %v4312 = vadd.f32 %v4310, %v4311
  %v4313 = vsel %vm26, %v4207, 0.0
  %v4314 = vadd.f32 %v4312, %v4313
  %v4315 = vsel %vm26, %v4208, 0.0
  %v4316 = vadd.f32 %v4314, %v4315
  %v4317 = vsel %vm26, %v4209, 0.0
  %v4318 = vadd.f32 %v4316, %v4317
  %v4319 = vsel %vm26, %v4210, 0.0
  %v4320 = vadd.f32 %v4318, %v4319
  %v4321 = vsel %vm26, %v4211, 0.0
  %v4322 = vadd.f32 %v4320, %v4321
  %v4323 = vsel %vm26, %v4212, 0.0
  %v4324 = vadd.f32 %v4322, %v4323
  %v4325 = vsel %vm26, %v4213, 0.0
  %v4326 = vadd.f32 %v4324, %v4325
  %v4327 = vsel %vm26, %v4214, 0.0
  %v4328 = vadd.f32 %v4326, %v4327
  %v4329 = vsel %vm26, %v4215, 0.0
  %v4330 = vadd.f32 %v4328, %v4329
  %v4331 = vsel %vm26, %v4216, 0.0
  %v4332 = vadd.f32 %v4330, %v4331
  %v4333 = vsel %vm26, %v4217, 0.0
  %v4334 = vadd.f32 %v4332, %v4333
  %v4335 = vsel %vm26, %v4218, 0.0
  %v4336 = vadd.f32 %v4334, %v4335
  %v4337 = vsel %vm26, %v4219, 0.0
  %v4338 = vadd.f32 %v4336, %v4337
  %v4339 = vsel %vm26, %v4220, 0.0
  %v4340 = vadd.f32 %v4338, %v4339
  %v4341 = vsel %vm26, %v4221, 0.0
  %v4342 = vadd.f32 %v4340, %v4341
  %v4343 = vsel %vm26, %v4222, 0.0
  %v4344 = vadd.f32 %v4342, %v4343
  %v4345 = vsel %vm26, %v4223, 0.0
  %v4346 = vadd.f32 %v4344, %v4345
  %v4347 = vsel %vm26, %v4224, 0.0
  %v4348 = vadd.f32 %v4346, %v4347
  %v4349 = vsel %vm26, %v4225, 0.0
  %v4350 = vadd.f32 %v4348, %v4349
  %v4351 = vsel %vm26, %v4226, 0.0
  %v4352 = vadd.f32 %v4350, %v4351
  %v4353 = vsel %vm26, %v4227, 0.0
  %v4354 = vadd.f32 %v4352, %v4353
  %v4355 = vrot.slane %v4354, 4
  %v4356 = vadd.f32 %v4354, %v4355
  %v4357 = vrot.slane %v4356, 2
  %v4358 = vadd.f32 %v4356, %v4357
  %v4359 = vrot.slane %v4358, 1
  %v4360 = vadd.f32 %v4358, %v4359
  %v4361 = vmul.f32 %v4163, 0.001953125
  %v4362 = vmul.f32 %v4360, 0.001953125
  %v4363 = vmul.f32 %v4361, %v4361
  %v4364 = vsub.f32 %v4362, %v4363
  %v4365 = vadd.f32 %v4364, 1e-05
  %v4366 = vrsqrt.pop %v4365
  %v4367 = vsub.f32 %v3713, %v4361
  %v4368 = vsub.f32 %v3718, %v4361
  %v4369 = vsub.f32 %v3723, %v4361
  %v4370 = vsub.f32 %v3728, %v4361
  %v4371 = vsub.f32 %v3733, %v4361
  %v4372 = vsub.f32 %v3738, %v4361
  %v4373 = vsub.f32 %v3743, %v4361
  %v4374 = vsub.f32 %v3748, %v4361
  %v4375 = vsub.f32 %v3753, %v4361
  %v4376 = vsub.f32 %v3758, %v4361
  %v4377 = vsub.f32 %v3763, %v4361
  %v4378 = vsub.f32 %v3768, %v4361
  %v4379 = vsub.f32 %v3773, %v4361
  %v4380 = vsub.f32 %v3778, %v4361
  %v4381 = vsub.f32 %v3783, %v4361
  %v4382 = vsub.f32 %v3788, %v4361
  %v4383 = vsub.f32 %v3793, %v4361
  %v4384 = vsub.f32 %v3798, %v4361
  %v4385 = vsub.f32 %v3803, %v4361
  %v4386 = vsub.f32 %v3808, %v4361
  %v4387 = vsub.f32 %v3813, %v4361
  %v4388 = vsub.f32 %v3818, %v4361
  %v4389 = vsub.f32 %v3823, %v4361
  %v4390 = vsub.f32 %v3828, %v4361
  %v4391 = vsub.f32 %v3833, %v4361
  %v4392 = vsub.f32 %v3838, %v4361
  %v4393 = vsub.f32 %v3843, %v4361
  %v4394 = vsub.f32 %v3848, %v4361
  %v4395 = vsub.f32 %v3853, %v4361
  %v4396 = vsub.f32 %v3858, %v4361
  %v4397 = vsub.f32 %v3863, %v4361
  %v4398 = vsub.f32 %v3868, %v4361
  %v4399 = vsub.f32 %v3873, %v4361
  %v4400 = vsub.f32 %v3878, %v4361
  %v4401 = vsub.f32 %v3883, %v4361
  %v4402 = vsub.f32 %v3888, %v4361
  %v4403 = vsub.f32 %v3893, %v4361
  %v4404 = vsub.f32 %v3898, %v4361
  %v4405 = vsub.f32 %v3903, %v4361
  %v4406 = vsub.f32 %v3908, %v4361
  %v4407 = vsub.f32 %v3913, %v4361
  %v4408 = vsub.f32 %v3918, %v4361
  %v4409 = vsub.f32 %v3923, %v4361
  %v4410 = vsub.f32 %v3928, %v4361
  %v4411 = vsub.f32 %v3933, %v4361
  %v4412 = vsub.f32 %v3938, %v4361
  %v4413 = vsub.f32 %v3943, %v4361
  %v4414 = vsub.f32 %v3948, %v4361
  %v4415 = vsub.f32 %v3953, %v4361
  %v4416 = vsub.f32 %v3958, %v4361
  %v4417 = vsub.f32 %v3963, %v4361
  %v4418 = vsub.f32 %v3968, %v4361
  %v4419 = vsub.f32 %v3973, %v4361
  %v4420 = vsub.f32 %v3978, %v4361
  %v4421 = vsub.f32 %v3983, %v4361
  %v4422 = vsub.f32 %v3988, %v4361
  %v4423 = vsub.f32 %v3993, %v4361
  %v4424 = vsub.f32 %v3998, %v4361
  %v4425 = vsub.f32 %v4003, %v4361
  %v4426 = vsub.f32 %v4008, %v4361
  %v4427 = vsub.f32 %v4013, %v4361
  %v4428 = vsub.f32 %v4018, %v4361
  %v4429 = vsub.f32 %v4023, %v4361
  %v4430 = vsub.f32 %v4028, %v4361
  %v4431 = vmul.f32 %v4367, %v4366
  %v4432 = vmul.f32 %v4368, %v4366
  %v4433 = vmul.f32 %v4369, %v4366
  %v4434 = vmul.f32 %v4370, %v4366
  %v4435 = vmul.f32 %v4371, %v4366
  %v4436 = vmul.f32 %v4372, %v4366
  %v4437 = vmul.f32 %v4373, %v4366
  %v4438 = vmul.f32 %v4374, %v4366
  %v4439 = vmul.f32 %v4375, %v4366
  %v4440 = vmul.f32 %v4376, %v4366
  %v4441 = vmul.f32 %v4377, %v4366
  %v4442 = vmul.f32 %v4378, %v4366
  %v4443 = vmul.f32 %v4379, %v4366
  %v4444 = vmul.f32 %v4380, %v4366
  %v4445 = vmul.f32 %v4381, %v4366
  %v4446 = vmul.f32 %v4382, %v4366
  %v4447 = vmul.f32 %v4383, %v4366
  %v4448 = vmul.f32 %v4384, %v4366
  %v4449 = vmul.f32 %v4385, %v4366
  %v4450 = vmul.f32 %v4386, %v4366
  %v4451 = vmul.f32 %v4387, %v4366
  %v4452 = vmul.f32 %v4388, %v4366
  %v4453 = vmul.f32 %v4389, %v4366
  %v4454 = vmul.f32 %v4390, %v4366
  %v4455 = vmul.f32 %v4391, %v4366
  %v4456 = vmul.f32 %v4392, %v4366
  %v4457 = vmul.f32 %v4393, %v4366
  %v4458 = vmul.f32 %v4394, %v4366
  %v4459 = vmul.f32 %v4395, %v4366
  %v4460 = vmul.f32 %v4396, %v4366
  %v4461 = vmul.f32 %v4397, %v4366
  %v4462 = vmul.f32 %v4398, %v4366
  %v4463 = vmul.f32 %v4399, %v4366
  %v4464 = vmul.f32 %v4400, %v4366
  %v4465 = vmul.f32 %v4401, %v4366
  %v4466 = vmul.f32 %v4402, %v4366
  %v4467 = vmul.f32 %v4403, %v4366
  %v4468 = vmul.f32 %v4404, %v4366
  %v4469 = vmul.f32 %v4405, %v4366
  %v4470 = vmul.f32 %v4406, %v4366
  %v4471 = vmul.f32 %v4407, %v4366
  %v4472 = vmul.f32 %v4408, %v4366
  %v4473 = vmul.f32 %v4409, %v4366
  %v4474 = vmul.f32 %v4410, %v4366
  %v4475 = vmul.f32 %v4411, %v4366
  %v4476 = vmul.f32 %v4412, %v4366
  %v4477 = vmul.f32 %v4413, %v4366
  %v4478 = vmul.f32 %v4414, %v4366
  %v4479 = vmul.f32 %v4415, %v4366
  %v4480 = vmul.f32 %v4416, %v4366
  %v4481 = vmul.f32 %v4417, %v4366
  %v4482 = vmul.f32 %v4418, %v4366
  %v4483 = vmul.f32 %v4419, %v4366
  %v4484 = vmul.f32 %v4420, %v4366
  %v4485 = vmul.f32 %v4421, %v4366
  %v4486 = vmul.f32 %v4422, %v4366
  %v4487 = vmul.f32 %v4423, %v4366
  %v4488 = vmul.f32 %v4424, %v4366
  %v4489 = vmul.f32 %v4425, %v4366
  %v4490 = vmul.f32 %v4426, %v4366
  %v4491 = vmul.f32 %v4427, %v4366
  %v4492 = vmul.f32 %v4428, %v4366
  %v4493 = vmul.f32 %v4429, %v4366
  %v4494 = vmul.f32 %v4430, %v4366
  %v4495 = vld [vmem:[%s2] sm:$0x1]
  %v4497 = vlaneseq
  %v4498 = vshrl.u32 %v4497, 7
  %v4499 = vsub.s32 0, %v4498
  %v4500 = vrot.slane %v4495, %v4499
  %v4502 = vmul.f32 %v4431, %v4500
  %v4503 = vmul.f32 %v4432, %v4500
  %v4504 = vmul.f32 %v4433, %v4500
  %v4505 = vmul.f32 %v4434, %v4500
  %v4506 = vmul.f32 %v4435, %v4500
  %v4507 = vmul.f32 %v4436, %v4500
  %v4508 = vmul.f32 %v4437, %v4500
  %v4509 = vmul.f32 %v4438, %v4500
  %v4510 = vmul.f32 %v4439, %v4500
  %v4511 = vmul.f32 %v4440, %v4500
  %v4512 = vmul.f32 %v4441, %v4500
  %v4513 = vmul.f32 %v4442, %v4500
  %v4514 = vmul.f32 %v4443, %v4500
  %v4515 = vmul.f32 %v4444, %v4500
  %v4516 = vmul.f32 %v4445, %v4500
  %v4517 = vmul.f32 %v4446, %v4500
  %v4518 = vmul.f32 %v4447, %v4500
  %v4519 = vmul.f32 %v4448, %v4500
  %v4520 = vmul.f32 %v4449, %v4500
  %v4521 = vmul.f32 %v4450, %v4500
  %v4522 = vmul.f32 %v4451, %v4500
  %v4523 = vmul.f32 %v4452, %v4500
  %v4524 = vmul.f32 %v4453, %v4500
  %v4525 = vmul.f32 %v4454, %v4500
  %v4526 = vmul.f32 %v4455, %v4500
  %v4527 = vmul.f32 %v4456, %v4500
  %v4528 = vmul.f32 %v4457, %v4500
  %v4529 = vmul.f32 %v4458, %v4500
  %v4530 = vmul.f32 %v4459, %v4500
  %v4531 = vmul.f32 %v4460, %v4500
  %v4532 = vmul.f32 %v4461, %v4500
  %v4533 = vmul.f32 %v4462, %v4500
  %v4534 = vmul.f32 %v4463, %v4500
  %v4535 = vmul.f32 %v4464, %v4500
  %v4536 = vmul.f32 %v4465, %v4500
  %v4537 = vmul.f32 %v4466, %v4500
  %v4538 = vmul.f32 %v4467, %v4500
  %v4539 = vmul.f32 %v4468, %v4500
  %v4540 = vmul.f32 %v4469, %v4500
  %v4541 = vmul.f32 %v4470, %v4500
  %v4542 = vmul.f32 %v4471, %v4500
  %v4543 = vmul.f32 %v4472, %v4500
  %v4544 = vmul.f32 %v4473, %v4500
  %v4545 = vmul.f32 %v4474, %v4500
  %v4546 = vmul.f32 %v4475, %v4500
  %v4547 = vmul.f32 %v4476, %v4500
  %v4548 = vmul.f32 %v4477, %v4500
  %v4549 = vmul.f32 %v4478, %v4500
  %v4550 = vmul.f32 %v4479, %v4500
  %v4551 = vmul.f32 %v4480, %v4500
  %v4552 = vmul.f32 %v4481, %v4500
  %v4553 = vmul.f32 %v4482, %v4500
  %v4554 = vmul.f32 %v4483, %v4500
  %v4555 = vmul.f32 %v4484, %v4500
  %v4556 = vmul.f32 %v4485, %v4500
  %v4557 = vmul.f32 %v4486, %v4500
  %v4558 = vmul.f32 %v4487, %v4500
  %v4559 = vmul.f32 %v4488, %v4500
  %v4560 = vmul.f32 %v4489, %v4500
  %v4561 = vmul.f32 %v4490, %v4500
  %v4562 = vmul.f32 %v4491, %v4500
  %v4563 = vmul.f32 %v4492, %v4500
  %v4564 = vmul.f32 %v4493, %v4500
  %v4565 = vmul.f32 %v4494, %v4500
  %v4566 = vld [vmem:[%s3] sm:$0x1]
  %v4568 = vlaneseq
  %v4569 = vshrl.u32 %v4568, 7
  %v4570 = vsub.s32 0, %v4569
  %v4571 = vrot.slane %v4566, %v4570
  %v4573 = vadd.f32 %v4502, %v4571
  %v4574 = vadd.f32 %v4503, %v4571
  %v4575 = vadd.f32 %v4504, %v4571
  %v4576 = vadd.f32 %v4505, %v4571
  %v4577 = vadd.f32 %v4506, %v4571
  %v4578 = vadd.f32 %v4507, %v4571
  %v4579 = vadd.f32 %v4508, %v4571
  %v4580 = vadd.f32 %v4509, %v4571
  %v4581 = vadd.f32 %v4510, %v4571
  %v4582 = vadd.f32 %v4511, %v4571
  %v4583 = vadd.f32 %v4512, %v4571
  %v4584 = vadd.f32 %v4513, %v4571
  %v4585 = vadd.f32 %v4514, %v4571
  %v4586 = vadd.f32 %v4515, %v4571
  %v4587 = vadd.f32 %v4516, %v4571
  %v4588 = vadd.f32 %v4517, %v4571
  %v4589 = vadd.f32 %v4518, %v4571
  %v4590 = vadd.f32 %v4519, %v4571
  %v4591 = vadd.f32 %v4520, %v4571
  %v4592 = vadd.f32 %v4521, %v4571
  %v4593 = vadd.f32 %v4522, %v4571
  %v4594 = vadd.f32 %v4523, %v4571
  %v4595 = vadd.f32 %v4524, %v4571
  %v4596 = vadd.f32 %v4525, %v4571
  %v4597 = vadd.f32 %v4526, %v4571
  %v4598 = vadd.f32 %v4527, %v4571
  %v4599 = vadd.f32 %v4528, %v4571
  %v4600 = vadd.f32 %v4529, %v4571
  %v4601 = vadd.f32 %v4530, %v4571
  %v4602 = vadd.f32 %v4531, %v4571
  %v4603 = vadd.f32 %v4532, %v4571
  %v4604 = vadd.f32 %v4533, %v4571
  %v4605 = vadd.f32 %v4534, %v4571
  %v4606 = vadd.f32 %v4535, %v4571
  %v4607 = vadd.f32 %v4536, %v4571
  %v4608 = vadd.f32 %v4537, %v4571
  %v4609 = vadd.f32 %v4538, %v4571
  %v4610 = vadd.f32 %v4539, %v4571
  %v4611 = vadd.f32 %v4540, %v4571
  %v4612 = vadd.f32 %v4541, %v4571
  %v4613 = vadd.f32 %v4542, %v4571
  %v4614 = vadd.f32 %v4543, %v4571
  %v4615 = vadd.f32 %v4544, %v4571
  %v4616 = vadd.f32 %v4545, %v4571
  %v4617 = vadd.f32 %v4546, %v4571
  %v4618 = vadd.f32 %v4547, %v4571
  %v4619 = vadd.f32 %v4548, %v4571
  %v4620 = vadd.f32 %v4549, %v4571
  %v4621 = vadd.f32 %v4550, %v4571
  %v4622 = vadd.f32 %v4551, %v4571
  %v4623 = vadd.f32 %v4552, %v4571
  %v4624 = vadd.f32 %v4553, %v4571
  %v4625 = vadd.f32 %v4554, %v4571
  %v4626 = vadd.f32 %v4555, %v4571
  %v4627 = vadd.f32 %v4556, %v4571
  %v4628 = vadd.f32 %v4557, %v4571
  %v4629 = vadd.f32 %v4558, %v4571
  %v4630 = vadd.f32 %v4559, %v4571
  %v4631 = vadd.f32 %v4560, %v4571
  %v4632 = vadd.f32 %v4561, %v4571
  %v4633 = vadd.f32 %v4562, %v4571
  %v4634 = vadd.f32 %v4563, %v4571
  %v4635 = vadd.f32 %v4564, %v4571
  %v4636 = vadd.f32 %v4565, %v4571
  %v4637 = vmax.f32 %v4573, 0.0
  %v4638 = vmax.f32 %v4574, 0.0
  %v4639 = vmax.f32 %v4575, 0.0
  %v4640 = vmax.f32 %v4576, 0.0
  %v4641 = vmax.f32 %v4577, 0.0
  %v4642 = vmax.f32 %v4578, 0.0
  %v4643 = vmax.f32 %v4579, 0.0
  %v4644 = vmax.f32 %v4580, 0.0
  %v4645 = vmax.f32 %v4581, 0.0
  %v4646 = vmax.f32 %v4582, 0.0
  %v4647 = vmax.f32 %v4583, 0.0
  %v4648 = vmax.f32 %v4584, 0.0
  %v4649 = vmax.f32 %v4585, 0.0
  %v4650 = vmax.f32 %v4586, 0.0
  %v4651 = vmax.f32 %v4587, 0.0
  %v4652 = vmax.f32 %v4588, 0.0
  %v4653 = vmax.f32 %v4589, 0.0
  %v4654 = vmax.f32 %v4590, 0.0
  %v4655 = vmax.f32 %v4591, 0.0
  %v4656 = vmax.f32 %v4592, 0.0
  %v4657 = vmax.f32 %v4593, 0.0
  %v4658 = vmax.f32 %v4594, 0.0
  %v4659 = vmax.f32 %v4595, 0.0
  %v4660 = vmax.f32 %v4596, 0.0
  %v4661 = vmax.f32 %v4597, 0.0
  %v4662 = vmax.f32 %v4598, 0.0
  %v4663 = vmax.f32 %v4599, 0.0
  %v4664 = vmax.f32 %v4600, 0.0
  %v4665 = vmax.f32 %v4601, 0.0
  %v4666 = vmax.f32 %v4602, 0.0
  %v4667 = vmax.f32 %v4603, 0.0
  %v4668 = vmax.f32 %v4604, 0.0
  %v4669 = vmax.f32 %v4605, 0.0
  %v4670 = vmax.f32 %v4606, 0.0
  %v4671 = vmax.f32 %v4607, 0.0
  %v4672 = vmax.f32 %v4608, 0.0
  %v4673 = vmax.f32 %v4609, 0.0
  %v4674 = vmax.f32 %v4610, 0.0
  %v4675 = vmax.f32 %v4611, 0.0
  %v4676 = vmax.f32 %v4612, 0.0
  %v4677 = vmax.f32 %v4613, 0.0
  %v4678 = vmax.f32 %v4614, 0.0
  %v4679 = vmax.f32 %v4615, 0.0
  %v4680 = vmax.f32 %v4616, 0.0
  %v4681 = vmax.f32 %v4617, 0.0
  %v4682 = vmax.f32 %v4618, 0.0
  %v4683 = vmax.f32 %v4619, 0.0
  %v4684 = vmax.f32 %v4620, 0.0
  %v4685 = vmax.f32 %v4621, 0.0
  %v4686 = vmax.f32 %v4622, 0.0
  %v4687 = vmax.f32 %v4623, 0.0
  %v4688 = vmax.f32 %v4624, 0.0
  %v4689 = vmax.f32 %v4625, 0.0
  %v4690 = vmax.f32 %v4626, 0.0
  %v4691 = vmax.f32 %v4627, 0.0
  %v4692 = vmax.f32 %v4628, 0.0
  %v4693 = vmax.f32 %v4629, 0.0
  %v4694 = vmax.f32 %v4630, 0.0
  %v4695 = vmax.f32 %v4631, 0.0
  %v4696 = vmax.f32 %v4632, 0.0
  %v4697 = vmax.f32 %v4633, 0.0
  %v4698 = vmax.f32 %v4634, 0.0
  %v4699 = vmax.f32 %v4635, 0.0
  %v4700 = vmax.f32 %v4636, 0.0
  %4701 = vst.msk [vmem:[#allocation3] sm:$0xff] %vm26, 0.0
  %4702 = vst.msk [vmem:[#allocation3 + $0x8] sm:$0xff] %vm26, 0.0
  %4703 = vst.msk [vmem:[#allocation3 + $0x10] sm:$0xff] %vm26, 0.0
  %4704 = vst.msk [vmem:[#allocation3 + $0x18] sm:$0xff] %vm26, 0.0
  %4705 = vst.msk [vmem:[#allocation3 + $0x20] sm:$0xff] %vm26, 0.0
  %4706 = vst.msk [vmem:[#allocation3 + $0x28] sm:$0xff] %vm26, 0.0
  %4707 = vst.msk [vmem:[#allocation3 + $0x30] sm:$0xff] %vm26, 0.0
  %4708 = vst.msk [vmem:[#allocation3 + $0x38] sm:$0xff] %vm26, 0.0
  %4709 = vst.msk [vmem:[#allocation3 + $0x40] sm:$0xff] %vm26, 0.0
  %4710 = vst.msk [vmem:[#allocation3 + $0x48] sm:$0xff] %vm26, 0.0
  %4711 = vst.msk [vmem:[#allocation3 + $0x50] sm:$0xff] %vm26, 0.0
  %4712 = vst.msk [vmem:[#allocation3 + $0x58] sm:$0xff] %vm26, 0.0
  %4713 = vst.msk [vmem:[#allocation3 + $0x60] sm:$0xff] %vm26, 0.0
  %4714 = vst.msk [vmem:[#allocation3 + $0x68] sm:$0xff] %vm26, 0.0
  %4715 = vst.msk [vmem:[#allocation3 + $0x70] sm:$0xff] %vm26, 0.0
  %4716 = vst.msk [vmem:[#allocation3 + $0x78] sm:$0xff] %vm26, 0.0
  %4717 = vst.msk [vmem:[#allocation3 + $0x80] sm:$0xff] %vm26, 0.0
  %4718 = vst.msk [vmem:[#allocation3 + $0x88] sm:$0xff] %vm26, 0.0
  %4719 = vst.msk [vmem:[#allocation3 + $0x90] sm:$0xff] %vm26, 0.0
  %4720 = vst.msk [vmem:[#allocation3 + $0x98] sm:$0xff] %vm26, 0.0
  %4721 = vst.msk [vmem:[#allocation3 + $0xa0] sm:$0xff] %vm26, 0.0
  %4722 = vst.msk [vmem:[#allocation3 + $0xa8] sm:$0xff] %vm26, 0.0
  %4723 = vst.msk [vmem:[#allocation3 + $0xb0] sm:$0xff] %vm26, 0.0
  %4724 = vst.msk [vmem:[#allocation3 + $0xb8] sm:$0xff] %vm26, 0.0
  %4725 = vst.msk [vmem:[#allocation3 + $0xc0] sm:$0xff] %vm26, 0.0
  %4726 = vst.msk [vmem:[#allocation3 + $0xc8] sm:$0xff] %vm26, 0.0
  %4727 = vst.msk [vmem:[#allocation3 + $0xd0] sm:$0xff] %vm26, 0.0
  %4728 = vst.msk [vmem:[#allocation3 + $0xd8] sm:$0xff] %vm26, 0.0
  %4729 = vst.msk [vmem:[#allocation3 + $0xe0] sm:$0xff] %vm26, 0.0
  %4730 = vst.msk [vmem:[#allocation3 + $0xe8] sm:$0xff] %vm26, 0.0
  %4731 = vst.msk [vmem:[#allocation3 + $0xf0] sm:$0xff] %vm26, 0.0
  %4732 = vst.msk [vmem:[#allocation3 + $0xf8] sm:$0xff] %vm26, 0.0
  %4733 = vst.msk [vmem:[#allocation3 + $0x100] sm:$0xff] %vm26, 0.0
  %4734 = vst.msk [vmem:[#allocation3 + $0x108] sm:$0xff] %vm26, 0.0
  %4735 = vst.msk [vmem:[#allocation3 + $0x110] sm:$0xff] %vm26, 0.0
  %4736 = vst.msk [vmem:[#allocation3 + $0x118] sm:$0xff] %vm26, 0.0
  %4737 = vst.msk [vmem:[#allocation3 + $0x120] sm:$0xff] %vm26, 0.0
  %4738 = vst.msk [vmem:[#allocation3 + $0x128] sm:$0xff] %vm26, 0.0
  %4739 = vst.msk [vmem:[#allocation3 + $0x130] sm:$0xff] %vm26, 0.0
  %4740 = vst.msk [vmem:[#allocation3 + $0x138] sm:$0xff] %vm26, 0.0
  %4741 = vst.msk [vmem:[#allocation3 + $0x140] sm:$0xff] %vm26, 0.0
  %4742 = vst.msk [vmem:[#allocation3 + $0x148] sm:$0xff] %vm26, 0.0
  %4743 = vst.msk [vmem:[#allocation3 + $0x150] sm:$0xff] %vm26, 0.0
  %4744 = vst.msk [vmem:[#allocation3 + $0x158] sm:$0xff] %vm26, 0.0
  %4745 = vst.msk [vmem:[#allocation3 + $0x160] sm:$0xff] %vm26, 0.0
  %4746 = vst.msk [vmem:[#allocation3 + $0x168] sm:$0xff] %vm26, 0.0
  %4747 = vst.msk [vmem:[#allocation3 + $0x170] sm:$0xff] %vm26, 0.0
  %4748 = vst.msk [vmem:[#allocation3 + $0x178] sm:$0xff] %vm26, 0.0
  %4749 = vst.msk [vmem:[#allocation3 + $0x180] sm:$0xff] %vm26, 0.0
  %4750 = vst.msk [vmem:[#allocation3 + $0x188] sm:$0xff] %vm26, 0.0
  %4751 = vst.msk [vmem:[#allocation3 + $0x190] sm:$0xff] %vm26, 0.0
  %4752 = vst.msk [vmem:[#allocation3 + $0x198] sm:$0xff] %vm26, 0.0
  %4753 = vst.msk [vmem:[#allocation3 + $0x1a0] sm:$0xff] %vm26, 0.0
  %4754 = vst.msk [vmem:[#allocation3 + $0x1a8] sm:$0xff] %vm26, 0.0
  %4755 = vst.msk [vmem:[#allocation3 + $0x1b0] sm:$0xff] %vm26, 0.0
  %4756 = vst.msk [vmem:[#allocation3 + $0x1b8] sm:$0xff] %vm26, 0.0
  %4757 = vst.msk [vmem:[#allocation3 + $0x1c0] sm:$0xff] %vm26, 0.0
  %4758 = vst.msk [vmem:[#allocation3 + $0x1c8] sm:$0xff] %vm26, 0.0
  %4759 = vst.msk [vmem:[#allocation3 + $0x1d0] sm:$0xff] %vm26, 0.0
  %4760 = vst.msk [vmem:[#allocation3 + $0x1d8] sm:$0xff] %vm26, 0.0
  %4761 = vst.msk [vmem:[#allocation3 + $0x1e0] sm:$0xff] %vm26, 0.0
  %4762 = vst.msk [vmem:[#allocation3 + $0x1e8] sm:$0xff] %vm26, 0.0
  %4763 = vst.msk [vmem:[#allocation3 + $0x1f0] sm:$0xff] %vm26, 0.0
  %4764 = vst.msk [vmem:[#allocation3 + $0x1f8] sm:$0xff] %vm26, 0.0
  %4765 = vst.msk [vmem:[#allocation3 + $0x200] sm:$0xff] %vm26, 0.0
  %4766 = vst.msk [vmem:[#allocation3 + $0x208] sm:$0xff] %vm26, 0.0
  %4767 = vst.msk [vmem:[#allocation3 + $0x210] sm:$0xff] %vm26, 0.0
  %4768 = vst.msk [vmem:[#allocation3 + $0x218] sm:$0xff] %vm26, 0.0
  %4769 = vst.msk [vmem:[#allocation3 + $0x220] sm:$0xff] %vm26, 0.0
  %4770 = vst.msk [vmem:[#allocation3 + $0x228] sm:$0xff] %vm26, 0.0
  %4771 = vst.msk [vmem:[#allocation3 + $0x230] sm:$0xff] %vm26, 0.0
  %4772 = vst.msk [vmem:[#allocation3 + $0x238] sm:$0xff] %vm26, 0.0
  %4773 = vst.msk [vmem:[#allocation3 + $0x240] sm:$0xff] %vm26, 0.0
  %4774 = vst.msk [vmem:[#allocation3 + $0x248] sm:$0xff] %vm26, 0.0
  %4775 = vst.msk [vmem:[#allocation3 + $0x250] sm:$0xff] %vm26, 0.0
  %4776 = vst.msk [vmem:[#allocation3 + $0x258] sm:$0xff] %vm26, 0.0
  %4777 = vst.msk [vmem:[#allocation3 + $0x260] sm:$0xff] %vm26, 0.0
  %4778 = vst.msk [vmem:[#allocation3 + $0x268] sm:$0xff] %vm26, 0.0
  %4779 = vst.msk [vmem:[#allocation3 + $0x270] sm:$0xff] %vm26, 0.0
  %4780 = vst.msk [vmem:[#allocation3 + $0x278] sm:$0xff] %vm26, 0.0
  %4781 = vst.msk [vmem:[#allocation3 + $0x280] sm:$0xff] %vm26, 0.0
  %4782 = vst.msk [vmem:[#allocation3 + $0x288] sm:$0xff] %vm26, 0.0
  %4783 = vst.msk [vmem:[#allocation3 + $0x290] sm:$0xff] %vm26, 0.0
  %4784 = vst.msk [vmem:[#allocation3 + $0x298] sm:$0xff] %vm26, 0.0
  %4785 = vst.msk [vmem:[#allocation3 + $0x2a0] sm:$0xff] %vm26, 0.0
  %4786 = vst.msk [vmem:[#allocation3 + $0x2a8] sm:$0xff] %vm26, 0.0
  %4787 = vst.msk [vmem:[#allocation3 + $0x2b0] sm:$0xff] %vm26, 0.0
  %4788 = vst.msk [vmem:[#allocation3 + $0x2b8] sm:$0xff] %vm26, 0.0
  %4789 = vst.msk [vmem:[#allocation3 + $0x2c0] sm:$0xff] %vm26, 0.0
  %4790 = vst.msk [vmem:[#allocation3 + $0x2c8] sm:$0xff] %vm26, 0.0
  %4791 = vst.msk [vmem:[#allocation3 + $0x2d0] sm:$0xff] %vm26, 0.0
  %4792 = vst.msk [vmem:[#allocation3 + $0x2d8] sm:$0xff] %vm26, 0.0
  %4793 = vst.msk [vmem:[#allocation3 + $0x2e0] sm:$0xff] %vm26, 0.0
  %4794 = vst.msk [vmem:[#allocation3 + $0x2e8] sm:$0xff] %vm26, 0.0
  %4795 = vst.msk [vmem:[#allocation3 + $0x2f0] sm:$0xff] %vm26, 0.0
  %4796 = vst.msk [vmem:[#allocation3 + $0x2f8] sm:$0xff] %vm26, 0.0
  %4797 = vst.msk [vmem:[#allocation3 + $0x300] sm:$0xff] %vm26, 0.0
  %4798 = vst.msk [vmem:[#allocation3 + $0x308] sm:$0xff] %vm26, 0.0
  %4799 = vst.msk [vmem:[#allocation3 + $0x310] sm:$0xff] %vm26, 0.0
  %4800 = vst.msk [vmem:[#allocation3 + $0x318] sm:$0xff] %vm26, 0.0
  %4801 = vst.msk [vmem:[#allocation3 + $0x320] sm:$0xff] %vm26, 0.0
  %4802 = vst.msk [vmem:[#allocation3 + $0x328] sm:$0xff] %vm26, 0.0
  %4803 = vst.msk [vmem:[#allocation3 + $0x330] sm:$0xff] %vm26, 0.0
  %4804 = vst.msk [vmem:[#allocation3 + $0x338] sm:$0xff] %vm26, 0.0
  %4805 = vst.msk [vmem:[#allocation3 + $0x340] sm:$0xff] %vm26, 0.0
  %4806 = vst.msk [vmem:[#allocation3 + $0x348] sm:$0xff] %vm26, 0.0
  %4807 = vst.msk [vmem:[#allocation3 + $0x350] sm:$0xff] %vm26, 0.0
  %4808 = vst.msk [vmem:[#allocation3 + $0x358] sm:$0xff] %vm26, 0.0
  %4809 = vst.msk [vmem:[#allocation3 + $0x360] sm:$0xff] %vm26, 0.0
  %4810 = vst.msk [vmem:[#allocation3 + $0x368] sm:$0xff] %vm26, 0.0
  %4811 = vst.msk [vmem:[#allocation3 + $0x370] sm:$0xff] %vm26, 0.0
  %4812 = vst.msk [vmem:[#allocation3 + $0x378] sm:$0xff] %vm26, 0.0
  %4813 = vst.msk [vmem:[#allocation3 + $0x380] sm:$0xff] %vm26, 0.0
  %4814 = vst.msk [vmem:[#allocation3 + $0x388] sm:$0xff] %vm26, 0.0
  %4815 = vst.msk [vmem:[#allocation3 + $0x390] sm:$0xff] %vm26, 0.0
  %4816 = vst.msk [vmem:[#allocation3 + $0x398] sm:$0xff] %vm26, 0.0
  %4817 = vst.msk [vmem:[#allocation3 + $0x3a0] sm:$0xff] %vm26, 0.0
  %4818 = vst.msk [vmem:[#allocation3 + $0x3a8] sm:$0xff] %vm26, 0.0
  %4819 = vst.msk [vmem:[#allocation3 + $0x3b0] sm:$0xff] %vm26, 0.0
  %4820 = vst.msk [vmem:[#allocation3 + $0x3b8] sm:$0xff] %vm26, 0.0
  %4821 = vst.msk [vmem:[#allocation3 + $0x3c0] sm:$0xff] %vm26, 0.0
  %4822 = vst.msk [vmem:[#allocation3 + $0x3c8] sm:$0xff] %vm26, 0.0
  %4823 = vst.msk [vmem:[#allocation3 + $0x3d0] sm:$0xff] %vm26, 0.0
  %4824 = vst.msk [vmem:[#allocation3 + $0x3d8] sm:$0xff] %vm26, 0.0
  %4825 = vst.msk [vmem:[#allocation3 + $0x3e0] sm:$0xff] %vm26, 0.0
  %4826 = vst.msk [vmem:[#allocation3 + $0x3e8] sm:$0xff] %vm26, 0.0
  %4827 = vst.msk [vmem:[#allocation3 + $0x3f0] sm:$0xff] %vm26, 0.0
  %4828 = vst.msk [vmem:[#allocation3 + $0x3f8] sm:$0xff] %vm26, 0.0
  %4829 = vst.msk [vmem:[#allocation3 + $0x400] sm:$0xff] %vm26, 0.0
  %4830 = vst.msk [vmem:[#allocation3 + $0x408] sm:$0xff] %vm26, 0.0
  %4831 = vst.msk [vmem:[#allocation3 + $0x410] sm:$0xff] %vm26, 0.0
  %4832 = vst.msk [vmem:[#allocation3 + $0x418] sm:$0xff] %vm26, 0.0
  %4833 = vst.msk [vmem:[#allocation3 + $0x420] sm:$0xff] %vm26, 0.0
  %4834 = vst.msk [vmem:[#allocation3 + $0x428] sm:$0xff] %vm26, 0.0
  %4835 = vst.msk [vmem:[#allocation3 + $0x430] sm:$0xff] %vm26, 0.0
  %4836 = vst.msk [vmem:[#allocation3 + $0x438] sm:$0xff] %vm26, 0.0
  %4837 = vst.msk [vmem:[#allocation3 + $0x440] sm:$0xff] %vm26, 0.0
  %4838 = vst.msk [vmem:[#allocation3 + $0x448] sm:$0xff] %vm26, 0.0
  %4839 = vst.msk [vmem:[#allocation3 + $0x450] sm:$0xff] %vm26, 0.0
  %4840 = vst.msk [vmem:[#allocation3 + $0x458] sm:$0xff] %vm26, 0.0
  %4841 = vst.msk [vmem:[#allocation3 + $0x460] sm:$0xff] %vm26, 0.0
  %4842 = vst.msk [vmem:[#allocation3 + $0x468] sm:$0xff] %vm26, 0.0
  %4843 = vst.msk [vmem:[#allocation3 + $0x470] sm:$0xff] %vm26, 0.0
  %4844 = vst.msk [vmem:[#allocation3 + $0x478] sm:$0xff] %vm26, 0.0
  %s4845 = scalar_lea.vmem [#allocation3], 32
  %4846 = vst.msk [vmem:[%s4845 + $0x8] sm:$0xff] %vm26, %v4637
  %4847 = vst.msk [vmem:[%s4845 + $0x10] sm:$0xff] %vm26, %v4638
  %4848 = vst.msk [vmem:[%s4845 + $0x28] sm:$0xff] %vm26, %v4639
  %4849 = vst.msk [vmem:[%s4845 + $0x30] sm:$0xff] %vm26, %v4640
  %4850 = vst.msk [vmem:[%s4845 + $0x48] sm:$0xff] %vm26, %v4641
  %4851 = vst.msk [vmem:[%s4845 + $0x50] sm:$0xff] %vm26, %v4642
  %4852 = vst.msk [vmem:[%s4845 + $0x68] sm:$0xff] %vm26, %v4643
  %4853 = vst.msk [vmem:[%s4845 + $0x70] sm:$0xff] %vm26, %v4644
  %4854 = vst.msk [vmem:[%s4845 + $0x88] sm:$0xff] %vm26, %v4645
  %4855 = vst.msk [vmem:[%s4845 + $0x90] sm:$0xff] %vm26, %v4646
  %4856 = vst.msk [vmem:[%s4845 + $0xa8] sm:$0xff] %vm26, %v4647
  %4857 = vst.msk [vmem:[%s4845 + $0xb0] sm:$0xff] %vm26, %v4648
  %4858 = vst.msk [vmem:[%s4845 + $0xc8] sm:$0xff] %vm26, %v4649
  %4859 = vst.msk [vmem:[%s4845 + $0xd0] sm:$0xff] %vm26, %v4650
  %4860 = vst.msk [vmem:[%s4845 + $0xe8] sm:$0xff] %vm26, %v4651
  %4861 = vst.msk [vmem:[%s4845 + $0xf0] sm:$0xff] %vm26, %v4652
  %4862 = vst.msk [vmem:[%s4845 + $0x108] sm:$0xff] %vm26, %v4653
  %4863 = vst.msk [vmem:[%s4845 + $0x110] sm:$0xff] %vm26, %v4654
  %4864 = vst.msk [vmem:[%s4845 + $0x128] sm:$0xff] %vm26, %v4655
  %4865 = vst.msk [vmem:[%s4845 + $0x130] sm:$0xff] %vm26, %v4656
  %4866 = vst.msk [vmem:[%s4845 + $0x148] sm:$0xff] %vm26, %v4657
  %4867 = vst.msk [vmem:[%s4845 + $0x150] sm:$0xff] %vm26, %v4658
  %4868 = vst.msk [vmem:[%s4845 + $0x168] sm:$0xff] %vm26, %v4659
  %4869 = vst.msk [vmem:[%s4845 + $0x170] sm:$0xff] %vm26, %v4660
  %4870 = vst.msk [vmem:[%s4845 + $0x188] sm:$0xff] %vm26, %v4661
  %4871 = vst.msk [vmem:[%s4845 + $0x190] sm:$0xff] %vm26, %v4662
  %4872 = vst.msk [vmem:[%s4845 + $0x1a8] sm:$0xff] %vm26, %v4663
  %4873 = vst.msk [vmem:[%s4845 + $0x1b0] sm:$0xff] %vm26, %v4664
  %4874 = vst.msk [vmem:[%s4845 + $0x1c8] sm:$0xff] %vm26, %v4665
  %4875 = vst.msk [vmem:[%s4845 + $0x1d0] sm:$0xff] %vm26, %v4666
  %4876 = vst.msk [vmem:[%s4845 + $0x1e8] sm:$0xff] %vm26, %v4667
  %4877 = vst.msk [vmem:[%s4845 + $0x1f0] sm:$0xff] %vm26, %v4668
  %4878 = vst.msk [vmem:[%s4845 + $0x248] sm:$0xff] %vm26, %v4669
  %4879 = vst.msk [vmem:[%s4845 + $0x250] sm:$0xff] %vm26, %v4670
  %4880 = vst.msk [vmem:[%s4845 + $0x268] sm:$0xff] %vm26, %v4671
  %4881 = vst.msk [vmem:[%s4845 + $0x270] sm:$0xff] %vm26, %v4672
  %4882 = vst.msk [vmem:[%s4845 + $0x288] sm:$0xff] %vm26, %v4673
  %4883 = vst.msk [vmem:[%s4845 + $0x290] sm:$0xff] %vm26, %v4674
  %4884 = vst.msk [vmem:[%s4845 + $0x2a8] sm:$0xff] %vm26, %v4675
  %4885 = vst.msk [vmem:[%s4845 + $0x2b0] sm:$0xff] %vm26, %v4676
  %4886 = vst.msk [vmem:[%s4845 + $0x2c8] sm:$0xff] %vm26, %v4677
  %4887 = vst.msk [vmem:[%s4845 + $0x2d0] sm:$0xff] %vm26, %v4678
  %4888 = vst.msk [vmem:[%s4845 + $0x2e8] sm:$0xff] %vm26, %v4679
  %4889 = vst.msk [vmem:[%s4845 + $0x2f0] sm:$0xff] %vm26, %v4680
  %4890 = vst.msk [vmem:[%s4845 + $0x308] sm:$0xff] %vm26, %v4681
  %4891 = vst.msk [vmem:[%s4845 + $0x310] sm:$0xff] %vm26, %v4682
  %4892 = vst.msk [vmem:[%s4845 + $0x328] sm:$0xff] %vm26, %v4683
  %4893 = vst.msk [vmem:[%s4845 + $0x330] sm:$0xff] %vm26, %v4684
  %4894 = vst.msk [vmem:[%s4845 + $0x348] sm:$0xff] %vm26, %v4685
  %4895 = vst.msk [vmem:[%s4845 + $0x350] sm:$0xff] %vm26, %v4686
  %4896 = vst.msk [vmem:[%s4845 + $0x368] sm:$0xff] %vm26, %v4687
  %4897 = vst.msk [vmem:[%s4845 + $0x370] sm:$0xff] %vm26, %v4688
  %4898 = vst.msk [vmem:[%s4845 + $0x388] sm:$0xff] %vm26, %v4689
  %4899 = vst.msk [vmem:[%s4845 + $0x390] sm:$0xff] %vm26, %v4690
  %4900 = vst.msk [vmem:[%s4845 + $0x3a8] sm:$0xff] %vm26, %v4691
  %4901 = vst.msk [vmem:[%s4845 + $0x3b0] sm:$0xff] %vm26, %v4692
  %4902 = vst.msk [vmem:[%s4845 + $0x3c8] sm:$0xff] %vm26, %v4693
  %4903 = vst.msk [vmem:[%s4845 + $0x3d0] sm:$0xff] %vm26, %v4694
  %4904 = vst.msk [vmem:[%s4845 + $0x3e8] sm:$0xff] %vm26, %v4695
  %4905 = vst.msk [vmem:[%s4845 + $0x3f0] sm:$0xff] %vm26, %v4696
  %4906 = vst.msk [vmem:[%s4845 + $0x408] sm:$0xff] %vm26, %v4697
  %4907 = vst.msk [vmem:[%s4845 + $0x410] sm:$0xff] %vm26, %v4698
  %4908 = vst.msk [vmem:[%s4845 + $0x428] sm:$0xff] %vm26, %v4699
  %4909 = vst.msk [vmem:[%s4845 + $0x430] sm:$0xff] %vm26, %v4700
  %v4910 = vld [vmem:[#allocation3 + $0x7] sm:$0xff]
  %v4911 = vld [vmem:[#allocation3 + $0xf] sm:$0xff]
  %v4912 = vld [vmem:[#allocation3 + $0x27] sm:$0xff]
  %v4913 = vld [vmem:[#allocation3 + $0x2f] sm:$0xff]
  %v4914 = vld [vmem:[#allocation3 + $0x47] sm:$0xff]
  %v4915 = vld [vmem:[#allocation3 + $0x4f] sm:$0xff]
  %v4916 = vld [vmem:[#allocation3 + $0x67] sm:$0xff]
  %v4917 = vld [vmem:[#allocation3 + $0x6f] sm:$0xff]
  %v4918 = vld [vmem:[#allocation3 + $0x87] sm:$0xff]
  %v4919 = vld [vmem:[#allocation3 + $0x8f] sm:$0xff]
  %v4920 = vld [vmem:[#allocation3 + $0xa7] sm:$0xff]
  %v4921 = vld [vmem:[#allocation3 + $0xaf] sm:$0xff]
  %v4922 = vld [vmem:[#allocation3 + $0xc7] sm:$0xff]
  %v4923 = vld [vmem:[#allocation3 + $0xcf] sm:$0xff]
  %v4924 = vld [vmem:[#allocation3 + $0xe7] sm:$0xff]
  %v4925 = vld [vmem:[#allocation3 + $0xef] sm:$0xff]
  %v4926 = vld [vmem:[#allocation3 + $0x107] sm:$0xff]
  %v4927 = vld [vmem:[#allocation3 + $0x10f] sm:$0xff]
  %v4928 = vld [vmem:[#allocation3 + $0x127] sm:$0xff]
  %v4929 = vld [vmem:[#allocation3 + $0x12f] sm:$0xff]
  %v4930 = vld [vmem:[#allocation3 + $0x147] sm:$0xff]
  %v4931 = vld [vmem:[#allocation3 + $0x14f] sm:$0xff]
  %v4932 = vld [vmem:[#allocation3 + $0x167] sm:$0xff]
  %v4933 = vld [vmem:[#allocation3 + $0x16f] sm:$0xff]
  %v4934 = vld [vmem:[#allocation3 + $0x187] sm:$0xff]
  %v4935 = vld [vmem:[#allocation3 + $0x18f] sm:$0xff]
  %v4936 = vld [vmem:[#allocation3 + $0x1a7] sm:$0xff]
  %v4937 = vld [vmem:[#allocation3 + $0x1af] sm:$0xff]
  %v4938 = vld [vmem:[#allocation3 + $0x1c7] sm:$0xff]
  %v4939 = vld [vmem:[#allocation3 + $0x1cf] sm:$0xff]
  %v4940 = vld [vmem:[#allocation3 + $0x1e7] sm:$0xff]
  %v4941 = vld [vmem:[#allocation3 + $0x1ef] sm:$0xff]
  %v4942 = vld [vmem:[#allocation3 + $0x247] sm:$0xff]
  %v4943 = vld [vmem:[#allocation3 + $0x24f] sm:$0xff]
  %v4944 = vld [vmem:[#allocation3 + $0x267] sm:$0xff]
  %v4945 = vld [vmem:[#allocation3 + $0x26f] sm:$0xff]
  %v4946 = vld [vmem:[#allocation3 + $0x287] sm:$0xff]
  %v4947 = vld [vmem:[#allocation3 + $0x28f] sm:$0xff]
  %v4948 = vld [vmem:[#allocation3 + $0x2a7] sm:$0xff]
  %v4949 = vld [vmem:[#allocation3 + $0x2af] sm:$0xff]
  %v4950 = vld [vmem:[#allocation3 + $0x2c7] sm:$0xff]
  %v4951 = vld [vmem:[#allocation3 + $0x2cf] sm:$0xff]
  %v4952 = vld [vmem:[#allocation3 + $0x2e7] sm:$0xff]
  %v4953 = vld [vmem:[#allocation3 + $0x2ef] sm:$0xff]
  %v4954 = vld [vmem:[#allocation3 + $0x307] sm:$0xff]
  %v4955 = vld [vmem:[#allocation3 + $0x30f] sm:$0xff]
  %v4956 = vld [vmem:[#allocation3 + $0x327] sm:$0xff]
  %v4957 = vld [vmem:[#allocation3 + $0x32f] sm:$0xff]
  %v4958 = vld [vmem:[#allocation3 + $0x347] sm:$0xff]
  %v4959 = vld [vmem:[#allocation3 + $0x34f] sm:$0xff]
  %v4960 = vld [vmem:[#allocation3 + $0x367] sm:$0xff]
  %v4961 = vld [vmem:[#allocation3 + $0x36f] sm:$0xff]
  %v4962 = vld [vmem:[#allocation3 + $0x387] sm:$0xff]
  %v4963 = vld [vmem:[#allocation3 + $0x38f] sm:$0xff]
  %v4964 = vld [vmem:[#allocation3 + $0x3a7] sm:$0xff]
  %v4965 = vld [vmem:[#allocation3 + $0x3af] sm:$0xff]
  %v4966 = vld [vmem:[#allocation3 + $0x3c7] sm:$0xff]
  %v4967 = vld [vmem:[#allocation3 + $0x3cf] sm:$0xff]
  %v4968 = vld [vmem:[#allocation3 + $0x3e7] sm:$0xff]
  %v4969 = vld [vmem:[#allocation3 + $0x3ef] sm:$0xff]
  %v4970 = vld [vmem:[#allocation3 + $0x407] sm:$0xff]
  %v4971 = vld [vmem:[#allocation3 + $0x40f] sm:$0xff]
  %v4972 = vld [vmem:[#allocation3 + $0x427] sm:$0xff]
  %v4973 = vld [vmem:[#allocation3 + $0x42f] sm:$0xff]
  %v4974 = vld [vmem:[#allocation3 + $0x8] sm:$0xff]
  %v4975 = vld [vmem:[#allocation3 + $0x10] sm:$0xff]
  %v4976 = vld [vmem:[#allocation3 + $0x28] sm:$0xff]
  %v4977 = vld [vmem:[#allocation3 + $0x30] sm:$0xff]
  %v4978 = vld [vmem:[#allocation3 + $0x48] sm:$0xff]
  %v4979 = vld [vmem:[#allocation3 + $0x50] sm:$0xff]
  %v4980 = vld [vmem:[#allocation3 + $0x68] sm:$0xff]
  %v4981 = vld [vmem:[#allocation3 + $0x70] sm:$0xff]
  %v4982 = vld [vmem:[#allocation3 + $0x88] sm:$0xff]
  %v4983 = vld [vmem:[#allocation3 + $0x90] sm:$0xff]
  %v4984 = vld [vmem:[#allocation3 + $0xa8] sm:$0xff]
  %v4985 = vld [vmem:[#allocation3 + $0xb0] sm:$0xff]
  %v4986 = vld [vmem:[#allocation3 + $0xc8] sm:$0xff]
  %v4987 = vld [vmem:[#allocation3 + $0xd0] sm:$0xff]
  %v4988 = vld [vmem:[#allocation3 + $0xe8] sm:$0xff]
  %v4989 = vld [vmem:[#allocation3 + $0xf0] sm:$0xff]
  %v4990 = vld [vmem:[#allocation3 + $0x108] sm:$0xff]
  %v4991 = vld [vmem:[#allocation3 + $0x110] sm:$0xff]
  %v4992 = vld [vmem:[#allocation3 + $0x128] sm:$0xff]
  %v4993 = vld [vmem:[#allocation3 + $0x130] sm:$0xff]
  %v4994 = vld [vmem:[#allocation3 + $0x148] sm:$0xff]
  %v4995 = vld [vmem:[#allocation3 + $0x150] sm:$0xff]
  %v4996 = vld [vmem:[#allocation3 + $0x168] sm:$0xff]
  %v4997 = vld [vmem:[#allocation3 + $0x170] sm:$0xff]
  %v4998 = vld [vmem:[#allocation3 + $0x188] sm:$0xff]
  %v4999 = vld [vmem:[#allocation3 + $0x190] sm:$0xff]
  %v5000 = vld [vmem:[#allocation3 + $0x1a8] sm:$0xff]
  %v5001 = vld [vmem:[#allocation3 + $0x1b0] sm:$0xff]
  %v5002 = vld [vmem:[#allocation3 + $0x1c8] sm:$0xff]
  %v5003 = vld [vmem:[#allocation3 + $0x1d0] sm:$0xff]
  %v5004 = vld [vmem:[#allocation3 + $0x1e8] sm:$0xff]
  %v5005 = vld [vmem:[#allocation3 + $0x1f0] sm:$0xff]
  %v5006 = vld [vmem:[#allocation3 + $0x248] sm:$0xff]
  %v5007 = vld [vmem:[#allocation3 + $0x250] sm:$0xff]
  %v5008 = vld [vmem:[#allocation3 + $0x268] sm:$0xff]
  %v5009 = vld [vmem:[#allocation3 + $0x270] sm:$0xff]
  %v5010 = vld [vmem:[#allocation3 + $0x288] sm:$0xff]
  %v5011 = vld [vmem:[#allocation3 + $0x290] sm:$0xff]
  %v5012 = vld [vmem:[#allocation3 + $0x2a8] sm:$0xff]
  %v5013 = vld [vmem:[#allocation3 + $0x2b0] sm:$0xff]
  %v5014 = vld [vmem:[#allocation3 + $0x2c8] sm:$0xff]
  %v5015 = vld [vmem:[#allocation3 + $0x2d0] sm:$0xff]
  %v5016 = vld [vmem:[#allocation3 + $0x2e8] sm:$0xff]
  %v5017 = vld [vmem:[#allocation3 + $0x2f0] sm:$0xff]
  %v5018 = vld [vmem:[#allocation3 + $0x308] sm:$0xff]
  %v5019 = vld [vmem:[#allocation3 + $0x310] sm:$0xff]
  %v5020 = vld [vmem:[#allocation3 + $0x328] sm:$0xff]
  %v5021 = vld [vmem:[#allocation3 + $0x330] sm:$0xff]
  %v5022 = vld [vmem:[#allocation3 + $0x348] sm:$0xff]
  %v5023 = vld [vmem:[#allocation3 + $0x350] sm:$0xff]
  %v5024 = vld [vmem:[#allocation3 + $0x368] sm:$0xff]
  %v5025 = vld [vmem:[#allocation3 + $0x370] sm:$0xff]
  %v5026 = vld [vmem:[#allocation3 + $0x388] sm:$0xff]
  %v5027 = vld [vmem:[#allocation3 + $0x390] sm:$0xff]
  %v5028 = vld [vmem:[#allocation3 + $0x3a8] sm:$0xff]
  %v5029 = vld [vmem:[#allocation3 + $0x3b0] sm:$0xff]
  %v5030 = vld [vmem:[#allocation3 + $0x3c8] sm:$0xff]
  %v5031 = vld [vmem:[#allocation3 + $0x3d0] sm:$0xff]
  %v5032 = vld [vmem:[#allocation3 + $0x3e8] sm:$0xff]
  %v5033 = vld [vmem:[#allocation3 + $0x3f0] sm:$0xff]
  %v5034 = vld [vmem:[#allocation3 + $0x408] sm:$0xff]
  %v5035 = vld [vmem:[#allocation3 + $0x410] sm:$0xff]
  %v5036 = vld [vmem:[#allocation3 + $0x428] sm:$0xff]
  %v5037 = vld [vmem:[#allocation3 + $0x430] sm:$0xff]
  %v5038 = vld [vmem:[#allocation3 + $0x9] sm:$0xff]
  %v5039 = vld [vmem:[#allocation3 + $0x11] sm:$0xff]
  %v5040 = vld [vmem:[#allocation3 + $0x29] sm:$0xff]
  %v5041 = vld [vmem:[#allocation3 + $0x31] sm:$0xff]
  %v5042 = vld [vmem:[#allocation3 + $0x49] sm:$0xff]
  %v5043 = vld [vmem:[#allocation3 + $0x51] sm:$0xff]
  %v5044 = vld [vmem:[#allocation3 + $0x69] sm:$0xff]
  %v5045 = vld [vmem:[#allocation3 + $0x71] sm:$0xff]
  %v5046 = vld [vmem:[#allocation3 + $0x89] sm:$0xff]
  %v5047 = vld [vmem:[#allocation3 + $0x91] sm:$0xff]
  %v5048 = vld [vmem:[#allocation3 + $0xa9] sm:$0xff]
  %v5049 = vld [vmem:[#allocation3 + $0xb1] sm:$0xff]
  %v5050 = vld [vmem:[#allocation3 + $0xc9] sm:$0xff]
  %v5051 = vld [vmem:[#allocation3 + $0xd1] sm:$0xff]
  %v5052 = vld [vmem:[#allocation3 + $0xe9] sm:$0xff]
  %v5053 = vld [vmem:[#allocation3 + $0xf1] sm:$0xff]
  %v5054 = vld [vmem:[#allocation3 + $0x109] sm:$0xff]
  %v5055 = vld [vmem:[#allocation3 + $0x111] sm:$0xff]
  %v5056 = vld [vmem:[#allocation3 + $0x129] sm:$0xff]
  %v5057 = vld [vmem:[#allocation3 + $0x131] sm:$0xff]
  %v5058 = vld [vmem:[#allocation3 + $0x149] sm:$0xff]
  %v5059 = vld [vmem:[#allocation3 + $0x151] sm:$0xff]
  %v5060 = vld [vmem:[#allocation3 + $0x169] sm:$0xff]
  %v5061 = vld [vmem:[#allocation3 + $0x171] sm:$0xff]
  %v5062 = vld [vmem:[#allocation3 + $0x189] sm:$0xff]
  %v5063 = vld [vmem:[#allocation3 + $0x191] sm:$0xff]
  %v5064 = vld [vmem:[#allocation3 + $0x1a9] sm:$0xff]
  %v5065 = vld [vmem:[#allocation3 + $0x1b1] sm:$0xff]
  %v5066 = vld [vmem:[#allocation3 + $0x1c9] sm:$0xff]
  %v5067 = vld [vmem:[#allocation3 + $0x1d1] sm:$0xff]
  %v5068 = vld [vmem:[#allocation3 + $0x1e9] sm:$0xff]
  %v5069 = vld [vmem:[#allocation3 + $0x1f1] sm:$0xff]
  %v5070 = vld [vmem:[#allocation3 + $0x249] sm:$0xff]
  %v5071 = vld [vmem:[#allocation3 + $0x251] sm:$0xff]
  %v5072 = vld [vmem:[#allocation3 + $0x269] sm:$0xff]
  %v5073 = vld [vmem:[#allocation3 + $0x271] sm:$0xff]
  %v5074 = vld [vmem:[#allocation3 + $0x289] sm:$0xff]
  %v5075 = vld [vmem:[#allocation3 + $0x291] sm:$0xff]
  %v5076 = vld [vmem:[#allocation3 + $0x2a9] sm:$0xff]
  %v5077 = vld [vmem:[#allocation3 + $0x2b1] sm:$0xff]
  %v5078 = vld [vmem:[#allocation3 + $0x2c9] sm:$0xff]
  %v5079 = vld [vmem:[#allocation3 + $0x2d1] sm:$0xff]
  %v5080 = vld [vmem:[#allocation3 + $0x2e9] sm:$0xff]
  %v5081 = vld [vmem:[#allocation3 + $0x2f1] sm:$0xff]
  %v5082 = vld [vmem:[#allocation3 + $0x309] sm:$0xff]
  %v5083 = vld [vmem:[#allocation3 + $0x311] sm:$0xff]
  %v5084 = vld [vmem:[#allocation3 + $0x329] sm:$0xff]
  %v5085 = vld [vmem:[#allocation3 + $0x331] sm:$0xff]
  %v5086 = vld [vmem:[#allocation3 + $0x349] sm:$0xff]
  %v5087 = vld [vmem:[#allocation3 + $0x351] sm:$0xff]
  %v5088 = vld [vmem:[#allocation3 + $0x369] sm:$0xff]
  %v5089 = vld [vmem:[#allocation3 + $0x371] sm:$0xff]
  %v5090 = vld [vmem:[#allocation3 + $0x389] sm:$0xff]
  %v5091 = vld [vmem:[#allocation3 + $0x391] sm:$0xff]
  %v5092 = vld [vmem:[#allocation3 + $0x3a9] sm:$0xff]
  %v5093 = vld [vmem:[#allocation3 + $0x3b1] sm:$0xff]
  %v5094 = vld [vmem:[#allocation3 + $0x3c9] sm:$0xff]
  %v5095 = vld [vmem:[#allocation3 + $0x3d1] sm:$0xff]
  %v5096 = vld [vmem:[#allocation3 + $0x3e9] sm:$0xff]
  %v5097 = vld [vmem:[#allocation3 + $0x3f1] sm:$0xff]
  %v5098 = vld [vmem:[#allocation3 + $0x409] sm:$0xff]
  %v5099 = vld [vmem:[#allocation3 + $0x411] sm:$0xff]
  %v5100 = vld [vmem:[#allocation3 + $0x429] sm:$0xff]
  %v5101 = vld [vmem:[#allocation3 + $0x431] sm:$0xff]
  %v5102 = vld [vmem:[%s4845 + $0x7] sm:$0xff]
  %v5103 = vld [vmem:[%s4845 + $0xf] sm:$0xff]
  %v5104 = vld [vmem:[%s4845 + $0x27] sm:$0xff]
  %v5105 = vld [vmem:[%s4845 + $0x2f] sm:$0xff]
  %v5106 = vld [vmem:[%s4845 + $0x47] sm:$0xff]
  %v5107 = vld [vmem:[%s4845 + $0x4f] sm:$0xff]
  %v5108 = vld [vmem:[%s4845 + $0x67] sm:$0xff]
  %v5109 = vld [vmem:[%s4845 + $0x6f] sm:$0xff]
  %v5110 = vld [vmem:[%s4845 + $0x87] sm:$0xff]
  %v5111 = vld [vmem:[%s4845 + $0x8f] sm:$0xff]
  %v5112 = vld [vmem:[%s4845 + $0xa7] sm:$0xff]
  %v5113 = vld [vmem:[%s4845 + $0xaf] sm:$0xff]
  %v5114 = vld [vmem:[%s4845 + $0xc7] sm:$0xff]
  %v5115 = vld [vmem:[%s4845 + $0xcf] sm:$0xff]
  %v5116 = vld [vmem:[%s4845 + $0xe7] sm:$0xff]
  %v5117 = vld [vmem:[%s4845 + $0xef] sm:$0xff]
  %v5118 = vld [vmem:[%s4845 + $0x107] sm:$0xff]
  %v5119 = vld [vmem:[%s4845 + $0x10f] sm:$0xff]
  %v5120 = vld [vmem:[%s4845 + $0x127] sm:$0xff]
  %v5121 = vld [vmem:[%s4845 + $0x12f] sm:$0xff]
  %v5122 = vld [vmem:[%s4845 + $0x147] sm:$0xff]
  %v5123 = vld [vmem:[%s4845 + $0x14f] sm:$0xff]
  %v5124 = vld [vmem:[%s4845 + $0x167] sm:$0xff]
  %v5125 = vld [vmem:[%s4845 + $0x16f] sm:$0xff]
  %v5126 = vld [vmem:[%s4845 + $0x187] sm:$0xff]
  %v5127 = vld [vmem:[%s4845 + $0x18f] sm:$0xff]
  %v5128 = vld [vmem:[%s4845 + $0x1a7] sm:$0xff]
  %v5129 = vld [vmem:[%s4845 + $0x1af] sm:$0xff]
  %v5130 = vld [vmem:[%s4845 + $0x1c7] sm:$0xff]
  %v5131 = vld [vmem:[%s4845 + $0x1cf] sm:$0xff]
  %v5132 = vld [vmem:[%s4845 + $0x1e7] sm:$0xff]
  %v5133 = vld [vmem:[%s4845 + $0x1ef] sm:$0xff]
  %v5134 = vld [vmem:[%s4845 + $0x247] sm:$0xff]
  %v5135 = vld [vmem:[%s4845 + $0x24f] sm:$0xff]
  %v5136 = vld [vmem:[%s4845 + $0x267] sm:$0xff]
  %v5137 = vld [vmem:[%s4845 + $0x26f] sm:$0xff]
  %v5138 = vld [vmem:[%s4845 + $0x287] sm:$0xff]
  %v5139 = vld [vmem:[%s4845 + $0x28f] sm:$0xff]
  %v5140 = vld [vmem:[%s4845 + $0x2a7] sm:$0xff]
  %v5141 = vld [vmem:[%s4845 + $0x2af] sm:$0xff]
  %v5142 = vld [vmem:[%s4845 + $0x2c7] sm:$0xff]
  %v5143 = vld [vmem:[%s4845 + $0x2cf] sm:$0xff]
  %v5144 = vld [vmem:[%s4845 + $0x2e7] sm:$0xff]
  %v5145 = vld [vmem:[%s4845 + $0x2ef] sm:$0xff]
  %v5146 = vld [vmem:[%s4845 + $0x307] sm:$0xff]
  %v5147 = vld [vmem:[%s4845 + $0x30f] sm:$0xff]
  %v5148 = vld [vmem:[%s4845 + $0x327] sm:$0xff]
  %v5149 = vld [vmem:[%s4845 + $0x32f] sm:$0xff]
  %v5150 = vld [vmem:[%s4845 + $0x347] sm:$0xff]
  %v5151 = vld [vmem:[%s4845 + $0x34f] sm:$0xff]
  %v5152 = vld [vmem:[%s4845 + $0x367] sm:$0xff]
  %v5153 = vld [vmem:[%s4845 + $0x36f] sm:$0xff]
  %v5154 = vld [vmem:[%s4845 + $0x387] sm:$0xff]
  %v5155 = vld [vmem:[%s4845 + $0x38f] sm:$0xff]
  %v5156 = vld [vmem:[%s4845 + $0x3a7] sm:$0xff]
  %v5157 = vld [vmem:[%s4845 + $0x3af] sm:$0xff]
  %v5158 = vld [vmem:[%s4845 + $0x3c7] sm:$0xff]
  %v5159 = vld [vmem:[%s4845 + $0x3cf] sm:$0xff]
  %v5160 = vld [vmem:[%s4845 + $0x3e7] sm:$0xff]
  %v5161 = vld [vmem:[%s4845 + $0x3ef] sm:$0xff]
  %v5162 = vld [vmem:[%s4845 + $0x407] sm:$0xff]
  %v5163 = vld [vmem:[%s4845 + $0x40f] sm:$0xff]
  %v5164 = vld [vmem:[%s4845 + $0x427] sm:$0xff]
  %v5165 = vld [vmem:[%s4845 + $0x42f] sm:$0xff]
  %v5166 = vld [vmem:[%s4845 + $0x8] sm:$0xff]
  %v5167 = vld [vmem:[%s4845 + $0x10] sm:$0xff]
  %v5168 = vld [vmem:[%s4845 + $0x28] sm:$0xff]
  %v5169 = vld [vmem:[%s4845 + $0x30] sm:$0xff]
  %v5170 = vld [vmem:[%s4845 + $0x48] sm:$0xff]
  %v5171 = vld [vmem:[%s4845 + $0x50] sm:$0xff]
  %v5172 = vld [vmem:[%s4845 + $0x68] sm:$0xff]
  %v5173 = vld [vmem:[%s4845 + $0x70] sm:$0xff]
  %v5174 = vld [vmem:[%s4845 + $0x88] sm:$0xff]
  %v5175 = vld [vmem:[%s4845 + $0x90] sm:$0xff]
  %v5176 = vld [vmem:[%s4845 + $0xa8] sm:$0xff]
  %v5177 = vld [vmem:[%s4845 + $0xb0] sm:$0xff]
  %v5178 = vld [vmem:[%s4845 + $0xc8] sm:$0xff]
  %v5179 = vld [vmem:[%s4845 + $0xd0] sm:$0xff]
  %v5180 = vld [vmem:[%s4845 + $0xe8] sm:$0xff]
  %v5181 = vld [vmem:[%s4845 + $0xf0] sm:$0xff]
  %v5182 = vld [vmem:[%s4845 + $0x108] sm:$0xff]
  %v5183 = vld [vmem:[%s4845 + $0x110] sm:$0xff]
  %v5184 = vld [vmem:[%s4845 + $0x128] sm:$0xff]
  %v5185 = vld [vmem:[%s4845 + $0x130] sm:$0xff]
  %v5186 = vld [vmem:[%s4845 + $0x148] sm:$0xff]
  %v5187 = vld [vmem:[%s4845 + $0x150] sm:$0xff]
  %v5188 = vld [vmem:[%s4845 + $0x168] sm:$0xff]
  %v5189 = vld [vmem:[%s4845 + $0x170] sm:$0xff]
  %v5190 = vld [vmem:[%s4845 + $0x188] sm:$0xff]
  %v5191 = vld [vmem:[%s4845 + $0x190] sm:$0xff]
  %v5192 = vld [vmem:[%s4845 + $0x1a8] sm:$0xff]
  %v5193 = vld [vmem:[%s4845 + $0x1b0] sm:$0xff]
  %v5194 = vld [vmem:[%s4845 + $0x1c8] sm:$0xff]
  %v5195 = vld [vmem:[%s4845 + $0x1d0] sm:$0xff]
  %v5196 = vld [vmem:[%s4845 + $0x1e8] sm:$0xff]
  %v5197 = vld [vmem:[%s4845 + $0x1f0] sm:$0xff]
  %v5198 = vld [vmem:[%s4845 + $0x248] sm:$0xff]
  %v5199 = vld [vmem:[%s4845 + $0x250] sm:$0xff]
  %v5200 = vld [vmem:[%s4845 + $0x268] sm:$0xff]
  %v5201 = vld [vmem:[%s4845 + $0x270] sm:$0xff]
  %v5202 = vld [vmem:[%s4845 + $0x288] sm:$0xff]
  %v5203 = vld [vmem:[%s4845 + $0x290] sm:$0xff]
  %v5204 = vld [vmem:[%s4845 + $0x2a8] sm:$0xff]
  %v5205 = vld [vmem:[%s4845 + $0x2b0] sm:$0xff]
  %v5206 = vld [vmem:[%s4845 + $0x2c8] sm:$0xff]
  %v5207 = vld [vmem:[%s4845 + $0x2d0] sm:$0xff]
  %v5208 = vld [vmem:[%s4845 + $0x2e8] sm:$0xff]
  %v5209 = vld [vmem:[%s4845 + $0x2f0] sm:$0xff]
  %v5210 = vld [vmem:[%s4845 + $0x308] sm:$0xff]
  %v5211 = vld [vmem:[%s4845 + $0x310] sm:$0xff]
  %v5212 = vld [vmem:[%s4845 + $0x328] sm:$0xff]
  %v5213 = vld [vmem:[%s4845 + $0x330] sm:$0xff]
  %v5214 = vld [vmem:[%s4845 + $0x348] sm:$0xff]
  %v5215 = vld [vmem:[%s4845 + $0x350] sm:$0xff]
  %v5216 = vld [vmem:[%s4845 + $0x368] sm:$0xff]
  %v5217 = vld [vmem:[%s4845 + $0x370] sm:$0xff]
  %v5218 = vld [vmem:[%s4845 + $0x388] sm:$0xff]
  %v5219 = vld [vmem:[%s4845 + $0x390] sm:$0xff]
  %v5220 = vld [vmem:[%s4845 + $0x3a8] sm:$0xff]
  %v5221 = vld [vmem:[%s4845 + $0x3b0] sm:$0xff]
  %v5222 = vld [vmem:[%s4845 + $0x3c8] sm:$0xff]
  %v5223 = vld [vmem:[%s4845 + $0x3d0] sm:$0xff]
  %v5224 = vld [vmem:[%s4845 + $0x3e8] sm:$0xff]
  %v5225 = vld [vmem:[%s4845 + $0x3f0] sm:$0xff]
  %v5226 = vld [vmem:[%s4845 + $0x408] sm:$0xff]
  %v5227 = vld [vmem:[%s4845 + $0x410] sm:$0xff]
  %v5228 = vld [vmem:[%s4845 + $0x428] sm:$0xff]
  %v5229 = vld [vmem:[%s4845 + $0x430] sm:$0xff]
  %v5230 = vld [vmem:[%s4845 + $0x9] sm:$0xff]
  %v5231 = vld [vmem:[%s4845 + $0x11] sm:$0xff]
  %v5232 = vld [vmem:[%s4845 + $0x29] sm:$0xff]
  %v5233 = vld [vmem:[%s4845 + $0x31] sm:$0xff]
  %v5234 = vld [vmem:[%s4845 + $0x49] sm:$0xff]
  %v5235 = vld [vmem:[%s4845 + $0x51] sm:$0xff]
  %v5236 = vld [vmem:[%s4845 + $0x69] sm:$0xff]
  %v5237 = vld [vmem:[%s4845 + $0x71] sm:$0xff]
  %v5238 = vld [vmem:[%s4845 + $0x89] sm:$0xff]
  %v5239 = vld [vmem:[%s4845 + $0x91] sm:$0xff]
  %v5240 = vld [vmem:[%s4845 + $0xa9] sm:$0xff]
  %v5241 = vld [vmem:[%s4845 + $0xb1] sm:$0xff]
  %v5242 = vld [vmem:[%s4845 + $0xc9] sm:$0xff]
  %v5243 = vld [vmem:[%s4845 + $0xd1] sm:$0xff]
  %v5244 = vld [vmem:[%s4845 + $0xe9] sm:$0xff]
  %v5245 = vld [vmem:[%s4845 + $0xf1] sm:$0xff]
  %v5246 = vld [vmem:[%s4845 + $0x109] sm:$0xff]
  %v5247 = vld [vmem:[%s4845 + $0x111] sm:$0xff]
  %v5248 = vld [vmem:[%s4845 + $0x129] sm:$0xff]
  %v5249 = vld [vmem:[%s4845 + $0x131] sm:$0xff]
  %v5250 = vld [vmem:[%s4845 + $0x149] sm:$0xff]
  %v5251 = vld [vmem:[%s4845 + $0x151] sm:$0xff]
  %v5252 = vld [vmem:[%s4845 + $0x169] sm:$0xff]
  %v5253 = vld [vmem:[%s4845 + $0x171] sm:$0xff]
  %v5254 = vld [vmem:[%s4845 + $0x189] sm:$0xff]
  %v5255 = vld [vmem:[%s4845 + $0x191] sm:$0xff]
  %v5256 = vld [vmem:[%s4845 + $0x1a9] sm:$0xff]
  %v5257 = vld [vmem:[%s4845 + $0x1b1] sm:$0xff]
  %v5258 = vld [vmem:[%s4845 + $0x1c9] sm:$0xff]
  %v5259 = vld [vmem:[%s4845 + $0x1d1] sm:$0xff]
  %v5260 = vld [vmem:[%s4845 + $0x1e9] sm:$0xff]
  %v5261 = vld [vmem:[%s4845 + $0x1f1] sm:$0xff]
  %v5262 = vld [vmem:[%s4845 + $0x249] sm:$0xff]
  %v5263 = vld [vmem:[%s4845 + $0x251] sm:$0xff]
  %v5264 = vld [vmem:[%s4845 + $0x269] sm:$0xff]
  %v5265 = vld [vmem:[%s4845 + $0x271] sm:$0xff]
  %v5266 = vld [vmem:[%s4845 + $0x289] sm:$0xff]
  %v5267 = vld [vmem:[%s4845 + $0x291] sm:$0xff]
  %v5268 = vld [vmem:[%s4845 + $0x2a9] sm:$0xff]
  %v5269 = vld [vmem:[%s4845 + $0x2b1] sm:$0xff]
  %v5270 = vld [vmem:[%s4845 + $0x2c9] sm:$0xff]
  %v5271 = vld [vmem:[%s4845 + $0x2d1] sm:$0xff]
  %v5272 = vld [vmem:[%s4845 + $0x2e9] sm:$0xff]
  %v5273 = vld [vmem:[%s4845 + $0x2f1] sm:$0xff]
  %v5274 = vld [vmem:[%s4845 + $0x309] sm:$0xff]
  %v5275 = vld [vmem:[%s4845 + $0x311] sm:$0xff]
  %v5276 = vld [vmem:[%s4845 + $0x329] sm:$0xff]
  %v5277 = vld [vmem:[%s4845 + $0x331] sm:$0xff]
  %v5278 = vld [vmem:[%s4845 + $0x349] sm:$0xff]
  %v5279 = vld [vmem:[%s4845 + $0x351] sm:$0xff]
  %v5280 = vld [vmem:[%s4845 + $0x369] sm:$0xff]
  %v5281 = vld [vmem:[%s4845 + $0x371] sm:$0xff]
  %v5282 = vld [vmem:[%s4845 + $0x389] sm:$0xff]
  %v5283 = vld [vmem:[%s4845 + $0x391] sm:$0xff]
  %v5284 = vld [vmem:[%s4845 + $0x3a9] sm:$0xff]
  %v5285 = vld [vmem:[%s4845 + $0x3b1] sm:$0xff]
  %v5286 = vld [vmem:[%s4845 + $0x3c9] sm:$0xff]
  %v5287 = vld [vmem:[%s4845 + $0x3d1] sm:$0xff]
  %v5288 = vld [vmem:[%s4845 + $0x3e9] sm:$0xff]
  %v5289 = vld [vmem:[%s4845 + $0x3f1] sm:$0xff]
  %v5290 = vld [vmem:[%s4845 + $0x409] sm:$0xff]
  %v5291 = vld [vmem:[%s4845 + $0x411] sm:$0xff]
  %v5292 = vld [vmem:[%s4845 + $0x429] sm:$0xff]
  %v5293 = vld [vmem:[%s4845 + $0x431] sm:$0xff]
  %s5294 = scalar_lea.vmem [#allocation3], 64
  %v5295 = vld [vmem:[%s5294 + $0x7] sm:$0xff]
  %v5296 = vld [vmem:[%s5294 + $0xf] sm:$0xff]
  %v5297 = vld [vmem:[%s5294 + $0x27] sm:$0xff]
  %v5298 = vld [vmem:[%s5294 + $0x2f] sm:$0xff]
  %v5299 = vld [vmem:[%s5294 + $0x47] sm:$0xff]
  %v5300 = vld [vmem:[%s5294 + $0x4f] sm:$0xff]
  %v5301 = vld [vmem:[%s5294 + $0x67] sm:$0xff]
  %v5302 = vld [vmem:[%s5294 + $0x6f] sm:$0xff]
  %v5303 = vld [vmem:[%s5294 + $0x87] sm:$0xff]
  %v5304 = vld [vmem:[%s5294 + $0x8f] sm:$0xff]
  %v5305 = vld [vmem:[%s5294 + $0xa7] sm:$0xff]
  %v5306 = vld [vmem:[%s5294 + $0xaf] sm:$0xff]
  %v5307 = vld [vmem:[%s5294 + $0xc7] sm:$0xff]
  %v5308 = vld [vmem:[%s5294 + $0xcf] sm:$0xff]
  %v5309 = vld [vmem:[%s5294 + $0xe7] sm:$0xff]
  %v5310 = vld [vmem:[%s5294 + $0xef] sm:$0xff]
  %v5311 = vld [vmem:[%s5294 + $0x107] sm:$0xff]
  %v5312 = vld [vmem:[%s5294 + $0x10f] sm:$0xff]
  %v5313 = vld [vmem:[%s5294 + $0x127] sm:$0xff]
  %v5314 = vld [vmem:[%s5294 + $0x12f] sm:$0xff]
  %v5315 = vld [vmem:[%s5294 + $0x147] sm:$0xff]
  %v5316 = vld [vmem:[%s5294 + $0x14f] sm:$0xff]
  %v5317 = vld [vmem:[%s5294 + $0x167] sm:$0xff]
  %v5318 = vld [vmem:[%s5294 + $0x16f] sm:$0xff]
  %v5319 = vld [vmem:[%s5294 + $0x187] sm:$0xff]
  %v5320 = vld [vmem:[%s5294 + $0x18f] sm:$0xff]
  %v5321 = vld [vmem:[%s5294 + $0x1a7] sm:$0xff]
  %v5322 = vld [vmem:[%s5294 + $0x1af] sm:$0xff]
  %v5323 = vld [vmem:[%s5294 + $0x1c7] sm:$0xff]
  %v5324 = vld [vmem:[%s5294 + $0x1cf] sm:$0xff]
  %v5325 = vld [vmem:[%s5294 + $0x1e7] sm:$0xff]
  %v5326 = vld [vmem:[%s5294 + $0x1ef] sm:$0xff]
  %v5327 = vld [vmem:[%s5294 + $0x247] sm:$0xff]
  %v5328 = vld [vmem:[%s5294 + $0x24f] sm:$0xff]
  %v5329 = vld [vmem:[%s5294 + $0x267] sm:$0xff]
  %v5330 = vld [vmem:[%s5294 + $0x26f] sm:$0xff]
  %v5331 = vld [vmem:[%s5294 + $0x287] sm:$0xff]
  %v5332 = vld [vmem:[%s5294 + $0x28f] sm:$0xff]
  %v5333 = vld [vmem:[%s5294 + $0x2a7] sm:$0xff]
  %v5334 = vld [vmem:[%s5294 + $0x2af] sm:$0xff]
  %v5335 = vld [vmem:[%s5294 + $0x2c7] sm:$0xff]
  %v5336 = vld [vmem:[%s5294 + $0x2cf] sm:$0xff]
  %v5337 = vld [vmem:[%s5294 + $0x2e7] sm:$0xff]
  %v5338 = vld [vmem:[%s5294 + $0x2ef] sm:$0xff]
  %v5339 = vld [vmem:[%s5294 + $0x307] sm:$0xff]
  %v5340 = vld [vmem:[%s5294 + $0x30f] sm:$0xff]
  %v5341 = vld [vmem:[%s5294 + $0x327] sm:$0xff]
  %v5342 = vld [vmem:[%s5294 + $0x32f] sm:$0xff]
  %v5343 = vld [vmem:[%s5294 + $0x347] sm:$0xff]
  %v5344 = vld [vmem:[%s5294 + $0x34f] sm:$0xff]
  %v5345 = vld [vmem:[%s5294 + $0x367] sm:$0xff]
  %v5346 = vld [vmem:[%s5294 + $0x36f] sm:$0xff]
  %v5347 = vld [vmem:[%s5294 + $0x387] sm:$0xff]
  %v5348 = vld [vmem:[%s5294 + $0x38f] sm:$0xff]
  %v5349 = vld [vmem:[%s5294 + $0x3a7] sm:$0xff]
  %v5350 = vld [vmem:[%s5294 + $0x3af] sm:$0xff]
  %v5351 = vld [vmem:[%s5294 + $0x3c7] sm:$0xff]
  %v5352 = vld [vmem:[%s5294 + $0x3cf] sm:$0xff]
  %v5353 = vld [vmem:[%s5294 + $0x3e7] sm:$0xff]
  %v5354 = vld [vmem:[%s5294 + $0x3ef] sm:$0xff]
  %v5355 = vld [vmem:[%s5294 + $0x407] sm:$0xff]
  %v5356 = vld [vmem:[%s5294 + $0x40f] sm:$0xff]
  %v5357 = vld [vmem:[%s5294 + $0x427] sm:$0xff]
  %v5358 = vld [vmem:[%s5294 + $0x42f] sm:$0xff]
  %v5359 = vld [vmem:[%s5294 + $0x8] sm:$0xff]
  %v5360 = vld [vmem:[%s5294 + $0x10] sm:$0xff]
  %v5361 = vld [vmem:[%s5294 + $0x28] sm:$0xff]
  %v5362 = vld [vmem:[%s5294 + $0x30] sm:$0xff]
  %v5363 = vld [vmem:[%s5294 + $0x48] sm:$0xff]
  %v5364 = vld [vmem:[%s5294 + $0x50] sm:$0xff]
  %v5365 = vld [vmem:[%s5294 + $0x68] sm:$0xff]
  %v5366 = vld [vmem:[%s5294 + $0x70] sm:$0xff]
  %v5367 = vld [vmem:[%s5294 + $0x88] sm:$0xff]
  %v5368 = vld [vmem:[%s5294 + $0x90] sm:$0xff]
  %v5369 = vld [vmem:[%s5294 + $0xa8] sm:$0xff]
  %v5370 = vld [vmem:[%s5294 + $0xb0] sm:$0xff]
  %v5371 = vld [vmem:[%s5294 + $0xc8] sm:$0xff]
  %v5372 = vld [vmem:[%s5294 + $0xd0] sm:$0xff]
  %v5373 = vld [vmem:[%s5294 + $0xe8] sm:$0xff]
  %v5374 = vld [vmem:[%s5294 + $0xf0] sm:$0xff]
  %v5375 = vld [vmem:[%s5294 + $0x108] sm:$0xff]
  %v5376 = vld [vmem:[%s5294 + $0x110] sm:$0xff]
  %v5377 = vld [vmem:[%s5294 + $0x128] sm:$0xff]
  %v5378 = vld [vmem:[%s5294 + $0x130] sm:$0xff]
  %v5379 = vld [vmem:[%s5294 + $0x148] sm:$0xff]
  %v5380 = vld [vmem:[%s5294 + $0x150] sm:$0xff]
  %v5381 = vld [vmem:[%s5294 + $0x168] sm:$0xff]
  %v5382 = vld [vmem:[%s5294 + $0x170] sm:$0xff]
  %v5383 = vld [vmem:[%s5294 + $0x188] sm:$0xff]
  %v5384 = vld [vmem:[%s5294 + $0x190] sm:$0xff]
  %v5385 = vld [vmem:[%s5294 + $0x1a8] sm:$0xff]
  %v5386 = vld [vmem:[%s5294 + $0x1b0] sm:$0xff]
  %v5387 = vld [vmem:[%s5294 + $0x1c8] sm:$0xff]
  %v5388 = vld [vmem:[%s5294 + $0x1d0] sm:$0xff]
  %v5389 = vld [vmem:[%s5294 + $0x1e8] sm:$0xff]
  %v5390 = vld [vmem:[%s5294 + $0x1f0] sm:$0xff]
  %v5391 = vld [vmem:[%s5294 + $0x248] sm:$0xff]
  %v5392 = vld [vmem:[%s5294 + $0x250] sm:$0xff]
  %v5393 = vld [vmem:[%s5294 + $0x268] sm:$0xff]
  %v5394 = vld [vmem:[%s5294 + $0x270] sm:$0xff]
  %v5395 = vld [vmem:[%s5294 + $0x288] sm:$0xff]
  %v5396 = vld [vmem:[%s5294 + $0x290] sm:$0xff]
  %v5397 = vld [vmem:[%s5294 + $0x2a8] sm:$0xff]
  %v5398 = vld [vmem:[%s5294 + $0x2b0] sm:$0xff]
  %v5399 = vld [vmem:[%s5294 + $0x2c8] sm:$0xff]
  %v5400 = vld [vmem:[%s5294 + $0x2d0] sm:$0xff]
  %v5401 = vld [vmem:[%s5294 + $0x2e8] sm:$0xff]
  %v5402 = vld [vmem:[%s5294 + $0x2f0] sm:$0xff]
  %v5403 = vld [vmem:[%s5294 + $0x308] sm:$0xff]
  %v5404 = vld [vmem:[%s5294 + $0x310] sm:$0xff]
  %v5405 = vld [vmem:[%s5294 + $0x328] sm:$0xff]
  %v5406 = vld [vmem:[%s5294 + $0x330] sm:$0xff]
  %v5407 = vld [vmem:[%s5294 + $0x348] sm:$0xff]
  %v5408 = vld [vmem:[%s5294 + $0x350] sm:$0xff]
  %v5409 = vld [vmem:[%s5294 + $0x368] sm:$0xff]
  %v5410 = vld [vmem:[%s5294 + $0x370] sm:$0xff]
  %v5411 = vld [vmem:[%s5294 + $0x388] sm:$0xff]
  %v5412 = vld [vmem:[%s5294 + $0x390] sm:$0xff]
  %v5413 = vld [vmem:[%s5294 + $0x3a8] sm:$0xff]
  %v5414 = vld [vmem:[%s5294 + $0x3b0] sm:$0xff]
  %v5415 = vld [vmem:[%s5294 + $0x3c8] sm:$0xff]
  %v5416 = vld [vmem:[%s5294 + $0x3d0] sm:$0xff]
  %v5417 = vld [vmem:[%s5294 + $0x3e8] sm:$0xff]
  %v5418 = vld [vmem:[%s5294 + $0x3f0] sm:$0xff]
  %v5419 = vld [vmem:[%s5294 + $0x408] sm:$0xff]
  %v5420 = vld [vmem:[%s5294 + $0x410] sm:$0xff]
  %v5421 = vld [vmem:[%s5294 + $0x428] sm:$0xff]
  %v5422 = vld [vmem:[%s5294 + $0x430] sm:$0xff]
  %v5423 = vld [vmem:[%s5294 + $0x9] sm:$0xff]
  %v5424 = vld [vmem:[%s5294 + $0x11] sm:$0xff]
  %v5425 = vld [vmem:[%s5294 + $0x29] sm:$0xff]
  %v5426 = vld [vmem:[%s5294 + $0x31] sm:$0xff]
  %v5427 = vld [vmem:[%s5294 + $0x49] sm:$0xff]
  %v5428 = vld [vmem:[%s5294 + $0x51] sm:$0xff]
  %v5429 = vld [vmem:[%s5294 + $0x69] sm:$0xff]
  %v5430 = vld [vmem:[%s5294 + $0x71] sm:$0xff]
  %v5431 = vld [vmem:[%s5294 + $0x89] sm:$0xff]
  %v5432 = vld [vmem:[%s5294 + $0x91] sm:$0xff]
  %v5433 = vld [vmem:[%s5294 + $0xa9] sm:$0xff]
  %v5434 = vld [vmem:[%s5294 + $0xb1] sm:$0xff]
  %v5435 = vld [vmem:[%s5294 + $0xc9] sm:$0xff]
  %v5436 = vld [vmem:[%s5294 + $0xd1] sm:$0xff]
  %v5437 = vld [vmem:[%s5294 + $0xe9] sm:$0xff]
  %v5438 = vld [vmem:[%s5294 + $0xf1] sm:$0xff]
  %v5439 = vld [vmem:[%s5294 + $0x109] sm:$0xff]
  %v5440 = vld [vmem:[%s5294 + $0x111] sm:$0xff]
  %v5441 = vld [vmem:[%s5294 + $0x129] sm:$0xff]
  %v5442 = vld [vmem:[%s5294 + $0x131] sm:$0xff]
  %v5443 = vld [vmem:[%s5294 + $0x149] sm:$0xff]
  %v5444 = vld [vmem:[%s5294 + $0x151] sm:$0xff]
  %v5445 = vld [vmem:[%s5294 + $0x169] sm:$0xff]
  %v5446 = vld [vmem:[%s5294 + $0x171] sm:$0xff]
  %v5447 = vld [vmem:[%s5294 + $0x189] sm:$0xff]
  %v5448 = vld [vmem:[%s5294 + $0x191] sm:$0xff]
  %v5449 = vld [vmem:[%s5294 + $0x1a9] sm:$0xff]
  %v5450 = vld [vmem:[%s5294 + $0x1b1] sm:$0xff]
  %v5451 = vld [vmem:[%s5294 + $0x1c9] sm:$0xff]
  %v5452 = vld [vmem:[%s5294 + $0x1d1] sm:$0xff]
  %v5453 = vld [vmem:[%s5294 + $0x1e9] sm:$0xff]
  %v5454 = vld [vmem:[%s5294 + $0x1f1] sm:$0xff]
  %v5455 = vld [vmem:[%s5294 + $0x249] sm:$0xff]
  %v5456 = vld [vmem:[%s5294 + $0x251] sm:$0xff]
  %v5457 = vld [vmem:[%s5294 + $0x269] sm:$0xff]
  %v5458 = vld [vmem:[%s5294 + $0x271] sm:$0xff]
  %v5459 = vld [vmem:[%s5294 + $0x289] sm:$0xff]
  %v5460 = vld [vmem:[%s5294 + $0x291] sm:$0xff]
  %v5461 = vld [vmem:[%s5294 + $0x2a9] sm:$0xff]
  %v5462 = vld [vmem:[%s5294 + $0x2b1] sm:$0xff]
  %v5463 = vld [vmem:[%s5294 + $0x2c9] sm:$0xff]
  %v5464 = vld [vmem:[%s5294 + $0x2d1] sm:$0xff]
  %v5465 = vld [vmem:[%s5294 + $0x2e9] sm:$0xff]
  %v5466 = vld [vmem:[%s5294 + $0x2f1] sm:$0xff]
  %v5467 = vld [vmem:[%s5294 + $0x309] sm:$0xff]
  %v5468 = vld [vmem:[%s5294 + $0x311] sm:$0xff]
  %v5469 = vld [vmem:[%s5294 + $0x329] sm:$0xff]
  %v5470 = vld [vmem:[%s5294 + $0x331] sm:$0xff]
  %v5471 = vld [vmem:[%s5294 + $0x349] sm:$0xff]
  %v5472 = vld [vmem:[%s5294 + $0x351] sm:$0xff]
  %v5473 = vld [vmem:[%s5294 + $0x369] sm:$0xff]
  %v5474 = vld [vmem:[%s5294 + $0x371] sm:$0xff]
  %v5475 = vld [vmem:[%s5294 + $0x389] sm:$0xff]
  %v5476 = vld [vmem:[%s5294 + $0x391] sm:$0xff]
  %v5477 = vld [vmem:[%s5294 + $0x3a9] sm:$0xff]
  %v5478 = vld [vmem:[%s5294 + $0x3b1] sm:$0xff]
  %v5479 = vld [vmem:[%s5294 + $0x3c9] sm:$0xff]
  %v5480 = vld [vmem:[%s5294 + $0x3d1] sm:$0xff]
  %v5481 = vld [vmem:[%s5294 + $0x3e9] sm:$0xff]
  %v5482 = vld [vmem:[%s5294 + $0x3f1] sm:$0xff]
  %v5483 = vld [vmem:[%s5294 + $0x409] sm:$0xff]
  %v5484 = vld [vmem:[%s5294 + $0x411] sm:$0xff]
  %v5485 = vld [vmem:[%s5294 + $0x429] sm:$0xff]
  %v5486 = vld [vmem:[%s5294 + $0x431] sm:$0xff]
  %5551 = vrot.lane.b32.xlu0 %v4974, 4
  %v5552 = vpop.permute.xlu0 %5551
  %5553 = vrot.lane.b32.xlu0 %v4975, 4
  %v5554 = vpop.permute.xlu0 %5553
  %5555 = vrot.lane.b32.xlu0 %v4976, 4
  %v5556 = vpop.permute.xlu0 %5555
  %5557 = vrot.lane.b32.xlu0 %v4977, 4
  %v5558 = vpop.permute.xlu0 %5557
  %5559 = vrot.lane.b32.xlu0 %v4978, 4
  %v5560 = vpop.permute.xlu0 %5559
  %5561 = vrot.lane.b32.xlu0 %v4979, 4
  %v5562 = vpop.permute.xlu0 %5561
  %5563 = vrot.lane.b32.xlu0 %v4980, 4
  %v5564 = vpop.permute.xlu0 %5563
  %5565 = vrot.lane.b32.xlu0 %v4981, 4
  %v5566 = vpop.permute.xlu0 %5565
  %5567 = vrot.lane.b32.xlu0 %v4982, 4
  %v5568 = vpop.permute.xlu0 %5567
  %5569 = vrot.lane.b32.xlu0 %v4983, 4
  %v5570 = vpop.permute.xlu0 %5569
  %5571 = vrot.lane.b32.xlu0 %v4984, 4
  %v5572 = vpop.permute.xlu0 %5571
  %5573 = vrot.lane.b32.xlu0 %v4985, 4
  %v5574 = vpop.permute.xlu0 %5573
  %5575 = vrot.lane.b32.xlu0 %v4986, 4
  %v5576 = vpop.permute.xlu0 %5575
  %5577 = vrot.lane.b32.xlu0 %v4987, 4
  %v5578 = vpop.permute.xlu0 %5577
  %5579 = vrot.lane.b32.xlu0 %v4988, 4
  %v5580 = vpop.permute.xlu0 %5579
  %5581 = vrot.lane.b32.xlu0 %v4989, 4
  %v5582 = vpop.permute.xlu0 %5581
  %5583 = vrot.lane.b32.xlu0 %v4990, 4
  %v5584 = vpop.permute.xlu0 %5583
  %5585 = vrot.lane.b32.xlu0 %v4991, 4
  %v5586 = vpop.permute.xlu0 %5585
  %5587 = vrot.lane.b32.xlu0 %v4992, 4
  %v5588 = vpop.permute.xlu0 %5587
  %5589 = vrot.lane.b32.xlu0 %v4993, 4
  %v5590 = vpop.permute.xlu0 %5589
  %5591 = vrot.lane.b32.xlu0 %v4994, 4
  %v5592 = vpop.permute.xlu0 %5591
  %5593 = vrot.lane.b32.xlu0 %v4995, 4
  %v5594 = vpop.permute.xlu0 %5593
  %5595 = vrot.lane.b32.xlu0 %v4996, 4
  %v5596 = vpop.permute.xlu0 %5595
  %5597 = vrot.lane.b32.xlu0 %v4997, 4
  %v5598 = vpop.permute.xlu0 %5597
  %5599 = vrot.lane.b32.xlu0 %v4998, 4
  %v5600 = vpop.permute.xlu0 %5599
  %5601 = vrot.lane.b32.xlu0 %v4999, 4
  %v5602 = vpop.permute.xlu0 %5601
  %5603 = vrot.lane.b32.xlu0 %v5000, 4
  %v5604 = vpop.permute.xlu0 %5603
  %5605 = vrot.lane.b32.xlu0 %v5001, 4
  %v5606 = vpop.permute.xlu0 %5605
  %5607 = vrot.lane.b32.xlu0 %v5002, 4
  %v5608 = vpop.permute.xlu0 %5607
  %5609 = vrot.lane.b32.xlu0 %v5003, 4
  %v5610 = vpop.permute.xlu0 %5609
  %5611 = vrot.lane.b32.xlu0 %v5004, 4
  %v5612 = vpop.permute.xlu0 %5611
  %5613 = vrot.lane.b32.xlu0 %v5005, 4
  %v5614 = vpop.permute.xlu0 %5613
  %5615 = vrot.lane.b32.xlu0 %v5006, 4
  %v5616 = vpop.permute.xlu0 %5615
  %5617 = vrot.lane.b32.xlu0 %v5007, 4
  %v5618 = vpop.permute.xlu0 %5617
  %5619 = vrot.lane.b32.xlu0 %v5008, 4
  %v5620 = vpop.permute.xlu0 %5619
  %5621 = vrot.lane.b32.xlu0 %v5009, 4
  %v5622 = vpop.permute.xlu0 %5621
  %5623 = vrot.lane.b32.xlu0 %v5010, 4
  %v5624 = vpop.permute.xlu0 %5623
  %5625 = vrot.lane.b32.xlu0 %v5011, 4
  %v5626 = vpop.permute.xlu0 %5625
  %5627 = vrot.lane.b32.xlu0 %v5012, 4
  %v5628 = vpop.permute.xlu0 %5627
  %5629 = vrot.lane.b32.xlu0 %v5013, 4
  %v5630 = vpop.permute.xlu0 %5629
  %5631 = vrot.lane.b32.xlu0 %v5014, 4
  %v5632 = vpop.permute.xlu0 %5631
  %5633 = vrot.lane.b32.xlu0 %v5015, 4
  %v5634 = vpop.permute.xlu0 %5633
  %5635 = vrot.lane.b32.xlu0 %v5016, 4
  %v5636 = vpop.permute.xlu0 %5635
  %5637 = vrot.lane.b32.xlu0 %v5017, 4
  %v5638 = vpop.permute.xlu0 %5637
  %5639 = vrot.lane.b32.xlu0 %v5018, 4
  %v5640 = vpop.permute.xlu0 %5639
  %5641 = vrot.lane.b32.xlu0 %v5019, 4
  %v5642 = vpop.permute.xlu0 %5641
  %5643 = vrot.lane.b32.xlu0 %v5020, 4
  %v5644 = vpop.permute.xlu0 %5643
  %5645 = vrot.lane.b32.xlu0 %v5021, 4
  %v5646 = vpop.permute.xlu0 %5645
  %5647 = vrot.lane.b32.xlu0 %v5022, 4
  %v5648 = vpop.permute.xlu0 %5647
  %5649 = vrot.lane.b32.xlu0 %v5023, 4
  %v5650 = vpop.permute.xlu0 %5649
  %5651 = vrot.lane.b32.xlu0 %v5024, 4
  %v5652 = vpop.permute.xlu0 %5651
  %5653 = vrot.lane.b32.xlu0 %v5025, 4
  %v5654 = vpop.permute.xlu0 %5653
  %5655 = vrot.lane.b32.xlu0 %v5026, 4
  %v5656 = vpop.permute.xlu0 %5655
  %5657 = vrot.lane.b32.xlu0 %v5027, 4
  %v5658 = vpop.permute.xlu0 %5657
  %5659 = vrot.lane.b32.xlu0 %v5028, 4
  %v5660 = vpop.permute.xlu0 %5659
  %5661 = vrot.lane.b32.xlu0 %v5029, 4
  %v5662 = vpop.permute.xlu0 %5661
  %5663 = vrot.lane.b32.xlu0 %v5030, 4
  %v5664 = vpop.permute.xlu0 %5663
  %5665 = vrot.lane.b32.xlu0 %v5031, 4
  %v5666 = vpop.permute.xlu0 %5665
  %5667 = vrot.lane.b32.xlu0 %v5032, 4
  %v5668 = vpop.permute.xlu0 %5667
  %5669 = vrot.lane.b32.xlu0 %v5033, 4
  %v5670 = vpop.permute.xlu0 %5669
  %5671 = vrot.lane.b32.xlu0 %v5034, 4
  %v5672 = vpop.permute.xlu0 %5671
  %5673 = vrot.lane.b32.xlu0 %v5035, 4
  %v5674 = vpop.permute.xlu0 %5673
  %5675 = vrot.lane.b32.xlu0 %v5036, 4
  %v5676 = vpop.permute.xlu0 %5675
  %5677 = vrot.lane.b32.xlu0 %v5037, 4
  %v5678 = vpop.permute.xlu0 %5677
  %5807 = vrot.lane.b32.xlu0 %v5038, 8
  %v5808 = vpop.permute.xlu0 %5807
  %5809 = vrot.lane.b32.xlu0 %v5039, 8
  %v5810 = vpop.permute.xlu0 %5809
  %5811 = vrot.lane.b32.xlu0 %v5040, 8
  %v5812 = vpop.permute.xlu0 %5811
  %5813 = vrot.lane.b32.xlu0 %v5041, 8
  %v5814 = vpop.permute.xlu0 %5813
  %5815 = vrot.lane.b32.xlu0 %v5042, 8
  %v5816 = vpop.permute.xlu0 %5815
  %5817 = vrot.lane.b32.xlu0 %v5043, 8
  %v5818 = vpop.permute.xlu0 %5817
  %5819 = vrot.lane.b32.xlu0 %v5044, 8
  %v5820 = vpop.permute.xlu0 %5819
  %5821 = vrot.lane.b32.xlu0 %v5045, 8
  %v5822 = vpop.permute.xlu0 %5821
  %5823 = vrot.lane.b32.xlu0 %v5046, 8
  %v5824 = vpop.permute.xlu0 %5823
  %5825 = vrot.lane.b32.xlu0 %v5047, 8
  %v5826 = vpop.permute.xlu0 %5825
  %5827 = vrot.lane.b32.xlu0 %v5048, 8
  %v5828 = vpop.permute.xlu0 %5827
  %5829 = vrot.lane.b32.xlu0 %v5049, 8
  %v5830 = vpop.permute.xlu0 %5829
  %5831 = vrot.lane.b32.xlu0 %v5050, 8
  %v5832 = vpop.permute.xlu0 %5831
  %5833 = vrot.lane.b32.xlu0 %v5051, 8
  %v5834 = vpop.permute.xlu0 %5833
  %5835 = vrot.lane.b32.xlu0 %v5052, 8
  %v5836 = vpop.permute.xlu0 %5835
  %5837 = vrot.lane.b32.xlu0 %v5053, 8
  %v5838 = vpop.permute.xlu0 %5837
  %5839 = vrot.lane.b32.xlu0 %v5054, 8
  %v5840 = vpop.permute.xlu0 %5839
  %5841 = vrot.lane.b32.xlu0 %v5055, 8
  %v5842 = vpop.permute.xlu0 %5841
  %5843 = vrot.lane.b32.xlu0 %v5056, 8
  %v5844 = vpop.permute.xlu0 %5843
  %5845 = vrot.lane.b32.xlu0 %v5057, 8
  %v5846 = vpop.permute.xlu0 %5845
  %5847 = vrot.lane.b32.xlu0 %v5058, 8
  %v5848 = vpop.permute.xlu0 %5847
  %5849 = vrot.lane.b32.xlu0 %v5059, 8
  %v5850 = vpop.permute.xlu0 %5849
  %5851 = vrot.lane.b32.xlu0 %v5060, 8
  %v5852 = vpop.permute.xlu0 %5851
  %5853 = vrot.lane.b32.xlu0 %v5061, 8
  %v5854 = vpop.permute.xlu0 %5853
  %5855 = vrot.lane.b32.xlu0 %v5062, 8
  %v5856 = vpop.permute.xlu0 %5855
  %5857 = vrot.lane.b32.xlu0 %v5063, 8
  %v5858 = vpop.permute.xlu0 %5857
  %5859 = vrot.lane.b32.xlu0 %v5064, 8
  %v5860 = vpop.permute.xlu0 %5859
  %5861 = vrot.lane.b32.xlu0 %v5065, 8
  %v5862 = vpop.permute.xlu0 %5861
  %5863 = vrot.lane.b32.xlu0 %v5066, 8
  %v5864 = vpop.permute.xlu0 %5863
  %5865 = vrot.lane.b32.xlu0 %v5067, 8
  %v5866 = vpop.permute.xlu0 %5865
  %5867 = vrot.lane.b32.xlu0 %v5068, 8
  %v5868 = vpop.permute.xlu0 %5867
  %5869 = vrot.lane.b32.xlu0 %v5069, 8
  %v5870 = vpop.permute.xlu0 %5869
  %5871 = vrot.lane.b32.xlu0 %v5070, 8
  %v5872 = vpop.permute.xlu0 %5871
  %5873 = vrot.lane.b32.xlu0 %v5071, 8
  %v5874 = vpop.permute.xlu0 %5873
  %5875 = vrot.lane.b32.xlu0 %v5072, 8
  %v5876 = vpop.permute.xlu0 %5875
  %5877 = vrot.lane.b32.xlu0 %v5073, 8
  %v5878 = vpop.permute.xlu0 %5877
  %5879 = vrot.lane.b32.xlu0 %v5074, 8
  %v5880 = vpop.permute.xlu0 %5879
  %5881 = vrot.lane.b32.xlu0 %v5075, 8
  %v5882 = vpop.permute.xlu0 %5881
  %5883 = vrot.lane.b32.xlu0 %v5076, 8
  %v5884 = vpop.permute.xlu0 %5883
  %5885 = vrot.lane.b32.xlu0 %v5077, 8
  %v5886 = vpop.permute.xlu0 %5885
  %5887 = vrot.lane.b32.xlu0 %v5078, 8
  %v5888 = vpop.permute.xlu0 %5887
  %5889 = vrot.lane.b32.xlu0 %v5079, 8
  %v5890 = vpop.permute.xlu0 %5889
  %5891 = vrot.lane.b32.xlu0 %v5080, 8
  %v5892 = vpop.permute.xlu0 %5891
  %5893 = vrot.lane.b32.xlu0 %v5081, 8
  %v5894 = vpop.permute.xlu0 %5893
  %5895 = vrot.lane.b32.xlu0 %v5082, 8
  %v5896 = vpop.permute.xlu0 %5895
  %5897 = vrot.lane.b32.xlu0 %v5083, 8
  %v5898 = vpop.permute.xlu0 %5897
  %5899 = vrot.lane.b32.xlu0 %v5084, 8
  %v5900 = vpop.permute.xlu0 %5899
  %5901 = vrot.lane.b32.xlu0 %v5085, 8
  %v5902 = vpop.permute.xlu0 %5901
  %5903 = vrot.lane.b32.xlu0 %v5086, 8
  %v5904 = vpop.permute.xlu0 %5903
  %5905 = vrot.lane.b32.xlu0 %v5087, 8
  %v5906 = vpop.permute.xlu0 %5905
  %5907 = vrot.lane.b32.xlu0 %v5088, 8
  %v5908 = vpop.permute.xlu0 %5907
  %5909 = vrot.lane.b32.xlu0 %v5089, 8
  %v5910 = vpop.permute.xlu0 %5909
  %5911 = vrot.lane.b32.xlu0 %v5090, 8
  %v5912 = vpop.permute.xlu0 %5911
  %5913 = vrot.lane.b32.xlu0 %v5091, 8
  %v5914 = vpop.permute.xlu0 %5913
  %5915 = vrot.lane.b32.xlu0 %v5092, 8
  %v5916 = vpop.permute.xlu0 %5915
  %5917 = vrot.lane.b32.xlu0 %v5093, 8
  %v5918 = vpop.permute.xlu0 %5917
  %5919 = vrot.lane.b32.xlu0 %v5094, 8
  %v5920 = vpop.permute.xlu0 %5919
  %5921 = vrot.lane.b32.xlu0 %v5095, 8
  %v5922 = vpop.permute.xlu0 %5921
  %5923 = vrot.lane.b32.xlu0 %v5096, 8
  %v5924 = vpop.permute.xlu0 %5923
  %5925 = vrot.lane.b32.xlu0 %v5097, 8
  %v5926 = vpop.permute.xlu0 %5925
  %5927 = vrot.lane.b32.xlu0 %v5098, 8
  %v5928 = vpop.permute.xlu0 %5927
  %5929 = vrot.lane.b32.xlu0 %v5099, 8
  %v5930 = vpop.permute.xlu0 %5929
  %5931 = vrot.lane.b32.xlu0 %v5100, 8
  %v5932 = vpop.permute.xlu0 %5931
  %5933 = vrot.lane.b32.xlu0 %v5101, 8
  %v5934 = vpop.permute.xlu0 %5933
  %6063 = vrot.lane.b32.xlu0 %v5102, 12
  %v6064 = vpop.permute.xlu0 %6063
  %6065 = vrot.lane.b32.xlu0 %v5103, 12
  %v6066 = vpop.permute.xlu0 %6065
  %6067 = vrot.lane.b32.xlu0 %v5104, 12
  %v6068 = vpop.permute.xlu0 %6067
  %6069 = vrot.lane.b32.xlu0 %v5105, 12
  %v6070 = vpop.permute.xlu0 %6069
  %6071 = vrot.lane.b32.xlu0 %v5106, 12
  %v6072 = vpop.permute.xlu0 %6071
  %6073 = vrot.lane.b32.xlu0 %v5107, 12
  %v6074 = vpop.permute.xlu0 %6073
  %6075 = vrot.lane.b32.xlu0 %v5108, 12
  %v6076 = vpop.permute.xlu0 %6075
  %6077 = vrot.lane.b32.xlu0 %v5109, 12
  %v6078 = vpop.permute.xlu0 %6077
  %6079 = vrot.lane.b32.xlu0 %v5110, 12
  %v6080 = vpop.permute.xlu0 %6079
  %6081 = vrot.lane.b32.xlu0 %v5111, 12
  %v6082 = vpop.permute.xlu0 %6081
  %6083 = vrot.lane.b32.xlu0 %v5112, 12
  %v6084 = vpop.permute.xlu0 %6083
  %6085 = vrot.lane.b32.xlu0 %v5113, 12
  %v6086 = vpop.permute.xlu0 %6085
  %6087 = vrot.lane.b32.xlu0 %v5114, 12
  %v6088 = vpop.permute.xlu0 %6087
  %6089 = vrot.lane.b32.xlu0 %v5115, 12
  %v6090 = vpop.permute.xlu0 %6089
  %6091 = vrot.lane.b32.xlu0 %v5116, 12
  %v6092 = vpop.permute.xlu0 %6091
  %6093 = vrot.lane.b32.xlu0 %v5117, 12
  %v6094 = vpop.permute.xlu0 %6093
  %6095 = vrot.lane.b32.xlu0 %v5118, 12
  %v6096 = vpop.permute.xlu0 %6095
  %6097 = vrot.lane.b32.xlu0 %v5119, 12
  %v6098 = vpop.permute.xlu0 %6097
  %6099 = vrot.lane.b32.xlu0 %v5120, 12
  %v6100 = vpop.permute.xlu0 %6099
  %6101 = vrot.lane.b32.xlu0 %v5121, 12
  %v6102 = vpop.permute.xlu0 %6101
  %6103 = vrot.lane.b32.xlu0 %v5122, 12
  %v6104 = vpop.permute.xlu0 %6103
  %6105 = vrot.lane.b32.xlu0 %v5123, 12
  %v6106 = vpop.permute.xlu0 %6105
  %6107 = vrot.lane.b32.xlu0 %v5124, 12
  %v6108 = vpop.permute.xlu0 %6107
  %6109 = vrot.lane.b32.xlu0 %v5125, 12
  %v6110 = vpop.permute.xlu0 %6109
  %6111 = vrot.lane.b32.xlu0 %v5126, 12
  %v6112 = vpop.permute.xlu0 %6111
  %6113 = vrot.lane.b32.xlu0 %v5127, 12
  %v6114 = vpop.permute.xlu0 %6113
  %6115 = vrot.lane.b32.xlu0 %v5128, 12
  %v6116 = vpop.permute.xlu0 %6115
  %6117 = vrot.lane.b32.xlu0 %v5129, 12
  %v6118 = vpop.permute.xlu0 %6117
  %6119 = vrot.lane.b32.xlu0 %v5130, 12
  %v6120 = vpop.permute.xlu0 %6119
  %6121 = vrot.lane.b32.xlu0 %v5131, 12
  %v6122 = vpop.permute.xlu0 %6121
  %6123 = vrot.lane.b32.xlu0 %v5132, 12
  %v6124 = vpop.permute.xlu0 %6123
  %6125 = vrot.lane.b32.xlu0 %v5133, 12
  %v6126 = vpop.permute.xlu0 %6125
  %6127 = vrot.lane.b32.xlu0 %v5134, 12
  %v6128 = vpop.permute.xlu0 %6127
  %6129 = vrot.lane.b32.xlu0 %v5135, 12
  %v6130 = vpop.permute.xlu0 %6129
  %6131 = vrot.lane.b32.xlu0 %v5136, 12
  %v6132 = vpop.permute.xlu0 %6131
  %6133 = vrot.lane.b32.xlu0 %v5137, 12
  %v6134 = vpop.permute.xlu0 %6133
  %6135 = vrot.lane.b32.xlu0 %v5138, 12
  %v6136 = vpop.permute.xlu0 %6135
  %6137 = vrot.lane.b32.xlu0 %v5139, 12
  %v6138 = vpop.permute.xlu0 %6137
  %6139 = vrot.lane.b32.xlu0 %v5140, 12
  %v6140 = vpop.permute.xlu0 %6139
  %6141 = vrot.lane.b32.xlu0 %v5141, 12
  %v6142 = vpop.permute.xlu0 %6141
  %6143 = vrot.lane.b32.xlu0 %v5142, 12
  %v6144 = vpop.permute.xlu0 %6143
  %6145 = vrot.lane.b32.xlu0 %v5143, 12
  %v6146 = vpop.permute.xlu0 %6145
  %6147 = vrot.lane.b32.xlu0 %v5144, 12
  %v6148 = vpop.permute.xlu0 %6147
  %6149 = vrot.lane.b32.xlu0 %v5145, 12
  %v6150 = vpop.permute.xlu0 %6149
  %6151 = vrot.lane.b32.xlu0 %v5146, 12
  %v6152 = vpop.permute.xlu0 %6151
  %6153 = vrot.lane.b32.xlu0 %v5147, 12
  %v6154 = vpop.permute.xlu0 %6153
  %6155 = vrot.lane.b32.xlu0 %v5148, 12
  %v6156 = vpop.permute.xlu0 %6155
  %6157 = vrot.lane.b32.xlu0 %v5149, 12
  %v6158 = vpop.permute.xlu0 %6157
  %6159 = vrot.lane.b32.xlu0 %v5150, 12
  %v6160 = vpop.permute.xlu0 %6159
  %6161 = vrot.lane.b32.xlu0 %v5151, 12
  %v6162 = vpop.permute.xlu0 %6161
  %6163 = vrot.lane.b32.xlu0 %v5152, 12
  %v6164 = vpop.permute.xlu0 %6163
  %6165 = vrot.lane.b32.xlu0 %v5153, 12
  %v6166 = vpop.permute.xlu0 %6165
  %6167 = vrot.lane.b32.xlu0 %v5154, 12
  %v6168 = vpop.permute.xlu0 %6167
  %6169 = vrot.lane.b32.xlu0 %v5155, 12
  %v6170 = vpop.permute.xlu0 %6169
  %6171 = vrot.lane.b32.xlu0 %v5156, 12
  %v6172 = vpop.permute.xlu0 %6171
  %6173 = vrot.lane.b32.xlu0 %v5157, 12
  %v6174 = vpop.permute.xlu0 %6173
  %6175 = vrot.lane.b32.xlu0 %v5158, 12
  %v6176 = vpop.permute.xlu0 %6175
  %6177 = vrot.lane.b32.xlu0 %v5159, 12
  %v6178 = vpop.permute.xlu0 %6177
  %6179 = vrot.lane.b32.xlu0 %v5160, 12
  %v6180 = vpop.permute.xlu0 %6179
  %6181 = vrot.lane.b32.xlu0 %v5161, 12
  %v6182 = vpop.permute.xlu0 %6181
  %6183 = vrot.lane.b32.xlu0 %v5162, 12
  %v6184 = vpop.permute.xlu0 %6183
  %6185 = vrot.lane.b32.xlu0 %v5163, 12
  %v6186 = vpop.permute.xlu0 %6185
  %6187 = vrot.lane.b32.xlu0 %v5164, 12
  %v6188 = vpop.permute.xlu0 %6187
  %6189 = vrot.lane.b32.xlu0 %v5165, 12
  %v6190 = vpop.permute.xlu0 %6189
  %6319 = vrot.lane.b32.xlu0 %v5166, 16
  %v6320 = vpop.permute.xlu0 %6319
  %6321 = vrot.lane.b32.xlu0 %v5167, 16
  %v6322 = vpop.permute.xlu0 %6321
  %6323 = vrot.lane.b32.xlu0 %v5168, 16
  %v6324 = vpop.permute.xlu0 %6323
  %6325 = vrot.lane.b32.xlu0 %v5169, 16
  %v6326 = vpop.permute.xlu0 %6325
  %6327 = vrot.lane.b32.xlu0 %v5170, 16
  %v6328 = vpop.permute.xlu0 %6327
  %6329 = vrot.lane.b32.xlu0 %v5171, 16
  %v6330 = vpop.permute.xlu0 %6329
  %6331 = vrot.lane.b32.xlu0 %v5172, 16
  %v6332 = vpop.permute.xlu0 %6331
  %6333 = vrot.lane.b32.xlu0 %v5173, 16
  %v6334 = vpop.permute.xlu0 %6333
  %6335 = vrot.lane.b32.xlu0 %v5174, 16
  %v6336 = vpop.permute.xlu0 %6335
  %6337 = vrot.lane.b32.xlu0 %v5175, 16
  %v6338 = vpop.permute.xlu0 %6337
  %6339 = vrot.lane.b32.xlu0 %v5176, 16
  %v6340 = vpop.permute.xlu0 %6339
  %6341 = vrot.lane.b32.xlu0 %v5177, 16
  %v6342 = vpop.permute.xlu0 %6341
  %6343 = vrot.lane.b32.xlu0 %v5178, 16
  %v6344 = vpop.permute.xlu0 %6343
  %6345 = vrot.lane.b32.xlu0 %v5179, 16
  %v6346 = vpop.permute.xlu0 %6345
  %6347 = vrot.lane.b32.xlu0 %v5180, 16
  %v6348 = vpop.permute.xlu0 %6347
  %6349 = vrot.lane.b32.xlu0 %v5181, 16
  %v6350 = vpop.permute.xlu0 %6349
  %6351 = vrot.lane.b32.xlu0 %v5182, 16
  %v6352 = vpop.permute.xlu0 %6351
  %6353 = vrot.lane.b32.xlu0 %v5183, 16
  %v6354 = vpop.permute.xlu0 %6353
  %6355 = vrot.lane.b32.xlu0 %v5184, 16
  %v6356 = vpop.permute.xlu0 %6355
  %6357 = vrot.lane.b32.xlu0 %v5185, 16
  %v6358 = vpop.permute.xlu0 %6357
  %6359 = vrot.lane.b32.xlu0 %v5186, 16
  %v6360 = vpop.permute.xlu0 %6359
  %6361 = vrot.lane.b32.xlu0 %v5187, 16
  %v6362 = vpop.permute.xlu0 %6361
  %6363 = vrot.lane.b32.xlu0 %v5188, 16
  %v6364 = vpop.permute.xlu0 %6363
  %6365 = vrot.lane.b32.xlu0 %v5189, 16
  %v6366 = vpop.permute.xlu0 %6365
  %6367 = vrot.lane.b32.xlu0 %v5190, 16
  %v6368 = vpop.permute.xlu0 %6367
  %6369 = vrot.lane.b32.xlu0 %v5191, 16
  %v6370 = vpop.permute.xlu0 %6369
  %6371 = vrot.lane.b32.xlu0 %v5192, 16
  %v6372 = vpop.permute.xlu0 %6371
  %6373 = vrot.lane.b32.xlu0 %v5193, 16
  %v6374 = vpop.permute.xlu0 %6373
  %6375 = vrot.lane.b32.xlu0 %v5194, 16
  %v6376 = vpop.permute.xlu0 %6375
  %6377 = vrot.lane.b32.xlu0 %v5195, 16
  %v6378 = vpop.permute.xlu0 %6377
  %6379 = vrot.lane.b32.xlu0 %v5196, 16
  %v6380 = vpop.permute.xlu0 %6379
  %6381 = vrot.lane.b32.xlu0 %v5197, 16
  %v6382 = vpop.permute.xlu0 %6381
  %6383 = vrot.lane.b32.xlu0 %v5198, 16
  %v6384 = vpop.permute.xlu0 %6383
  %6385 = vrot.lane.b32.xlu0 %v5199, 16
  %v6386 = vpop.permute.xlu0 %6385
  %6387 = vrot.lane.b32.xlu0 %v5200, 16
  %v6388 = vpop.permute.xlu0 %6387
  %6389 = vrot.lane.b32.xlu0 %v5201, 16
  %v6390 = vpop.permute.xlu0 %6389
  %6391 = vrot.lane.b32.xlu0 %v5202, 16
  %v6392 = vpop.permute.xlu0 %6391
  %6393 = vrot.lane.b32.xlu0 %v5203, 16
  %v6394 = vpop.permute.xlu0 %6393
  %6395 = vrot.lane.b32.xlu0 %v5204, 16
  %v6396 = vpop.permute.xlu0 %6395
  %6397 = vrot.lane.b32.xlu0 %v5205, 16
  %v6398 = vpop.permute.xlu0 %6397
  %6399 = vrot.lane.b32.xlu0 %v5206, 16
  %v6400 = vpop.permute.xlu0 %6399
  %6401 = vrot.lane.b32.xlu0 %v5207, 16
  %v6402 = vpop.permute.xlu0 %6401
  %6403 = vrot.lane.b32.xlu0 %v5208, 16
  %v6404 = vpop.permute.xlu0 %6403
  %6405 = vrot.lane.b32.xlu0 %v5209, 16
  %v6406 = vpop.permute.xlu0 %6405
  %6407 = vrot.lane.b32.xlu0 %v5210, 16
  %v6408 = vpop.permute.xlu0 %6407
  %6409 = vrot.lane.b32.xlu0 %v5211, 16
  %v6410 = vpop.permute.xlu0 %6409
  %6411 = vrot.lane.b32.xlu0 %v5212, 16
  %v6412 = vpop.permute.xlu0 %6411
  %6413 = vrot.lane.b32.xlu0 %v5213, 16
  %v6414 = vpop.permute.xlu0 %6413
  %6415 = vrot.lane.b32.xlu0 %v5214, 16
  %v6416 = vpop.permute.xlu0 %6415
  %6417 = vrot.lane.b32.xlu0 %v5215, 16
  %v6418 = vpop.permute.xlu0 %6417
  %6419 = vrot.lane.b32.xlu0 %v5216, 16
  %v6420 = vpop.permute.xlu0 %6419
  %6421 = vrot.lane.b32.xlu0 %v5217, 16
  %v6422 = vpop.permute.xlu0 %6421
  %6423 = vrot.lane.b32.xlu0 %v5218, 16
  %v6424 = vpop.permute.xlu0 %6423
  %6425 = vrot.lane.b32.xlu0 %v5219, 16
  %v6426 = vpop.permute.xlu0 %6425
  %6427 = vrot.lane.b32.xlu0 %v5220, 16
  %v6428 = vpop.permute.xlu0 %6427
  %6429 = vrot.lane.b32.xlu0 %v5221, 16
  %v6430 = vpop.permute.xlu0 %6429
  %6431 = vrot.lane.b32.xlu0 %v5222, 16
  %v6432 = vpop.permute.xlu0 %6431
  %6433 = vrot.lane.b32.xlu0 %v5223, 16
  %v6434 = vpop.permute.xlu0 %6433
  %6435 = vrot.lane.b32.xlu0 %v5224, 16
  %v6436 = vpop.permute.xlu0 %6435
  %6437 = vrot.lane.b32.xlu0 %v5225, 16
  %v6438 = vpop.permute.xlu0 %6437
  %6439 = vrot.lane.b32.xlu0 %v5226, 16
  %v6440 = vpop.permute.xlu0 %6439
  %6441 = vrot.lane.b32.xlu0 %v5227, 16
  %v6442 = vpop.permute.xlu0 %6441
  %6443 = vrot.lane.b32.xlu0 %v5228, 16
  %v6444 = vpop.permute.xlu0 %6443
  %6445 = vrot.lane.b32.xlu0 %v5229, 16
  %v6446 = vpop.permute.xlu0 %6445
  %6575 = vrot.lane.b32.xlu0 %v5230, 20
  %v6576 = vpop.permute.xlu0 %6575
  %6577 = vrot.lane.b32.xlu0 %v5231, 20
  %v6578 = vpop.permute.xlu0 %6577
  %6579 = vrot.lane.b32.xlu0 %v5232, 20
  %v6580 = vpop.permute.xlu0 %6579
  %6581 = vrot.lane.b32.xlu0 %v5233, 20
  %v6582 = vpop.permute.xlu0 %6581
  %6583 = vrot.lane.b32.xlu0 %v5234, 20
  %v6584 = vpop.permute.xlu0 %6583
  %6585 = vrot.lane.b32.xlu0 %v5235, 20
  %v6586 = vpop.permute.xlu0 %6585
  %6587 = vrot.lane.b32.xlu0 %v5236, 20
  %v6588 = vpop.permute.xlu0 %6587
  %6589 = vrot.lane.b32.xlu0 %v5237, 20
  %v6590 = vpop.permute.xlu0 %6589
  %6591 = vrot.lane.b32.xlu0 %v5238, 20
  %v6592 = vpop.permute.xlu0 %6591
  %6593 = vrot.lane.b32.xlu0 %v5239, 20
  %v6594 = vpop.permute.xlu0 %6593
  %6595 = vrot.lane.b32.xlu0 %v5240, 20
  %v6596 = vpop.permute.xlu0 %6595
  %6597 = vrot.lane.b32.xlu0 %v5241, 20
  %v6598 = vpop.permute.xlu0 %6597
  %6599 = vrot.lane.b32.xlu0 %v5242, 20
  %v6600 = vpop.permute.xlu0 %6599
  %6601 = vrot.lane.b32.xlu0 %v5243, 20
  %v6602 = vpop.permute.xlu0 %6601
  %6603 = vrot.lane.b32.xlu0 %v5244, 20
  %v6604 = vpop.permute.xlu0 %6603
  %6605 = vrot.lane.b32.xlu0 %v5245, 20
  %v6606 = vpop.permute.xlu0 %6605
  %6607 = vrot.lane.b32.xlu0 %v5246, 20
  %v6608 = vpop.permute.xlu0 %6607
  %6609 = vrot.lane.b32.xlu0 %v5247, 20
  %v6610 = vpop.permute.xlu0 %6609
  %6611 = vrot.lane.b32.xlu0 %v5248, 20
  %v6612 = vpop.permute.xlu0 %6611
  %6613 = vrot.lane.b32.xlu0 %v5249, 20
  %v6614 = vpop.permute.xlu0 %6613
  %6615 = vrot.lane.b32.xlu0 %v5250, 20
  %v6616 = vpop.permute.xlu0 %6615
  %6617 = vrot.lane.b32.xlu0 %v5251, 20
  %v6618 = vpop.permute.xlu0 %6617
  %6619 = vrot.lane.b32.xlu0 %v5252, 20
  %v6620 = vpop.permute.xlu0 %6619
  %6621 = vrot.lane.b32.xlu0 %v5253, 20
  %v6622 = vpop.permute.xlu0 %6621
  %6623 = vrot.lane.b32.xlu0 %v5254, 20
  %v6624 = vpop.permute.xlu0 %6623
  %6625 = vrot.lane.b32.xlu0 %v5255, 20
  %v6626 = vpop.permute.xlu0 %6625
  %6627 = vrot.lane.b32.xlu0 %v5256, 20
  %v6628 = vpop.permute.xlu0 %6627
  %6629 = vrot.lane.b32.xlu0 %v5257, 20
  %v6630 = vpop.permute.xlu0 %6629
  %6631 = vrot.lane.b32.xlu0 %v5258, 20
  %v6632 = vpop.permute.xlu0 %6631
  %6633 = vrot.lane.b32.xlu0 %v5259, 20
  %v6634 = vpop.permute.xlu0 %6633
  %6635 = vrot.lane.b32.xlu0 %v5260, 20
  %v6636 = vpop.permute.xlu0 %6635
  %6637 = vrot.lane.b32.xlu0 %v5261, 20
  %v6638 = vpop.permute.xlu0 %6637
  %6639 = vrot.lane.b32.xlu0 %v5262, 20
  %v6640 = vpop.permute.xlu0 %6639
  %6641 = vrot.lane.b32.xlu0 %v5263, 20
  %v6642 = vpop.permute.xlu0 %6641
  %6643 = vrot.lane.b32.xlu0 %v5264, 20
  %v6644 = vpop.permute.xlu0 %6643
  %6645 = vrot.lane.b32.xlu0 %v5265, 20
  %v6646 = vpop.permute.xlu0 %6645
  %6647 = vrot.lane.b32.xlu0 %v5266, 20
  %v6648 = vpop.permute.xlu0 %6647
  %6649 = vrot.lane.b32.xlu0 %v5267, 20
  %v6650 = vpop.permute.xlu0 %6649
  %6651 = vrot.lane.b32.xlu0 %v5268, 20
  %v6652 = vpop.permute.xlu0 %6651
  %6653 = vrot.lane.b32.xlu0 %v5269, 20
  %v6654 = vpop.permute.xlu0 %6653
  %6655 = vrot.lane.b32.xlu0 %v5270, 20
  %v6656 = vpop.permute.xlu0 %6655
  %6657 = vrot.lane.b32.xlu0 %v5271, 20
  %v6658 = vpop.permute.xlu0 %6657
  %6659 = vrot.lane.b32.xlu0 %v5272, 20
  %v6660 = vpop.permute.xlu0 %6659
  %6661 = vrot.lane.b32.xlu0 %v5273, 20
  %v6662 = vpop.permute.xlu0 %6661
  %6663 = vrot.lane.b32.xlu0 %v5274, 20
  %v6664 = vpop.permute.xlu0 %6663
  %6665 = vrot.lane.b32.xlu0 %v5275, 20
  %v6666 = vpop.permute.xlu0 %6665
  %6667 = vrot.lane.b32.xlu0 %v5276, 20
  %v6668 = vpop.permute.xlu0 %6667
  %6669 = vrot.lane.b32.xlu0 %v5277, 20
  %v6670 = vpop.permute.xlu0 %6669
  %6671 = vrot.lane.b32.xlu0 %v5278, 20
  %v6672 = vpop.permute.xlu0 %6671
  %6673 = vrot.lane.b32.xlu0 %v5279, 20
  %v6674 = vpop.permute.xlu0 %6673
  %6675 = vrot.lane.b32.xlu0 %v5280, 20
  %v6676 = vpop.permute.xlu0 %6675
  %6677 = vrot.lane.b32.xlu0 %v5281, 20
  %v6678 = vpop.permute.xlu0 %6677
  %6679 = vrot.lane.b32.xlu0 %v5282, 20
  %v6680 = vpop.permute.xlu0 %6679
  %6681 = vrot.lane.b32.xlu0 %v5283, 20
  %v6682 = vpop.permute.xlu0 %6681
  %6683 = vrot.lane.b32.xlu0 %v5284, 20
  %v6684 = vpop.permute.xlu0 %6683
  %6685 = vrot.lane.b32.xlu0 %v5285, 20
  %v6686 = vpop.permute.xlu0 %6685
  %6687 = vrot.lane.b32.xlu0 %v5286, 20
  %v6688 = vpop.permute.xlu0 %6687
  %6689 = vrot.lane.b32.xlu0 %v5287, 20
  %v6690 = vpop.permute.xlu0 %6689
  %6691 = vrot.lane.b32.xlu0 %v5288, 20
  %v6692 = vpop.permute.xlu0 %6691
  %6693 = vrot.lane.b32.xlu0 %v5289, 20
  %v6694 = vpop.permute.xlu0 %6693
  %6695 = vrot.lane.b32.xlu0 %v5290, 20
  %v6696 = vpop.permute.xlu0 %6695
  %6697 = vrot.lane.b32.xlu0 %v5291, 20
  %v6698 = vpop.permute.xlu0 %6697
  %6699 = vrot.lane.b32.xlu0 %v5292, 20
  %v6700 = vpop.permute.xlu0 %6699
  %6701 = vrot.lane.b32.xlu0 %v5293, 20
  %v6702 = vpop.permute.xlu0 %6701
  %6831 = vrot.lane.b32.xlu0 %v5295, 24
  %v6832 = vpop.permute.xlu0 %6831
  %6833 = vrot.lane.b32.xlu0 %v5296, 24
  %v6834 = vpop.permute.xlu0 %6833
  %6835 = vrot.lane.b32.xlu0 %v5297, 24
  %v6836 = vpop.permute.xlu0 %6835
  %6837 = vrot.lane.b32.xlu0 %v5298, 24
  %v6838 = vpop.permute.xlu0 %6837
  %6839 = vrot.lane.b32.xlu0 %v5299, 24
  %v6840 = vpop.permute.xlu0 %6839
  %6841 = vrot.lane.b32.xlu0 %v5300, 24
  %v6842 = vpop.permute.xlu0 %6841
  %6843 = vrot.lane.b32.xlu0 %v5301, 24
  %v6844 = vpop.permute.xlu0 %6843
  %6845 = vrot.lane.b32.xlu0 %v5302, 24
  %v6846 = vpop.permute.xlu0 %6845
  %6847 = vrot.lane.b32.xlu0 %v5303, 24
  %v6848 = vpop.permute.xlu0 %6847
  %6849 = vrot.lane.b32.xlu0 %v5304, 24
  %v6850 = vpop.permute.xlu0 %6849
  %6851 = vrot.lane.b32.xlu0 %v5305, 24
  %v6852 = vpop.permute.xlu0 %6851
  %6853 = vrot.lane.b32.xlu0 %v5306, 24
  %v6854 = vpop.permute.xlu0 %6853
  %6855 = vrot.lane.b32.xlu0 %v5307, 24
  %v6856 = vpop.permute.xlu0 %6855
  %6857 = vrot.lane.b32.xlu0 %v5308, 24
  %v6858 = vpop.permute.xlu0 %6857
  %6859 = vrot.lane.b32.xlu0 %v5309, 24
  %v6860 = vpop.permute.xlu0 %6859
  %6861 = vrot.lane.b32.xlu0 %v5310, 24
  %v6862 = vpop.permute.xlu0 %6861
  %6863 = vrot.lane.b32.xlu0 %v5311, 24
  %v6864 = vpop.permute.xlu0 %6863
  %6865 = vrot.lane.b32.xlu0 %v5312, 24
  %v6866 = vpop.permute.xlu0 %6865
  %6867 = vrot.lane.b32.xlu0 %v5313, 24
  %v6868 = vpop.permute.xlu0 %6867
  %6869 = vrot.lane.b32.xlu0 %v5314, 24
  %v6870 = vpop.permute.xlu0 %6869
  %6871 = vrot.lane.b32.xlu0 %v5315, 24
  %v6872 = vpop.permute.xlu0 %6871
  %6873 = vrot.lane.b32.xlu0 %v5316, 24
  %v6874 = vpop.permute.xlu0 %6873
  %6875 = vrot.lane.b32.xlu0 %v5317, 24
  %v6876 = vpop.permute.xlu0 %6875
  %6877 = vrot.lane.b32.xlu0 %v5318, 24
  %v6878 = vpop.permute.xlu0 %6877
  %6879 = vrot.lane.b32.xlu0 %v5319, 24
  %v6880 = vpop.permute.xlu0 %6879
  %6881 = vrot.lane.b32.xlu0 %v5320, 24
  %v6882 = vpop.permute.xlu0 %6881
  %6883 = vrot.lane.b32.xlu0 %v5321, 24
  %v6884 = vpop.permute.xlu0 %6883
  %6885 = vrot.lane.b32.xlu0 %v5322, 24
  %v6886 = vpop.permute.xlu0 %6885
  %6887 = vrot.lane.b32.xlu0 %v5323, 24
  %v6888 = vpop.permute.xlu0 %6887
  %6889 = vrot.lane.b32.xlu0 %v5324, 24
  %v6890 = vpop.permute.xlu0 %6889
  %6891 = vrot.lane.b32.xlu0 %v5325, 24
  %v6892 = vpop.permute.xlu0 %6891
  %6893 = vrot.lane.b32.xlu0 %v5326, 24
  %v6894 = vpop.permute.xlu0 %6893
  %6895 = vrot.lane.b32.xlu0 %v5327, 24
  %v6896 = vpop.permute.xlu0 %6895
  %6897 = vrot.lane.b32.xlu0 %v5328, 24
  %v6898 = vpop.permute.xlu0 %6897
  %6899 = vrot.lane.b32.xlu0 %v5329, 24
  %v6900 = vpop.permute.xlu0 %6899
  %6901 = vrot.lane.b32.xlu0 %v5330, 24
  %v6902 = vpop.permute.xlu0 %6901
  %6903 = vrot.lane.b32.xlu0 %v5331, 24
  %v6904 = vpop.permute.xlu0 %6903
  %6905 = vrot.lane.b32.xlu0 %v5332, 24
  %v6906 = vpop.permute.xlu0 %6905
  %6907 = vrot.lane.b32.xlu0 %v5333, 24
  %v6908 = vpop.permute.xlu0 %6907
  %6909 = vrot.lane.b32.xlu0 %v5334, 24
  %v6910 = vpop.permute.xlu0 %6909
  %6911 = vrot.lane.b32.xlu0 %v5335, 24
  %v6912 = vpop.permute.xlu0 %6911
  %6913 = vrot.lane.b32.xlu0 %v5336, 24
  %v6914 = vpop.permute.xlu0 %6913
  %6915 = vrot.lane.b32.xlu0 %v5337, 24
  %v6916 = vpop.permute.xlu0 %6915
  %6917 = vrot.lane.b32.xlu0 %v5338, 24
  %v6918 = vpop.permute.xlu0 %6917
  %6919 = vrot.lane.b32.xlu0 %v5339, 24
  %v6920 = vpop.permute.xlu0 %6919
  %6921 = vrot.lane.b32.xlu0 %v5340, 24
  %v6922 = vpop.permute.xlu0 %6921
  %6923 = vrot.lane.b32.xlu0 %v5341, 24
  %v6924 = vpop.permute.xlu0 %6923
  %6925 = vrot.lane.b32.xlu0 %v5342, 24
  %v6926 = vpop.permute.xlu0 %6925
  %6927 = vrot.lane.b32.xlu0 %v5343, 24
  %v6928 = vpop.permute.xlu0 %6927
  %6929 = vrot.lane.b32.xlu0 %v5344, 24
  %v6930 = vpop.permute.xlu0 %6929
  %6931 = vrot.lane.b32.xlu0 %v5345, 24
  %v6932 = vpop.permute.xlu0 %6931
  %6933 = vrot.lane.b32.xlu0 %v5346, 24
  %v6934 = vpop.permute.xlu0 %6933
  %6935 = vrot.lane.b32.xlu0 %v5347, 24
  %v6936 = vpop.permute.xlu0 %6935
  %6937 = vrot.lane.b32.xlu0 %v5348, 24
  %v6938 = vpop.permute.xlu0 %6937
  %6939 = vrot.lane.b32.xlu0 %v5349, 24
  %v6940 = vpop.permute.xlu0 %6939
  %6941 = vrot.lane.b32.xlu0 %v5350, 24
  %v6942 = vpop.permute.xlu0 %6941
  %6943 = vrot.lane.b32.xlu0 %v5351, 24
  %v6944 = vpop.permute.xlu0 %6943
  %6945 = vrot.lane.b32.xlu0 %v5352, 24
  %v6946 = vpop.permute.xlu0 %6945
  %6947 = vrot.lane.b32.xlu0 %v5353, 24
  %v6948 = vpop.permute.xlu0 %6947
  %6949 = vrot.lane.b32.xlu0 %v5354, 24
  %v6950 = vpop.permute.xlu0 %6949
  %6951 = vrot.lane.b32.xlu0 %v5355, 24
  %v6952 = vpop.permute.xlu0 %6951
  %6953 = vrot.lane.b32.xlu0 %v5356, 24
  %v6954 = vpop.permute.xlu0 %6953
  %6955 = vrot.lane.b32.xlu0 %v5357, 24
  %v6956 = vpop.permute.xlu0 %6955
  %6957 = vrot.lane.b32.xlu0 %v5358, 24
  %v6958 = vpop.permute.xlu0 %6957
  %7087 = vrot.lane.b32.xlu0 %v5359, 28
  %v7088 = vpop.permute.xlu0 %7087
  %7089 = vrot.lane.b32.xlu0 %v5360, 28
  %v7090 = vpop.permute.xlu0 %7089
  %7091 = vrot.lane.b32.xlu0 %v5361, 28
  %v7092 = vpop.permute.xlu0 %7091
  %7093 = vrot.lane.b32.xlu0 %v5362, 28
  %v7094 = vpop.permute.xlu0 %7093
  %7095 = vrot.lane.b32.xlu0 %v5363, 28
  %v7096 = vpop.permute.xlu0 %7095
  %7097 = vrot.lane.b32.xlu0 %v5364, 28
  %v7098 = vpop.permute.xlu0 %7097
  %7099 = vrot.lane.b32.xlu0 %v5365, 28
  %v7100 = vpop.permute.xlu0 %7099
  %7101 = vrot.lane.b32.xlu0 %v5366, 28
  %v7102 = vpop.permute.xlu0 %7101
  %7103 = vrot.lane.b32.xlu0 %v5367, 28
  %v7104 = vpop.permute.xlu0 %7103
  %7105 = vrot.lane.b32.xlu0 %v5368, 28
  %v7106 = vpop.permute.xlu0 %7105
  %7107 = vrot.lane.b32.xlu0 %v5369, 28
  %v7108 = vpop.permute.xlu0 %7107
  %7109 = vrot.lane.b32.xlu0 %v5370, 28
  %v7110 = vpop.permute.xlu0 %7109
  %7111 = vrot.lane.b32.xlu0 %v5371, 28
  %v7112 = vpop.permute.xlu0 %7111
  %7113 = vrot.lane.b32.xlu0 %v5372, 28
  %v7114 = vpop.permute.xlu0 %7113
  %7115 = vrot.lane.b32.xlu0 %v5373, 28
  %v7116 = vpop.permute.xlu0 %7115
  %7117 = vrot.lane.b32.xlu0 %v5374, 28
  %v7118 = vpop.permute.xlu0 %7117
  %7119 = vrot.lane.b32.xlu0 %v5375, 28
  %v7120 = vpop.permute.xlu0 %7119
  %7121 = vrot.lane.b32.xlu0 %v5376, 28
  %v7122 = vpop.permute.xlu0 %7121
  %7123 = vrot.lane.b32.xlu0 %v5377, 28
  %v7124 = vpop.permute.xlu0 %7123
  %7125 = vrot.lane.b32.xlu0 %v5378, 28
  %v7126 = vpop.permute.xlu0 %7125
  %7127 = vrot.lane.b32.xlu0 %v5379, 28
  %v7128 = vpop.permute.xlu0 %7127
  %7129 = vrot.lane.b32.xlu0 %v5380, 28
  %v7130 = vpop.permute.xlu0 %7129
  %7131 = vrot.lane.b32.xlu0 %v5381, 28
  %v7132 = vpop.permute.xlu0 %7131
  %7133 = vrot.lane.b32.xlu0 %v5382, 28
  %v7134 = vpop.permute.xlu0 %7133
  %7135 = vrot.lane.b32.xlu0 %v5383, 28
  %v7136 = vpop.permute.xlu0 %7135
  %7137 = vrot.lane.b32.xlu0 %v5384, 28
  %v7138 = vpop.permute.xlu0 %7137
  %7139 = vrot.lane.b32.xlu0 %v5385, 28
  %v7140 = vpop.permute.xlu0 %7139
  %7141 = vrot.lane.b32.xlu0 %v5386, 28
  %v7142 = vpop.permute.xlu0 %7141
  %7143 = vrot.lane.b32.xlu0 %v5387, 28
  %v7144 = vpop.permute.xlu0 %7143
  %7145 = vrot.lane.b32.xlu0 %v5388, 28
  %v7146 = vpop.permute.xlu0 %7145
  %7147 = vrot.lane.b32.xlu0 %v5389, 28
  %v7148 = vpop.permute.xlu0 %7147
  %7149 = vrot.lane.b32.xlu0 %v5390, 28
  %v7150 = vpop.permute.xlu0 %7149
  %7151 = vrot.lane.b32.xlu0 %v5391, 28
  %v7152 = vpop.permute.xlu0 %7151
  %7153 = vrot.lane.b32.xlu0 %v5392, 28
  %v7154 = vpop.permute.xlu0 %7153
  %7155 = vrot.lane.b32.xlu0 %v5393, 28
  %v7156 = vpop.permute.xlu0 %7155
  %7157 = vrot.lane.b32.xlu0 %v5394, 28
  %v7158 = vpop.permute.xlu0 %7157
  %7159 = vrot.lane.b32.xlu0 %v5395, 28
  %v7160 = vpop.permute.xlu0 %7159
  %7161 = vrot.lane.b32.xlu0 %v5396, 28
  %v7162 = vpop.permute.xlu0 %7161
  %7163 = vrot.lane.b32.xlu0 %v5397, 28
  %v7164 = vpop.permute.xlu0 %7163
  %7165 = vrot.lane.b32.xlu0 %v5398, 28
  %v7166 = vpop.permute.xlu0 %7165
  %7167 = vrot.lane.b32.xlu0 %v5399, 28
  %v7168 = vpop.permute.xlu0 %7167
  %7169 = vrot.lane.b32.xlu0 %v5400, 28
  %v7170 = vpop.permute.xlu0 %7169
  %7171 = vrot.lane.b32.xlu0 %v5401, 28
  %v7172 = vpop.permute.xlu0 %7171
  %7173 = vrot.lane.b32.xlu0 %v5402, 28
  %v7174 = vpop.permute.xlu0 %7173
  %7175 = vrot.lane.b32.xlu0 %v5403, 28
  %v7176 = vpop.permute.xlu0 %7175
  %7177 = vrot.lane.b32.xlu0 %v5404, 28
  %v7178 = vpop.permute.xlu0 %7177
  %7179 = vrot.lane.b32.xlu0 %v5405, 28
  %v7180 = vpop.permute.xlu0 %7179
  %7181 = vrot.lane.b32.xlu0 %v5406, 28
  %v7182 = vpop.permute.xlu0 %7181
  %7183 = vrot.lane.b32.xlu0 %v5407, 28
  %v7184 = vpop.permute.xlu0 %7183
  %7185 = vrot.lane.b32.xlu0 %v5408, 28
  %v7186 = vpop.permute.xlu0 %7185
  %7187 = vrot.lane.b32.xlu0 %v5409, 28
  %v7188 = vpop.permute.xlu0 %7187
  %7189 = vrot.lane.b32.xlu0 %v5410, 28
  %v7190 = vpop.permute.xlu0 %7189
  %7191 = vrot.lane.b32.xlu0 %v5411, 28
  %v7192 = vpop.permute.xlu0 %7191
  %7193 = vrot.lane.b32.xlu0 %v5412, 28
  %v7194 = vpop.permute.xlu0 %7193
  %7195 = vrot.lane.b32.xlu0 %v5413, 28
  %v7196 = vpop.permute.xlu0 %7195
  %7197 = vrot.lane.b32.xlu0 %v5414, 28
  %v7198 = vpop.permute.xlu0 %7197
  %7199 = vrot.lane.b32.xlu0 %v5415, 28
  %v7200 = vpop.permute.xlu0 %7199
  %7201 = vrot.lane.b32.xlu0 %v5416, 28
  %v7202 = vpop.permute.xlu0 %7201
  %7203 = vrot.lane.b32.xlu0 %v5417, 28
  %v7204 = vpop.permute.xlu0 %7203
  %7205 = vrot.lane.b32.xlu0 %v5418, 28
  %v7206 = vpop.permute.xlu0 %7205
  %7207 = vrot.lane.b32.xlu0 %v5419, 28
  %v7208 = vpop.permute.xlu0 %7207
  %7209 = vrot.lane.b32.xlu0 %v5420, 28
  %v7210 = vpop.permute.xlu0 %7209
  %7211 = vrot.lane.b32.xlu0 %v5421, 28
  %v7212 = vpop.permute.xlu0 %7211
  %7213 = vrot.lane.b32.xlu0 %v5422, 28
  %v7214 = vpop.permute.xlu0 %7213
  %7343 = vrot.lane.b32.xlu0 %v5423, 32
  %v7344 = vpop.permute.xlu0 %7343
  %7345 = vrot.lane.b32.xlu0 %v5424, 32
  %v7346 = vpop.permute.xlu0 %7345
  %7347 = vrot.lane.b32.xlu0 %v5425, 32
  %v7348 = vpop.permute.xlu0 %7347
  %7349 = vrot.lane.b32.xlu0 %v5426, 32
  %v7350 = vpop.permute.xlu0 %7349
  %7351 = vrot.lane.b32.xlu0 %v5427, 32
  %v7352 = vpop.permute.xlu0 %7351
  %7353 = vrot.lane.b32.xlu0 %v5428, 32
  %v7354 = vpop.permute.xlu0 %7353
  %7355 = vrot.lane.b32.xlu0 %v5429, 32
  %v7356 = vpop.permute.xlu0 %7355
  %7357 = vrot.lane.b32.xlu0 %v5430, 32
  %v7358 = vpop.permute.xlu0 %7357
  %7359 = vrot.lane.b32.xlu0 %v5431, 32
  %v7360 = vpop.permute.xlu0 %7359
  %7361 = vrot.lane.b32.xlu0 %v5432, 32
  %v7362 = vpop.permute.xlu0 %7361
  %7363 = vrot.lane.b32.xlu0 %v5433, 32
  %v7364 = vpop.permute.xlu0 %7363
  %7365 = vrot.lane.b32.xlu0 %v5434, 32
  %v7366 = vpop.permute.xlu0 %7365
  %7367 = vrot.lane.b32.xlu0 %v5435, 32
  %v7368 = vpop.permute.xlu0 %7367
  %7369 = vrot.lane.b32.xlu0 %v5436, 32
  %v7370 = vpop.permute.xlu0 %7369
  %7371 = vrot.lane.b32.xlu0 %v5437, 32
  %v7372 = vpop.permute.xlu0 %7371
  %7373 = vrot.lane.b32.xlu0 %v5438, 32
  %v7374 = vpop.permute.xlu0 %7373
  %7375 = vrot.lane.b32.xlu0 %v5439, 32
  %v7376 = vpop.permute.xlu0 %7375
  %7377 = vrot.lane.b32.xlu0 %v5440, 32
  %v7378 = vpop.permute.xlu0 %7377
  %7379 = vrot.lane.b32.xlu0 %v5441, 32
  %v7380 = vpop.permute.xlu0 %7379
  %7381 = vrot.lane.b32.xlu0 %v5442, 32
  %v7382 = vpop.permute.xlu0 %7381
  %7383 = vrot.lane.b32.xlu0 %v5443, 32
  %v7384 = vpop.permute.xlu0 %7383
  %7385 = vrot.lane.b32.xlu0 %v5444, 32
  %v7386 = vpop.permute.xlu0 %7385
  %7387 = vrot.lane.b32.xlu0 %v5445, 32
  %v7388 = vpop.permute.xlu0 %7387
  %7389 = vrot.lane.b32.xlu0 %v5446, 32
  %v7390 = vpop.permute.xlu0 %7389
  %7391 = vrot.lane.b32.xlu0 %v5447, 32
  %v7392 = vpop.permute.xlu0 %7391
  %7393 = vrot.lane.b32.xlu0 %v5448, 32
  %v7394 = vpop.permute.xlu0 %7393
  %7395 = vrot.lane.b32.xlu0 %v5449, 32
  %v7396 = vpop.permute.xlu0 %7395
  %7397 = vrot.lane.b32.xlu0 %v5450, 32
  %v7398 = vpop.permute.xlu0 %7397
  %7399 = vrot.lane.b32.xlu0 %v5451, 32
  %v7400 = vpop.permute.xlu0 %7399
  %7401 = vrot.lane.b32.xlu0 %v5452, 32
  %v7402 = vpop.permute.xlu0 %7401
  %7403 = vrot.lane.b32.xlu0 %v5453, 32
  %v7404 = vpop.permute.xlu0 %7403
  %7405 = vrot.lane.b32.xlu0 %v5454, 32
  %v7406 = vpop.permute.xlu0 %7405
  %7407 = vrot.lane.b32.xlu0 %v5455, 32
  %v7408 = vpop.permute.xlu0 %7407
  %7409 = vrot.lane.b32.xlu0 %v5456, 32
  %v7410 = vpop.permute.xlu0 %7409
  %7411 = vrot.lane.b32.xlu0 %v5457, 32
  %v7412 = vpop.permute.xlu0 %7411
  %7413 = vrot.lane.b32.xlu0 %v5458, 32
  %v7414 = vpop.permute.xlu0 %7413
  %7415 = vrot.lane.b32.xlu0 %v5459, 32
  %v7416 = vpop.permute.xlu0 %7415
  %7417 = vrot.lane.b32.xlu0 %v5460, 32
  %v7418 = vpop.permute.xlu0 %7417
  %7419 = vrot.lane.b32.xlu0 %v5461, 32
  %v7420 = vpop.permute.xlu0 %7419
  %7421 = vrot.lane.b32.xlu0 %v5462, 32
  %v7422 = vpop.permute.xlu0 %7421
  %7423 = vrot.lane.b32.xlu0 %v5463, 32
  %v7424 = vpop.permute.xlu0 %7423
  %7425 = vrot.lane.b32.xlu0 %v5464, 32
  %v7426 = vpop.permute.xlu0 %7425
  %7427 = vrot.lane.b32.xlu0 %v5465, 32
  %v7428 = vpop.permute.xlu0 %7427
  %7429 = vrot.lane.b32.xlu0 %v5466, 32
  %v7430 = vpop.permute.xlu0 %7429
  %7431 = vrot.lane.b32.xlu0 %v5467, 32
  %v7432 = vpop.permute.xlu0 %7431
  %7433 = vrot.lane.b32.xlu0 %v5468, 32
  %v7434 = vpop.permute.xlu0 %7433
  %7435 = vrot.lane.b32.xlu0 %v5469, 32
  %v7436 = vpop.permute.xlu0 %7435
  %7437 = vrot.lane.b32.xlu0 %v5470, 32
  %v7438 = vpop.permute.xlu0 %7437
  %7439 = vrot.lane.b32.xlu0 %v5471, 32
  %v7440 = vpop.permute.xlu0 %7439
  %7441 = vrot.lane.b32.xlu0 %v5472, 32
  %v7442 = vpop.permute.xlu0 %7441
  %7443 = vrot.lane.b32.xlu0 %v5473, 32
  %v7444 = vpop.permute.xlu0 %7443
  %7445 = vrot.lane.b32.xlu0 %v5474, 32
  %v7446 = vpop.permute.xlu0 %7445
  %7447 = vrot.lane.b32.xlu0 %v5475, 32
  %v7448 = vpop.permute.xlu0 %7447
  %7449 = vrot.lane.b32.xlu0 %v5476, 32
  %v7450 = vpop.permute.xlu0 %7449
  %7451 = vrot.lane.b32.xlu0 %v5477, 32
  %v7452 = vpop.permute.xlu0 %7451
  %7453 = vrot.lane.b32.xlu0 %v5478, 32
  %v7454 = vpop.permute.xlu0 %7453
  %7455 = vrot.lane.b32.xlu0 %v5479, 32
  %v7456 = vpop.permute.xlu0 %7455
  %7457 = vrot.lane.b32.xlu0 %v5480, 32
  %v7458 = vpop.permute.xlu0 %7457
  %7459 = vrot.lane.b32.xlu0 %v5481, 32
  %v7460 = vpop.permute.xlu0 %7459
  %7461 = vrot.lane.b32.xlu0 %v5482, 32
  %v7462 = vpop.permute.xlu0 %7461
  %7463 = vrot.lane.b32.xlu0 %v5483, 32
  %v7464 = vpop.permute.xlu0 %7463
  %7465 = vrot.lane.b32.xlu0 %v5484, 32
  %v7466 = vpop.permute.xlu0 %7465
  %7467 = vrot.lane.b32.xlu0 %v5485, 32
  %v7468 = vpop.permute.xlu0 %7467
  %7469 = vrot.lane.b32.xlu0 %v5486, 32
  %v7470 = vpop.permute.xlu0 %7469
  %v7535 = vsel %vm26, %v4910, %v5552
  %v7536 = vsel %vm26, %v4911, %v5554
  %v7537 = vsel %vm26, %v4912, %v5556
  %v7538 = vsel %vm26, %v4913, %v5558
  %v7539 = vsel %vm26, %v4914, %v5560
  %v7540 = vsel %vm26, %v4915, %v5562
  %v7541 = vsel %vm26, %v4916, %v5564
  %v7542 = vsel %vm26, %v4917, %v5566
  %v7543 = vsel %vm26, %v4918, %v5568
  %v7544 = vsel %vm26, %v4919, %v5570
  %v7545 = vsel %vm26, %v4920, %v5572
  %v7546 = vsel %vm26, %v4921, %v5574
  %v7547 = vsel %vm26, %v4922, %v5576
  %v7548 = vsel %vm26, %v4923, %v5578
  %v7549 = vsel %vm26, %v4924, %v5580
  %v7550 = vsel %vm26, %v4925, %v5582
  %v7551 = vsel %vm26, %v4926, %v5584
  %v7552 = vsel %vm26, %v4927, %v5586
  %v7553 = vsel %vm26, %v4928, %v5588
  %v7554 = vsel %vm26, %v4929, %v5590
  %v7555 = vsel %vm26, %v4930, %v5592
  %v7556 = vsel %vm26, %v4931, %v5594
  %v7557 = vsel %vm26, %v4932, %v5596
  %v7558 = vsel %vm26, %v4933, %v5598
  %v7559 = vsel %vm26, %v4934, %v5600
  %v7560 = vsel %vm26, %v4935, %v5602
  %v7561 = vsel %vm26, %v4936, %v5604
  %v7562 = vsel %vm26, %v4937, %v5606
  %v7563 = vsel %vm26, %v4938, %v5608
  %v7564 = vsel %vm26, %v4939, %v5610
  %v7565 = vsel %vm26, %v4940, %v5612
  %v7566 = vsel %vm26, %v4941, %v5614
  %v7567 = vsel %vm26, %v4942, %v5616
  %v7568 = vsel %vm26, %v4943, %v5618
  %v7569 = vsel %vm26, %v4944, %v5620
  %v7570 = vsel %vm26, %v4945, %v5622
  %v7571 = vsel %vm26, %v4946, %v5624
  %v7572 = vsel %vm26, %v4947, %v5626
  %v7573 = vsel %vm26, %v4948, %v5628
  %v7574 = vsel %vm26, %v4949, %v5630
  %v7575 = vsel %vm26, %v4950, %v5632
  %v7576 = vsel %vm26, %v4951, %v5634
  %v7577 = vsel %vm26, %v4952, %v5636
  %v7578 = vsel %vm26, %v4953, %v5638
  %v7579 = vsel %vm26, %v4954, %v5640
  %v7580 = vsel %vm26, %v4955, %v5642
  %v7581 = vsel %vm26, %v4956, %v5644
  %v7582 = vsel %vm26, %v4957, %v5646
  %v7583 = vsel %vm26, %v4958, %v5648
  %v7584 = vsel %vm26, %v4959, %v5650
  %v7585 = vsel %vm26, %v4960, %v5652
  %v7586 = vsel %vm26, %v4961, %v5654
  %v7587 = vsel %vm26, %v4962, %v5656
  %v7588 = vsel %vm26, %v4963, %v5658
  %v7589 = vsel %vm26, %v4964, %v5660
  %v7590 = vsel %vm26, %v4965, %v5662
  %v7591 = vsel %vm26, %v4966, %v5664
  %v7592 = vsel %vm26, %v4967, %v5666
  %v7593 = vsel %vm26, %v4968, %v5668
  %v7594 = vsel %vm26, %v4969, %v5670
  %v7595 = vsel %vm26, %v4970, %v5672
  %v7596 = vsel %vm26, %v4971, %v5674
  %v7597 = vsel %vm26, %v4972, %v5676
  %v7598 = vsel %vm26, %v4973, %v5678
  %v7599 = vsel %vm2989, %v7535, %v5808
  %v7600 = vsel %vm2989, %v7536, %v5810
  %v7601 = vsel %vm2989, %v7537, %v5812
  %v7602 = vsel %vm2989, %v7538, %v5814
  %v7603 = vsel %vm2989, %v7539, %v5816
  %v7604 = vsel %vm2989, %v7540, %v5818
  %v7605 = vsel %vm2989, %v7541, %v5820
  %v7606 = vsel %vm2989, %v7542, %v5822
  %v7607 = vsel %vm2989, %v7543, %v5824
  %v7608 = vsel %vm2989, %v7544, %v5826
  %v7609 = vsel %vm2989, %v7545, %v5828
  %v7610 = vsel %vm2989, %v7546, %v5830
  %v7611 = vsel %vm2989, %v7547, %v5832
  %v7612 = vsel %vm2989, %v7548, %v5834
  %v7613 = vsel %vm2989, %v7549, %v5836
  %v7614 = vsel %vm2989, %v7550, %v5838
  %v7615 = vsel %vm2989, %v7551, %v5840
  %v7616 = vsel %vm2989, %v7552, %v5842
  %v7617 = vsel %vm2989, %v7553, %v5844
  %v7618 = vsel %vm2989, %v7554, %v5846
  %v7619 = vsel %vm2989, %v7555, %v5848
  %v7620 = vsel %vm2989, %v7556, %v5850
  %v7621 = vsel %vm2989, %v7557, %v5852
  %v7622 = vsel %vm2989, %v7558, %v5854
  %v7623 = vsel %vm2989, %v7559, %v5856
  %v7624 = vsel %vm2989, %v7560, %v5858
  %v7625 = vsel %vm2989, %v7561, %v5860
  %v7626 = vsel %vm2989, %v7562, %v5862
  %v7627 = vsel %vm2989, %v7563, %v5864
  %v7628 = vsel %vm2989, %v7564, %v5866
  %v7629 = vsel %vm2989, %v7565, %v5868
  %v7630 = vsel %vm2989, %v7566, %v5870
  %v7631 = vsel %vm2989, %v7567, %v5872
  %v7632 = vsel %vm2989, %v7568, %v5874
  %v7633 = vsel %vm2989, %v7569, %v5876
  %v7634 = vsel %vm2989, %v7570, %v5878
  %v7635 = vsel %vm2989, %v7571, %v5880
  %v7636 = vsel %vm2989, %v7572, %v5882
  %v7637 = vsel %vm2989, %v7573, %v5884
  %v7638 = vsel %vm2989, %v7574, %v5886
  %v7639 = vsel %vm2989, %v7575, %v5888
  %v7640 = vsel %vm2989, %v7576, %v5890
  %v7641 = vsel %vm2989, %v7577, %v5892
  %v7642 = vsel %vm2989, %v7578, %v5894
  %v7643 = vsel %vm2989, %v7579, %v5896
  %v7644 = vsel %vm2989, %v7580, %v5898
  %v7645 = vsel %vm2989, %v7581, %v5900
  %v7646 = vsel %vm2989, %v7582, %v5902
  %v7647 = vsel %vm2989, %v7583, %v5904
  %v7648 = vsel %vm2989, %v7584, %v5906
  %v7649 = vsel %vm2989, %v7585, %v5908
  %v7650 = vsel %vm2989, %v7586, %v5910
  %v7651 = vsel %vm2989, %v7587, %v5912
  %v7652 = vsel %vm2989, %v7588, %v5914
  %v7653 = vsel %vm2989, %v7589, %v5916
  %v7654 = vsel %vm2989, %v7590, %v5918
  %v7655 = vsel %vm2989, %v7591, %v5920
  %v7656 = vsel %vm2989, %v7592, %v5922
  %v7657 = vsel %vm2989, %v7593, %v5924
  %v7658 = vsel %vm2989, %v7594, %v5926
  %v7659 = vsel %vm2989, %v7595, %v5928
  %v7660 = vsel %vm2989, %v7596, %v5930
  %v7661 = vsel %vm2989, %v7597, %v5932
  %v7662 = vsel %vm2989, %v7598, %v5934
  %v7663 = vsel %vm3054, %v7599, %v6064
  %v7664 = vsel %vm3054, %v7600, %v6066
  %v7665 = vsel %vm3054, %v7601, %v6068
  %v7666 = vsel %vm3054, %v7602, %v6070
  %v7667 = vsel %vm3054, %v7603, %v6072
  %v7668 = vsel %vm3054, %v7604, %v6074
  %v7669 = vsel %vm3054, %v7605, %v6076
  %v7670 = vsel %vm3054, %v7606, %v6078
  %v7671 = vsel %vm3054, %v7607, %v6080
  %v7672 = vsel %vm3054, %v7608, %v6082
  %v7673 = vsel %vm3054, %v7609, %v6084
  %v7674 = vsel %vm3054, %v7610, %v6086
  %v7675 = vsel %vm3054, %v7611, %v6088
  %v7676 = vsel %vm3054, %v7612, %v6090
  %v7677 = vsel %vm3054, %v7613, %v6092
  %v7678 = vsel %vm3054, %v7614, %v6094
  %v7679 = vsel %vm3054, %v7615, %v6096
  %v7680 = vsel %vm3054, %v7616, %v6098
  %v7681 = vsel %vm3054, %v7617, %v6100
  %v7682 = vsel %vm3054, %v7618, %v6102
  %v7683 = vsel %vm3054, %v7619, %v6104
  %v7684 = vsel %vm3054, %v7620, %v6106
  %v7685 = vsel %vm3054, %v7621, %v6108
  %v7686 = vsel %vm3054, %v7622, %v6110
  %v7687 = vsel %vm3054, %v7623, %v6112
  %v7688 = vsel %vm3054, %v7624, %v6114
  %v7689 = vsel %vm3054, %v7625, %v6116
  %v7690 = vsel %vm3054, %v7626, %v6118
  %v7691 = vsel %vm3054, %v7627, %v6120
  %v7692 = vsel %vm3054, %v7628, %v6122
  %v7693 = vsel %vm3054, %v7629, %v6124
  %v7694 = vsel %vm3054, %v7630, %v6126
  %v7695 = vsel %vm3054, %v7631, %v6128
  %v7696 = vsel %vm3054, %v7632, %v6130
  %v7697 = vsel %vm3054, %v7633, %v6132
  %v7698 = vsel %vm3054, %v7634, %v6134
  %v7699 = vsel %vm3054, %v7635, %v6136
  %v7700 = vsel %vm3054, %v7636, %v6138
  %v7701 = vsel %vm3054, %v7637, %v6140
  %v7702 = vsel %vm3054, %v7638, %v6142
  %v7703 = vsel %vm3054, %v7639, %v6144
  %v7704 = vsel %vm3054, %v7640, %v6146
  %v7705 = vsel %vm3054, %v7641, %v6148
  %v7706 = vsel %vm3054, %v7642, %v6150
  %v7707 = vsel %vm3054, %v7643, %v6152
  %v7708 = vsel %vm3054, %v7644, %v6154
  %v7709 = vsel %vm3054, %v7645, %v6156
  %v7710 = vsel %vm3054, %v7646, %v6158
  %v7711 = vsel %vm3054, %v7647, %v6160
  %v7712 = vsel %vm3054, %v7648, %v6162
  %v7713 = vsel %vm3054, %v7649, %v6164
  %v7714 = vsel %vm3054, %v7650, %v6166
  %v7715 = vsel %vm3054, %v7651, %v6168
  %v7716 = vsel %vm3054, %v7652, %v6170
  %v7717 = vsel %vm3054, %v7653, %v6172
  %v7718 = vsel %vm3054, %v7654, %v6174
  %v7719 = vsel %vm3054, %v7655, %v6176
  %v7720 = vsel %vm3054, %v7656, %v6178
  %v7721 = vsel %vm3054, %v7657, %v6180
  %v7722 = vsel %vm3054, %v7658, %v6182
  %v7723 = vsel %vm3054, %v7659, %v6184
  %v7724 = vsel %vm3054, %v7660, %v6186
  %v7725 = vsel %vm3054, %v7661, %v6188
  %v7726 = vsel %vm3054, %v7662, %v6190
  %v7727 = vsel %vm3119, %v7663, %v6320
  %v7728 = vsel %vm3119, %v7664, %v6322
  %v7729 = vsel %vm3119, %v7665, %v6324
  %v7730 = vsel %vm3119, %v7666, %v6326
  %v7731 = vsel %vm3119, %v7667, %v6328
  %v7732 = vsel %vm3119, %v7668, %v6330
  %v7733 = vsel %vm3119, %v7669, %v6332
  %v7734 = vsel %vm3119, %v7670, %v6334
  %v7735 = vsel %vm3119, %v7671, %v6336
  %v7736 = vsel %vm3119, %v7672, %v6338
  %v7737 = vsel %vm3119, %v7673, %v6340
  %v7738 = vsel %vm3119, %v7674, %v6342
  %v7739 = vsel %vm3119, %v7675, %v6344
  %v7740 = vsel %vm3119, %v7676, %v6346
  %v7741 = vsel %vm3119, %v7677, %v6348
  %v7742 = vsel %vm3119, %v7678, %v6350
  %v7743 = vsel %vm3119, %v7679, %v6352
  %v7744 = vsel %vm3119, %v7680, %v6354
  %v7745 = vsel %vm3119, %v7681, %v6356
  %v7746 = vsel %vm3119, %v7682, %v6358
  %v7747 = vsel %vm3119, %v7683, %v6360
  %v7748 = vsel %vm3119, %v7684, %v6362
  %v7749 = vsel %vm3119, %v7685, %v6364
  %v7750 = vsel %vm3119, %v7686, %v6366
  %v7751 = vsel %vm3119, %v7687, %v6368
  %v7752 = vsel %vm3119, %v7688, %v6370
  %v7753 = vsel %vm3119, %v7689, %v6372
  %v7754 = vsel %vm3119, %v7690, %v6374
  %v7755 = vsel %vm3119, %v7691, %v6376
  %v7756 = vsel %vm3119, %v7692, %v6378
  %v7757 = vsel %vm3119, %v7693, %v6380
  %v7758 = vsel %vm3119, %v7694, %v6382
  %v7759 = vsel %vm3119, %v7695, %v6384
  %v7760 = vsel %vm3119, %v7696, %v6386
  %v7761 = vsel %vm3119, %v7697, %v6388
  %v7762 = vsel %vm3119, %v7698, %v6390
  %v7763 = vsel %vm3119, %v7699, %v6392
  %v7764 = vsel %vm3119, %v7700, %v6394
  %v7765 = vsel %vm3119, %v7701, %v6396
  %v7766 = vsel %vm3119, %v7702, %v6398
  %v7767 = vsel %vm3119, %v7703, %v6400
  %v7768 = vsel %vm3119, %v7704, %v6402
  %v7769 = vsel %vm3119, %v7705, %v6404
  %v7770 = vsel %vm3119, %v7706, %v6406
  %v7771 = vsel %vm3119, %v7707, %v6408
  %v7772 = vsel %vm3119, %v7708, %v6410
  %v7773 = vsel %vm3119, %v7709, %v6412
  %v7774 = vsel %vm3119, %v7710, %v6414
  %v7775 = vsel %vm3119, %v7711, %v6416
  %v7776 = vsel %vm3119, %v7712, %v6418
  %v7777 = vsel %vm3119, %v7713, %v6420
  %v7778 = vsel %vm3119, %v7714, %v6422
  %v7779 = vsel %vm3119, %v7715, %v6424
  %v7780 = vsel %vm3119, %v7716, %v6426
  %v7781 = vsel %vm3119, %v7717, %v6428
  %v7782 = vsel %vm3119, %v7718, %v6430
  %v7783 = vsel %vm3119, %v7719, %v6432
  %v7784 = vsel %vm3119, %v7720, %v6434
  %v7785 = vsel %vm3119, %v7721, %v6436
  %v7786 = vsel %vm3119, %v7722, %v6438
  %v7787 = vsel %vm3119, %v7723, %v6440
  %v7788 = vsel %vm3119, %v7724, %v6442
  %v7789 = vsel %vm3119, %v7725, %v6444
  %v7790 = vsel %vm3119, %v7726, %v6446
  %v7791 = vsel %vm3184, %v7727, %v6576
  %v7792 = vsel %vm3184, %v7728, %v6578
  %v7793 = vsel %vm3184, %v7729, %v6580
  %v7794 = vsel %vm3184, %v7730, %v6582
  %v7795 = vsel %vm3184, %v7731, %v6584
  %v7796 = vsel %vm3184, %v7732, %v6586
  %v7797 = vsel %vm3184, %v7733, %v6588
  %v7798 = vsel %vm3184, %v7734, %v6590
  %v7799 = vsel %vm3184, %v7735, %v6592
  %v7800 = vsel %vm3184, %v7736, %v6594
  %v7801 = vsel %vm3184, %v7737, %v6596
  %v7802 = vsel %vm3184, %v7738, %v6598
  %v7803 = vsel %vm3184, %v7739, %v6600
  %v7804 = vsel %vm3184, %v7740, %v6602
  %v7805 = vsel %vm3184, %v7741, %v6604
  %v7806 = vsel %vm3184, %v7742, %v6606
  %v7807 = vsel %vm3184, %v7743, %v6608
  %v7808 = vsel %vm3184, %v7744, %v6610
  %v7809 = vsel %vm3184, %v7745, %v6612
  %v7810 = vsel %vm3184, %v7746, %v6614
  %v7811 = vsel %vm3184, %v7747, %v6616
  %v7812 = vsel %vm3184, %v7748, %v6618
  %v7813 = vsel %vm3184, %v7749, %v6620
  %v7814 = vsel %vm3184, %v7750, %v6622
  %v7815 = vsel %vm3184, %v7751, %v6624
  %v7816 = vsel %vm3184, %v7752, %v6626
  %v7817 = vsel %vm3184, %v7753, %v6628
  %v7818 = vsel %vm3184, %v7754, %v6630
  %v7819 = vsel %vm3184, %v7755, %v6632
  %v7820 = vsel %vm3184, %v7756, %v6634
  %v7821 = vsel %vm3184, %v7757, %v6636
  %v7822 = vsel %vm3184, %v7758, %v6638
  %v7823 = vsel %vm3184, %v7759, %v6640
  %v7824 = vsel %vm3184, %v7760, %v6642
  %v7825 = vsel %vm3184, %v7761, %v6644
  %v7826 = vsel %vm3184, %v7762, %v6646
  %v7827 = vsel %vm3184, %v7763, %v6648
  %v7828 = vsel %vm3184, %v7764, %v6650
  %v7829 = vsel %vm3184, %v7765, %v6652
  %v7830 = vsel %vm3184, %v7766, %v6654
  %v7831 = vsel %vm3184, %v7767, %v6656
  %v7832 = vsel %vm3184, %v7768, %v6658
  %v7833 = vsel %vm3184, %v7769, %v6660
  %v7834 = vsel %vm3184, %v7770, %v6662
  %v7835 = vsel %vm3184, %v7771, %v6664
  %v7836 = vsel %vm3184, %v7772, %v6666
  %v7837 = vsel %vm3184, %v7773, %v6668
  %v7838 = vsel %vm3184, %v7774, %v6670
  %v7839 = vsel %vm3184, %v7775, %v6672
  %v7840 = vsel %vm3184, %v7776, %v6674
  %v7841 = vsel %vm3184, %v7777, %v6676
  %v7842 = vsel %vm3184, %v7778, %v6678
  %v7843 = vsel %vm3184, %v7779, %v6680
  %v7844 = vsel %vm3184, %v7780, %v6682
  %v7845 = vsel %vm3184, %v7781, %v6684
  %v7846 = vsel %vm3184, %v7782, %v6686
  %v7847 = vsel %vm3184, %v7783, %v6688
  %v7848 = vsel %vm3184, %v7784, %v6690
  %v7849 = vsel %vm3184, %v7785, %v6692
  %v7850 = vsel %vm3184, %v7786, %v6694
  %v7851 = vsel %vm3184, %v7787, %v6696
  %v7852 = vsel %vm3184, %v7788, %v6698
  %v7853 = vsel %vm3184, %v7789, %v6700
  %v7854 = vsel %vm3184, %v7790, %v6702
  %v7855 = vsel %vm3249, %v7791, %v6832
  %v7856 = vsel %vm3249, %v7792, %v6834
  %v7857 = vsel %vm3249, %v7793, %v6836
  %v7858 = vsel %vm3249, %v7794, %v6838
  %v7859 = vsel %vm3249, %v7795, %v6840
  %v7860 = vsel %vm3249, %v7796, %v6842
  %v7861 = vsel %vm3249, %v7797, %v6844
  %v7862 = vsel %vm3249, %v7798, %v6846
  %v7863 = vsel %vm3249, %v7799, %v6848
  %v7864 = vsel %vm3249, %v7800, %v6850
  %v7865 = vsel %vm3249, %v7801, %v6852
  %v7866 = vsel %vm3249, %v7802, %v6854
  %v7867 = vsel %vm3249, %v7803, %v6856
  %v7868 = vsel %vm3249, %v7804, %v6858
  %v7869 = vsel %vm3249, %v7805, %v6860
  %v7870 = vsel %vm3249, %v7806, %v6862
  %v7871 = vsel %vm3249, %v7807, %v6864
  %v7872 = vsel %vm3249, %v7808, %v6866
  %v7873 = vsel %vm3249, %v7809, %v6868
  %v7874 = vsel %vm3249, %v7810, %v6870
  %v7875 = vsel %vm3249, %v7811, %v6872
  %v7876 = vsel %vm3249, %v7812, %v6874
  %v7877 = vsel %vm3249, %v7813, %v6876
  %v7878 = vsel %vm3249, %v7814, %v6878
  %v7879 = vsel %vm3249, %v7815, %v6880
  %v7880 = vsel %vm3249, %v7816, %v6882
  %v7881 = vsel %vm3249, %v7817, %v6884
  %v7882 = vsel %vm3249, %v7818, %v6886
  %v7883 = vsel %vm3249, %v7819, %v6888
  %v7884 = vsel %vm3249, %v7820, %v6890
  %v7885 = vsel %vm3249, %v7821, %v6892
  %v7886 = vsel %vm3249, %v7822, %v6894
  %v7887 = vsel %vm3249, %v7823, %v6896
  %v7888 = vsel %vm3249, %v7824, %v6898
  %v7889 = vsel %vm3249, %v7825, %v6900
  %v7890 = vsel %vm3249, %v7826, %v6902
  %v7891 = vsel %vm3249, %v7827, %v6904
  %v7892 = vsel %vm3249, %v7828, %v6906
  %v7893 = vsel %vm3249, %v7829, %v6908
  %v7894 = vsel %vm3249, %v7830, %v6910
  %v7895 = vsel %vm3249, %v7831, %v6912
  %v7896 = vsel %vm3249, %v7832, %v6914
  %v7897 = vsel %vm3249, %v7833, %v6916
  %v7898 = vsel %vm3249, %v7834, %v6918
  %v7899 = vsel %vm3249, %v7835, %v6920
  %v7900 = vsel %vm3249, %v7836, %v6922
  %v7901 = vsel %vm3249, %v7837, %v6924
  %v7902 = vsel %vm3249, %v7838, %v6926
  %v7903 = vsel %vm3249, %v7839, %v6928
  %v7904 = vsel %vm3249, %v7840, %v6930
  %v7905 = vsel %vm3249, %v7841, %v6932
  %v7906 = vsel %vm3249, %v7842, %v6934
  %v7907 = vsel %vm3249, %v7843, %v6936
  %v7908 = vsel %vm3249, %v7844, %v6938
  %v7909 = vsel %vm3249, %v7845, %v6940
  %v7910 = vsel %vm3249, %v7846, %v6942
  %v7911 = vsel %vm3249, %v7847, %v6944
  %v7912 = vsel %vm3249, %v7848, %v6946
  %v7913 = vsel %vm3249, %v7849, %v6948
  %v7914 = vsel %vm3249, %v7850, %v6950
  %v7915 = vsel %vm3249, %v7851, %v6952
  %v7916 = vsel %vm3249, %v7852, %v6954
  %v7917 = vsel %vm3249, %v7853, %v6956
  %v7918 = vsel %vm3249, %v7854, %v6958
  %v7919 = vsel %vm3314, %v7855, %v7088
  %v7920 = vsel %vm3314, %v7856, %v7090
  %v7921 = vsel %vm3314, %v7857, %v7092
  %v7922 = vsel %vm3314, %v7858, %v7094
  %v7923 = vsel %vm3314, %v7859, %v7096
  %v7924 = vsel %vm3314, %v7860, %v7098
  %v7925 = vsel %vm3314, %v7861, %v7100
  %v7926 = vsel %vm3314, %v7862, %v7102
  %v7927 = vsel %vm3314, %v7863, %v7104
  %v7928 = vsel %vm3314, %v7864, %v7106
  %v7929 = vsel %vm3314, %v7865, %v7108
  %v7930 = vsel %vm3314, %v7866, %v7110
  %v7931 = vsel %vm3314, %v7867, %v7112
  %v7932 = vsel %vm3314, %v7868, %v7114
  %v7933 = vsel %vm3314, %v7869, %v7116
  %v7934 = vsel %vm3314, %v7870, %v7118
  %v7935 = vsel %vm3314, %v7871, %v7120
  %v7936 = vsel %vm3314, %v7872, %v7122
  %v7937 = vsel %vm3314, %v7873, %v7124
  %v7938 = vsel %vm3314, %v7874, %v7126
  %v7939 = vsel %vm3314, %v7875, %v7128
  %v7940 = vsel %vm3314, %v7876, %v7130
  %v7941 = vsel %vm3314, %v7877, %v7132
  %v7942 = vsel %vm3314, %v7878, %v7134
  %v7943 = vsel %vm3314, %v7879, %v7136
  %v7944 = vsel %vm3314, %v7880, %v7138
  %v7945 = vsel %vm3314, %v7881, %v7140
  %v7946 = vsel %vm3314, %v7882, %v7142
  %v7947 = vsel %vm3314, %v7883, %v7144
  %v7948 = vsel %vm3314, %v7884, %v7146
  %v7949 = vsel %vm3314, %v7885, %v7148
  %v7950 = vsel %vm3314, %v7886, %v7150
  %v7951 = vsel %vm3314, %v7887, %v7152
  %v7952 = vsel %vm3314, %v7888, %v7154
  %v7953 = vsel %vm3314, %v7889, %v7156
  %v7954 = vsel %vm3314, %v7890, %v7158
  %v7955 = vsel %vm3314, %v7891, %v7160
  %v7956 = vsel %vm3314, %v7892, %v7162
  %v7957 = vsel %vm3314, %v7893, %v7164
  %v7958 = vsel %vm3314, %v7894, %v7166
  %v7959 = vsel %vm3314, %v7895, %v7168
  %v7960 = vsel %vm3314, %v7896, %v7170
  %v7961 = vsel %vm3314, %v7897, %v7172
  %v7962 = vsel %vm3314, %v7898, %v7174
  %v7963 = vsel %vm3314, %v7899, %v7176
  %v7964 = vsel %vm3314, %v7900, %v7178
  %v7965 = vsel %vm3314, %v7901, %v7180
  %v7966 = vsel %vm3314, %v7902, %v7182
  %v7967 = vsel %vm3314, %v7903, %v7184
  %v7968 = vsel %vm3314, %v7904, %v7186
  %v7969 = vsel %vm3314, %v7905, %v7188
  %v7970 = vsel %vm3314, %v7906, %v7190
  %v7971 = vsel %vm3314, %v7907, %v7192
  %v7972 = vsel %vm3314, %v7908, %v7194
  %v7973 = vsel %vm3314, %v7909, %v7196
  %v7974 = vsel %vm3314, %v7910, %v7198
  %v7975 = vsel %vm3314, %v7911, %v7200
  %v7976 = vsel %vm3314, %v7912, %v7202
  %v7977 = vsel %vm3314, %v7913, %v7204
  %v7978 = vsel %vm3314, %v7914, %v7206
  %v7979 = vsel %vm3314, %v7915, %v7208
  %v7980 = vsel %vm3314, %v7916, %v7210
  %v7981 = vsel %vm3314, %v7917, %v7212
  %v7982 = vsel %vm3314, %v7918, %v7214
  %v7983 = vsel %vm3379, %v7919, %v7344
  %v7984 = vsel %vm3379, %v7920, %v7346
  %v7985 = vsel %vm3379, %v7921, %v7348
  %v7986 = vsel %vm3379, %v7922, %v7350
  %v7987 = vsel %vm3379, %v7923, %v7352
  %v7988 = vsel %vm3379, %v7924, %v7354
  %v7989 = vsel %vm3379, %v7925, %v7356
  %v7990 = vsel %vm3379, %v7926, %v7358
  %v7991 = vsel %vm3379, %v7927, %v7360
  %v7992 = vsel %vm3379, %v7928, %v7362
  %v7993 = vsel %vm3379, %v7929, %v7364
  %v7994 = vsel %vm3379, %v7930, %v7366
  %v7995 = vsel %vm3379, %v7931, %v7368
  %v7996 = vsel %vm3379, %v7932, %v7370
  %v7997 = vsel %vm3379, %v7933, %v7372
  %v7998 = vsel %vm3379, %v7934, %v7374
  %v7999 = vsel %vm3379, %v7935, %v7376
  %v8000 = vsel %vm3379, %v7936, %v7378
  %v8001 = vsel %vm3379, %v7937, %v7380
  %v8002 = vsel %vm3379, %v7938, %v7382
  %v8003 = vsel %vm3379, %v7939, %v7384
  %v8004 = vsel %vm3379, %v7940, %v7386
  %v8005 = vsel %vm3379, %v7941, %v7388
  %v8006 = vsel %vm3379, %v7942, %v7390
  %v8007 = vsel %vm3379, %v7943, %v7392
  %v8008 = vsel %vm3379, %v7944, %v7394
  %v8009 = vsel %vm3379, %v7945, %v7396
  %v8010 = vsel %vm3379, %v7946, %v7398
  %v8011 = vsel %vm3379, %v7947, %v7400
  %v8012 = vsel %vm3379, %v7948, %v7402
  %v8013 = vsel %vm3379, %v7949, %v7404
  %v8014 = vsel %vm3379, %v7950, %v7406
  %v8015 = vsel %vm3379, %v7951, %v7408
  %v8016 = vsel %vm3379, %v7952, %v7410
  %v8017 = vsel %vm3379, %v7953, %v7412
  %v8018 = vsel %vm3379, %v7954, %v7414
  %v8019 = vsel %vm3379, %v7955, %v7416
  %v8020 = vsel %vm3379, %v7956, %v7418
  %v8021 = vsel %vm3379, %v7957, %v7420
  %v8022 = vsel %vm3379, %v7958, %v7422
  %v8023 = vsel %vm3379, %v7959, %v7424
  %v8024 = vsel %vm3379, %v7960, %v7426
  %v8025 = vsel %vm3379, %v7961, %v7428
  %v8026 = vsel %vm3379, %v7962, %v7430
  %v8027 = vsel %vm3379, %v7963, %v7432
  %v8028 = vsel %vm3379, %v7964, %v7434
  %v8029 = vsel %vm3379, %v7965, %v7436
  %v8030 = vsel %vm3379, %v7966, %v7438
  %v8031 = vsel %vm3379, %v7967, %v7440
  %v8032 = vsel %vm3379, %v7968, %v7442
  %v8033 = vsel %vm3379, %v7969, %v7444
  %v8034 = vsel %vm3379, %v7970, %v7446
  %v8035 = vsel %vm3379, %v7971, %v7448
  %v8036 = vsel %vm3379, %v7972, %v7450
  %v8037 = vsel %vm3379, %v7973, %v7452
  %v8038 = vsel %vm3379, %v7974, %v7454
  %v8039 = vsel %vm3379, %v7975, %v7456
  %v8040 = vsel %vm3379, %v7976, %v7458
  %v8041 = vsel %vm3379, %v7977, %v7460
  %v8042 = vsel %vm3379, %v7978, %v7462
  %v8043 = vsel %vm3379, %v7979, %v7464
  %v8044 = vsel %vm3379, %v7980, %v7466
  %v8045 = vsel %vm3379, %v7981, %v7468
  %v8046 = vsel %vm3379, %v7982, %v7470
  %v8047 = vld [vmem:[%s4] sm:$0xff]
  %v8048 = vld [vmem:[%s4 + $0x8] sm:$0xff]
  %v8049 = vld [vmem:[%s4 + $0x10] sm:$0xff]
  %v8050 = vld [vmem:[%s4 + $0x18] sm:$0xff]
  %v8051 = vld [vmem:[%s4 + $0x20] sm:$0xf]
  %v8053 = vsel %vm3449, %v7983, 0
  %v8056 = vsel %vm3449, %v7984, 0
  %v8059 = vsel %vm3449, %v7985, 0
  %v8062 = vsel %vm3449, %v7986, 0
  %v8065 = vsel %vm3449, %v7987, 0
  %v8068 = vsel %vm3449, %v7988, 0
  %v8071 = vsel %vm3449, %v7989, 0
  %v8074 = vsel %vm3449, %v7990, 0
  %v8077 = vsel %vm3449, %v7991, 0
  %v8080 = vsel %vm3449, %v7992, 0
  %v8083 = vsel %vm3449, %v7993, 0
  %v8086 = vsel %vm3449, %v7994, 0
  %v8089 = vsel %vm3449, %v7995, 0
  %v8092 = vsel %vm3449, %v7996, 0
  %v8095 = vsel %vm3449, %v7997, 0
  %v8098 = vsel %vm3449, %v7998, 0
  %v8101 = vsel %vm3449, %v7999, 0
  %v8104 = vsel %vm3449, %v8000, 0
  %v8107 = vsel %vm3449, %v8001, 0
  %v8110 = vsel %vm3449, %v8002, 0
  %v8113 = vsel %vm3449, %v8003, 0
  %v8116 = vsel %vm3449, %v8004, 0
  %v8119 = vsel %vm3449, %v8005, 0
  %v8122 = vsel %vm3449, %v8006, 0
  %v8125 = vsel %vm3449, %v8007, 0
  %v8128 = vsel %vm3449, %v8008, 0
  %v8131 = vsel %vm3449, %v8009, 0
  %v8134 = vsel %vm3449, %v8010, 0
  %v8137 = vsel %vm3449, %v8011, 0
  %v8140 = vsel %vm3449, %v8012, 0
  %v8143 = vsel %vm3449, %v8013, 0
  %v8146 = vsel %vm3449, %v8014, 0
  %v8149 = vsel %vm3449, %v8015, 0
  %v8152 = vsel %vm3449, %v8016, 0
  %v8155 = vsel %vm3449, %v8017, 0
  %v8158 = vsel %vm3449, %v8018, 0
  %v8161 = vsel %vm3449, %v8019, 0
  %v8164 = vsel %vm3449, %v8020, 0
  %v8167 = vsel %vm3449, %v8021, 0
  %v8170 = vsel %vm3449, %v8022, 0
  %v8173 = vsel %vm3449, %v8023, 0
  %v8176 = vsel %vm3449, %v8024, 0
  %v8179 = vsel %vm3449, %v8025, 0
  %v8182 = vsel %vm3449, %v8026, 0
  %v8185 = vsel %vm3449, %v8027, 0
  %v8188 = vsel %vm3449, %v8028, 0
  %v8191 = vsel %vm3449, %v8029, 0
  %v8194 = vsel %vm3449, %v8030, 0
  %v8197 = vsel %vm3449, %v8031, 0
  %v8200 = vsel %vm3449, %v8032, 0
  %v8203 = vsel %vm3449, %v8033, 0
  %v8206 = vsel %vm3449, %v8034, 0
  %v8209 = vsel %vm3449, %v8035, 0
  %v8212 = vsel %vm3449, %v8036, 0
  %v8215 = vsel %vm3449, %v8037, 0
  %v8218 = vsel %vm3449, %v8038, 0
  %v8221 = vsel %vm3449, %v8039, 0
  %v8224 = vsel %vm3449, %v8040, 0
  %v8227 = vsel %vm3449, %v8041, 0
  %v8230 = vsel %vm3449, %v8042, 0
  %v8233 = vsel %vm3449, %v8043, 0
  %v8236 = vsel %vm3449, %v8044, 0
  %v8239 = vsel %vm3449, %v8045, 0
  %v8242 = vsel %vm3449, %v8046, 0
  %v8245 = vsel %vm3642, %v8051, 0
  %8247 = vmatprep.subr.mxu0 0.0
  %8248 = vmatpush1.msra.mxu0 %v8047
  %8249 = vmatprep.subr.mxu0 0.0
  %8250 = vmatpush1.msra.mxu0 %v8048
  %8251 = vmatprep.subr.mxu0 0.0
  %8252 = vmatpush1.msra.mxu0 %v8049
  %8253 = vmatprep.subr.mxu0 0.0
  %8254 = vmatpush1.msra.mxu0 %v8050
  %8255 = vmatprep.subr.mxu0 0.0
  %8256 = vmatpush1.msra.mxu0 %v8245
  %8257 = vmatprep.subr.mxu0 0.0
  %8258 = vmatpush1.msra.mxu0 0.0
  %8259 = vmatprep.subr.mxu0 0.0
  %8260 = vmatpush1.msra.mxu0 0.0
  %8261 = vmatprep.subr.mxu0 0.0
  %8262 = vmatpush1.msra.mxu0 0.0
  %8263 = vmatprep.subr.mxu0 0.0
  %8264 = vmatpush1.msra.mxu0 0.0
  %8265 = vmatprep.subr.mxu0 0.0
  %8266 = vmatpush1.msra.mxu0 0.0
  %8267 = vmatprep.subr.mxu0 0.0
  %8268 = vmatpush1.msra.mxu0 0.0
  %8269 = vmatprep.subr.mxu0 0.0
  %8270 = vmatpush1.msra.mxu0 0.0
  %8271 = vmatprep.subr.mxu0 0.0
  %8272 = vmatpush1.msra.mxu0 0.0
  %8273 = vmatprep.subr.mxu0 0.0
  %8274 = vmatpush1.msra.mxu0 0.0
  %8275 = vmatprep.subr.mxu0 0.0
  %8276 = vmatpush1.msra.mxu0 0.0
  %8277 = vmatprep.subr.mxu0 0.0
  %8278 = vmatpush1.msra.mxu0 0.0
  %8279 = vmatprep.subr.mxu0 0.0
  %8280 = vmatpush1.msra.mxu0 0.0
  %8281 = vmatprep.subr.mxu0 0.0
  %8282 = vmatpush1.msra.mxu0 0.0
  %8283 = vmatprep.subr.mxu0 0.0
  %8284 = vmatpush1.msra.mxu0 0.0
  %8285 = vmatprep.subr.mxu0 0.0
  %8286 = vmatpush1.msra.mxu0 0.0
  %8287 = vmatprep.subr.mxu0 0.0
  %8288 = vmatpush1.msra.mxu0 0.0
  %8289 = vmatprep.subr.mxu0 0.0
  %8290 = vmatpush1.msra.mxu0 0.0
  %8291 = vmatprep.subr.mxu0 0.0
  %8292 = vmatpush1.msra.mxu0 0.0
  %8293 = vmatprep.subr.mxu0 0.0
  %8294 = vmatpush1.msra.mxu0 0.0
  %8295 = vmatprep.subr.mxu0 0.0
  %8296 = vmatpush1.msra.mxu0 0.0
  %8297 = vmatprep.subr.mxu0 0.0
  %8298 = vmatpush1.msra.mxu0 0.0
  %8299 = vmatprep.subr.mxu0 0.0
  %8300 = vmatpush1.msra.mxu0 0.0
  %8301 = vmatprep.subr.mxu0 0.0
  %8302 = vmatpush1.msra.mxu0 0.0
  %8303 = vmatprep.subr.mxu0 0.0
  %8304 = vmatpush1.msra.mxu0 0.0
  %8305 = vmatprep.subr.mxu0 0.0
  %8306 = vmatpush1.msra.mxu0 0.0
  %8307 = vmatprep.subr.mxu0 0.0
  %8308 = vmatpush1.msra.mxu0 0.0
  %8309 = vmatprep.subr.mxu0 0.0
  %8310 = vmatpush1.msra.mxu0 0.0
  %8311 = vmatprep.mubr.f32.mxu0 0.0
  %8312 = vmatmul.mubr.f32.gmra.mrb[0].mxu0 %v8053
  %v8313 = vpop.f32.mrb[0].mxu0
  %v8314 = vadd.f32 0.0, %v8313
  %v8315 = vpop.f32.mrb[0].mxu0
  %8316 = vmatprep.mubr.f32.mxu0 0.0
  %8317 = vmatmul.mubr.f32.gmra.mrb[0].mxu0 %v8056
  %v8318 = vpop.f32.mrb[0].mxu0
  %v8319 = vadd.f32 0.0, %v8318
  %v8320 = vpop.f32.mrb[0].mxu0
  %8321 = vmatprep.mubr.f32.mxu0 0.0
  %8322 = vmatmul.mubr.f32.gmra.mrb[0].mxu0 %v8059
  %v8323 = vpop.f32.mrb[0].mxu0
  %v8324 = vadd.f32 0.0, %v8323
  %v8325 = vpop.f32.mrb[0].mxu0
  %8326 = vmatprep.mubr.f32.mxu0 0.0
  %8327 = vmatmul.mubr.f32.gmra.mrb[0].mxu0 %v8062
  %v8328 = vpop.f32.mrb[0].mxu0
  %v8329 = vadd.f32 0.0, %v8328
  %v8330 = vpop.f32.mrb[0].mxu0
  %8331 = vmatprep.mubr.f32.mxu0 0.0
  %8332 = vmatmul.mubr.f32.gmra.mrb[0].mxu0 %v8065
  %v8333 = vpop.f32.mrb[0].mxu0
  %v8334 = vadd.f32 0.0, %v8333
  %v8335 = vpop.f32.mrb[0].mxu0
  %8336 = vmatprep.mubr.f32.mxu0 0.0
  %8337 = vmatmul.mubr.f32.gmra.mrb[0].mxu0 %v8068
  %v8338 = vpop.f32.mrb[0].mxu0
  %v8339 = vadd.f32 0.0, %v8338
  %v8340 = vpop.f32.mrb[0].mxu0
  %8341 = vmatprep.mubr.f32.mxu0 0.0
  %8342 = vmatmul.mubr.f32.gmra.mrb[0].mxu0 %v8071
  %v8343 = vpop.f32.mrb[0].mxu0
  %v8344 = vadd.f32 0.0, %v8343
  %v8345 = vpop.f32.mrb[0].mxu0
  %8346 = vmatprep.mubr.f32.mxu0 0.0
  %8347 = vmatmul.mubr.f32.gmra.mrb[0].mxu0 %v8074
  %v8348 = vpop.f32.mrb[0].mxu0
  %v8349 = vadd.f32 0.0, %v8348
  %v8350 = vpop.f32.mrb[0].mxu0
  %8351 = vmatprep.mubr.f32.mxu0 0.0
  %8352 = vmatmul.mubr.f32.gmra.mrb[0].mxu0 %v8077
  %v8353 = vpop.f32.mrb[0].mxu0
  %v8354 = vadd.f32 0.0, %v8353
  %v8355 = vpop.f32.mrb[0].mxu0
  %8356 = vmatprep.mubr.f32.mxu0 0.0
  %8357 = vmatmul.mubr.f32.gmra.mrb[0].mxu0 %v8080
  %v8358 = vpop.f32.mrb[0].mxu0
  %v8359 = vadd.f32 0.0, %v8358
  %v8360 = vpop.f32.mrb[0].mxu0
  %8361 = vmatprep.mubr.f32.mxu0 0.0
  %8362 = vmatmul.mubr.f32.gmra.mrb[0].mxu0 %v8083
  %v8363 = vpop.f32.mrb[0].mxu0
  %v8364 = vadd.f32 0.0, %v8363
  %v8365 = vpop.f32.mrb[0].mxu0
  %8366 = vmatprep.mubr.f32.mxu0 0.0
  %8367 = vmatmul.mubr.f32.gmra.mrb[0].mxu0 %v8086
  %v8368 = vpop.f32.mrb[0].mxu0
  %v8369 = vadd.f32 0.0, %v8368
  %v8370 = vpop.f32.mrb[0].mxu0
  %8371 = vmatprep.mubr.f32.mxu0 0.0
  %8372 = vmatmul.mubr.f32.gmra.mrb[0].mxu0 %v8089
  %v8373 = vpop.f32.mrb[0].mxu0
  %v8374 = vadd.f32 0.0, %v8373
  %v8375 = vpop.f32.mrb[0].mxu0
  %8376 = vmatprep.mubr.f32.mxu0 0.0
  %8377 = vmatmul.mubr.f32.gmra.mrb[0].mxu0 %v8092
  %v8378 = vpop.f32.mrb[0].mxu0
  %v8379 = vadd.f32 0.0, %v8378
  %v8380 = vpop.f32.mrb[0].mxu0
  %8381 = vmatprep.mubr.f32.mxu0 0.0
  %8382 = vmatmul.mubr.f32.gmra.mrb[0].mxu0 %v8095
  %v8383 = vpop.f32.mrb[0].mxu0
  %v8384 = vadd.f32 0.0, %v8383
  %v8385 = vpop.f32.mrb[0].mxu0
  %8386 = vmatprep.mubr.f32.mxu0 0.0
  %8387 = vmatmul.mubr.f32.gmra.mrb[0].mxu0 %v8098
  %v8388 = vpop.f32.mrb[0].mxu0
  %v8389 = vadd.f32 0.0, %v8388
  %v8390 = vpop.f32.mrb[0].mxu0
  %8391 = vmatprep.mubr.f32.mxu0 0.0
  %8392 = vmatmul.mubr.f32.gmra.mrb[0].mxu0 %v8101
  %v8393 = vpop.f32.mrb[0].mxu0
  %v8394 = vadd.f32 0.0, %v8393
  %v8395 = vpop.f32.mrb[0].mxu0
  %8396 = vmatprep.mubr.f32.mxu0 0.0
  %8397 = vmatmul.mubr.f32.gmra.mrb[0].mxu0 %v8104
  %v8398 = vpop.f32.mrb[0].mxu0
  %v8399 = vadd.f32 0.0, %v8398
  %v8400 = vpop.f32.mrb[0].mxu0
  %8401 = vmatprep.mubr.f32.mxu0 0.0
  %8402 = vmatmul.mubr.f32.gmra.mrb[0].mxu0 %v8107
  %v8403 = vpop.f32.mrb[0].mxu0
  %v8404 = vadd.f32 0.0, %v8403
  %v8405 = vpop.f32.mrb[0].mxu0
  %8406 = vmatprep.mubr.f32.mxu0 0.0
  %8407 = vmatmul.mubr.f32.gmra.mrb[0].mxu0 %v8110
  %v8408 = vpop.f32.mrb[0].mxu0
  %v8409 = vadd.f32 0.0, %v8408
  %v8410 = vpop.f32.mrb[0].mxu0
  %8411 = vmatprep.mubr.f32.mxu0 0.0
  %8412 = vmatmul.mubr.f32.gmra.mrb[0].mxu0 %v8113
  %v8413 = vpop.f32.mrb[0].mxu0
  %v8414 = vadd.f32 0.0, %v8413
  %v8415 = vpop.f32.mrb[0].mxu0
  %8416 = vmatprep.mubr.f32.mxu0 0.0
  %8417 = vmatmul.mubr.f32.gmra.mrb[0].mxu0 %v8116
  %v8418 = vpop.f32.mrb[0].mxu0
  %v8419 = vadd.f32 0.0, %v8418
  %v8420 = vpop.f32.mrb[0].mxu0
  %8421 = vmatprep.mubr.f32.mxu0 0.0
  %8422 = vmatmul.mubr.f32.gmra.mrb[0].mxu0 %v8119
  %v8423 = vpop.f32.mrb[0].mxu0
  %v8424 = vadd.f32 0.0, %v8423
  %v8425 = vpop.f32.mrb[0].mxu0
  %8426 = vmatprep.mubr.f32.mxu0 0.0
  %8427 = vmatmul.mubr.f32.gmra.mrb[0].mxu0 %v8122
  %v8428 = vpop.f32.mrb[0].mxu0
  %v8429 = vadd.f32 0.0, %v8428
  %v8430 = vpop.f32.mrb[0].mxu0
  %8431 = vmatprep.mubr.f32.mxu0 0.0
  %8432 = vmatmul.mubr.f32.gmra.mrb[0].mxu0 %v8125
  %v8433 = vpop.f32.mrb[0].mxu0
  %v8434 = vadd.f32 0.0, %v8433
  %v8435 = vpop.f32.mrb[0].mxu0
  %8436 = vmatprep.mubr.f32.mxu0 0.0
  %8437 = vmatmul.mubr.f32.gmra.mrb[0].mxu0 %v8128
  %v8438 = vpop.f32.mrb[0].mxu0
  %v8439 = vadd.f32 0.0, %v8438
  %v8440 = vpop.f32.mrb[0].mxu0
  %8441 = vmatprep.mubr.f32.mxu0 0.0
  %8442 = vmatmul.mubr.f32.gmra.mrb[0].mxu0 %v8131
  %v8443 = vpop.f32.mrb[0].mxu0
  %v8444 = vadd.f32 0.0, %v8443
  %v8445 = vpop.f32.mrb[0].mxu0
  %8446 = vmatprep.mubr.f32.mxu0 0.0
  %8447 = vmatmul.mubr.f32.gmra.mrb[0].mxu0 %v8134
  %v8448 = vpop.f32.mrb[0].mxu0
  %v8449 = vadd.f32 0.0, %v8448
  %v8450 = vpop.f32.mrb[0].mxu0
  %8451 = vmatprep.mubr.f32.mxu0 0.0
  %8452 = vmatmul.mubr.f32.gmra.mrb[0].mxu0 %v8137
  %v8453 = vpop.f32.mrb[0].mxu0
  %v8454 = vadd.f32 0.0, %v8453
  %v8455 = vpop.f32.mrb[0].mxu0
  %8456 = vmatprep.mubr.f32.mxu0 0.0
  %8457 = vmatmul.mubr.f32.gmra.mrb[0].mxu0 %v8140
  %v8458 = vpop.f32.mrb[0].mxu0
  %v8459 = vadd.f32 0.0, %v8458
  %v8460 = vpop.f32.mrb[0].mxu0
  %8461 = vmatprep.mubr.f32.mxu0 0.0
  %8462 = vmatmul.mubr.f32.gmra.mrb[0].mxu0 %v8143
  %v8463 = vpop.f32.mrb[0].mxu0
  %v8464 = vadd.f32 0.0, %v8463
  %v8465 = vpop.f32.mrb[0].mxu0
  %8466 = vmatprep.mubr.f32.mxu0 0.0
  %8467 = vmatmul.mubr.f32.gmra.mrb[0].mxu0 %v8146
  %v8468 = vpop.f32.mrb[0].mxu0
  %v8469 = vadd.f32 0.0, %v8468
  %v8470 = vpop.f32.mrb[0].mxu0
  %8471 = vmatprep.mubr.f32.mxu0 0.0
  %8472 = vmatmul.mubr.f32.gmra.mrb[0].mxu0 %v8149
  %v8473 = vpop.f32.mrb[0].mxu0
  %v8474 = vadd.f32 0.0, %v8473
  %v8475 = vpop.f32.mrb[0].mxu0
  %8476 = vmatprep.mubr.f32.mxu0 0.0
  %8477 = vmatmul.mubr.f32.gmra.mrb[0].mxu0 %v8152
  %v8478 = vpop.f32.mrb[0].mxu0
  %v8479 = vadd.f32 0.0, %v8478
  %v8480 = vpop.f32.mrb[0].mxu0
  %8481 = vmatprep.mubr.f32.mxu0 0.0
  %8482 = vmatmul.mubr.f32.gmra.mrb[0].mxu0 %v8155
  %v8483 = vpop.f32.mrb[0].mxu0
  %v8484 = vadd.f32 0.0, %v8483
  %v8485 = vpop.f32.mrb[0].mxu0
  %8486 = vmatprep.mubr.f32.mxu0 0.0
  %8487 = vmatmul.mubr.f32.gmra.mrb[0].mxu0 %v8158
  %v8488 = vpop.f32.mrb[0].mxu0
  %v8489 = vadd.f32 0.0, %v8488
  %v8490 = vpop.f32.mrb[0].mxu0
  %8491 = vmatprep.mubr.f32.mxu0 0.0
  %8492 = vmatmul.mubr.f32.gmra.mrb[0].mxu0 %v8161
  %v8493 = vpop.f32.mrb[0].mxu0
  %v8494 = vadd.f32 0.0, %v8493
  %v8495 = vpop.f32.mrb[0].mxu0
  %8496 = vmatprep.mubr.f32.mxu0 0.0
  %8497 = vmatmul.mubr.f32.gmra.mrb[0].mxu0 %v8164
  %v8498 = vpop.f32.mrb[0].mxu0
  %v8499 = vadd.f32 0.0, %v8498
  %v8500 = vpop.f32.mrb[0].mxu0
  %8501 = vmatprep.mubr.f32.mxu0 0.0
  %8502 = vmatmul.mubr.f32.gmra.mrb[0].mxu0 %v8167
  %v8503 = vpop.f32.mrb[0].mxu0
  %v8504 = vadd.f32 0.0, %v8503
  %v8505 = vpop.f32.mrb[0].mxu0
  %8506 = vmatprep.mubr.f32.mxu0 0.0
  %8507 = vmatmul.mubr.f32.gmra.mrb[0].mxu0 %v8170
  %v8508 = vpop.f32.mrb[0].mxu0
  %v8509 = vadd.f32 0.0, %v8508
  %v8510 = vpop.f32.mrb[0].mxu0
  %8511 = vmatprep.mubr.f32.mxu0 0.0
  %8512 = vmatmul.mubr.f32.gmra.mrb[0].mxu0 %v8173
  %v8513 = vpop.f32.mrb[0].mxu0
  %v8514 = vadd.f32 0.0, %v8513
  %v8515 = vpop.f32.mrb[0].mxu0
  %8516 = vmatprep.mubr.f32.mxu0 0.0
  %8517 = vmatmul.mubr.f32.gmra.mrb[0].mxu0 %v8176
  %v8518 = vpop.f32.mrb[0].mxu0
  %v8519 = vadd.f32 0.0, %v8518
  %v8520 = vpop.f32.mrb[0].mxu0
  %8521 = vmatprep.mubr.f32.mxu0 0.0
  %8522 = vmatmul.mubr.f32.gmra.mrb[0].mxu0 %v8179
  %v8523 = vpop.f32.mrb[0].mxu0
  %v8524 = vadd.f32 0.0, %v8523
  %v8525 = vpop.f32.mrb[0].mxu0
  %8526 = vmatprep.mubr.f32.mxu0 0.0
  %8527 = vmatmul.mubr.f32.gmra.mrb[0].mxu0 %v8182
  %v8528 = vpop.f32.mrb[0].mxu0
  %v8529 = vadd.f32 0.0, %v8528
  %v8530 = vpop.f32.mrb[0].mxu0
  %8531 = vmatprep.mubr.f32.mxu0 0.0
  %8532 = vmatmul.mubr.f32.gmra.mrb[0].mxu0 %v8185
  %v8533 = vpop.f32.mrb[0].mxu0
  %v8534 = vadd.f32 0.0, %v8533
  %v8535 = vpop.f32.mrb[0].mxu0
  %8536 = vmatprep.mubr.f32.mxu0 0.0
  %8537 = vmatmul.mubr.f32.gmra.mrb[0].mxu0 %v8188
  %v8538 = vpop.f32.mrb[0].mxu0
  %v8539 = vadd.f32 0.0, %v8538
  %v8540 = vpop.f32.mrb[0].mxu0
  %8541 = vmatprep.mubr.f32.mxu0 0.0
  %8542 = vmatmul.mubr.f32.gmra.mrb[0].mxu0 %v8191
  %v8543 = vpop.f32.mrb[0].mxu0
  %v8544 = vadd.f32 0.0, %v8543
  %v8545 = vpop.f32.mrb[0].mxu0
  %8546 = vmatprep.mubr.f32.mxu0 0.0
  %8547 = vmatmul.mubr.f32.gmra.mrb[0].mxu0 %v8194
  %v8548 = vpop.f32.mrb[0].mxu0
  %v8549 = vadd.f32 0.0, %v8548
  %v8550 = vpop.f32.mrb[0].mxu0
  %8551 = vmatprep.mubr.f32.mxu0 0.0
  %8552 = vmatmul.mubr.f32.gmra.mrb[0].mxu0 %v8197
  %v8553 = vpop.f32.mrb[0].mxu0
  %v8554 = vadd.f32 0.0, %v8553
  %v8555 = vpop.f32.mrb[0].mxu0
  %8556 = vmatprep.mubr.f32.mxu0 0.0
  %8557 = vmatmul.mubr.f32.gmra.mrb[0].mxu0 %v8200
  %v8558 = vpop.f32.mrb[0].mxu0
  %v8559 = vadd.f32 0.0, %v8558
  %v8560 = vpop.f32.mrb[0].mxu0
  %8561 = vmatprep.mubr.f32.mxu0 0.0
  %8562 = vmatmul.mubr.f32.gmra.mrb[0].mxu0 %v8203
  %v8563 = vpop.f32.mrb[0].mxu0
  %v8564 = vadd.f32 0.0, %v8563
  %v8565 = vpop.f32.mrb[0].mxu0
  %8566 = vmatprep.mubr.f32.mxu0 0.0
  %8567 = vmatmul.mubr.f32.gmra.mrb[0].mxu0 %v8206
  %v8568 = vpop.f32.mrb[0].mxu0
  %v8569 = vadd.f32 0.0, %v8568
  %v8570 = vpop.f32.mrb[0].mxu0
  %8571 = vmatprep.mubr.f32.mxu0 0.0
  %8572 = vmatmul.mubr.f32.gmra.mrb[0].mxu0 %v8209
  %v8573 = vpop.f32.mrb[0].mxu0
  %v8574 = vadd.f32 0.0, %v8573
  %v8575 = vpop.f32.mrb[0].mxu0
  %8576 = vmatprep.mubr.f32.mxu0 0.0
  %8577 = vmatmul.mubr.f32.gmra.mrb[0].mxu0 %v8212
  %v8578 = vpop.f32.mrb[0].mxu0
  %v8579 = vadd.f32 0.0, %v8578
  %v8580 = vpop.f32.mrb[0].mxu0
  %8581 = vmatprep.mubr.f32.mxu0 0.0
  %8582 = vmatmul.mubr.f32.gmra.mrb[0].mxu0 %v8215
  %v8583 = vpop.f32.mrb[0].mxu0
  %v8584 = vadd.f32 0.0, %v8583
  %v8585 = vpop.f32.mrb[0].mxu0
  %8586 = vmatprep.mubr.f32.mxu0 0.0
  %8587 = vmatmul.mubr.f32.gmra.mrb[0].mxu0 %v8218
  %v8588 = vpop.f32.mrb[0].mxu0
  %v8589 = vadd.f32 0.0, %v8588
  %v8590 = vpop.f32.mrb[0].mxu0
  %8591 = vmatprep.mubr.f32.mxu0 0.0
  %8592 = vmatmul.mubr.f32.gmra.mrb[0].mxu0 %v8221
  %v8593 = vpop.f32.mrb[0].mxu0
  %v8594 = vadd.f32 0.0, %v8593
  %v8595 = vpop.f32.mrb[0].mxu0
  %8596 = vmatprep.mubr.f32.mxu0 0.0
  %8597 = vmatmul.mubr.f32.gmra.mrb[0].mxu0 %v8224
  %v8598 = vpop.f32.mrb[0].mxu0
  %v8599 = vadd.f32 0.0, %v8598
  %v8600 = vpop.f32.mrb[0].mxu0
  %8601 = vmatprep.mubr.f32.mxu0 0.0
  %8602 = vmatmul.mubr.f32.gmra.mrb[0].mxu0 %v8227
  %v8603 = vpop.f32.mrb[0].mxu0
  %v8604 = vadd.f32 0.0, %v8603
  %v8605 = vpop.f32.mrb[0].mxu0
  %8606 = vmatprep.mubr.f32.mxu0 0.0
  %8607 = vmatmul.mubr.f32.gmra.mrb[0].mxu0 %v8230
  %v8608 = vpop.f32.mrb[0].mxu0
  %v8609 = vadd.f32 0.0, %v8608
  %v8610 = vpop.f32.mrb[0].mxu0
  %8611 = vmatprep.mubr.f32.mxu0 0.0
  %8612 = vmatmul.mubr.f32.gmra.mrb[0].mxu0 %v8233
  %v8613 = vpop.f32.mrb[0].mxu0
  %v8614 = vadd.f32 0.0, %v8613
  %v8615 = vpop.f32.mrb[0].mxu0
  %8616 = vmatprep.mubr.f32.mxu0 0.0
  %8617 = vmatmul.mubr.f32.gmra.mrb[0].mxu0 %v8236
  %v8618 = vpop.f32.mrb[0].mxu0
  %v8619 = vadd.f32 0.0, %v8618
  %v8620 = vpop.f32.mrb[0].mxu0
  %8621 = vmatprep.mubr.f32.mxu0 0.0
  %8622 = vmatmul.mubr.f32.gmra.mrb[0].mxu0 %v8239
  %v8623 = vpop.f32.mrb[0].mxu0
  %v8624 = vadd.f32 0.0, %v8623
  %v8625 = vpop.f32.mrb[0].mxu0
  %8626 = vmatprep.mubr.f32.mxu0 0.0
  %8627 = vmatmul.mubr.f32.gmra.mrb[0].mxu0 %v8242
  %v8628 = vpop.f32.mrb[0].mxu0
  %v8629 = vadd.f32 0.0, %v8628
  %v8630 = vpop.f32.mrb[0].mxu0
  %8631 = vdwg.mxu0
  %v8632 = vsel %vm26, %v8314, 0.0
  %v8633 = vsel %vm26, %v8319, 0.0
  %v8634 = vadd.f32 %v8632, %v8633
  %v8635 = vsel %vm26, %v8324, 0.0
  %v8636 = vadd.f32 %v8634, %v8635
  %v8637 = vsel %vm26, %v8329, 0.0
  %v8638 = vadd.f32 %v8636, %v8637
  %v8639 = vsel %vm26, %v8334, 0.0
  %v8640 = vadd.f32 %v8638, %v8639
  %v8641 = vsel %vm26, %v8339, 0.0
  %v8642 = vadd.f32 %v8640, %v8641
  %v8643 = vsel %vm26, %v8344, 0.0
  %v8644 = vadd.f32 %v8642, %v8643
  %v8645 = vsel %vm26, %v8349, 0.0
  %v8646 = vadd.f32 %v8644, %v8645
  %v8647 = vsel %vm26, %v8354, 0.0
  %v8648 = vadd.f32 %v8646, %v8647
  %v8649 = vsel %vm26, %v8359, 0.0
  %v8650 = vadd.f32 %v8648, %v8649
  %v8651 = vsel %vm26, %v8364, 0.0
  %v8652 = vadd.f32 %v8650, %v8651
  %v8653 = vsel %vm26, %v8369, 0.0
  %v8654 = vadd.f32 %v8652, %v8653
  %v8655 = vsel %vm26, %v8374, 0.0
  %v8656 = vadd.f32 %v8654, %v8655
  %v8657 = vsel %vm26, %v8379, 0.0
  %v8658 = vadd.f32 %v8656, %v8657
  %v8659 = vsel %vm26, %v8384, 0.0
  %v8660 = vadd.f32 %v8658, %v8659
  %v8661 = vsel %vm26, %v8389, 0.0
  %v8662 = vadd.f32 %v8660, %v8661
  %v8663 = vsel %vm26, %v8394, 0.0
  %v8664 = vadd.f32 %v8662, %v8663
  %v8665 = vsel %vm26, %v8399, 0.0
  %v8666 = vadd.f32 %v8664, %v8665
  %v8667 = vsel %vm26, %v8404, 0.0
  %v8668 = vadd.f32 %v8666, %v8667
  %v8669 = vsel %vm26, %v8409, 0.0
  %v8670 = vadd.f32 %v8668, %v8669
  %v8671 = vsel %vm26, %v8414, 0.0
  %v8672 = vadd.f32 %v8670, %v8671
  %v8673 = vsel %vm26, %v8419, 0.0
  %v8674 = vadd.f32 %v8672, %v8673
  %v8675 = vsel %vm26, %v8424, 0.0
  %v8676 = vadd.f32 %v8674, %v8675
  %v8677 = vsel %vm26, %v8429, 0.0
  %v8678 = vadd.f32 %v8676, %v8677
  %v8679 = vsel %vm26, %v8434, 0.0
  %v8680 = vadd.f32 %v8678, %v8679
  %v8681 = vsel %vm26, %v8439, 0.0
  %v8682 = vadd.f32 %v8680, %v8681
  %v8683 = vsel %vm26, %v8444, 0.0
  %v8684 = vadd.f32 %v8682, %v8683
  %v8685 = vsel %vm26, %v8449, 0.0
  %v8686 = vadd.f32 %v8684, %v8685
  %v8687 = vsel %vm26, %v8454, 0.0
  %v8688 = vadd.f32 %v8686, %v8687
  %v8689 = vsel %vm26, %v8459, 0.0
  %v8690 = vadd.f32 %v8688, %v8689
  %v8691 = vsel %vm26, %v8464, 0.0
  %v8692 = vadd.f32 %v8690, %v8691
  %v8693 = vsel %vm26, %v8469, 0.0
  %v8694 = vadd.f32 %v8692, %v8693
  %v8695 = vsel %vm26, %v8474, 0.0
  %v8696 = vadd.f32 %v8694, %v8695
  %v8697 = vsel %vm26, %v8479, 0.0
  %v8698 = vadd.f32 %v8696, %v8697
  %v8699 = vsel %vm26, %v8484, 0.0
  %v8700 = vadd.f32 %v8698, %v8699
  %v8701 = vsel %vm26, %v8489, 0.0
  %v8702 = vadd.f32 %v8700, %v8701
  %v8703 = vsel %vm26, %v8494, 0.0
  %v8704 = vadd.f32 %v8702, %v8703
  %v8705 = vsel %vm26, %v8499, 0.0
  %v8706 = vadd.f32 %v8704, %v8705
  %v8707 = vsel %vm26, %v8504, 0.0
  %v8708 = vadd.f32 %v8706, %v8707
  %v8709 = vsel %vm26, %v8509, 0.0
  %v8710 = vadd.f32 %v8708, %v8709
  %v8711 = vsel %vm26, %v8514, 0.0
  %v8712 = vadd.f32 %v8710, %v8711
  %v8713 = vsel %vm26, %v8519, 0.0
  %v8714 = vadd.f32 %v8712, %v8713
  %v8715 = vsel %vm26, %v8524, 0.0
  %v8716 = vadd.f32 %v8714, %v8715
  %v8717 = vsel %vm26, %v8529, 0.0
  %v8718 = vadd.f32 %v8716, %v8717
  %v8719 = vsel %vm26, %v8534, 0.0
  %v8720 = vadd.f32 %v8718, %v8719
  %v8721 = vsel %vm26, %v8539, 0.0
  %v8722 = vadd.f32 %v8720, %v8721
  %v8723 = vsel %vm26, %v8544, 0.0
  %v8724 = vadd.f32 %v8722, %v8723
  %v8725 = vsel %vm26, %v8549, 0.0
  %v8726 = vadd.f32 %v8724, %v8725
  %v8727 = vsel %vm26, %v8554, 0.0
  %v8728 = vadd.f32 %v8726, %v8727
  %v8729 = vsel %vm26, %v8559, 0.0
  %v8730 = vadd.f32 %v8728, %v8729
  %v8731 = vsel %vm26, %v8564, 0.0
  %v8732 = vadd.f32 %v8730, %v8731
  %v8733 = vsel %vm26, %v8569, 0.0
  %v8734 = vadd.f32 %v8732, %v8733
  %v8735 = vsel %vm26, %v8574, 0.0
  %v8736 = vadd.f32 %v8734, %v8735
  %v8737 = vsel %vm26, %v8579, 0.0
  %v8738 = vadd.f32 %v8736, %v8737
  %v8739 = vsel %vm26, %v8584, 0.0
  %v8740 = vadd.f32 %v8738, %v8739
  %v8741 = vsel %vm26, %v8589, 0.0
  %v8742 = vadd.f32 %v8740, %v8741
  %v8743 = vsel %vm26, %v8594, 0.0
  %v8744 = vadd.f32 %v8742, %v8743
  %v8745 = vsel %vm26, %v8599, 0.0
  %v8746 = vadd.f32 %v8744, %v8745
  %v8747 = vsel %vm26, %v8604, 0.0
  %v8748 = vadd.f32 %v8746, %v8747
  %v8749 = vsel %vm26, %v8609, 0.0
  %v8750 = vadd.f32 %v8748, %v8749
  %v8751 = vsel %vm26, %v8614, 0.0
  %v8752 = vadd.f32 %v8750, %v8751
  %v8753 = vsel %vm26, %v8619, 0.0
  %v8754 = vadd.f32 %v8752, %v8753
  %v8755 = vsel %vm26, %v8624, 0.0
  %v8756 = vadd.f32 %v8754, %v8755
  %v8757 = vsel %vm26, %v8629, 0.0
  %v8758 = vadd.f32 %v8756, %v8757
  %v8759 = vrot.slane %v8758, 4
  %v8760 = vadd.f32 %v8758, %v8759
  %v8761 = vrot.slane %v8760, 2
  %v8762 = vadd.f32 %v8760, %v8761
  %v8763 = vrot.slane %v8762, 1
  %v8764 = vadd.f32 %v8762, %v8763
  %v8765 = vmul.f32 %v8314, %v8314
  %v8766 = vmul.f32 %v8319, %v8319
  %v8767 = vmul.f32 %v8324, %v8324
  %v8768 = vmul.f32 %v8329, %v8329
  %v8769 = vmul.f32 %v8334, %v8334
  %v8770 = vmul.f32 %v8339, %v8339
  %v8771 = vmul.f32 %v8344, %v8344
  %v8772 = vmul.f32 %v8349, %v8349
  %v8773 = vmul.f32 %v8354, %v8354
  %v8774 = vmul.f32 %v8359, %v8359
  %v8775 = vmul.f32 %v8364, %v8364
  %v8776 = vmul.f32 %v8369, %v8369
  %v8777 = vmul.f32 %v8374, %v8374
  %v8778 = vmul.f32 %v8379, %v8379
  %v8779 = vmul.f32 %v8384, %v8384
  %v8780 = vmul.f32 %v8389, %v8389
  %v8781 = vmul.f32 %v8394, %v8394
  %v8782 = vmul.f32 %v8399, %v8399
  %v8783 = vmul.f32 %v8404, %v8404
  %v8784 = vmul.f32 %v8409, %v8409
  %v8785 = vmul.f32 %v8414, %v8414
  %v8786 = vmul.f32 %v8419, %v8419
  %v8787 = vmul.f32 %v8424, %v8424
  %v8788 = vmul.f32 %v8429, %v8429
  %v8789 = vmul.f32 %v8434, %v8434
  %v8790 = vmul.f32 %v8439, %v8439
  %v8791 = vmul.f32 %v8444, %v8444
  %v8792 = vmul.f32 %v8449, %v8449
  %v8793 = vmul.f32 %v8454, %v8454
  %v8794 = vmul.f32 %v8459, %v8459
  %v8795 = vmul.f32 %v8464, %v8464
  %v8796 = vmul.f32 %v8469, %v8469
  %v8797 = vmul.f32 %v8474, %v8474
  %v8798 = vmul.f32 %v8479, %v8479
  %v8799 = vmul.f32 %v8484, %v8484
  %v8800 = vmul.f32 %v8489, %v8489
  %v8801 = vmul.f32 %v8494, %v8494
  %v8802 = vmul.f32 %v8499, %v8499
  %v8803 = vmul.f32 %v8504, %v8504
  %v8804 = vmul.f32 %v8509, %v8509
  %v8805 = vmul.f32 %v8514, %v8514
  %v8806 = vmul.f32 %v8519, %v8519
  %v8807 = vmul.f32 %v8524, %v8524
  %v8808 = vmul.f32 %v8529, %v8529
  %v8809 = vmul.f32 %v8534, %v8534
  %v8810 = vmul.f32 %v8539, %v8539
  %v8811 = vmul.f32 %v8544, %v8544
  %v8812 = vmul.f32 %v8549, %v8549
  %v8813 = vmul.f32 %v8554, %v8554
  %v8814 = vmul.f32 %v8559, %v8559
  %v8815 = vmul.f32 %v8564, %v8564
  %v8816 = vmul.f32 %v8569, %v8569
  %v8817 = vmul.f32 %v8574, %v8574
  %v8818 = vmul.f32 %v8579, %v8579
  %v8819 = vmul.f32 %v8584, %v8584
  %v8820 = vmul.f32 %v8589, %v8589
  %v8821 = vmul.f32 %v8594, %v8594
  %v8822 = vmul.f32 %v8599, %v8599
  %v8823 = vmul.f32 %v8604, %v8604
  %v8824 = vmul.f32 %v8609, %v8609
  %v8825 = vmul.f32 %v8614, %v8614
  %v8826 = vmul.f32 %v8619, %v8619
  %v8827 = vmul.f32 %v8624, %v8624
  %v8828 = vmul.f32 %v8629, %v8629
  %v8829 = vsel %vm26, %v8765, 0.0
  %v8830 = vsel %vm26, %v8766, 0.0
  %v8831 = vadd.f32 %v8829, %v8830
  %v8832 = vsel %vm26, %v8767, 0.0
  %v8833 = vadd.f32 %v8831, %v8832
  %v8834 = vsel %vm26, %v8768, 0.0
  %v8835 = vadd.f32 %v8833, %v8834
  %v8836 = vsel %vm26, %v8769, 0.0
  %v8837 = vadd.f32 %v8835, %v8836
  %v8838 = vsel %vm26, %v8770, 0.0
  %v8839 = vadd.f32 %v8837, %v8838
  %v8840 = vsel %vm26, %v8771, 0.0
  %v8841 = vadd.f32 %v8839, %v8840
  %v8842 = vsel %vm26, %v8772, 0.0
  %v8843 = vadd.f32 %v8841, %v8842
  %v8844 = vsel %vm26, %v8773, 0.0
  %v8845 = vadd.f32 %v8843, %v8844
  %v8846 = vsel %vm26, %v8774, 0.0
  %v8847 = vadd.f32 %v8845, %v8846
  %v8848 = vsel %vm26, %v8775, 0.0
  %v8849 = vadd.f32 %v8847, %v8848
  %v8850 = vsel %vm26, %v8776, 0.0
  %v8851 = vadd.f32 %v8849, %v8850
  %v8852 = vsel %vm26, %v8777, 0.0
  %v8853 = vadd.f32 %v8851, %v8852
  %v8854 = vsel %vm26, %v8778, 0.0
  %v8855 = vadd.f32 %v8853, %v8854
  %v8856 = vsel %vm26, %v8779, 0.0
  %v8857 = vadd.f32 %v8855, %v8856
  %v8858 = vsel %vm26, %v8780, 0.0
  %v8859 = vadd.f32 %v8857, %v8858
  %v8860 = vsel %vm26, %v8781, 0.0
  %v8861 = vadd.f32 %v8859, %v8860
  %v8862 = vsel %vm26, %v8782, 0.0
  %v8863 = vadd.f32 %v8861, %v8862
  %v8864 = vsel %vm26, %v8783, 0.0
  %v8865 = vadd.f32 %v8863, %v8864
  %v8866 = vsel %vm26, %v8784, 0.0
  %v8867 = vadd.f32 %v8865, %v8866
  %v8868 = vsel %vm26, %v8785, 0.0
  %v8869 = vadd.f32 %v8867, %v8868
  %v8870 = vsel %vm26, %v8786, 0.0
  %v8871 = vadd.f32 %v8869, %v8870
  %v8872 = vsel %vm26, %v8787, 0.0
  %v8873 = vadd.f32 %v8871, %v8872
  %v8874 = vsel %vm26, %v8788, 0.0
  %v8875 = vadd.f32 %v8873, %v8874
  %v8876 = vsel %vm26, %v8789, 0.0
  %v8877 = vadd.f32 %v8875, %v8876
  %v8878 = vsel %vm26, %v8790, 0.0
  %v8879 = vadd.f32 %v8877, %v8878
  %v8880 = vsel %vm26, %v8791, 0.0
  %v8881 = vadd.f32 %v8879, %v8880
  %v8882 = vsel %vm26, %v8792, 0.0
  %v8883 = vadd.f32 %v8881, %v8882
  %v8884 = vsel %vm26, %v8793, 0.0
  %v8885 = vadd.f32 %v8883, %v8884
  %v8886 = vsel %vm26, %v8794, 0.0
  %v8887 = vadd.f32 %v8885, %v8886
  %v8888 = vsel %vm26, %v8795, 0.0
  %v8889 = vadd.f32 %v8887, %v8888
  %v8890 = vsel %vm26, %v8796, 0.0
  %v8891 = vadd.f32 %v8889, %v8890
  %v8892 = vsel %vm26, %v8797, 0.0
  %v8893 = vadd.f32 %v8891, %v8892
  %v8894 = vsel %vm26, %v8798, 0.0
  %v8895 = vadd.f32 %v8893, %v8894
  %v8896 = vsel %vm26, %v8799, 0.0
  %v8897 = vadd.f32 %v8895, %v8896
  %v8898 = vsel %vm26, %v8800, 0.0
  %v8899 = vadd.f32 %v8897, %v8898
  %v8900 = vsel %vm26, %v8801, 0.0
  %v8901 = vadd.f32 %v8899, %v8900
  %v8902 = vsel %vm26, %v8802, 0.0
  %v8903 = vadd.f32 %v8901, %v8902
  %v8904 = vsel %vm26, %v8803, 0.0
  %v8905 = vadd.f32 %v8903, %v8904
  %v8906 = vsel %vm26, %v8804, 0.0
  %v8907 = vadd.f32 %v8905, %v8906
  %v8908 = vsel %vm26, %v8805, 0.0
  %v8909 = vadd.f32 %v8907, %v8908
  %v8910 = vsel %vm26, %v8806, 0.0
  %v8911 = vadd.f32 %v8909, %v8910
  %v8912 = vsel %vm26, %v8807, 0.0
  %v8913 = vadd.f32 %v8911, %v8912
  %v8914 = vsel %vm26, %v8808, 0.0
  %v8915 = vadd.f32 %v8913, %v8914
  %v8916 = vsel %vm26, %v8809, 0.0
  %v8917 = vadd.f32 %v8915, %v8916
  %v8918 = vsel %vm26, %v8810, 0.0
  %v8919 = vadd.f32 %v8917, %v8918
  %v8920 = vsel %vm26, %v8811, 0.0
  %v8921 = vadd.f32 %v8919, %v8920
  %v8922 = vsel %vm26, %v8812, 0.0
  %v8923 = vadd.f32 %v8921, %v8922
  %v8924 = vsel %vm26, %v8813, 0.0
  %v8925 = vadd.f32 %v8923, %v8924
  %v8926 = vsel %vm26, %v8814, 0.0
  %v8927 = vadd.f32 %v8925, %v8926
  %v8928 = vsel %vm26, %v8815, 0.0
  %v8929 = vadd.f32 %v8927, %v8928
  %v8930 = vsel %vm26, %v8816, 0.0
  %v8931 = vadd.f32 %v8929, %v8930
  %v8932 = vsel %vm26, %v8817, 0.0
  %v8933 = vadd.f32 %v8931, %v8932
  %v8934 = vsel %vm26, %v8818, 0.0
  %v8935 = vadd.f32 %v8933, %v8934
  %v8936 = vsel %vm26, %v8819, 0.0
  %v8937 = vadd.f32 %v8935, %v8936
  %v8938 = vsel %vm26, %v8820, 0.0
  %v8939 = vadd.f32 %v8937, %v8938
  %v8940 = vsel %vm26, %v8821, 0.0
  %v8941 = vadd.f32 %v8939, %v8940
  %v8942 = vsel %vm26, %v8822, 0.0
  %v8943 = vadd.f32 %v8941, %v8942
  %v8944 = vsel %vm26, %v8823, 0.0
  %v8945 = vadd.f32 %v8943, %v8944
  %v8946 = vsel %vm26, %v8824, 0.0
  %v8947 = vadd.f32 %v8945, %v8946
  %v8948 = vsel %vm26, %v8825, 0.0
  %v8949 = vadd.f32 %v8947, %v8948
  %v8950 = vsel %vm26, %v8826, 0.0
  %v8951 = vadd.f32 %v8949, %v8950
  %v8952 = vsel %vm26, %v8827, 0.0
  %v8953 = vadd.f32 %v8951, %v8952
  %v8954 = vsel %vm26, %v8828, 0.0
  %v8955 = vadd.f32 %v8953, %v8954
  %v8956 = vrot.slane %v8955, 4
  %v8957 = vadd.f32 %v8955, %v8956
  %v8958 = vrot.slane %v8957, 2
  %v8959 = vadd.f32 %v8957, %v8958
  %v8960 = vrot.slane %v8959, 1
  %v8961 = vadd.f32 %v8959, %v8960
  %v8962 = vmul.f32 %v8764, 0.001953125
  %v8963 = vmul.f32 %v8961, 0.001953125
  %v8964 = vmul.f32 %v8962, %v8962
  %v8965 = vsub.f32 %v8963, %v8964
  %v8966 = vadd.f32 %v8965, 1e-05
  %v8967 = vrsqrt.pop %v8966
  %v8968 = vsub.f32 %v8314, %v8962
  %v8969 = vsub.f32 %v8319, %v8962
  %v8970 = vsub.f32 %v8324, %v8962
  %v8971 = vsub.f32 %v8329, %v8962
  %v8972 = vsub.f32 %v8334, %v8962
  %v8973 = vsub.f32 %v8339, %v8962
  %v8974 = vsub.f32 %v8344, %v8962
  %v8975 = vsub.f32 %v8349, %v8962
  %v8976 = vsub.f32 %v8354, %v8962
  %v8977 = vsub.f32 %v8359, %v8962
  %v8978 = vsub.f32 %v8364, %v8962
  %v8979 = vsub.f32 %v8369, %v8962
  %v8980 = vsub.f32 %v8374, %v8962
  %v8981 = vsub.f32 %v8379, %v8962
  %v8982 = vsub.f32 %v8384, %v8962
  %v8983 = vsub.f32 %v8389, %v8962
  %v8984 = vsub.f32 %v8394, %v8962
  %v8985 = vsub.f32 %v8399, %v8962
  %v8986 = vsub.f32 %v8404, %v8962
  %v8987 = vsub.f32 %v8409, %v8962
  %v8988 = vsub.f32 %v8414, %v8962
  %v8989 = vsub.f32 %v8419, %v8962
  %v8990 = vsub.f32 %v8424, %v8962
  %v8991 = vsub.f32 %v8429, %v8962
  %v8992 = vsub.f32 %v8434, %v8962
  %v8993 = vsub.f32 %v8439, %v8962
  %v8994 = vsub.f32 %v8444, %v8962
  %v8995 = vsub.f32 %v8449, %v8962
  %v8996 = vsub.f32 %v8454, %v8962
  %v8997 = vsub.f32 %v8459, %v8962
  %v8998 = vsub.f32 %v8464, %v8962
  %v8999 = vsub.f32 %v8469, %v8962
  %v9000 = vsub.f32 %v8474, %v8962
  %v9001 = vsub.f32 %v8479, %v8962
  %v9002 = vsub.f32 %v8484, %v8962
  %v9003 = vsub.f32 %v8489, %v8962
  %v9004 = vsub.f32 %v8494, %v8962
  %v9005 = vsub.f32 %v8499, %v8962
  %v9006 = vsub.f32 %v8504, %v8962
  %v9007 = vsub.f32 %v8509, %v8962
  %v9008 = vsub.f32 %v8514, %v8962
  %v9009 = vsub.f32 %v8519, %v8962
  %v9010 = vsub.f32 %v8524, %v8962
  %v9011 = vsub.f32 %v8529, %v8962
  %v9012 = vsub.f32 %v8534, %v8962
  %v9013 = vsub.f32 %v8539, %v8962
  %v9014 = vsub.f32 %v8544, %v8962
  %v9015 = vsub.f32 %v8549, %v8962
  %v9016 = vsub.f32 %v8554, %v8962
  %v9017 = vsub.f32 %v8559, %v8962
  %v9018 = vsub.f32 %v8564, %v8962
  %v9019 = vsub.f32 %v8569, %v8962
  %v9020 = vsub.f32 %v8574, %v8962
  %v9021 = vsub.f32 %v8579, %v8962
  %v9022 = vsub.f32 %v8584, %v8962
  %v9023 = vsub.f32 %v8589, %v8962
  %v9024 = vsub.f32 %v8594, %v8962
  %v9025 = vsub.f32 %v8599, %v8962
  %v9026 = vsub.f32 %v8604, %v8962
  %v9027 = vsub.f32 %v8609, %v8962
  %v9028 = vsub.f32 %v8614, %v8962
  %v9029 = vsub.f32 %v8619, %v8962
  %v9030 = vsub.f32 %v8624, %v8962
  %v9031 = vsub.f32 %v8629, %v8962
  %v9032 = vmul.f32 %v8968, %v8967
  %v9033 = vmul.f32 %v8969, %v8967
  %v9034 = vmul.f32 %v8970, %v8967
  %v9035 = vmul.f32 %v8971, %v8967
  %v9036 = vmul.f32 %v8972, %v8967
  %v9037 = vmul.f32 %v8973, %v8967
  %v9038 = vmul.f32 %v8974, %v8967
  %v9039 = vmul.f32 %v8975, %v8967
  %v9040 = vmul.f32 %v8976, %v8967
  %v9041 = vmul.f32 %v8977, %v8967
  %v9042 = vmul.f32 %v8978, %v8967
  %v9043 = vmul.f32 %v8979, %v8967
  %v9044 = vmul.f32 %v8980, %v8967
  %v9045 = vmul.f32 %v8981, %v8967
  %v9046 = vmul.f32 %v8982, %v8967
  %v9047 = vmul.f32 %v8983, %v8967
  %v9048 = vmul.f32 %v8984, %v8967
  %v9049 = vmul.f32 %v8985, %v8967
  %v9050 = vmul.f32 %v8986, %v8967
  %v9051 = vmul.f32 %v8987, %v8967
  %v9052 = vmul.f32 %v8988, %v8967
  %v9053 = vmul.f32 %v8989, %v8967
  %v9054 = vmul.f32 %v8990, %v8967
  %v9055 = vmul.f32 %v8991, %v8967
  %v9056 = vmul.f32 %v8992, %v8967
  %v9057 = vmul.f32 %v8993, %v8967
  %v9058 = vmul.f32 %v8994, %v8967
  %v9059 = vmul.f32 %v8995, %v8967
  %v9060 = vmul.f32 %v8996, %v8967
  %v9061 = vmul.f32 %v8997, %v8967
  %v9062 = vmul.f32 %v8998, %v8967
  %v9063 = vmul.f32 %v8999, %v8967
  %v9064 = vmul.f32 %v9000, %v8967
  %v9065 = vmul.f32 %v9001, %v8967
  %v9066 = vmul.f32 %v9002, %v8967
  %v9067 = vmul.f32 %v9003, %v8967
  %v9068 = vmul.f32 %v9004, %v8967
  %v9069 = vmul.f32 %v9005, %v8967
  %v9070 = vmul.f32 %v9006, %v8967
  %v9071 = vmul.f32 %v9007, %v8967
  %v9072 = vmul.f32 %v9008, %v8967
  %v9073 = vmul.f32 %v9009, %v8967
  %v9074 = vmul.f32 %v9010, %v8967
  %v9075 = vmul.f32 %v9011, %v8967
  %v9076 = vmul.f32 %v9012, %v8967
  %v9077 = vmul.f32 %v9013, %v8967
  %v9078 = vmul.f32 %v9014, %v8967
  %v9079 = vmul.f32 %v9015, %v8967
  %v9080 = vmul.f32 %v9016, %v8967
  %v9081 = vmul.f32 %v9017, %v8967
  %v9082 = vmul.f32 %v9018, %v8967
  %v9083 = vmul.f32 %v9019, %v8967
  %v9084 = vmul.f32 %v9020, %v8967
  %v9085 = vmul.f32 %v9021, %v8967
  %v9086 = vmul.f32 %v9022, %v8967
  %v9087 = vmul.f32 %v9023, %v8967
  %v9088 = vmul.f32 %v9024, %v8967
  %v9089 = vmul.f32 %v9025, %v8967
  %v9090 = vmul.f32 %v9026, %v8967
  %v9091 = vmul.f32 %v9027, %v8967
  %v9092 = vmul.f32 %v9028, %v8967
  %v9093 = vmul.f32 %v9029, %v8967
  %v9094 = vmul.f32 %v9030, %v8967
  %v9095 = vmul.f32 %v9031, %v8967
  %v9096 = vld [vmem:[%s5] sm:$0x1]
  %v9098 = vlaneseq
  %v9099 = vshrl.u32 %v9098, 7
  %v9100 = vsub.s32 0, %v9099
  %v9101 = vrot.slane %v9096, %v9100
  %v9103 = vmul.f32 %v9032, %v9101
  %v9104 = vmul.f32 %v9033, %v9101
  %v9105 = vmul.f32 %v9034, %v9101
  %v9106 = vmul.f32 %v9035, %v9101
  %v9107 = vmul.f32 %v9036, %v9101
  %v9108 = vmul.f32 %v9037, %v9101
  %v9109 = vmul.f32 %v9038, %v9101
  %v9110 = vmul.f32 %v9039, %v9101
  %v9111 = vmul.f32 %v9040, %v9101
  %v9112 = vmul.f32 %v9041, %v9101
  %v9113 = vmul.f32 %v9042, %v9101
  %v9114 = vmul.f32 %v9043, %v9101
  %v9115 = vmul.f32 %v9044, %v9101
  %v9116 = vmul.f32 %v9045, %v9101
  %v9117 = vmul.f32 %v9046, %v9101
  %v9118 = vmul.f32 %v9047, %v9101
  %v9119 = vmul.f32 %v9048, %v9101
  %v9120 = vmul.f32 %v9049, %v9101
  %v9121 = vmul.f32 %v9050, %v9101
  %v9122 = vmul.f32 %v9051, %v9101
  %v9123 = vmul.f32 %v9052, %v9101
  %v9124 = vmul.f32 %v9053, %v9101
  %v9125 = vmul.f32 %v9054, %v9101
  %v9126 = vmul.f32 %v9055, %v9101
  %v9127 = vmul.f32 %v9056, %v9101
  %v9128 = vmul.f32 %v9057, %v9101
  %v9129 = vmul.f32 %v9058, %v9101
  %v9130 = vmul.f32 %v9059, %v9101
  %v9131 = vmul.f32 %v9060, %v9101
  %v9132 = vmul.f32 %v9061, %v9101
  %v9133 = vmul.f32 %v9062, %v9101
  %v9134 = vmul.f32 %v9063, %v9101
  %v9135 = vmul.f32 %v9064, %v9101
  %v9136 = vmul.f32 %v9065, %v9101
  %v9137 = vmul.f32 %v9066, %v9101
  %v9138 = vmul.f32 %v9067, %v9101
  %v9139 = vmul.f32 %v9068, %v9101
  %v9140 = vmul.f32 %v9069, %v9101
  %v9141 = vmul.f32 %v9070, %v9101
  %v9142 = vmul.f32 %v9071, %v9101
  %v9143 = vmul.f32 %v9072, %v9101
  %v9144 = vmul.f32 %v9073, %v9101
  %v9145 = vmul.f32 %v9074, %v9101
  %v9146 = vmul.f32 %v9075, %v9101
  %v9147 = vmul.f32 %v9076, %v9101
  %v9148 = vmul.f32 %v9077, %v9101
  %v9149 = vmul.f32 %v9078, %v9101
  %v9150 = vmul.f32 %v9079, %v9101
  %v9151 = vmul.f32 %v9080, %v9101
  %v9152 = vmul.f32 %v9081, %v9101
  %v9153 = vmul.f32 %v9082, %v9101
  %v9154 = vmul.f32 %v9083, %v9101
  %v9155 = vmul.f32 %v9084, %v9101
  %v9156 = vmul.f32 %v9085, %v9101
  %v9157 = vmul.f32 %v9086, %v9101
  %v9158 = vmul.f32 %v9087, %v9101
  %v9159 = vmul.f32 %v9088, %v9101
  %v9160 = vmul.f32 %v9089, %v9101
  %v9161 = vmul.f32 %v9090, %v9101
  %v9162 = vmul.f32 %v9091, %v9101
  %v9163 = vmul.f32 %v9092, %v9101
  %v9164 = vmul.f32 %v9093, %v9101
  %v9165 = vmul.f32 %v9094, %v9101
  %v9166 = vmul.f32 %v9095, %v9101
  %v9167 = vld [vmem:[%s6] sm:$0x1]
  %v9169 = vlaneseq
  %v9170 = vshrl.u32 %v9169, 7
  %v9171 = vsub.s32 0, %v9170
  %v9172 = vrot.slane %v9167, %v9171
  %v9174 = vadd.f32 %v9103, %v9172
  %v9175 = vadd.f32 %v9104, %v9172
  %v9176 = vadd.f32 %v9105, %v9172
  %v9177 = vadd.f32 %v9106, %v9172
  %v9178 = vadd.f32 %v9107, %v9172
  %v9179 = vadd.f32 %v9108, %v9172
  %v9180 = vadd.f32 %v9109, %v9172
  %v9181 = vadd.f32 %v9110, %v9172
  %v9182 = vadd.f32 %v9111, %v9172
  %v9183 = vadd.f32 %v9112, %v9172
  %v9184 = vadd.f32 %v9113, %v9172
  %v9185 = vadd.f32 %v9114, %v9172
  %v9186 = vadd.f32 %v9115, %v9172
  %v9187 = vadd.f32 %v9116, %v9172
  %v9188 = vadd.f32 %v9117, %v9172
  %v9189 = vadd.f32 %v9118, %v9172
  %v9190 = vadd.f32 %v9119, %v9172
  %v9191 = vadd.f32 %v9120, %v9172
  %v9192 = vadd.f32 %v9121, %v9172
  %v9193 = vadd.f32 %v9122, %v9172
  %v9194 = vadd.f32 %v9123, %v9172
  %v9195 = vadd.f32 %v9124, %v9172
  %v9196 = vadd.f32 %v9125, %v9172
  %v9197 = vadd.f32 %v9126, %v9172
  %v9198 = vadd.f32 %v9127, %v9172
  %v9199 = vadd.f32 %v9128, %v9172
  %v9200 = vadd.f32 %v9129, %v9172
  %v9201 = vadd.f32 %v9130, %v9172
  %v9202 = vadd.f32 %v9131, %v9172
  %v9203 = vadd.f32 %v9132, %v9172
  %v9204 = vadd.f32 %v9133, %v9172
  %v9205 = vadd.f32 %v9134, %v9172
  %v9206 = vadd.f32 %v9135, %v9172
  %v9207 = vadd.f32 %v9136, %v9172
  %v9208 = vadd.f32 %v9137, %v9172
  %v9209 = vadd.f32 %v9138, %v9172
  %v9210 = vadd.f32 %v9139, %v9172
  %v9211 = vadd.f32 %v9140, %v9172
  %v9212 = vadd.f32 %v9141, %v9172
  %v9213 = vadd.f32 %v9142, %v9172
  %v9214 = vadd.f32 %v9143, %v9172
  %v9215 = vadd.f32 %v9144, %v9172
  %v9216 = vadd.f32 %v9145, %v9172
  %v9217 = vadd.f32 %v9146, %v9172
  %v9218 = vadd.f32 %v9147, %v9172
  %v9219 = vadd.f32 %v9148, %v9172
  %v9220 = vadd.f32 %v9149, %v9172
  %v9221 = vadd.f32 %v9150, %v9172
  %v9222 = vadd.f32 %v9151, %v9172
  %v9223 = vadd.f32 %v9152, %v9172
  %v9224 = vadd.f32 %v9153, %v9172
  %v9225 = vadd.f32 %v9154, %v9172
  %v9226 = vadd.f32 %v9155, %v9172
  %v9227 = vadd.f32 %v9156, %v9172
  %v9228 = vadd.f32 %v9157, %v9172
  %v9229 = vadd.f32 %v9158, %v9172
  %v9230 = vadd.f32 %v9159, %v9172
  %v9231 = vadd.f32 %v9160, %v9172
  %v9232 = vadd.f32 %v9161, %v9172
  %v9233 = vadd.f32 %v9162, %v9172
  %v9234 = vadd.f32 %v9163, %v9172
  %v9235 = vadd.f32 %v9164, %v9172
  %v9236 = vadd.f32 %v9165, %v9172
  %v9237 = vadd.f32 %v9166, %v9172
  %v9238 = vld [vmem:[%s0] sm:$0xff]
  %v9239 = vld [vmem:[%s0 + $0x8] sm:$0xff]
  %v9240 = vld [vmem:[%s0 + $0x10] sm:$0xff]
  %v9241 = vld [vmem:[%s0 + $0x18] sm:$0xff]
  %v9242 = vld [vmem:[%s0 + $0x20] sm:$0xff]
  %v9243 = vld [vmem:[%s0 + $0x28] sm:$0xff]
  %v9244 = vld [vmem:[%s0 + $0x30] sm:$0xff]
  %v9245 = vld [vmem:[%s0 + $0x38] sm:$0xff]
  %v9246 = vld [vmem:[%s0 + $0x40] sm:$0xff]
  %v9247 = vld [vmem:[%s0 + $0x48] sm:$0xff]
  %v9248 = vld [vmem:[%s0 + $0x50] sm:$0xff]
  %v9249 = vld [vmem:[%s0 + $0x58] sm:$0xff]
  %v9250 = vld [vmem:[%s0 + $0x60] sm:$0xff]
  %v9251 = vld [vmem:[%s0 + $0x68] sm:$0xff]
  %v9252 = vld [vmem:[%s0 + $0x70] sm:$0xff]
  %v9253 = vld [vmem:[%s0 + $0x78] sm:$0xff]
  %v9254 = vld [vmem:[%s0 + $0x80] sm:$0xff]
  %v9255 = vld [vmem:[%s0 + $0x88] sm:$0xff]
  %v9256 = vld [vmem:[%s0 + $0x90] sm:$0xff]
  %v9257 = vld [vmem:[%s0 + $0x98] sm:$0xff]
  %v9258 = vld [vmem:[%s0 + $0xa0] sm:$0xff]
  %v9259 = vld [vmem:[%s0 + $0xa8] sm:$0xff]
  %v9260 = vld [vmem:[%s0 + $0xb0] sm:$0xff]
  %v9261 = vld [vmem:[%s0 + $0xb8] sm:$0xff]
  %v9262 = vld [vmem:[%s0 + $0xc0] sm:$0xff]
  %v9263 = vld [vmem:[%s0 + $0xc8] sm:$0xff]
  %v9264 = vld [vmem:[%s0 + $0xd0] sm:$0xff]
  %v9265 = vld [vmem:[%s0 + $0xd8] sm:$0xff]
  %v9266 = vld [vmem:[%s0 + $0xe0] sm:$0xff]
  %v9267 = vld [vmem:[%s0 + $0xe8] sm:$0xff]
  %v9268 = vld [vmem:[%s0 + $0xf0] sm:$0xff]
  %v9269 = vld [vmem:[%s0 + $0xf8] sm:$0xff]
  %v9270 = vld [vmem:[%s0 + $0x100] sm:$0xff]
  %v9271 = vld [vmem:[%s0 + $0x108] sm:$0xff]
  %v9272 = vld [vmem:[%s0 + $0x110] sm:$0xff]
  %v9273 = vld [vmem:[%s0 + $0x118] sm:$0xff]
  %v9274 = vld [vmem:[%s0 + $0x120] sm:$0xff]
  %v9275 = vld [vmem:[%s0 + $0x128] sm:$0xff]
  %v9276 = vld [vmem:[%s0 + $0x130] sm:$0xff]
  %v9277 = vld [vmem:[%s0 + $0x138] sm:$0xff]
  %v9278 = vld [vmem:[%s0 + $0x140] sm:$0xff]
  %v9279 = vld [vmem:[%s0 + $0x148] sm:$0xff]
  %v9280 = vld [vmem:[%s0 + $0x150] sm:$0xff]
  %v9281 = vld [vmem:[%s0 + $0x158] sm:$0xff]
  %v9282 = vld [vmem:[%s0 + $0x160] sm:$0xff]
  %v9283 = vld [vmem:[%s0 + $0x168] sm:$0xff]
  %v9284 = vld [vmem:[%s0 + $0x170] sm:$0xff]
  %v9285 = vld [vmem:[%s0 + $0x178] sm:$0xff]
  %v9286 = vld [vmem:[%s0 + $0x180] sm:$0xff]
  %v9287 = vld [vmem:[%s0 + $0x188] sm:$0xff]
  %v9288 = vld [vmem:[%s0 + $0x190] sm:$0xff]
  %v9289 = vld [vmem:[%s0 + $0x198] sm:$0xff]
  %v9290 = vld [vmem:[%s0 + $0x1a0] sm:$0xff]
  %v9291 = vld [vmem:[%s0 + $0x1a8] sm:$0xff]
  %v9292 = vld [vmem:[%s0 + $0x1b0] sm:$0xff]
  %v9293 = vld [vmem:[%s0 + $0x1b8] sm:$0xff]
  %v9294 = vld [vmem:[%s0 + $0x1c0] sm:$0xff]
  %v9295 = vld [vmem:[%s0 + $0x1c8] sm:$0xff]
  %v9296 = vld [vmem:[%s0 + $0x1d0] sm:$0xff]
  %v9297 = vld [vmem:[%s0 + $0x1d8] sm:$0xff]
  %v9298 = vld [vmem:[%s0 + $0x1e0] sm:$0xff]
  %v9299 = vld [vmem:[%s0 + $0x1e8] sm:$0xff]
  %v9300 = vld [vmem:[%s0 + $0x1f0] sm:$0xff]
  %v9301 = vld [vmem:[%s0 + $0x1f8] sm:$0xff]
  %v9302 = vadd.f32 %v9174, %v9238
  %v9303 = vadd.f32 %v9175, %v9239
  %v9304 = vadd.f32 %v9176, %v9240
  %v9305 = vadd.f32 %v9177, %v9241
  %v9306 = vadd.f32 %v9178, %v9242
  %v9307 = vadd.f32 %v9179, %v9243
  %v9308 = vadd.f32 %v9180, %v9244
  %v9309 = vadd.f32 %v9181, %v9245
  %v9310 = vadd.f32 %v9182, %v9246
  %v9311 = vadd.f32 %v9183, %v9247
  %v9312 = vadd.f32 %v9184, %v9248
  %v9313 = vadd.f32 %v9185, %v9249
  %v9314 = vadd.f32 %v9186, %v9250
  %v9315 = vadd.f32 %v9187, %v9251
  %v9316 = vadd.f32 %v9188, %v9252
  %v9317 = vadd.f32 %v9189, %v9253
  %v9318 = vadd.f32 %v9190, %v9254
  %v9319 = vadd.f32 %v9191, %v9255
  %v9320 = vadd.f32 %v9192, %v9256
  %v9321 = vadd.f32 %v9193, %v9257
  %v9322 = vadd.f32 %v9194, %v9258
  %v9323 = vadd.f32 %v9195, %v9259
  %v9324 = vadd.f32 %v9196, %v9260
  %v9325 = vadd.f32 %v9197, %v9261
  %v9326 = vadd.f32 %v9198, %v9262
  %v9327 = vadd.f32 %v9199, %v9263
  %v9328 = vadd.f32 %v9200, %v9264
  %v9329 = vadd.f32 %v9201, %v9265
  %v9330 = vadd.f32 %v9202, %v9266
  %v9331 = vadd.f32 %v9203, %v9267
  %v9332 = vadd.f32 %v9204, %v9268
  %v9333 = vadd.f32 %v9205, %v9269
  %v9334 = vadd.f32 %v9206, %v9270
  %v9335 = vadd.f32 %v9207, %v9271
  %v9336 = vadd.f32 %v9208, %v9272
  %v9337 = vadd.f32 %v9209, %v9273
  %v9338 = vadd.f32 %v9210, %v9274
  %v9339 = vadd.f32 %v9211, %v9275
  %v9340 = vadd.f32 %v9212, %v9276
  %v9341 = vadd.f32 %v9213, %v9277
  %v9342 = vadd.f32 %v9214, %v9278
  %v9343 = vadd.f32 %v9215, %v9279
  %v9344 = vadd.f32 %v9216, %v9280
  %v9345 = vadd.f32 %v9217, %v9281
  %v9346 = vadd.f32 %v9218, %v9282
  %v9347 = vadd.f32 %v9219, %v9283
  %v9348 = vadd.f32 %v9220, %v9284
  %v9349 = vadd.f32 %v9221, %v9285
  %v9350 = vadd.f32 %v9222, %v9286
  %v9351 = vadd.f32 %v9223, %v9287
  %v9352 = vadd.f32 %v9224, %v9288
  %v9353 = vadd.f32 %v9225, %v9289
  %v9354 = vadd.f32 %v9226, %v9290
  %v9355 = vadd.f32 %v9227, %v9291
  %v9356 = vadd.f32 %v9228, %v9292
  %v9357 = vadd.f32 %v9229, %v9293
  %v9358 = vadd.f32 %v9230, %v9294
  %v9359 = vadd.f32 %v9231, %v9295
  %v9360 = vadd.f32 %v9232, %v9296
  %v9361 = vadd.f32 %v9233, %v9297
  %v9362 = vadd.f32 %v9234, %v9298
  %v9363 = vadd.f32 %v9235, %v9299
  %v9364 = vadd.f32 %v9236, %v9300
  %v9365 = vadd.f32 %v9237, %v9301
  %v9366 = vmax.f32 %v9302, 0.0
  %v9367 = vmax.f32 %v9303, 0.0
  %v9368 = vmax.f32 %v9304, 0.0
  %v9369 = vmax.f32 %v9305, 0.0
  %v9370 = vmax.f32 %v9306, 0.0
  %v9371 = vmax.f32 %v9307, 0.0
  %v9372 = vmax.f32 %v9308, 0.0
  %v9373 = vmax.f32 %v9309, 0.0
  %v9374 = vmax.f32 %v9310, 0.0
  %v9375 = vmax.f32 %v9311, 0.0
  %v9376 = vmax.f32 %v9312, 0.0
  %v9377 = vmax.f32 %v9313, 0.0
  %v9378 = vmax.f32 %v9314, 0.0
  %v9379 = vmax.f32 %v9315, 0.0
  %v9380 = vmax.f32 %v9316, 0.0
  %v9381 = vmax.f32 %v9317, 0.0
  %v9382 = vmax.f32 %v9318, 0.0
  %v9383 = vmax.f32 %v9319, 0.0
  %v9384 = vmax.f32 %v9320, 0.0
  %v9385 = vmax.f32 %v9321, 0.0
  %v9386 = vmax.f32 %v9322, 0.0
  %v9387 = vmax.f32 %v9323, 0.0
  %v9388 = vmax.f32 %v9324, 0.0
  %v9389 = vmax.f32 %v9325, 0.0
  %v9390 = vmax.f32 %v9326, 0.0
  %v9391 = vmax.f32 %v9327, 0.0
  %v9392 = vmax.f32 %v9328, 0.0
  %v9393 = vmax.f32 %v9329, 0.0
  %v9394 = vmax.f32 %v9330, 0.0
  %v9395 = vmax.f32 %v9331, 0.0
  %v9396 = vmax.f32 %v9332, 0.0
  %v9397 = vmax.f32 %v9333, 0.0
  %v9398 = vmax.f32 %v9334, 0.0
  %v9399 = vmax.f32 %v9335, 0.0
  %v9400 = vmax.f32 %v9336, 0.0
  %v9401 = vmax.f32 %v9337, 0.0
  %v9402 = vmax.f32 %v9338, 0.0
  %v9403 = vmax.f32 %v9339, 0.0
  %v9404 = vmax.f32 %v9340, 0.0
  %v9405 = vmax.f32 %v9341, 0.0
  %v9406 = vmax.f32 %v9342, 0.0
  %v9407 = vmax.f32 %v9343, 0.0
  %v9408 = vmax.f32 %v9344, 0.0
  %v9409 = vmax.f32 %v9345, 0.0
  %v9410 = vmax.f32 %v9346, 0.0
  %v9411 = vmax.f32 %v9347, 0.0
  %v9412 = vmax.f32 %v9348, 0.0
  %v9413 = vmax.f32 %v9349, 0.0
  %v9414 = vmax.f32 %v9350, 0.0
  %v9415 = vmax.f32 %v9351, 0.0
  %v9416 = vmax.f32 %v9352, 0.0
  %v9417 = vmax.f32 %v9353, 0.0
  %v9418 = vmax.f32 %v9354, 0.0
  %v9419 = vmax.f32 %v9355, 0.0
  %v9420 = vmax.f32 %v9356, 0.0
  %v9421 = vmax.f32 %v9357, 0.0
  %v9422 = vmax.f32 %v9358, 0.0
  %v9423 = vmax.f32 %v9359, 0.0
  %v9424 = vmax.f32 %v9360, 0.0
  %v9425 = vmax.f32 %v9361, 0.0
  %v9426 = vmax.f32 %v9362, 0.0
  %v9427 = vmax.f32 %v9363, 0.0
  %v9428 = vmax.f32 %v9364, 0.0
  %v9429 = vmax.f32 %v9365, 0.0
  %9430 = vst.msk [vmem:[%s7] sm:$0xff] %vm26, %v9366
  %9431 = vst.msk [vmem:[%s7 + $0x8] sm:$0xff] %vm26, %v9367
  %9432 = vst.msk [vmem:[%s7 + $0x10] sm:$0xff] %vm26, %v9368
  %9433 = vst.msk [vmem:[%s7 + $0x18] sm:$0xff] %vm26, %v9369
  %9434 = vst.msk [vmem:[%s7 + $0x20] sm:$0xff] %vm26, %v9370
  %9435 = vst.msk [vmem:[%s7 + $0x28] sm:$0xff] %vm26, %v9371
  %9436 = vst.msk [vmem:[%s7 + $0x30] sm:$0xff] %vm26, %v9372
  %9437 = vst.msk [vmem:[%s7 + $0x38] sm:$0xff] %vm26, %v9373
  %9438 = vst.msk [vmem:[%s7 + $0x40] sm:$0xff] %vm26, %v9374
  %9439 = vst.msk [vmem:[%s7 + $0x48] sm:$0xff] %vm26, %v9375
  %9440 = vst.msk [vmem:[%s7 + $0x50] sm:$0xff] %vm26, %v9376
  %9441 = vst.msk [vmem:[%s7 + $0x58] sm:$0xff] %vm26, %v9377
  %9442 = vst.msk [vmem:[%s7 + $0x60] sm:$0xff] %vm26, %v9378
  %9443 = vst.msk [vmem:[%s7 + $0x68] sm:$0xff] %vm26, %v9379
  %9444 = vst.msk [vmem:[%s7 + $0x70] sm:$0xff] %vm26, %v9380
  %9445 = vst.msk [vmem:[%s7 + $0x78] sm:$0xff] %vm26, %v9381
  %9446 = vst.msk [vmem:[%s7 + $0x80] sm:$0xff] %vm26, %v9382
  %9447 = vst.msk [vmem:[%s7 + $0x88] sm:$0xff] %vm26, %v9383
  %9448 = vst.msk [vmem:[%s7 + $0x90] sm:$0xff] %vm26, %v9384
  %9449 = vst.msk [vmem:[%s7 + $0x98] sm:$0xff] %vm26, %v9385
  %9450 = vst.msk [vmem:[%s7 + $0xa0] sm:$0xff] %vm26, %v9386
  %9451 = vst.msk [vmem:[%s7 + $0xa8] sm:$0xff] %vm26, %v9387
  %9452 = vst.msk [vmem:[%s7 + $0xb0] sm:$0xff] %vm26, %v9388
  %9453 = vst.msk [vmem:[%s7 + $0xb8] sm:$0xff] %vm26, %v9389
  %9454 = vst.msk [vmem:[%s7 + $0xc0] sm:$0xff] %vm26, %v9390
  %9455 = vst.msk [vmem:[%s7 + $0xc8] sm:$0xff] %vm26, %v9391
  %9456 = vst.msk [vmem:[%s7 + $0xd0] sm:$0xff] %vm26, %v9392
  %9457 = vst.msk [vmem:[%s7 + $0xd8] sm:$0xff] %vm26, %v9393
  %9458 = vst.msk [vmem:[%s7 + $0xe0] sm:$0xff] %vm26, %v9394
  %9459 = vst.msk [vmem:[%s7 + $0xe8] sm:$0xff] %vm26, %v9395
  %9460 = vst.msk [vmem:[%s7 + $0xf0] sm:$0xff] %vm26, %v9396
  %9461 = vst.msk [vmem:[%s7 + $0xf8] sm:$0xff] %vm26, %v9397
  %9462 = vst.msk [vmem:[%s7 + $0x100] sm:$0xff] %vm26, %v9398
  %9463 = vst.msk [vmem:[%s7 + $0x108] sm:$0xff] %vm26, %v9399
  %9464 = vst.msk [vmem:[%s7 + $0x110] sm:$0xff] %vm26, %v9400
  %9465 = vst.msk [vmem:[%s7 + $0x118] sm:$0xff] %vm26, %v9401
  %9466 = vst.msk [vmem:[%s7 + $0x120] sm:$0xff] %vm26, %v9402
  %9467 = vst.msk [vmem:[%s7 + $0x128] sm:$0xff] %vm26, %v9403
  %9468 = vst.msk [vmem:[%s7 + $0x130] sm:$0xff] %vm26, %v9404
  %9469 = vst.msk [vmem:[%s7 + $0x138] sm:$0xff] %vm26, %v9405
  %9470 = vst.msk [vmem:[%s7 + $0x140] sm:$0xff] %vm26, %v9406
  %9471 = vst.msk [vmem:[%s7 + $0x148] sm:$0xff] %vm26, %v9407
  %9472 = vst.msk [vmem:[%s7 + $0x150] sm:$0xff] %vm26, %v9408
  %9473 = vst.msk [vmem:[%s7 + $0x158] sm:$0xff] %vm26, %v9409
  %9474 = vst.msk [vmem:[%s7 + $0x160] sm:$0xff] %vm26, %v9410
  %9475 = vst.msk [vmem:[%s7 + $0x168] sm:$0xff] %vm26, %v9411
  %9476 = vst.msk [vmem:[%s7 + $0x170] sm:$0xff] %vm26, %v9412
  %9477 = vst.msk [vmem:[%s7 + $0x178] sm:$0xff] %vm26, %v9413
  %9478 = vst.msk [vmem:[%s7 + $0x180] sm:$0xff] %vm26, %v9414
  %9479 = vst.msk [vmem:[%s7 + $0x188] sm:$0xff] %vm26, %v9415
  %9480 = vst.msk [vmem:[%s7 + $0x190] sm:$0xff] %vm26, %v9416
  %9481 = vst.msk [vmem:[%s7 + $0x198] sm:$0xff] %vm26, %v9417
  %9482 = vst.msk [vmem:[%s7 + $0x1a0] sm:$0xff] %vm26, %v9418
  %9483 = vst.msk [vmem:[%s7 + $0x1a8] sm:$0xff] %vm26, %v9419
  %9484 = vst.msk [vmem:[%s7 + $0x1b0] sm:$0xff] %vm26, %v9420
  %9485 = vst.msk [vmem:[%s7 + $0x1b8] sm:$0xff] %vm26, %v9421
  %9486 = vst.msk [vmem:[%s7 + $0x1c0] sm:$0xff] %vm26, %v9422
  %9487 = vst.msk [vmem:[%s7 + $0x1c8] sm:$0xff] %vm26, %v9423
  %9488 = vst.msk [vmem:[%s7 + $0x1d0] sm:$0xff] %vm26, %v9424
  %9489 = vst.msk [vmem:[%s7 + $0x1d8] sm:$0xff] %vm26, %v9425
  %9490 = vst.msk [vmem:[%s7 + $0x1e0] sm:$0xff] %vm26, %v9426
  %9491 = vst.msk [vmem:[%s7 + $0x1e8] sm:$0xff] %vm26, %v9427
  %9492 = vst.msk [vmem:[%s7 + $0x1f0] sm:$0xff] %vm26, %v9428
  %9493 = vst.msk [vmem:[%s7 + $0x1f8] sm:$0xff] %vm26, %v9429
  // Predicated region
  $region30: #{basic_block_forward.1} parent=0 // pred_check
    _
  $region31: #{basic_block_forward.1} parent=0 // pred_check_branch
    %9495 = sbr.rel (0) target = $region33
  $region32: #{basic_block_forward.1} parent=0 // pred_region
    _
  $region33: #{basic_block_forward.1} parent=0 // pred_fallthru
    _
  // Predicated region
  $region34: #{basic_block_forward.1} parent=0 // pred_check
    _
  $region35: #{basic_block_forward.1} parent=0 // pred_check_branch
    %9497 = sbr.rel (0) target = $region37
  $region36: #{basic_block_forward.1} parent=0 // pred_region
    _
  $region37: #{basic_block_forward.1} parent=0 // pred_fallthru
    _

</llo_original>
